<compile_context>
chip_gen: v7x
topology: tpu7x:2x2x1
jax: 0.10.0
libtpu: 0.0.40
codegen_flags: <defaults>
</compile_context>

<pallas_src>
import jax
import jax.numpy as jnp
from jax import lax
from jax.experimental import pallas as pl
from jax.experimental.pallas import tpu as pltpu

# ---- module hyper-parameters (from BaselineTrain.__init__) -------------------
FEAT_DIM = 512       # self.feature.final_feat_dim (ResNet10 backbone, flatten=True)
HIDDEN_DIM = 2048    # predictor hidden_dim
OUTPUT_DIM = 512     # predictor output_dim
NUM_CLASS = 16       # num_class (loss_type='softmax' -> nn.Linear classifier)
CLS_PAD = 128        # lane-dense padded classifier width (>= NUM_CLASS, multiple of 128)
IN_CH = 3            # RGB images
BN_EPS = 1e-5        # nn.BatchNorm1d default eps


# ------------------------------------------------------------------------------
# Fused forward kernel:
#   feature stem : global-average-pool(H*W) -> Linear(C -> 512) + bias   -> z
#   predictor    : Linear(512->2048, no bias) -> BatchNorm1d(batch stats)
#                  -> ReLU -> Linear(2048->512) + bias                   -> p
#   classifier   : Linear(512 -> 128 padded, first NUM_CLASS real) + bias -> s
# All weights fit VMEM (w1+w2 = 4 MiB bf16), so a single grid step suffices.
# ------------------------------------------------------------------------------
def _fused_forward_kernel(x_ref, ws_ref, bs_ref,
                          w1_ref, g_ref, be_ref, w2_ref, b2_ref,
                          wc_ref, bc_ref,
                          z_ref, p_ref, s_ref):
    # ---- feature stem: GAP over H*W (lane reduction), then small f32 matmul ----
    pooled = jnp.mean(x_ref[...], axis=-1)                                 # (B, C) f32
    z = (jnp.dot(pooled, ws_ref[...], preferred_element_type=jnp.float32)
         + bs_ref[...])                                                    # (B, 512) f32
    z_ref[...] = z
    zb = z.astype(jnp.bfloat16)                                            # MXU input

    # ---- predictor: Linear(no bias) -> BN1d (training-mode batch stats) -> ReLU -> Linear
    h = jnp.dot(zb, w1_ref[...], preferred_element_type=jnp.float32)       # (B, 2048) f32
    mu = jnp.mean(h, axis=0, keepdims=True)
    var = jnp.mean(jnp.square(h - mu), axis=0, keepdims=True)              # biased var
    hn = (h - mu) * lax.rsqrt(var + BN_EPS) * g_ref[...] + be_ref[...]
    hr = jnp.maximum(hn, 0.0)                                              # ReLU
    p_ref[...] = (jnp.dot(hr.astype(jnp.bfloat16), w2_ref[...],
                          preferred_element_type=jnp.float32) + b2_ref[...])

    # ---- classifier on the un-augmented features (== z under identity aug) ----
    s_ref[...] = (jnp.dot(zb, wc_ref[...], preferred_element_type=jnp.float32)
                  + bc_ref[...])                                           # (B, 128) f32


def baseline_train_forward(params, x):
    B, C, H, W = x.shape
    x_flat = x.reshape(B, C, H * W).astype(jnp.float32)

    z, p, s_pad = pl.pallas_call(
        _fused_forward_kernel,
        out_shape=(
            jax.ShapeDtypeStruct((B, FEAT_DIM), jnp.float32),
            jax.ShapeDtypeStruct((B, OUTPUT_DIM), jnp.float32),
            jax.ShapeDtypeStruct((B, CLS_PAD), jnp.float32),
        ),
        grid=(1,),
        in_specs=[
            pl.BlockSpec((B, C, H * W), lambda i: (0, 0, 0)),
            pl.BlockSpec((C, FEAT_DIM), lambda i: (0, 0)),
            pl.BlockSpec((1, FEAT_DIM), lambda i: (0, 0)),
            pl.BlockSpec((FEAT_DIM, HIDDEN_DIM), lambda i: (0, 0)),
            pl.BlockSpec((1, HIDDEN_DIM), lambda i: (0, 0)),
            pl.BlockSpec((1, HIDDEN_DIM), lambda i: (0, 0)),
            pl.BlockSpec((HIDDEN_DIM, OUTPUT_DIM), lambda i: (0, 0)),
            pl.BlockSpec((1, OUTPUT_DIM), lambda i: (0, 0)),
            pl.BlockSpec((FEAT_DIM, CLS_PAD), lambda i: (0, 0)),
            pl.BlockSpec((1, CLS_PAD), lambda i: (0, 0)),
        ],
        out_specs=(
            pl.BlockSpec((B, FEAT_DIM), lambda i: (0, 0)),
            pl.BlockSpec((B, OUTPUT_DIM), lambda i: (0, 0)),
            pl.BlockSpec((B, CLS_PAD), lambda i: (0, 0)),
        ),
        compiler_params=pltpu.CompilerParams(dimension_semantics=("arbitrary",)),
    )(
        x_flat,
        params["w_stem"],
        params["b_stem"].reshape(1, FEAT_DIM),
        params["w1"],
        params["bn_gamma"].reshape(1, HIDDEN_DIM),
        params["bn_beta"].reshape(1, HIDDEN_DIM),
        params["w2"],
        params["b2"].reshape(1, OUTPUT_DIM),
        params["w_cls_pad"],
        params["b_cls_pad"].reshape(1, CLS_PAD),
    )

    scores = s_pad[:, :NUM_CLASS]
    # TODO(synk): torchvision random augmentations (RandomResizedCrop / ColorJitter /
    # GaussianBlur ...) have no Pallas equivalent; identity augmentation is used, so the
    # two SimSiam views collapse (z1 == z2 == out, p1 == p2) and are CSE'd to one pass.
    return scores, z, z, p, p


def init_params(key):
    ks = jax.random.split(key, 4)
    p = {}
    # TODO(synk): backbone_rot.ResNet(SimpleBlock, [1,1,1,1], [64,128,256,512]) (plus the
    # rotm head) is defined outside this module; replaced with a deterministic GAP+linear
    # stand-in with the same output feature dimension (512).
    p["w_stem"] = 0.05 * jax.random.normal(ks[0], (IN_CH, FEAT_DIM), jnp.float32)
    p["b_stem"] = jnp.zeros((FEAT_DIM,), jnp.float32)
    # classifier: nn.Linear(final_feat_dim, num_class); bias filled with 0 in __init__.
    # Padded to a lane-dense 128-wide output; extra columns are zero and sliced off.
    w_cls = 0.05 * jax.random.normal(ks[1], (FEAT_DIM, NUM_CLASS), jnp.float32)
    p["w_cls_pad"] = jnp.pad(w_cls, ((0, 0), (0, CLS_PAD - NUM_CLASS))).astype(jnp.bfloat16)
    p["b_cls_pad"] = jnp.zeros((CLS_PAD,), jnp.float32)
    # predictor: Linear(512, 2048, bias=False) -> BN1d(2048) -> ReLU -> Linear(2048, 512)
    p["w1"] = (0.02 * jax.random.normal(ks[2], (FEAT_DIM, HIDDEN_DIM), jnp.float32)
               ).astype(jnp.bfloat16)
    p["bn_gamma"] = jnp.ones((HIDDEN_DIM,), jnp.float32)
    p["bn_beta"] = jnp.zeros((HIDDEN_DIM,), jnp.float32)
    p["w2"] = (0.02 * jax.random.normal(ks[3], (HIDDEN_DIM, OUTPUT_DIM), jnp.float32)
               ).astype(jnp.bfloat16)
    p["b2"] = jnp.zeros((OUTPUT_DIM,), jnp.float32)
    # TODO(synk): BatchNorm1d running_mean / running_var are not tracked (training-mode
    # batch statistics only), matching the training forward but not eval mode.
    return p


if __name__ == "__main__":
    key = jax.random.PRNGKey(0)
    pkey, xkey = jax.random.split(key)
    params = init_params(pkey)
    x = jax.random.normal(xkey, (2, IN_CH, 16, 16), jnp.float32)  # NCHW, like PyTorch

    fwd = jax.jit(baseline_train_forward)
    scores, z1, z2, p1, p2 = fwd(params, x)
    jax.block_until_ready((scores, z1, z2, p1, p2))

    assert scores.shape == (2, NUM_CLASS)
    assert z1.shape == (2, FEAT_DIM) and z2.shape == (2, FEAT_DIM)
    assert p1.shape == (2, OUTPUT_DIM) and p2.shape == (2, OUTPUT_DIM)
    print("KERNEL_OK")
</pallas_src>

<mosaic_0001>
module attributes {stable_mosaic.version = 11 : i64} {
  func.func @_fused_forward_kernel(%arg0: i32, %arg1: memref<2x3x256xf32, #tpu.memory_space<vmem>>, %arg2: memref<3x512xf32, #tpu.memory_space<vmem>>, %arg3: memref<1x512xf32, #tpu.memory_space<vmem>>, %arg4: memref<512x2048xbf16, #tpu.memory_space<vmem>>, %arg5: memref<1x2048xf32, #tpu.memory_space<vmem>>, %arg6: memref<1x2048xf32, #tpu.memory_space<vmem>>, %arg7: memref<2048x512xbf16, #tpu.memory_space<vmem>>, %arg8: memref<1x512xf32, #tpu.memory_space<vmem>>, %arg9: memref<512x128xbf16, #tpu.memory_space<vmem>>, %arg10: memref<1x128xf32, #tpu.memory_space<vmem>>, %arg11: memref<2x512xf32, #tpu.memory_space<vmem>>, %arg12: memref<2x512xf32, #tpu.memory_space<vmem>>, %arg13: memref<2x128xf32, #tpu.memory_space<vmem>>) attributes {dimension_semantics = [#tpu.dimension_semantics<arbitrary>], iteration_bounds = array<i64: 1>, scalar_prefetch = 0 : i64, scratch_operands = 0 : i64, tpu.core_type = #tpu.core_type<tc>, window_params = [{pipeline_mode = #tpu.pipeline_mode<synchronous>, transform_indices = @transform_0, window_bounds = array<i64: 2, 3, 256>}, {pipeline_mode = #tpu.pipeline_mode<synchronous>, transform_indices = @transform_1, window_bounds = array<i64: 3, 512>}, {pipeline_mode = #tpu.pipeline_mode<synchronous>, transform_indices = @transform_2, window_bounds = array<i64: 1, 512>}, {pipeline_mode = #tpu.pipeline_mode<synchronous>, transform_indices = @transform_3, window_bounds = array<i64: 512, 2048>}, {pipeline_mode = #tpu.pipeline_mode<synchronous>, transform_indices = @transform_4, window_bounds = array<i64: 1, 2048>}, {pipeline_mode = #tpu.pipeline_mode<synchronous>, transform_indices = @transform_5, window_bounds = array<i64: 1, 2048>}, {pipeline_mode = #tpu.pipeline_mode<synchronous>, transform_indices = @transform_6, window_bounds = array<i64: 2048, 512>}, {pipeline_mode = #tpu.pipeline_mode<synchronous>, transform_indices = @transform_7, window_bounds = array<i64: 1, 512>}, {pipeline_mode = #tpu.pipeline_mode<synchronous>, transform_indices = @transform_8, window_bounds = array<i64: 512, 128>}, {pipeline_mode = #tpu.pipeline_mode<synchronous>, transform_indices = @transform_9, window_bounds = array<i64: 1, 128>}, {pipeline_mode = #tpu.pipeline_mode<synchronous>, transform_indices = @transform_10, window_bounds = array<i64: 2, 512>}, {pipeline_mode = #tpu.pipeline_mode<synchronous>, transform_indices = @transform_11, window_bounds = array<i64: 2, 512>}, {pipeline_mode = #tpu.pipeline_mode<synchronous>, transform_indices = @transform_12, window_bounds = array<i64: 2, 128>}]} {
    %c0 = arith.constant 0 : index
    %c0_0 = arith.constant 0 : index
    %c0_1 = arith.constant 0 : index
    %0 = vector.load %arg1[%c0, %c0_0, %c0_1] : memref<2x3x256xf32, #tpu.memory_space<vmem>>, vector<2x3x256xf32>
    %cst = arith.constant dense<0.000000e+00> : vector<2x3xf32>
    %1 = vector.multi_reduction <add>, %0, %cst [2] : vector<2x3x256xf32> to vector<2x3xf32>
    %cst_2 = arith.constant 2.560000e+02 : f32
    %2 = vector.broadcast %cst_2 : f32 to vector<2x3xf32>
    %3 = arith.divf %1, %2 : vector<2x3xf32>
    %c0_3 = arith.constant 0 : index
    %c0_4 = arith.constant 0 : index
    %4 = vector.load %arg2[%c0_3, %c0_4] : memref<3x512xf32, #tpu.memory_space<vmem>>, vector<3x512xf32>
    %cst_5 = arith.constant dense<0.000000e+00> : vector<2x512xf32>
    %5 = tpu.matmul %3, %4, %cst_5 {dimension_numbers = #tpu.dot_dimension_numbers<[1], [0], [0], [1], [0, 0, 1, 1], [], []>} : vector<2x3xf32>, vector<3x512xf32>, vector<2x512xf32> -> vector<2x512xf32>
    %c0_6 = arith.constant 0 : index
    %c0_7 = arith.constant 0 : index
    %6 = vector.load %arg3[%c0_6, %c0_7] : memref<1x512xf32, #tpu.memory_space<vmem>>, vector<1x512xf32>
    %7 = vector.broadcast %6 : vector<1x512xf32> to vector<2x512xf32>
    %8 = arith.addf %5, %7 : vector<2x512xf32>
    %c0_8 = arith.constant 0 : index
    %c0_9 = arith.constant 0 : index
    %9 = vector.load %arg11[%c0_8, %c0_9] : memref<2x512xf32, #tpu.memory_space<vmem>>, vector<2x512xf32>
    tpu.vector_store %arg11[%c0_8, %c0_9], %8 {strides = array<i32>} : memref<2x512xf32, #tpu.memory_space<vmem>>, vector<2x512xf32>,
    %10 = arith.truncf %8 : vector<2x512xf32> to vector<2x512xbf16>
    %c0_10 = arith.constant 0 : index
    %c0_11 = arith.constant 0 : index
    %11 = vector.load %arg4[%c0_10, %c0_11] : memref<512x2048xbf16, #tpu.memory_space<vmem>>, vector<512x2048xbf16>
    %cst_12 = arith.constant dense<0.000000e+00> : vector<2x2048xf32>
    %12 = tpu.matmul %10, %11, %cst_12 {dimension_numbers = #tpu.dot_dimension_numbers<[1], [0], [0], [1], [0, 0, 1, 1], [], []>} : vector<2x512xbf16>, vector<512x2048xbf16>, vector<2x2048xf32> -> vector<2x2048xf32>
    %cst_13 = arith.constant dense<0.000000e+00> : vector<2048xf32>
    %13 = vector.multi_reduction <add>, %12, %cst_13 [0] : vector<2x2048xf32> to vector<2048xf32>
    %14 = vector.shape_cast %13 : vector<2048xf32> to vector<1x2048xf32>
    %cst_14 = arith.constant 2.000000e+00 : f32
    %15 = vector.broadcast %cst_14 : f32 to vector<1x2048xf32>
    %16 = arith.divf %14, %15 : vector<1x2048xf32>
    %17 = vector.broadcast %16 : vector<1x2048xf32> to vector<2x2048xf32>
    %18 = arith.subf %12, %17 : vector<2x2048xf32>
    %19 = arith.mulf %18, %18 : vector<2x2048xf32>
    %cst_15 = arith.constant dense<0.000000e+00> : vector<2048xf32>
    %20 = vector.multi_reduction <add>, %19, %cst_15 [0] : vector<2x2048xf32> to vector<2048xf32>
    %21 = vector.shape_cast %20 : vector<2048xf32> to vector<1x2048xf32>
    %cst_16 = arith.constant 2.000000e+00 : f32
    %22 = vector.broadcast %cst_16 : f32 to vector<1x2048xf32>
    %23 = arith.divf %21, %22 : vector<1x2048xf32>
    %24 = vector.broadcast %16 : vector<1x2048xf32> to vector<2x2048xf32>
    %25 = arith.subf %12, %24 : vector<2x2048xf32>
    %cst_17 = arith.constant 9.99999974E-6 : f32
    %26 = vector.broadcast %cst_17 : f32 to vector<1x2048xf32>
    %27 = arith.addf %23, %26 : vector<1x2048xf32>
    %28 = math.rsqrt %27 : vector<1x2048xf32>
    %29 = vector.broadcast %28 : vector<1x2048xf32> to vector<2x2048xf32>
    %30 = arith.mulf %25, %29 : vector<2x2048xf32>
    %c0_18 = arith.constant 0 : index
    %c0_19 = arith.constant 0 : index
    %31 = vector.load %arg5[%c0_18, %c0_19] : memref<1x2048xf32, #tpu.memory_space<vmem>>, vector<1x2048xf32>
    %32 = vector.broadcast %31 : vector<1x2048xf32> to vector<2x2048xf32>
    %33 = arith.mulf %30, %32 : vector<2x2048xf32>
    %c0_20 = arith.constant 0 : index
    %c0_21 = arith.constant 0 : index
    %34 = vector.load %arg6[%c0_20, %c0_21] : memref<1x2048xf32, #tpu.memory_space<vmem>>, vector<1x2048xf32>
    %35 = vector.broadcast %34 : vector<1x2048xf32> to vector<2x2048xf32>
    %36 = arith.addf %33, %35 : vector<2x2048xf32>
    %cst_22 = arith.constant 0.000000e+00 : f32
    %37 = vector.broadcast %cst_22 : f32 to vector<2x2048xf32>
    %38 = arith.maximumf %36, %37 : vector<2x2048xf32>
    %39 = arith.truncf %38 : vector<2x2048xf32> to vector<2x2048xbf16>
    %c0_23 = arith.constant 0 : index
    %c0_24 = arith.constant 0 : index
    %40 = vector.load %arg7[%c0_23, %c0_24] : memref<2048x512xbf16, #tpu.memory_space<vmem>>, vector<2048x512xbf16>
    %cst_25 = arith.constant dense<0.000000e+00> : vector<2x512xf32>
    %41 = tpu.matmul %39, %40, %cst_25 {dimension_numbers = #tpu.dot_dimension_numbers<[1], [0], [0], [1], [0, 0, 1, 1], [], []>} : vector<2x2048xbf16>, vector<2048x512xbf16>, vector<2x512xf32> -> vector<2x512xf32>
    %c0_26 = arith.constant 0 : index
    %c0_27 = arith.constant 0 : index
    %42 = vector.load %arg8[%c0_26, %c0_27] : memref<1x512xf32, #tpu.memory_space<vmem>>, vector<1x512xf32>
    %43 = vector.broadcast %42 : vector<1x512xf32> to vector<2x512xf32>
    %44 = arith.addf %41, %43 : vector<2x512xf32>
    %c0_28 = arith.constant 0 : index
    %c0_29 = arith.constant 0 : index
    %45 = vector.load %arg12[%c0_28, %c0_29] : memref<2x512xf32, #tpu.memory_space<vmem>>, vector<2x512xf32>
    tpu.vector_store %arg12[%c0_28, %c0_29], %44 {strides = array<i32>} : memref<2x512xf32, #tpu.memory_space<vmem>>, vector<2x512xf32>,
    %c0_30 = arith.constant 0 : index
    %c0_31 = arith.constant 0 : index
    %46 = vector.load %arg9[%c0_30, %c0_31] : memref<512x128xbf16, #tpu.memory_space<vmem>>, vector<512x128xbf16>
    %cst_32 = arith.constant dense<0.000000e+00> : vector<2x128xf32>
    %47 = tpu.matmul %10, %46, %cst_32 {dimension_numbers = #tpu.dot_dimension_numbers<[1], [0], [0], [1], [0, 0, 1, 1], [], []>} : vector<2x512xbf16>, vector<512x128xbf16>, vector<2x128xf32> -> vector<2x128xf32>
    %c0_33 = arith.constant 0 : index
    %c0_34 = arith.constant 0 : index
    %48 = vector.load %arg10[%c0_33, %c0_34] : memref<1x128xf32, #tpu.memory_space<vmem>>, vector<1x128xf32>
    %49 = vector.broadcast %48 : vector<1x128xf32> to vector<2x128xf32>
    %50 = arith.addf %47, %49 : vector<2x128xf32>
    %c0_35 = arith.constant 0 : index
    %c0_36 = arith.constant 0 : index
    %51 = vector.load %arg13[%c0_35, %c0_36] : memref<2x128xf32, #tpu.memory_space<vmem>>, vector<2x128xf32>
    tpu.vector_store %arg13[%c0_35, %c0_36], %50 {strides = array<i32>} : memref<2x128xf32, #tpu.memory_space<vmem>>, vector<2x128xf32>,
    return
  }
  func.func @transform_0(%arg0: i32) -> (i32, i32, i32) {
    %c0_i32 = arith.constant 0 : i32
    %c0_i32_0 = arith.constant 0 : i32
    %c0_i32_1 = arith.constant 0 : i32
    %c0_i32_2 = arith.constant 0 : i32
    return %c0_i32, %c0_i32_0, %c0_i32_1 : i32, i32, i32
  }
  func.func @transform_1(%arg0: i32) -> (i32, i32) {
    %c0_i32 = arith.constant 0 : i32
    %c0_i32_0 = arith.constant 0 : i32
    %c0_i32_1 = arith.constant 0 : i32
    return %c0_i32, %c0_i32_0 : i32, i32
  }
  func.func @transform_2(%arg0: i32) -> (i32, i32) {
    %c0_i32 = arith.constant 0 : i32
    %c0_i32_0 = arith.constant 0 : i32
    %c0_i32_1 = arith.constant 0 : i32
    return %c0_i32, %c0_i32_0 : i32, i32
  }
  func.func @transform_3(%arg0: i32) -> (i32, i32) {
    %c0_i32 = arith.constant 0 : i32
    %c0_i32_0 = arith.constant 0 : i32
    %c0_i32_1 = arith.constant 0 : i32
    return %c0_i32, %c0_i32_0 : i32, i32
  }
  func.func @transform_4(%arg0: i32) -> (i32, i32) {
    %c0_i32 = arith.constant 0 : i32
    %c0_i32_0 = arith.constant 0 : i32
    %c0_i32_1 = arith.constant 0 : i32
    return %c0_i32, %c0_i32_0 : i32, i32
  }
  func.func @transform_5(%arg0: i32) -> (i32, i32) {
    %c0_i32 = arith.constant 0 : i32
    %c0_i32_0 = arith.constant 0 : i32
    %c0_i32_1 = arith.constant 0 : i32
    return %c0_i32, %c0_i32_0 : i32, i32
  }
  func.func @transform_6(%arg0: i32) -> (i32, i32) {
    %c0_i32 = arith.constant 0 : i32
    %c0_i32_0 = arith.constant 0 : i32
    %c0_i32_1 = arith.constant 0 : i32
    return %c0_i32, %c0_i32_0 : i32, i32
  }
  func.func @transform_7(%arg0: i32) -> (i32, i32) {
    %c0_i32 = arith.constant 0 : i32
    %c0_i32_0 = arith.constant 0 : i32
    %c0_i32_1 = arith.constant 0 : i32
    return %c0_i32, %c0_i32_0 : i32, i32
  }
  func.func @transform_8(%arg0: i32) -> (i32, i32) {
    %c0_i32 = arith.constant 0 : i32
    %c0_i32_0 = arith.constant 0 : i32
    %c0_i32_1 = arith.constant 0 : i32
    return %c0_i32, %c0_i32_0 : i32, i32
  }
  func.func @transform_9(%arg0: i32) -> (i32, i32) {
    %c0_i32 = arith.constant 0 : i32
    %c0_i32_0 = arith.constant 0 : i32
    %c0_i32_1 = arith.constant 0 : i32
    return %c0_i32, %c0_i32_0 : i32, i32
  }
  func.func @transform_10(%arg0: i32) -> (i32, i32) {
    %c0_i32 = arith.constant 0 : i32
    %c0_i32_0 = arith.constant 0 : i32
    %c0_i32_1 = arith.constant 0 : i32
    return %c0_i32, %c0_i32_0 : i32, i32
  }
  func.func @transform_11(%arg0: i32) -> (i32, i32) {
    %c0_i32 = arith.constant 0 : i32
    %c0_i32_0 = arith.constant 0 : i32
    %c0_i32_1 = arith.constant 0 : i32
    return %c0_i32, %c0_i32_0 : i32, i32
  }
  func.func @transform_12(%arg0: i32) -> (i32, i32) {
    %c0_i32 = arith.constant 0 : i32
    %c0_i32_0 = arith.constant 0 : i32
    %c0_i32_1 = arith.constant 0 : i32
    return %c0_i32, %c0_i32_0 : i32, i32
  }
}

</mosaic_0001>

<llo_original>
// kernel: baseline_train_forward.1
$region0: #{baseline_train_forward.1}
  #allocation0 [shape = 'u32[]', space=smem, size = 0x4, offset = 0x4, fixed_abs, tag = 'smem constant byte address 0x4 - core index']
  #allocation1 [shape = 'u32[144,128]{1,0:T(1,128)}', space=vmem, size = 0x12000, scoped, tag = 'internal scratch']
  %s0 = inlined_call_operand.vmem [shape: f32[2,3,256], index: 0, kind: input, shape index: {}]
  %s1 = inlined_call_operand.hbm [shape: f32[3,512], index: 1, kind: input, shape index: {}]
  %s2 = inlined_call_operand.hbm [shape: f32[1,512], index: 2, kind: input, shape index: {}]
  %s3 = inlined_call_operand.hbm [shape: bf16[512,2048], index: 3, kind: input, shape index: {}]
  %s4 = inlined_call_operand.hbm [shape: f32[1,2048], index: 4, kind: input, shape index: {}]
  %s5 = inlined_call_operand.hbm [shape: f32[1,2048], index: 5, kind: input, shape index: {}]
  %s6 = inlined_call_operand.hbm [shape: bf16[2048,512], index: 6, kind: input, shape index: {}]
  %s7 = inlined_call_operand.hbm [shape: f32[1,512], index: 7, kind: input, shape index: {}]
  %s8 = inlined_call_operand.hbm [shape: bf16[512,128], index: 8, kind: input, shape index: {}]
  %s9 = inlined_call_operand.hbm [shape: f32[1,128], index: 9, kind: input, shape index: {}]
  %s10 = inlined_call_operand.vmem [shape: f32[2,512], index: 10, kind: output, shape index: {0}]
  %s11 = inlined_call_operand.vmem [shape: f32[2,512], index: 11, kind: output, shape index: {1}]
  %s12 = inlined_call_operand.hbm [shape: f32[2,128], index: 12, kind: output, shape index: {2}]
  %13 = xla_tuple %s10, %s11, %s12
  %s14 = sld [smem:[#allocation0]]
  $region102: #{baseline_train_forward.1} parent=0
    _
  %s16 = ssub.s32 1, %s14
  %s17 = scalar_select 0, %s16, %s14
  $region1: #{baseline_train_forward.1} parent=0
    #allocation2 [shape = 'u8[8192]{0}', space=vmem, size = 0x2000, scoped, tag = 'input window, operand 1, single buffered']
    #allocation3 [shape = 's32[1]{0}', space=sflag, size = 0x4, scoped, tag = 'scoped memory for baseline_train_forward.1']
    #allocation4 [shape = 's32[1]{0}', space=sflag, size = 0x4, scoped, tag = 'scoped memory for baseline_train_forward.1']
    #allocation5 [shape = 'u8[2048]{0}', space=vmem, size = 0x800, scoped, tag = 'input window, operand 2, single buffered']
    #allocation6 [shape = 's32[1]{0}', space=sflag, size = 0x4, scoped, tag = 'scoped memory for baseline_train_forward.1']
    #allocation7 [shape = 'u8[2097152]{0}', space=vmem, size = 0x200000, scoped, tag = 'input window, operand 3, single buffered']
    #allocation8 [shape = 'u8[8192]{0}', space=vmem, size = 0x2000, scoped, tag = 'input window, operand 4, single buffered']
    #allocation9 [shape = 's32[1]{0}', space=sflag, size = 0x4, scoped, tag = 'scoped memory for baseline_train_forward.1']
    #allocation10 [shape = 'u8[8192]{0}', space=vmem, size = 0x2000, scoped, tag = 'input window, operand 5, single buffered']
    #allocation11 [shape = 'u8[2097152]{0}', space=vmem, size = 0x200000, scoped, tag = 'input window, operand 6, single buffered']
    #allocation12 [shape = 's32[1]{0}', space=sflag, size = 0x4, scoped, tag = 'scoped memory for baseline_train_forward.1']
    #allocation13 [shape = 'u8[2048]{0}', space=vmem, size = 0x800, scoped, tag = 'input window, operand 7, single buffered']
    #allocation14 [shape = 'u8[131072]{0}', space=vmem, size = 0x20000, scoped, tag = 'input window, operand 8, single buffered']
    #allocation15 [shape = 's32[1]{0}', space=sflag, size = 0x4, scoped, tag = 'scoped memory for baseline_train_forward.1']
    #allocation16 [shape = 'u8[512]{0}', space=vmem, size = 0x400, scoped, tag = 'input window, operand 9, single buffered']
    #allocation17 [shape = 'u8[1024]{0}', space=vmem, size = 0x400, scoped, tag = 'output window, operand 2, single buffered']
    %18 = vsyncpa [#allocation3], 0
    %19 = vsyncpa [#allocation6], 0
    %20 = vsyncpa [#allocation9], 0
    %21 = vsyncpa [#allocation12], 0
    %22 = vsyncpa [#allocation15], 0
    %23 = vsyncpa [#allocation4], 0
    // Predicated region
    $region2: #{baseline_train_forward.1} parent=1 // pred_check
      _
    $region3: #{baseline_train_forward.1} parent=1 // pred_check_branch
      %25 = sbr.rel (0) target = $region5
    $region4: #{baseline_train_forward.1} parent=1 // pred_region
      _
    $region5: #{baseline_train_forward.1} parent=1 // pred_fallthru
      _
    // Predicated region
    $region6: #{baseline_train_forward.1} parent=1 // pred_check
      _
    $region7: #{baseline_train_forward.1} parent=1 // pred_check_branch
      %27 = sbr.rel (0) target = $region9
    $region8: #{baseline_train_forward.1} parent=1 // pred_region
      %s29 = ssub.s32 256, 256
      %30 = vsyncadd [#allocation3], %s29
      %s32 = sshll.u32 [#allocation2], 4
      %s33 = int_to_ptr.vmem [resolvable:$true] %s32
      %35 = dma.hbm_to_vmem [thread:$0]  %s1, 256, %s33, [#allocation3]
    $region9: #{baseline_train_forward.1} parent=1 // pred_fallthru
      _
    // Predicated region
    $region10: #{baseline_train_forward.1} parent=1 // pred_check
      _
    $region11: #{baseline_train_forward.1} parent=1 // pred_check_branch
      %37 = sbr.rel (0) target = $region13
    $region12: #{baseline_train_forward.1} parent=1 // pred_region
      %s39 = ssub.s32 64, 64
      %40 = vsyncadd [#allocation6], %s39
      %s42 = sshll.u32 [#allocation5], 4
      %s43 = int_to_ptr.vmem [resolvable:$true] %s42
      %45 = dma.hbm_to_vmem [thread:$0]  %s2, 64, %s43, [#allocation6]
    $region13: #{baseline_train_forward.1} parent=1 // pred_fallthru
      _
    // Predicated region
    $region14: #{baseline_train_forward.1} parent=1 // pred_check
      _
    $region15: #{baseline_train_forward.1} parent=1 // pred_check_branch
      %47 = sbr.rel (0) target = $region17
    $region16: #{baseline_train_forward.1} parent=1 // pred_region
      %s49 = ssub.s32 65536, 65536
      %50 = vsyncadd [#allocation6], %s49
      %s51 = sshll.u32 [#allocation7], 4
      %s52 = int_to_ptr.vmem [resolvable:$true] %s51
      %57 = dma.hbm_to_vmem [thread:$0]  %s3, 65536, %s52, [#allocation6], 1024, 1024, 64
    $region17: #{baseline_train_forward.1} parent=1 // pred_fallthru
      _
    // Predicated region
    $region18: #{baseline_train_forward.1} parent=1 // pred_check
      _
    $region19: #{baseline_train_forward.1} parent=1 // pred_check_branch
      %59 = sbr.rel (0) target = $region21
    $region20: #{baseline_train_forward.1} parent=1 // pred_region
      %s61 = ssub.s32 256, 256
      %62 = vsyncadd [#allocation9], %s61
      %s64 = sshll.u32 [#allocation8], 4
      %s65 = int_to_ptr.vmem [resolvable:$true] %s64
      %67 = dma.hbm_to_vmem [thread:$0]  %s4, 256, %s65, [#allocation9]
    $region21: #{baseline_train_forward.1} parent=1 // pred_fallthru
      _
    // Predicated region
    $region22: #{baseline_train_forward.1} parent=1 // pred_check
      _
    $region23: #{baseline_train_forward.1} parent=1 // pred_check_branch
      %69 = sbr.rel (0) target = $region25
    $region24: #{baseline_train_forward.1} parent=1 // pred_region
      %s71 = ssub.s32 256, 256
      %72 = vsyncadd [#allocation9], %s71
      %s74 = sshll.u32 [#allocation10], 4
      %s75 = int_to_ptr.vmem [resolvable:$true] %s74
      %77 = dma.hbm_to_vmem [thread:$0]  %s5, 256, %s75, [#allocation9]
    $region25: #{baseline_train_forward.1} parent=1 // pred_fallthru
      _
    // Predicated region
    $region26: #{baseline_train_forward.1} parent=1 // pred_check
      _
    $region27: #{baseline_train_forward.1} parent=1 // pred_check_branch
      %79 = sbr.rel (0) target = $region29
    $region28: #{baseline_train_forward.1} parent=1 // pred_region
      %s81 = ssub.s32 65536, 65536
      %82 = vsyncadd [#allocation12], %s81
      %s83 = sshll.u32 [#allocation11], 4
      %s84 = int_to_ptr.vmem [resolvable:$true] %s83
      %89 = dma.hbm_to_vmem [thread:$0]  %s6, 65536, %s84, [#allocation12], 256, 256, 16
    $region29: #{baseline_train_forward.1} parent=1 // pred_fallthru
      _
    // Predicated region
    $region30: #{baseline_train_forward.1} parent=1 // pred_check
      _
    $region31: #{baseline_train_forward.1} parent=1 // pred_check_branch
      %91 = sbr.rel (0) target = $region33
    $region32: #{baseline_train_forward.1} parent=1 // pred_region
      %s93 = ssub.s32 64, 64
      %94 = vsyncadd [#allocation12], %s93
      %s96 = sshll.u32 [#allocation13], 4
      %s97 = int_to_ptr.vmem [resolvable:$true] %s96
      %99 = dma.hbm_to_vmem [thread:$0]  %s7, 64, %s97, [#allocation12]
    $region33: #{baseline_train_forward.1} parent=1 // pred_fallthru
      _
    // Predicated region
    $region34: #{baseline_train_forward.1} parent=1 // pred_check
      _
    $region35: #{baseline_train_forward.1} parent=1 // pred_check_branch
      %101 = sbr.rel (0) target = $region37
    $region36: #{baseline_train_forward.1} parent=1 // pred_region
      %s103 = ssub.s32 4096, 4096
      %104 = vsyncadd [#allocation15], %s103
      %s105 = sshll.u32 [#allocation14], 4
      %s106 = int_to_ptr.vmem [resolvable:$true] %s105
      %111 = dma.hbm_to_vmem [thread:$0]  %s8, 4096, %s106, [#allocation15], 64, 64, 4
    $region37: #{baseline_train_forward.1} parent=1 // pred_fallthru
      _
    // Predicated region
    $region38: #{baseline_train_forward.1} parent=1 // pred_check
      _
    $region39: #{baseline_train_forward.1} parent=1 // pred_check_branch
      %113 = sbr.rel (0) target = $region41
    $region40: #{baseline_train_forward.1} parent=1 // pred_region
      %s115 = ssub.s32 16, 16
      %116 = vsyncadd [#allocation15], %s115
      %s118 = sshll.u32 [#allocation16], 4
      %s119 = int_to_ptr.vmem [resolvable:$true] %s118
      %121 = dma.hbm_to_vmem [thread:$0]  %s9, 16, %s119, [#allocation15]
    $region41: #{baseline_train_forward.1} parent=1 // pred_fallthru
      _
    // Predicated region
    $region42: #{baseline_train_forward.1} parent=1 // pred_check
      _
    $region43: #{baseline_train_forward.1} parent=1 // pred_check_branch
      %123 = sbr.rel (0) target = $region45
    $region44: #{baseline_train_forward.1} parent=1 // pred_region
      %124 = dma.done [#allocation3], 256
    $region45: #{baseline_train_forward.1} parent=1 // pred_fallthru
      _
    // Predicated region
    $region46: #{baseline_train_forward.1} parent=1 // pred_check
      _
    $region47: #{baseline_train_forward.1} parent=1 // pred_check_branch
      %126 = sbr.rel (0) target = $region49
    $region48: #{baseline_train_forward.1} parent=1 // pred_region
      %127 = dma.done [#allocation6], 64
    $region49: #{baseline_train_forward.1} parent=1 // pred_fallthru
      _
    // Predicated region
    $region50: #{baseline_train_forward.1} parent=1 // pred_check
      _
    $region51: #{baseline_train_forward.1} parent=1 // pred_check_branch
      %129 = sbr.rel (0) target = $region53
    $region52: #{baseline_train_forward.1} parent=1 // pred_region
      %130 = dma.done [#allocation6], 65536
    $region53: #{baseline_train_forward.1} parent=1 // pred_fallthru
      _
    // Predicated region
    $region54: #{baseline_train_forward.1} parent=1 // pred_check
      _
    $region55: #{baseline_train_forward.1} parent=1 // pred_check_branch
      %132 = sbr.rel (0) target = $region57
    $region56: #{baseline_train_forward.1} parent=1 // pred_region
      %133 = dma.done [#allocation9], 256
    $region57: #{baseline_train_forward.1} parent=1 // pred_fallthru
      _
    // Predicated region
    $region58: #{baseline_train_forward.1} parent=1 // pred_check
      _
    $region59: #{baseline_train_forward.1} parent=1 // pred_check_branch
      %135 = sbr.rel (0) target = $region61
    $region60: #{baseline_train_forward.1} parent=1 // pred_region
      %136 = dma.done [#allocation9], 256
    $region61: #{baseline_train_forward.1} parent=1 // pred_fallthru
      _
    // Predicated region
    $region62: #{baseline_train_forward.1} parent=1 // pred_check
      _
    $region63: #{baseline_train_forward.1} parent=1 // pred_check_branch
      %138 = sbr.rel (0) target = $region65
    $region64: #{baseline_train_forward.1} parent=1 // pred_region
      %139 = dma.done [#allocation12], 65536
    $region65: #{baseline_train_forward.1} parent=1 // pred_fallthru
      _
    // Predicated region
    $region66: #{baseline_train_forward.1} parent=1 // pred_check
      _
    $region67: #{baseline_train_forward.1} parent=1 // pred_check_branch
      %141 = sbr.rel (0) target = $region69
    $region68: #{baseline_train_forward.1} parent=1 // pred_region
      %142 = dma.done [#allocation12], 64
    $region69: #{baseline_train_forward.1} parent=1 // pred_fallthru
      _
    // Predicated region
    $region70: #{baseline_train_forward.1} parent=1 // pred_check
      _
    $region71: #{baseline_train_forward.1} parent=1 // pred_check_branch
      %144 = sbr.rel (0) target = $region73
    $region72: #{baseline_train_forward.1} parent=1 // pred_region
      %145 = dma.done [#allocation15], 4096
    $region73: #{baseline_train_forward.1} parent=1 // pred_fallthru
      _
    // Predicated region
    $region74: #{baseline_train_forward.1} parent=1 // pred_check
      _
    $region75: #{baseline_train_forward.1} parent=1 // pred_check_branch
      %147 = sbr.rel (0) target = $region77
    $region76: #{baseline_train_forward.1} parent=1 // pred_region
      %148 = dma.done [#allocation15], 16
    $region77: #{baseline_train_forward.1} parent=1 // pred_fallthru
      _
    %v150 = vld [vmem:[%s0] sm:$0x77]
    %v151 = vld [vmem:[%s0 + $0x8] sm:$0x77]
    %v154 = vcombine.high %v150, %v150
    %v155 = vcombine.high %v151, %v151
    %vm158 = vcmask 1042432
    %v159 = vsel %vm158, %v150, 0.0
    %v160 = vsel %vm158, %v154, 0.0
    %v161 = vadd.f32 %v159, %v160
    %162 = vadd.xlane.f32.xlu0 %v161
    %v163 = vpop.xlane.xlu0 %162
    %v164 = vsel %vm158, %v151, 0.0
    %v165 = vsel %vm158, %v155, 0.0
    %v166 = vadd.f32 %v164, %v165
    %167 = vadd.xlane.f32.xlu0 %v166
    %v168 = vpop.xlane.xlu0 %167
    %v169 = vrcp.pop 256.0
    %v170 = vmul.f32 %v163, %v169
    %v171 = vmul.f32 %v168, %v169
    %v172 = vld [vmem:[#allocation2] sm:$0x77]
    %v173 = vld [vmem:[#allocation2 + $0x8] sm:$0x77]
    %v174 = vld [vmem:[#allocation5] sm:$0xf]
    %v176 = vlaneseq
    %v177 = vshrl.u32 %v176, 7
    %v178 = vsub.s32 0, %v177
    %v179 = vrot.slane %v174, %v178
    %v180 = vlaneseq
    %v181 = vshrl.u32 %v180, 7
    %v182 = vsub.s32 1, %v181
    %v183 = vrot.slane %v174, %v182
    %v184 = vlaneseq
    %v185 = vshrl.u32 %v184, 7
    %v186 = vsub.s32 2, %v185
    %v187 = vrot.slane %v174, %v186
    %v188 = vlaneseq
    %v189 = vshrl.u32 %v188, 7
    %v190 = vsub.s32 3, %v189
    %v191 = vrot.slane %v174, %v190
    %v198 = vlaneseq
    %v199 = vand.u32 %v198, 127
    %v200 = vlaneseq
    %v201 = vshrl.u32 %v200, 7
    %v202 = vsub.s32 %v199, %v201
    %v203 = vrot.slane %v170, %v202
    %v204 = vlaneseq
    %v205 = vshrl.u32 %v204, 7
    %v206 = vsub.s32 %v199, %v205
    %v207 = vrot.slane %v171, %v206
    %vm208 = vcmask 1041409
    %v209 = vsel %vm208, %v207, %v203
    %v212 = vcombine.high %v172, %v172
    %v213 = vcombine.high %v173, %v173
    %vm214 = vcmask 23552
    %v215 = vsel %vm214, %v209, 0
    %v217 = vsel %vm158, %v172, 0
    %v219 = vsel %vm158, %v212, 0
    %v221 = vsel %vm158, %v173, 0
    %v223 = vsel %vm158, %v213, 0
    %225 = vmatprep.subr.mxu0 %v219
    %226 = vmatpush1.msra.mxu0 %v217
    %227 = vmatprep.subr.mxu0 0.0
    %228 = vmatpush1.msra.mxu0 0.0
    %229 = vmatprep.subr.mxu0 0.0
    %230 = vmatpush1.msra.mxu0 0.0
    %231 = vmatprep.subr.mxu0 0.0
    %232 = vmatpush1.msra.mxu0 0.0
    %233 = vmatprep.subr.mxu0 0.0
    %234 = vmatpush1.msra.mxu0 0.0
    %235 = vmatprep.subr.mxu0 0.0
    %236 = vmatpush1.msra.mxu0 0.0
    %237 = vmatprep.subr.mxu0 0.0
    %238 = vmatpush1.msra.mxu0 0.0
    %239 = vmatprep.subr.mxu0 0.0
    %240 = vmatpush1.msra.mxu0 0.0
    %241 = vmatprep.subr.mxu0 0.0
    %242 = vmatpush1.msra.mxu0 0.0
    %243 = vmatprep.subr.mxu0 0.0
    %244 = vmatpush1.msra.mxu0 0.0
    %245 = vmatprep.subr.mxu0 0.0
    %246 = vmatpush1.msra.mxu0 0.0
    %247 = vmatprep.subr.mxu0 0.0
    %248 = vmatpush1.msra.mxu0 0.0
    %249 = vmatprep.subr.mxu0 0.0
    %250 = vmatpush1.msra.mxu0 0.0
    %251 = vmatprep.subr.mxu0 0.0
    %252 = vmatpush1.msra.mxu0 0.0
    %253 = vmatprep.subr.mxu0 0.0
    %254 = vmatpush1.msra.mxu0 0.0
    %255 = vmatprep.subr.mxu0 0.0
    %256 = vmatpush1.msra.mxu0 0.0
    %257 = vmatprep.subr.mxu0 0.0
    %258 = vmatpush1.msra.mxu0 0.0
    %259 = vmatprep.subr.mxu0 0.0
    %260 = vmatpush1.msra.mxu0 0.0
    %261 = vmatprep.subr.mxu0 0.0
    %262 = vmatpush1.msra.mxu0 0.0
    %263 = vmatprep.subr.mxu0 0.0
    %264 = vmatpush1.msra.mxu0 0.0
    %265 = vmatprep.subr.mxu0 0.0
    %266 = vmatpush1.msra.mxu0 0.0
    %267 = vmatprep.subr.mxu0 0.0
    %268 = vmatpush1.msra.mxu0 0.0
    %269 = vmatprep.subr.mxu0 0.0
    %270 = vmatpush1.msra.mxu0 0.0
    %271 = vmatprep.subr.mxu0 0.0
    %272 = vmatpush1.msra.mxu0 0.0
    %273 = vmatprep.subr.mxu0 0.0
    %274 = vmatpush1.msra.mxu0 0.0
    %275 = vmatprep.subr.mxu0 0.0
    %276 = vmatpush1.msra.mxu0 0.0
    %277 = vmatprep.subr.mxu0 0.0
    %278 = vmatpush1.msra.mxu0 0.0
    %279 = vmatprep.subr.mxu0 0.0
    %280 = vmatpush1.msra.mxu0 0.0
    %281 = vmatprep.subr.mxu0 0.0
    %282 = vmatpush1.msra.mxu0 0.0
    %283 = vmatprep.subr.mxu0 0.0
    %284 = vmatpush1.msra.mxu0 0.0
    %285 = vmatprep.subr.mxu0 0.0
    %286 = vmatpush1.msra.mxu0 0.0
    %287 = vmatprep.subr.mxu0 0.0
    %288 = vmatpush1.msra.mxu0 0.0
    %289 = vmatprep.mubr.f32.mxu0 0.0
    %290 = vmatmul.mubr.f32.gmra.mrb[0].mxu0 %v215
    %v291 = vpop.f32.mrb[0].mxu0
    %v292 = vadd.f32 %v179, %v291
    %v293 = vpop.f32.mrb[0].mxu0
    %v294 = vadd.f32 %v183, %v293
    %295 = vdwg.mxu0
    %296 = vmatprep.subr.mxu0 %v223
    %297 = vmatpush1.msra.mxu0 %v221
    %298 = vmatprep.subr.mxu0 0.0
    %299 = vmatpush1.msra.mxu0 0.0
    %300 = vmatprep.subr.mxu0 0.0
    %301 = vmatpush1.msra.mxu0 0.0
    %302 = vmatprep.subr.mxu0 0.0
    %303 = vmatpush1.msra.mxu0 0.0
    %304 = vmatprep.subr.mxu0 0.0
    %305 = vmatpush1.msra.mxu0 0.0
    %306 = vmatprep.subr.mxu0 0.0
    %307 = vmatpush1.msra.mxu0 0.0
    %308 = vmatprep.subr.mxu0 0.0
    %309 = vmatpush1.msra.mxu0 0.0
    %310 = vmatprep.subr.mxu0 0.0
    %311 = vmatpush1.msra.mxu0 0.0
    %312 = vmatprep.subr.mxu0 0.0
    %313 = vmatpush1.msra.mxu0 0.0
    %314 = vmatprep.subr.mxu0 0.0
    %315 = vmatpush1.msra.mxu0 0.0
    %316 = vmatprep.subr.mxu0 0.0
    %317 = vmatpush1.msra.mxu0 0.0
    %318 = vmatprep.subr.mxu0 0.0
    %319 = vmatpush1.msra.mxu0 0.0
    %320 = vmatprep.subr.mxu0 0.0
    %321 = vmatpush1.msra.mxu0 0.0
    %322 = vmatprep.subr.mxu0 0.0
    %323 = vmatpush1.msra.mxu0 0.0
    %324 = vmatprep.subr.mxu0 0.0
    %325 = vmatpush1.msra.mxu0 0.0
    %326 = vmatprep.subr.mxu0 0.0
    %327 = vmatpush1.msra.mxu0 0.0
    %328 = vmatprep.subr.mxu0 0.0
    %329 = vmatpush1.msra.mxu0 0.0
    %330 = vmatprep.subr.mxu0 0.0
    %331 = vmatpush1.msra.mxu0 0.0
    %332 = vmatprep.subr.mxu0 0.0
    %333 = vmatpush1.msra.mxu0 0.0
    %334 = vmatprep.subr.mxu0 0.0
    %335 = vmatpush1.msra.mxu0 0.0
    %336 = vmatprep.subr.mxu0 0.0
    %337 = vmatpush1.msra.mxu0 0.0
    %338 = vmatprep.subr.mxu0 0.0
    %339 = vmatpush1.msra.mxu0 0.0
    %340 = vmatprep.subr.mxu0 0.0
    %341 = vmatpush1.msra.mxu0 0.0
    %342 = vmatprep.subr.mxu0 0.0
    %343 = vmatpush1.msra.mxu0 0.0
    %344 = vmatprep.subr.mxu0 0.0
    %345 = vmatpush1.msra.mxu0 0.0
    %346 = vmatprep.subr.mxu0 0.0
    %347 = vmatpush1.msra.mxu0 0.0
    %348 = vmatprep.subr.mxu0 0.0
    %349 = vmatpush1.msra.mxu0 0.0
    %350 = vmatprep.subr.mxu0 0.0
    %351 = vmatpush1.msra.mxu0 0.0
    %352 = vmatprep.subr.mxu0 0.0
    %353 = vmatpush1.msra.mxu0 0.0
    %354 = vmatprep.subr.mxu0 0.0
    %355 = vmatpush1.msra.mxu0 0.0
    %356 = vmatprep.subr.mxu0 0.0
    %357 = vmatpush1.msra.mxu0 0.0
    %358 = vmatprep.subr.mxu0 0.0
    %359 = vmatpush1.msra.mxu0 0.0
    %360 = vmatprep.mubr.f32.mxu0 0.0
    %361 = vmatmul.mubr.f32.gmra.mrb[0].mxu0 %v215
    %v362 = vpop.f32.mrb[0].mxu0
    %v363 = vadd.f32 %v187, %v362
    %v364 = vpop.f32.mrb[0].mxu0
    %v365 = vadd.f32 %v191, %v364
    %366 = vdwg.mxu0
    %v371 = vcombine.low %v292, %v294
    %v372 = vcombine.low %v363, %v365
    %v374 = vunpack.c.l.s4 1983009808
    %v375 = vunpack.c.0.s8 %v374
    %v376 = vlaneseq
    %v377 = vshrl.u32 %v376, 7
    %v378 = vsub.s32 %v375, %v377
    %v379 = vrot.slane %v371, %v378
    %v381 = vunpack.c.l.s4 1983009808
    %v382 = vunpack.c.0.s8 %v381
    %v383 = vlaneseq
    %v384 = vshrl.u32 %v383, 7
    %v385 = vsub.s32 %v382, %v384
    %v386 = vrot.slane %v372, %v385
    %v387 = vcombine.low %v379, %v386
    %389 = vst [vmem:[%s10] sm:$0xff] %v387
    %v390 = vpack.c.bf16 %v292, %v292
    %v391 = vpack.c.bf16 %v294, %v294
    %v392 = vpack.c.bf16 %v363, %v363
    %v393 = vpack.c.bf16 %v365, %v365
    %v394 = vld [vmem:[#allocation7] sm:$0xff]
    %v395 = vld [vmem:[#allocation7 + $0x8] sm:$0xff]
    %v396 = vld [vmem:[#allocation7 + $0x10] sm:$0xff]
    %v397 = vld [vmem:[#allocation7 + $0x18] sm:$0xff]
    %v398 = vld [vmem:[#allocation7 + $0x20] sm:$0xff]
    %v399 = vld [vmem:[#allocation7 + $0x28] sm:$0xff]
    %v400 = vld [vmem:[#allocation7 + $0x30] sm:$0xff]
    %v401 = vld [vmem:[#allocation7 + $0x38] sm:$0xff]
    %v402 = vld [vmem:[#allocation7 + $0x40] sm:$0xff]
    %v403 = vld [vmem:[#allocation7 + $0x48] sm:$0xff]
    %v404 = vld [vmem:[#allocation7 + $0x50] sm:$0xff]
    %v405 = vld [vmem:[#allocation7 + $0x58] sm:$0xff]
    %v406 = vld [vmem:[#allocation7 + $0x60] sm:$0xff]
    %v407 = vld [vmem:[#allocation7 + $0x68] sm:$0xff]
    %v408 = vld [vmem:[#allocation7 + $0x70] sm:$0xff]
    %v409 = vld [vmem:[#allocation7 + $0x78] sm:$0xff]
    %v410 = vld [vmem:[#allocation7 + $0x80] sm:$0xff]
    %v411 = vld [vmem:[#allocation7 + $0x88] sm:$0xff]
    %v412 = vld [vmem:[#allocation7 + $0x90] sm:$0xff]
    %v413 = vld [vmem:[#allocation7 + $0x98] sm:$0xff]
    %v414 = vld [vmem:[#allocation7 + $0xa0] sm:$0xff]
    %v415 = vld [vmem:[#allocation7 + $0xa8] sm:$0xff]
    %v416 = vld [vmem:[#allocation7 + $0xb0] sm:$0xff]
    %v417 = vld [vmem:[#allocation7 + $0xb8] sm:$0xff]
    %v418 = vld [vmem:[#allocation7 + $0xc0] sm:$0xff]
    %v419 = vld [vmem:[#allocation7 + $0xc8] sm:$0xff]
    %v420 = vld [vmem:[#allocation7 + $0xd0] sm:$0xff]
    %v421 = vld [vmem:[#allocation7 + $0xd8] sm:$0xff]
    %v422 = vld [vmem:[#allocation7 + $0xe0] sm:$0xff]
    %v423 = vld [vmem:[#allocation7 + $0xe8] sm:$0xff]
    %v424 = vld [vmem:[#allocation7 + $0xf0] sm:$0xff]
    %v425 = vld [vmem:[#allocation7 + $0xf8] sm:$0xff]
    %v426 = vld [vmem:[#allocation7 + $0x100] sm:$0xff]
    %v427 = vld [vmem:[#allocation7 + $0x108] sm:$0xff]
    %v428 = vld [vmem:[#allocation7 + $0x110] sm:$0xff]
    %v429 = vld [vmem:[#allocation7 + $0x118] sm:$0xff]
    %v430 = vld [vmem:[#allocation7 + $0x120] sm:$0xff]
    %v431 = vld [vmem:[#allocation7 + $0x128] sm:$0xff]
    %v432 = vld [vmem:[#allocation7 + $0x130] sm:$0xff]
    %v433 = vld [vmem:[#allocation7 + $0x138] sm:$0xff]
    %v434 = vld [vmem:[#allocation7 + $0x140] sm:$0xff]
    %v435 = vld [vmem:[#allocation7 + $0x148] sm:$0xff]
    %v436 = vld [vmem:[#allocation7 + $0x150] sm:$0xff]
    %v437 = vld [vmem:[#allocation7 + $0x158] sm:$0xff]
    %v438 = vld [vmem:[#allocation7 + $0x160] sm:$0xff]
    %v439 = vld [vmem:[#allocation7 + $0x168] sm:$0xff]
    %v440 = vld [vmem:[#allocation7 + $0x170] sm:$0xff]
    %v441 = vld [vmem:[#allocation7 + $0x178] sm:$0xff]
    %v442 = vld [vmem:[#allocation7 + $0x180] sm:$0xff]
    %v443 = vld [vmem:[#allocation7 + $0x188] sm:$0xff]
    %v444 = vld [vmem:[#allocation7 + $0x190] sm:$0xff]
    %v445 = vld [vmem:[#allocation7 + $0x198] sm:$0xff]
    %v446 = vld [vmem:[#allocation7 + $0x1a0] sm:$0xff]
    %v447 = vld [vmem:[#allocation7 + $0x1a8] sm:$0xff]
    %v448 = vld [vmem:[#allocation7 + $0x1b0] sm:$0xff]
    %v449 = vld [vmem:[#allocation7 + $0x1b8] sm:$0xff]
    %v450 = vld [vmem:[#allocation7 + $0x1c0] sm:$0xff]
    %v451 = vld [vmem:[#allocation7 + $0x1c8] sm:$0xff]
    %v452 = vld [vmem:[#allocation7 + $0x1d0] sm:$0xff]
    %v453 = vld [vmem:[#allocation7 + $0x1d8] sm:$0xff]
    %v454 = vld [vmem:[#allocation7 + $0x1e0] sm:$0xff]
    %v455 = vld [vmem:[#allocation7 + $0x1e8] sm:$0xff]
    %v456 = vld [vmem:[#allocation7 + $0x1f0] sm:$0xff]
    %v457 = vld [vmem:[#allocation7 + $0x1f8] sm:$0xff]
    %v458 = vld [vmem:[#allocation7 + $0x200] sm:$0xff]
    %v459 = vld [vmem:[#allocation7 + $0x208] sm:$0xff]
    %v460 = vld [vmem:[#allocation7 + $0x210] sm:$0xff]
    %v461 = vld [vmem:[#allocation7 + $0x218] sm:$0xff]
    %v462 = vld [vmem:[#allocation7 + $0x220] sm:$0xff]
    %v463 = vld [vmem:[#allocation7 + $0x228] sm:$0xff]
    %v464 = vld [vmem:[#allocation7 + $0x230] sm:$0xff]
    %v465 = vld [vmem:[#allocation7 + $0x238] sm:$0xff]
    %v466 = vld [vmem:[#allocation7 + $0x240] sm:$0xff]
    %v467 = vld [vmem:[#allocation7 + $0x248] sm:$0xff]
    %v468 = vld [vmem:[#allocation7 + $0x250] sm:$0xff]
    %v469 = vld [vmem:[#allocation7 + $0x258] sm:$0xff]
    %v470 = vld [vmem:[#allocation7 + $0x260] sm:$0xff]
    %v471 = vld [vmem:[#allocation7 + $0x268] sm:$0xff]
    %v472 = vld [vmem:[#allocation7 + $0x270] sm:$0xff]
    %v473 = vld [vmem:[#allocation7 + $0x278] sm:$0xff]
    %v474 = vld [vmem:[#allocation7 + $0x280] sm:$0xff]
    %v475 = vld [vmem:[#allocation7 + $0x288] sm:$0xff]
    %v476 = vld [vmem:[#allocation7 + $0x290] sm:$0xff]
    %v477 = vld [vmem:[#allocation7 + $0x298] sm:$0xff]
    %v478 = vld [vmem:[#allocation7 + $0x2a0] sm:$0xff]
    %v479 = vld [vmem:[#allocation7 + $0x2a8] sm:$0xff]
    %v480 = vld [vmem:[#allocation7 + $0x2b0] sm:$0xff]
    %v481 = vld [vmem:[#allocation7 + $0x2b8] sm:$0xff]
    %v482 = vld [vmem:[#allocation7 + $0x2c0] sm:$0xff]
    %v483 = vld [vmem:[#allocation7 + $0x2c8] sm:$0xff]
    %v484 = vld [vmem:[#allocation7 + $0x2d0] sm:$0xff]
    %v485 = vld [vmem:[#allocation7 + $0x2d8] sm:$0xff]
    %v486 = vld [vmem:[#allocation7 + $0x2e0] sm:$0xff]
    %v487 = vld [vmem:[#allocation7 + $0x2e8] sm:$0xff]
    %v488 = vld [vmem:[#allocation7 + $0x2f0] sm:$0xff]
    %v489 = vld [vmem:[#allocation7 + $0x2f8] sm:$0xff]
    %v490 = vld [vmem:[#allocation7 + $0x300] sm:$0xff]
    %v491 = vld [vmem:[#allocation7 + $0x308] sm:$0xff]
    %v492 = vld [vmem:[#allocation7 + $0x310] sm:$0xff]
    %v493 = vld [vmem:[#allocation7 + $0x318] sm:$0xff]
    %v494 = vld [vmem:[#allocation7 + $0x320] sm:$0xff]
    %v495 = vld [vmem:[#allocation7 + $0x328] sm:$0xff]
    %v496 = vld [vmem:[#allocation7 + $0x330] sm:$0xff]
    %v497 = vld [vmem:[#allocation7 + $0x338] sm:$0xff]
    %v498 = vld [vmem:[#allocation7 + $0x340] sm:$0xff]
    %v499 = vld [vmem:[#allocation7 + $0x348] sm:$0xff]
    %v500 = vld [vmem:[#allocation7 + $0x350] sm:$0xff]
    %v501 = vld [vmem:[#allocation7 + $0x358] sm:$0xff]
    %v502 = vld [vmem:[#allocation7 + $0x360] sm:$0xff]
    %v503 = vld [vmem:[#allocation7 + $0x368] sm:$0xff]
    %v504 = vld [vmem:[#allocation7 + $0x370] sm:$0xff]
    %v505 = vld [vmem:[#allocation7 + $0x378] sm:$0xff]
    %v506 = vld [vmem:[#allocation7 + $0x380] sm:$0xff]
    %v507 = vld [vmem:[#allocation7 + $0x388] sm:$0xff]
    %v508 = vld [vmem:[#allocation7 + $0x390] sm:$0xff]
    %v509 = vld [vmem:[#allocation7 + $0x398] sm:$0xff]
    %v510 = vld [vmem:[#allocation7 + $0x3a0] sm:$0xff]
    %v511 = vld [vmem:[#allocation7 + $0x3a8] sm:$0xff]
    %v512 = vld [vmem:[#allocation7 + $0x3b0] sm:$0xff]
    %v513 = vld [vmem:[#allocation7 + $0x3b8] sm:$0xff]
    %v514 = vld [vmem:[#allocation7 + $0x3c0] sm:$0xff]
    %v515 = vld [vmem:[#allocation7 + $0x3c8] sm:$0xff]
    %v516 = vld [vmem:[#allocation7 + $0x3d0] sm:$0xff]
    %v517 = vld [vmem:[#allocation7 + $0x3d8] sm:$0xff]
    %v518 = vld [vmem:[#allocation7 + $0x3e0] sm:$0xff]
    %v519 = vld [vmem:[#allocation7 + $0x3e8] sm:$0xff]
    %v520 = vld [vmem:[#allocation7 + $0x3f0] sm:$0xff]
    %v521 = vld [vmem:[#allocation7 + $0x3f8] sm:$0xff]
    %v522 = vld [vmem:[#allocation7 + $0x400] sm:$0xff]
    %v523 = vld [vmem:[#allocation7 + $0x408] sm:$0xff]
    %v524 = vld [vmem:[#allocation7 + $0x410] sm:$0xff]
    %v525 = vld [vmem:[#allocation7 + $0x418] sm:$0xff]
    %v526 = vld [vmem:[#allocation7 + $0x420] sm:$0xff]
    %v527 = vld [vmem:[#allocation7 + $0x428] sm:$0xff]
    %v528 = vld [vmem:[#allocation7 + $0x430] sm:$0xff]
    %v529 = vld [vmem:[#allocation7 + $0x438] sm:$0xff]
    %v530 = vld [vmem:[#allocation7 + $0x440] sm:$0xff]
    %v531 = vld [vmem:[#allocation7 + $0x448] sm:$0xff]
    %v532 = vld [vmem:[#allocation7 + $0x450] sm:$0xff]
    %v533 = vld [vmem:[#allocation7 + $0x458] sm:$0xff]
    %v534 = vld [vmem:[#allocation7 + $0x460] sm:$0xff]
    %v535 = vld [vmem:[#allocation7 + $0x468] sm:$0xff]
    %v536 = vld [vmem:[#allocation7 + $0x470] sm:$0xff]
    %v537 = vld [vmem:[#allocation7 + $0x478] sm:$0xff]
    %v538 = vld [vmem:[#allocation7 + $0x480] sm:$0xff]
    %v539 = vld [vmem:[#allocation7 + $0x488] sm:$0xff]
    %v540 = vld [vmem:[#allocation7 + $0x490] sm:$0xff]
    %v541 = vld [vmem:[#allocation7 + $0x498] sm:$0xff]
    %v542 = vld [vmem:[#allocation7 + $0x4a0] sm:$0xff]
    %v543 = vld [vmem:[#allocation7 + $0x4a8] sm:$0xff]
    %v544 = vld [vmem:[#allocation7 + $0x4b0] sm:$0xff]
    %v545 = vld [vmem:[#allocation7 + $0x4b8] sm:$0xff]
    %v546 = vld [vmem:[#allocation7 + $0x4c0] sm:$0xff]
    %v547 = vld [vmem:[#allocation7 + $0x4c8] sm:$0xff]
    %v548 = vld [vmem:[#allocation7 + $0x4d0] sm:$0xff]
    %v549 = vld [vmem:[#allocation7 + $0x4d8] sm:$0xff]
    %v550 = vld [vmem:[#allocation7 + $0x4e0] sm:$0xff]
    %v551 = vld [vmem:[#allocation7 + $0x4e8] sm:$0xff]
    %v552 = vld [vmem:[#allocation7 + $0x4f0] sm:$0xff]
    %v553 = vld [vmem:[#allocation7 + $0x4f8] sm:$0xff]
    %v554 = vld [vmem:[#allocation7 + $0x500] sm:$0xff]
    %v555 = vld [vmem:[#allocation7 + $0x508] sm:$0xff]
    %v556 = vld [vmem:[#allocation7 + $0x510] sm:$0xff]
    %v557 = vld [vmem:[#allocation7 + $0x518] sm:$0xff]
    %v558 = vld [vmem:[#allocation7 + $0x520] sm:$0xff]
    %v559 = vld [vmem:[#allocation7 + $0x528] sm:$0xff]
    %v560 = vld [vmem:[#allocation7 + $0x530] sm:$0xff]
    %v561 = vld [vmem:[#allocation7 + $0x538] sm:$0xff]
    %v562 = vld [vmem:[#allocation7 + $0x540] sm:$0xff]
    %v563 = vld [vmem:[#allocation7 + $0x548] sm:$0xff]
    %v564 = vld [vmem:[#allocation7 + $0x550] sm:$0xff]
    %v565 = vld [vmem:[#allocation7 + $0x558] sm:$0xff]
    %v566 = vld [vmem:[#allocation7 + $0x560] sm:$0xff]
    %v567 = vld [vmem:[#allocation7 + $0x568] sm:$0xff]
    %v568 = vld [vmem:[#allocation7 + $0x570] sm:$0xff]
    %v569 = vld [vmem:[#allocation7 + $0x578] sm:$0xff]
    %v570 = vld [vmem:[#allocation7 + $0x580] sm:$0xff]
    %v571 = vld [vmem:[#allocation7 + $0x588] sm:$0xff]
    %v572 = vld [vmem:[#allocation7 + $0x590] sm:$0xff]
    %v573 = vld [vmem:[#allocation7 + $0x598] sm:$0xff]
    %v574 = vld [vmem:[#allocation7 + $0x5a0] sm:$0xff]
    %v575 = vld [vmem:[#allocation7 + $0x5a8] sm:$0xff]
    %v576 = vld [vmem:[#allocation7 + $0x5b0] sm:$0xff]
    %v577 = vld [vmem:[#allocation7 + $0x5b8] sm:$0xff]
    %v578 = vld [vmem:[#allocation7 + $0x5c0] sm:$0xff]
    %v579 = vld [vmem:[#allocation7 + $0x5c8] sm:$0xff]
    %v580 = vld [vmem:[#allocation7 + $0x5d0] sm:$0xff]
    %v581 = vld [vmem:[#allocation7 + $0x5d8] sm:$0xff]
    %v582 = vld [vmem:[#allocation7 + $0x5e0] sm:$0xff]
    %v583 = vld [vmem:[#allocation7 + $0x5e8] sm:$0xff]
    %v584 = vld [vmem:[#allocation7 + $0x5f0] sm:$0xff]
    %v585 = vld [vmem:[#allocation7 + $0x5f8] sm:$0xff]
    %v586 = vld [vmem:[#allocation7 + $0x600] sm:$0xff]
    %v587 = vld [vmem:[#allocation7 + $0x608] sm:$0xff]
    %v588 = vld [vmem:[#allocation7 + $0x610] sm:$0xff]
    %v589 = vld [vmem:[#allocation7 + $0x618] sm:$0xff]
    %v590 = vld [vmem:[#allocation7 + $0x620] sm:$0xff]
    %v591 = vld [vmem:[#allocation7 + $0x628] sm:$0xff]
    %v592 = vld [vmem:[#allocation7 + $0x630] sm:$0xff]
    %v593 = vld [vmem:[#allocation7 + $0x638] sm:$0xff]
    %v594 = vld [vmem:[#allocation7 + $0x640] sm:$0xff]
    %v595 = vld [vmem:[#allocation7 + $0x648] sm:$0xff]
    %v596 = vld [vmem:[#allocation7 + $0x650] sm:$0xff]
    %v597 = vld [vmem:[#allocation7 + $0x658] sm:$0xff]
    %v598 = vld [vmem:[#allocation7 + $0x660] sm:$0xff]
    %v599 = vld [vmem:[#allocation7 + $0x668] sm:$0xff]
    %v600 = vld [vmem:[#allocation7 + $0x670] sm:$0xff]
    %v601 = vld [vmem:[#allocation7 + $0x678] sm:$0xff]
    %v602 = vld [vmem:[#allocation7 + $0x680] sm:$0xff]
    %v603 = vld [vmem:[#allocation7 + $0x688] sm:$0xff]
    %v604 = vld [vmem:[#allocation7 + $0x690] sm:$0xff]
    %v605 = vld [vmem:[#allocation7 + $0x698] sm:$0xff]
    %v606 = vld [vmem:[#allocation7 + $0x6a0] sm:$0xff]
    %v607 = vld [vmem:[#allocation7 + $0x6a8] sm:$0xff]
    %v608 = vld [vmem:[#allocation7 + $0x6b0] sm:$0xff]
    %v609 = vld [vmem:[#allocation7 + $0x6b8] sm:$0xff]
    %v610 = vld [vmem:[#allocation7 + $0x6c0] sm:$0xff]
    %v611 = vld [vmem:[#allocation7 + $0x6c8] sm:$0xff]
    %v612 = vld [vmem:[#allocation7 + $0x6d0] sm:$0xff]
    %v613 = vld [vmem:[#allocation7 + $0x6d8] sm:$0xff]
    %v614 = vld [vmem:[#allocation7 + $0x6e0] sm:$0xff]
    %v615 = vld [vmem:[#allocation7 + $0x6e8] sm:$0xff]
    %v616 = vld [vmem:[#allocation7 + $0x6f0] sm:$0xff]
    %v617 = vld [vmem:[#allocation7 + $0x6f8] sm:$0xff]
    %v618 = vld [vmem:[#allocation7 + $0x700] sm:$0xff]
    %v619 = vld [vmem:[#allocation7 + $0x708] sm:$0xff]
    %v620 = vld [vmem:[#allocation7 + $0x710] sm:$0xff]
    %v621 = vld [vmem:[#allocation7 + $0x718] sm:$0xff]
    %v622 = vld [vmem:[#allocation7 + $0x720] sm:$0xff]
    %v623 = vld [vmem:[#allocation7 + $0x728] sm:$0xff]
    %v624 = vld [vmem:[#allocation7 + $0x730] sm:$0xff]
    %v625 = vld [vmem:[#allocation7 + $0x738] sm:$0xff]
    %v626 = vld [vmem:[#allocation7 + $0x740] sm:$0xff]
    %v627 = vld [vmem:[#allocation7 + $0x748] sm:$0xff]
    %v628 = vld [vmem:[#allocation7 + $0x750] sm:$0xff]
    %v629 = vld [vmem:[#allocation7 + $0x758] sm:$0xff]
    %v630 = vld [vmem:[#allocation7 + $0x760] sm:$0xff]
    %v631 = vld [vmem:[#allocation7 + $0x768] sm:$0xff]
    %v632 = vld [vmem:[#allocation7 + $0x770] sm:$0xff]
    %v633 = vld [vmem:[#allocation7 + $0x778] sm:$0xff]
    %v634 = vld [vmem:[#allocation7 + $0x780] sm:$0xff]
    %v635 = vld [vmem:[#allocation7 + $0x788] sm:$0xff]
    %v636 = vld [vmem:[#allocation7 + $0x790] sm:$0xff]
    %v637 = vld [vmem:[#allocation7 + $0x798] sm:$0xff]
    %v638 = vld [vmem:[#allocation7 + $0x7a0] sm:$0xff]
    %v639 = vld [vmem:[#allocation7 + $0x7a8] sm:$0xff]
    %v640 = vld [vmem:[#allocation7 + $0x7b0] sm:$0xff]
    %v641 = vld [vmem:[#allocation7 + $0x7b8] sm:$0xff]
    %v642 = vld [vmem:[#allocation7 + $0x7c0] sm:$0xff]
    %v643 = vld [vmem:[#allocation7 + $0x7c8] sm:$0xff]
    %v644 = vld [vmem:[#allocation7 + $0x7d0] sm:$0xff]
    %v645 = vld [vmem:[#allocation7 + $0x7d8] sm:$0xff]
    %v646 = vld [vmem:[#allocation7 + $0x7e0] sm:$0xff]
    %v647 = vld [vmem:[#allocation7 + $0x7e8] sm:$0xff]
    %v648 = vld [vmem:[#allocation7 + $0x7f0] sm:$0xff]
    %v649 = vld [vmem:[#allocation7 + $0x7f8] sm:$0xff]
    %v650 = vld [vmem:[#allocation7 + $0x800] sm:$0xff]
    %v651 = vld [vmem:[#allocation7 + $0x808] sm:$0xff]
    %v652 = vld [vmem:[#allocation7 + $0x810] sm:$0xff]
    %v653 = vld [vmem:[#allocation7 + $0x818] sm:$0xff]
    %v654 = vld [vmem:[#allocation7 + $0x820] sm:$0xff]
    %v655 = vld [vmem:[#allocation7 + $0x828] sm:$0xff]
    %v656 = vld [vmem:[#allocation7 + $0x830] sm:$0xff]
    %v657 = vld [vmem:[#allocation7 + $0x838] sm:$0xff]
    %v658 = vld [vmem:[#allocation7 + $0x840] sm:$0xff]
    %v659 = vld [vmem:[#allocation7 + $0x848] sm:$0xff]
    %v660 = vld [vmem:[#allocation7 + $0x850] sm:$0xff]
    %v661 = vld [vmem:[#allocation7 + $0x858] sm:$0xff]
    %v662 = vld [vmem:[#allocation7 + $0x860] sm:$0xff]
    %v663 = vld [vmem:[#allocation7 + $0x868] sm:$0xff]
    %v664 = vld [vmem:[#allocation7 + $0x870] sm:$0xff]
    %v665 = vld [vmem:[#allocation7 + $0x878] sm:$0xff]
    %v666 = vld [vmem:[#allocation7 + $0x880] sm:$0xff]
    %v667 = vld [vmem:[#allocation7 + $0x888] sm:$0xff]
    %v668 = vld [vmem:[#allocation7 + $0x890] sm:$0xff]
    %v669 = vld [vmem:[#allocation7 + $0x898] sm:$0xff]
    %v670 = vld [vmem:[#allocation7 + $0x8a0] sm:$0xff]
    %v671 = vld [vmem:[#allocation7 + $0x8a8] sm:$0xff]
    %v672 = vld [vmem:[#allocation7 + $0x8b0] sm:$0xff]
    %v673 = vld [vmem:[#allocation7 + $0x8b8] sm:$0xff]
    %v674 = vld [vmem:[#allocation7 + $0x8c0] sm:$0xff]
    %v675 = vld [vmem:[#allocation7 + $0x8c8] sm:$0xff]
    %v676 = vld [vmem:[#allocation7 + $0x8d0] sm:$0xff]
    %v677 = vld [vmem:[#allocation7 + $0x8d8] sm:$0xff]
    %v678 = vld [vmem:[#allocation7 + $0x8e0] sm:$0xff]
    %v679 = vld [vmem:[#allocation7 + $0x8e8] sm:$0xff]
    %v680 = vld [vmem:[#allocation7 + $0x8f0] sm:$0xff]
    %v681 = vld [vmem:[#allocation7 + $0x8f8] sm:$0xff]
    %v682 = vld [vmem:[#allocation7 + $0x900] sm:$0xff]
    %v683 = vld [vmem:[#allocation7 + $0x908] sm:$0xff]
    %v684 = vld [vmem:[#allocation7 + $0x910] sm:$0xff]
    %v685 = vld [vmem:[#allocation7 + $0x918] sm:$0xff]
    %v686 = vld [vmem:[#allocation7 + $0x920] sm:$0xff]
    %v687 = vld [vmem:[#allocation7 + $0x928] sm:$0xff]
    %v688 = vld [vmem:[#allocation7 + $0x930] sm:$0xff]
    %v689 = vld [vmem:[#allocation7 + $0x938] sm:$0xff]
    %v690 = vld [vmem:[#allocation7 + $0x940] sm:$0xff]
    %v691 = vld [vmem:[#allocation7 + $0x948] sm:$0xff]
    %v692 = vld [vmem:[#allocation7 + $0x950] sm:$0xff]
    %v693 = vld [vmem:[#allocation7 + $0x958] sm:$0xff]
    %v694 = vld [vmem:[#allocation7 + $0x960] sm:$0xff]
    %v695 = vld [vmem:[#allocation7 + $0x968] sm:$0xff]
    %v696 = vld [vmem:[#allocation7 + $0x970] sm:$0xff]
    %v697 = vld [vmem:[#allocation7 + $0x978] sm:$0xff]
    %v698 = vld [vmem:[#allocation7 + $0x980] sm:$0xff]
    %v699 = vld [vmem:[#allocation7 + $0x988] sm:$0xff]
    %v700 = vld [vmem:[#allocation7 + $0x990] sm:$0xff]
    %v701 = vld [vmem:[#allocation7 + $0x998] sm:$0xff]
    %v702 = vld [vmem:[#allocation7 + $0x9a0] sm:$0xff]
    %v703 = vld [vmem:[#allocation7 + $0x9a8] sm:$0xff]
    %v704 = vld [vmem:[#allocation7 + $0x9b0] sm:$0xff]
    %v705 = vld [vmem:[#allocation7 + $0x9b8] sm:$0xff]
    %v706 = vld [vmem:[#allocation7 + $0x9c0] sm:$0xff]
    %v707 = vld [vmem:[#allocation7 + $0x9c8] sm:$0xff]
    %v708 = vld [vmem:[#allocation7 + $0x9d0] sm:$0xff]
    %v709 = vld [vmem:[#allocation7 + $0x9d8] sm:$0xff]
    %v710 = vld [vmem:[#allocation7 + $0x9e0] sm:$0xff]
    %v711 = vld [vmem:[#allocation7 + $0x9e8] sm:$0xff]
    %v712 = vld [vmem:[#allocation7 + $0x9f0] sm:$0xff]
    %v713 = vld [vmem:[#allocation7 + $0x9f8] sm:$0xff]
    %v714 = vld [vmem:[#allocation7 + $0xa00] sm:$0xff]
    %v715 = vld [vmem:[#allocation7 + $0xa08] sm:$0xff]
    %v716 = vld [vmem:[#allocation7 + $0xa10] sm:$0xff]
    %v717 = vld [vmem:[#allocation7 + $0xa18] sm:$0xff]
    %v718 = vld [vmem:[#allocation7 + $0xa20] sm:$0xff]
    %v719 = vld [vmem:[#allocation7 + $0xa28] sm:$0xff]
    %v720 = vld [vmem:[#allocation7 + $0xa30] sm:$0xff]
    %v721 = vld [vmem:[#allocation7 + $0xa38] sm:$0xff]
    %v722 = vld [vmem:[#allocation7 + $0xa40] sm:$0xff]
    %v723 = vld [vmem:[#allocation7 + $0xa48] sm:$0xff]
    %v724 = vld [vmem:[#allocation7 + $0xa50] sm:$0xff]
    %v725 = vld [vmem:[#allocation7 + $0xa58] sm:$0xff]
    %v726 = vld [vmem:[#allocation7 + $0xa60] sm:$0xff]
    %v727 = vld [vmem:[#allocation7 + $0xa68] sm:$0xff]
    %v728 = vld [vmem:[#allocation7 + $0xa70] sm:$0xff]
    %v729 = vld [vmem:[#allocation7 + $0xa78] sm:$0xff]
    %v730 = vld [vmem:[#allocation7 + $0xa80] sm:$0xff]
    %v731 = vld [vmem:[#allocation7 + $0xa88] sm:$0xff]
    %v732 = vld [vmem:[#allocation7 + $0xa90] sm:$0xff]
    %v733 = vld [vmem:[#allocation7 + $0xa98] sm:$0xff]
    %v734 = vld [vmem:[#allocation7 + $0xaa0] sm:$0xff]
    %v735 = vld [vmem:[#allocation7 + $0xaa8] sm:$0xff]
    %v736 = vld [vmem:[#allocation7 + $0xab0] sm:$0xff]
    %v737 = vld [vmem:[#allocation7 + $0xab8] sm:$0xff]
    %v738 = vld [vmem:[#allocation7 + $0xac0] sm:$0xff]
    %v739 = vld [vmem:[#allocation7 + $0xac8] sm:$0xff]
    %v740 = vld [vmem:[#allocation7 + $0xad0] sm:$0xff]
    %v741 = vld [vmem:[#allocation7 + $0xad8] sm:$0xff]
    %v742 = vld [vmem:[#allocation7 + $0xae0] sm:$0xff]
    %v743 = vld [vmem:[#allocation7 + $0xae8] sm:$0xff]
    %v744 = vld [vmem:[#allocation7 + $0xaf0] sm:$0xff]
    %v745 = vld [vmem:[#allocation7 + $0xaf8] sm:$0xff]
    %v746 = vld [vmem:[#allocation7 + $0xb00] sm:$0xff]
    %v747 = vld [vmem:[#allocation7 + $0xb08] sm:$0xff]
    %v748 = vld [vmem:[#allocation7 + $0xb10] sm:$0xff]
    %v749 = vld [vmem:[#allocation7 + $0xb18] sm:$0xff]
    %v750 = vld [vmem:[#allocation7 + $0xb20] sm:$0xff]
    %v751 = vld [vmem:[#allocation7 + $0xb28] sm:$0xff]
    %v752 = vld [vmem:[#allocation7 + $0xb30] sm:$0xff]
    %v753 = vld [vmem:[#allocation7 + $0xb38] sm:$0xff]
    %v754 = vld [vmem:[#allocation7 + $0xb40] sm:$0xff]
    %v755 = vld [vmem:[#allocation7 + $0xb48] sm:$0xff]
    %v756 = vld [vmem:[#allocation7 + $0xb50] sm:$0xff]
    %v757 = vld [vmem:[#allocation7 + $0xb58] sm:$0xff]
    %v758 = vld [vmem:[#allocation7 + $0xb60] sm:$0xff]
    %v759 = vld [vmem:[#allocation7 + $0xb68] sm:$0xff]
    %v760 = vld [vmem:[#allocation7 + $0xb70] sm:$0xff]
    %v761 = vld [vmem:[#allocation7 + $0xb78] sm:$0xff]
    %v762 = vld [vmem:[#allocation7 + $0xb80] sm:$0xff]
    %v763 = vld [vmem:[#allocation7 + $0xb88] sm:$0xff]
    %v764 = vld [vmem:[#allocation7 + $0xb90] sm:$0xff]
    %v765 = vld [vmem:[#allocation7 + $0xb98] sm:$0xff]
    %v766 = vld [vmem:[#allocation7 + $0xba0] sm:$0xff]
    %v767 = vld [vmem:[#allocation7 + $0xba8] sm:$0xff]
    %v768 = vld [vmem:[#allocation7 + $0xbb0] sm:$0xff]
    %v769 = vld [vmem:[#allocation7 + $0xbb8] sm:$0xff]
    %v770 = vld [vmem:[#allocation7 + $0xbc0] sm:$0xff]
    %v771 = vld [vmem:[#allocation7 + $0xbc8] sm:$0xff]
    %v772 = vld [vmem:[#allocation7 + $0xbd0] sm:$0xff]
    %v773 = vld [vmem:[#allocation7 + $0xbd8] sm:$0xff]
    %v774 = vld [vmem:[#allocation7 + $0xbe0] sm:$0xff]
    %v775 = vld [vmem:[#allocation7 + $0xbe8] sm:$0xff]
    %v776 = vld [vmem:[#allocation7 + $0xbf0] sm:$0xff]
    %v777 = vld [vmem:[#allocation7 + $0xbf8] sm:$0xff]
    %v778 = vld [vmem:[#allocation7 + $0xc00] sm:$0xff]
    %v779 = vld [vmem:[#allocation7 + $0xc08] sm:$0xff]
    %v780 = vld [vmem:[#allocation7 + $0xc10] sm:$0xff]
    %v781 = vld [vmem:[#allocation7 + $0xc18] sm:$0xff]
    %v782 = vld [vmem:[#allocation7 + $0xc20] sm:$0xff]
    %v783 = vld [vmem:[#allocation7 + $0xc28] sm:$0xff]
    %v784 = vld [vmem:[#allocation7 + $0xc30] sm:$0xff]
    %v785 = vld [vmem:[#allocation7 + $0xc38] sm:$0xff]
    %v786 = vld [vmem:[#allocation7 + $0xc40] sm:$0xff]
    %v787 = vld [vmem:[#allocation7 + $0xc48] sm:$0xff]
    %v788 = vld [vmem:[#allocation7 + $0xc50] sm:$0xff]
    %v789 = vld [vmem:[#allocation7 + $0xc58] sm:$0xff]
    %v790 = vld [vmem:[#allocation7 + $0xc60] sm:$0xff]
    %v791 = vld [vmem:[#allocation7 + $0xc68] sm:$0xff]
    %v792 = vld [vmem:[#allocation7 + $0xc70] sm:$0xff]
    %v793 = vld [vmem:[#allocation7 + $0xc78] sm:$0xff]
    %v794 = vld [vmem:[#allocation7 + $0xc80] sm:$0xff]
    %v795 = vld [vmem:[#allocation7 + $0xc88] sm:$0xff]
    %v796 = vld [vmem:[#allocation7 + $0xc90] sm:$0xff]
    %v797 = vld [vmem:[#allocation7 + $0xc98] sm:$0xff]
    %v798 = vld [vmem:[#allocation7 + $0xca0] sm:$0xff]
    %v799 = vld [vmem:[#allocation7 + $0xca8] sm:$0xff]
    %v800 = vld [vmem:[#allocation7 + $0xcb0] sm:$0xff]
    %v801 = vld [vmem:[#allocation7 + $0xcb8] sm:$0xff]
    %v802 = vld [vmem:[#allocation7 + $0xcc0] sm:$0xff]
    %v803 = vld [vmem:[#allocation7 + $0xcc8] sm:$0xff]
    %v804 = vld [vmem:[#allocation7 + $0xcd0] sm:$0xff]
    %v805 = vld [vmem:[#allocation7 + $0xcd8] sm:$0xff]
    %v806 = vld [vmem:[#allocation7 + $0xce0] sm:$0xff]
    %v807 = vld [vmem:[#allocation7 + $0xce8] sm:$0xff]
    %v808 = vld [vmem:[#allocation7 + $0xcf0] sm:$0xff]
    %v809 = vld [vmem:[#allocation7 + $0xcf8] sm:$0xff]
    %v810 = vld [vmem:[#allocation7 + $0xd00] sm:$0xff]
    %v811 = vld [vmem:[#allocation7 + $0xd08] sm:$0xff]
    %v812 = vld [vmem:[#allocation7 + $0xd10] sm:$0xff]
    %v813 = vld [vmem:[#allocation7 + $0xd18] sm:$0xff]
    %v814 = vld [vmem:[#allocation7 + $0xd20] sm:$0xff]
    %v815 = vld [vmem:[#allocation7 + $0xd28] sm:$0xff]
    %v816 = vld [vmem:[#allocation7 + $0xd30] sm:$0xff]
    %v817 = vld [vmem:[#allocation7 + $0xd38] sm:$0xff]
    %v818 = vld [vmem:[#allocation7 + $0xd40] sm:$0xff]
    %v819 = vld [vmem:[#allocation7 + $0xd48] sm:$0xff]
    %v820 = vld [vmem:[#allocation7 + $0xd50] sm:$0xff]
    %v821 = vld [vmem:[#allocation7 + $0xd58] sm:$0xff]
    %v822 = vld [vmem:[#allocation7 + $0xd60] sm:$0xff]
    %v823 = vld [vmem:[#allocation7 + $0xd68] sm:$0xff]
    %v824 = vld [vmem:[#allocation7 + $0xd70] sm:$0xff]
    %v825 = vld [vmem:[#allocation7 + $0xd78] sm:$0xff]
    %v826 = vld [vmem:[#allocation7 + $0xd80] sm:$0xff]
    %v827 = vld [vmem:[#allocation7 + $0xd88] sm:$0xff]
    %v828 = vld [vmem:[#allocation7 + $0xd90] sm:$0xff]
    %v829 = vld [vmem:[#allocation7 + $0xd98] sm:$0xff]
    %v830 = vld [vmem:[#allocation7 + $0xda0] sm:$0xff]
    %v831 = vld [vmem:[#allocation7 + $0xda8] sm:$0xff]
    %v832 = vld [vmem:[#allocation7 + $0xdb0] sm:$0xff]
    %v833 = vld [vmem:[#allocation7 + $0xdb8] sm:$0xff]
    %v834 = vld [vmem:[#allocation7 + $0xdc0] sm:$0xff]
    %v835 = vld [vmem:[#allocation7 + $0xdc8] sm:$0xff]
    %v836 = vld [vmem:[#allocation7 + $0xdd0] sm:$0xff]
    %v837 = vld [vmem:[#allocation7 + $0xdd8] sm:$0xff]
    %v838 = vld [vmem:[#allocation7 + $0xde0] sm:$0xff]
    %v839 = vld [vmem:[#allocation7 + $0xde8] sm:$0xff]
    %v840 = vld [vmem:[#allocation7 + $0xdf0] sm:$0xff]
    %v841 = vld [vmem:[#allocation7 + $0xdf8] sm:$0xff]
    %v842 = vld [vmem:[#allocation7 + $0xe00] sm:$0xff]
    %v843 = vld [vmem:[#allocation7 + $0xe08] sm:$0xff]
    %v844 = vld [vmem:[#allocation7 + $0xe10] sm:$0xff]
    %v845 = vld [vmem:[#allocation7 + $0xe18] sm:$0xff]
    %v846 = vld [vmem:[#allocation7 + $0xe20] sm:$0xff]
    %v847 = vld [vmem:[#allocation7 + $0xe28] sm:$0xff]
    %v848 = vld [vmem:[#allocation7 + $0xe30] sm:$0xff]
    %v849 = vld [vmem:[#allocation7 + $0xe38] sm:$0xff]
    %v850 = vld [vmem:[#allocation7 + $0xe40] sm:$0xff]
    %v851 = vld [vmem:[#allocation7 + $0xe48] sm:$0xff]
    %v852 = vld [vmem:[#allocation7 + $0xe50] sm:$0xff]
    %v853 = vld [vmem:[#allocation7 + $0xe58] sm:$0xff]
    %v854 = vld [vmem:[#allocation7 + $0xe60] sm:$0xff]
    %v855 = vld [vmem:[#allocation7 + $0xe68] sm:$0xff]
    %v856 = vld [vmem:[#allocation7 + $0xe70] sm:$0xff]
    %v857 = vld [vmem:[#allocation7 + $0xe78] sm:$0xff]
    %v858 = vld [vmem:[#allocation7 + $0xe80] sm:$0xff]
    %v859 = vld [vmem:[#allocation7 + $0xe88] sm:$0xff]
    %v860 = vld [vmem:[#allocation7 + $0xe90] sm:$0xff]
    %v861 = vld [vmem:[#allocation7 + $0xe98] sm:$0xff]
    %v862 = vld [vmem:[#allocation7 + $0xea0] sm:$0xff]
    %v863 = vld [vmem:[#allocation7 + $0xea8] sm:$0xff]
    %v864 = vld [vmem:[#allocation7 + $0xeb0] sm:$0xff]
    %v865 = vld [vmem:[#allocation7 + $0xeb8] sm:$0xff]
    %v866 = vld [vmem:[#allocation7 + $0xec0] sm:$0xff]
    %v867 = vld [vmem:[#allocation7 + $0xec8] sm:$0xff]
    %v868 = vld [vmem:[#allocation7 + $0xed0] sm:$0xff]
    %v869 = vld [vmem:[#allocation7 + $0xed8] sm:$0xff]
    %v870 = vld [vmem:[#allocation7 + $0xee0] sm:$0xff]
    %v871 = vld [vmem:[#allocation7 + $0xee8] sm:$0xff]
    %v872 = vld [vmem:[#allocation7 + $0xef0] sm:$0xff]
    %v873 = vld [vmem:[#allocation7 + $0xef8] sm:$0xff]
    %v874 = vld [vmem:[#allocation7 + $0xf00] sm:$0xff]
    %v875 = vld [vmem:[#allocation7 + $0xf08] sm:$0xff]
    %v876 = vld [vmem:[#allocation7 + $0xf10] sm:$0xff]
    %v877 = vld [vmem:[#allocation7 + $0xf18] sm:$0xff]
    %v878 = vld [vmem:[#allocation7 + $0xf20] sm:$0xff]
    %v879 = vld [vmem:[#allocation7 + $0xf28] sm:$0xff]
    %v880 = vld [vmem:[#allocation7 + $0xf30] sm:$0xff]
    %v881 = vld [vmem:[#allocation7 + $0xf38] sm:$0xff]
    %v882 = vld [vmem:[#allocation7 + $0xf40] sm:$0xff]
    %v883 = vld [vmem:[#allocation7 + $0xf48] sm:$0xff]
    %v884 = vld [vmem:[#allocation7 + $0xf50] sm:$0xff]
    %v885 = vld [vmem:[#allocation7 + $0xf58] sm:$0xff]
    %v886 = vld [vmem:[#allocation7 + $0xf60] sm:$0xff]
    %v887 = vld [vmem:[#allocation7 + $0xf68] sm:$0xff]
    %v888 = vld [vmem:[#allocation7 + $0xf70] sm:$0xff]
    %v889 = vld [vmem:[#allocation7 + $0xf78] sm:$0xff]
    %v890 = vld [vmem:[#allocation7 + $0xf80] sm:$0xff]
    %v891 = vld [vmem:[#allocation7 + $0xf88] sm:$0xff]
    %v892 = vld [vmem:[#allocation7 + $0xf90] sm:$0xff]
    %v893 = vld [vmem:[#allocation7 + $0xf98] sm:$0xff]
    %v894 = vld [vmem:[#allocation7 + $0xfa0] sm:$0xff]
    %v895 = vld [vmem:[#allocation7 + $0xfa8] sm:$0xff]
    %v896 = vld [vmem:[#allocation7 + $0xfb0] sm:$0xff]
    %v897 = vld [vmem:[#allocation7 + $0xfb8] sm:$0xff]
    %v898 = vld [vmem:[#allocation7 + $0xfc0] sm:$0xff]
    %v899 = vld [vmem:[#allocation7 + $0xfc8] sm:$0xff]
    %v900 = vld [vmem:[#allocation7 + $0xfd0] sm:$0xff]
    %v901 = vld [vmem:[#allocation7 + $0xfd8] sm:$0xff]
    %v902 = vld [vmem:[#allocation7 + $0xfe0] sm:$0xff]
    %v903 = vld [vmem:[#allocation7 + $0xfe8] sm:$0xff]
    %v904 = vld [vmem:[#allocation7 + $0xff0] sm:$0xff]
    %v905 = vld [vmem:[#allocation7 + $0xff8] sm:$0xff]
    %v1418 = vunpack.c.l.b16 %v394
    %v1419 = vunpack.c.h.b16 %v394
    %v1420 = vunpack.c.l.b16 %v395
    %v1421 = vunpack.c.h.b16 %v395
    %v1422 = vunpack.c.l.b16 %v396
    %v1423 = vunpack.c.h.b16 %v396
    %v1424 = vunpack.c.l.b16 %v397
    %v1425 = vunpack.c.h.b16 %v397
    %v1426 = vunpack.c.l.b16 %v398
    %v1427 = vunpack.c.h.b16 %v398
    %v1428 = vunpack.c.l.b16 %v399
    %v1429 = vunpack.c.h.b16 %v399
    %v1430 = vunpack.c.l.b16 %v400
    %v1431 = vunpack.c.h.b16 %v400
    %v1432 = vunpack.c.l.b16 %v401
    %v1433 = vunpack.c.h.b16 %v401
    %v1434 = vunpack.c.l.b16 %v402
    %v1435 = vunpack.c.h.b16 %v402
    %v1436 = vunpack.c.l.b16 %v403
    %v1437 = vunpack.c.h.b16 %v403
    %v1438 = vunpack.c.l.b16 %v404
    %v1439 = vunpack.c.h.b16 %v404
    %v1440 = vunpack.c.l.b16 %v405
    %v1441 = vunpack.c.h.b16 %v405
    %v1442 = vunpack.c.l.b16 %v406
    %v1443 = vunpack.c.h.b16 %v406
    %v1444 = vunpack.c.l.b16 %v407
    %v1445 = vunpack.c.h.b16 %v407
    %v1446 = vunpack.c.l.b16 %v408
    %v1447 = vunpack.c.h.b16 %v408
    %v1448 = vunpack.c.l.b16 %v409
    %v1449 = vunpack.c.h.b16 %v409
    %v1450 = vunpack.c.l.b16 %v410
    %v1451 = vunpack.c.h.b16 %v410
    %v1452 = vunpack.c.l.b16 %v411
    %v1453 = vunpack.c.h.b16 %v411
    %v1454 = vunpack.c.l.b16 %v412
    %v1455 = vunpack.c.h.b16 %v412
    %v1456 = vunpack.c.l.b16 %v413
    %v1457 = vunpack.c.h.b16 %v413
    %v1458 = vunpack.c.l.b16 %v414
    %v1459 = vunpack.c.h.b16 %v414
    %v1460 = vunpack.c.l.b16 %v415
    %v1461 = vunpack.c.h.b16 %v415
    %v1462 = vunpack.c.l.b16 %v416
    %v1463 = vunpack.c.h.b16 %v416
    %v1464 = vunpack.c.l.b16 %v417
    %v1465 = vunpack.c.h.b16 %v417
    %v1466 = vunpack.c.l.b16 %v418
    %v1467 = vunpack.c.h.b16 %v418
    %v1468 = vunpack.c.l.b16 %v419
    %v1469 = vunpack.c.h.b16 %v419
    %v1470 = vunpack.c.l.b16 %v420
    %v1471 = vunpack.c.h.b16 %v420
    %v1472 = vunpack.c.l.b16 %v421
    %v1473 = vunpack.c.h.b16 %v421
    %v1474 = vunpack.c.l.b16 %v422
    %v1475 = vunpack.c.h.b16 %v422
    %v1476 = vunpack.c.l.b16 %v423
    %v1477 = vunpack.c.h.b16 %v423
    %v1478 = vunpack.c.l.b16 %v424
    %v1479 = vunpack.c.h.b16 %v424
    %v1480 = vunpack.c.l.b16 %v425
    %v1481 = vunpack.c.h.b16 %v425
    %v1482 = vunpack.c.l.b16 %v426
    %v1483 = vunpack.c.h.b16 %v426
    %v1484 = vunpack.c.l.b16 %v427
    %v1485 = vunpack.c.h.b16 %v427
    %v1486 = vunpack.c.l.b16 %v428
    %v1487 = vunpack.c.h.b16 %v428
    %v1488 = vunpack.c.l.b16 %v429
    %v1489 = vunpack.c.h.b16 %v429
    %v1490 = vunpack.c.l.b16 %v430
    %v1491 = vunpack.c.h.b16 %v430
    %v1492 = vunpack.c.l.b16 %v431
    %v1493 = vunpack.c.h.b16 %v431
    %v1494 = vunpack.c.l.b16 %v432
    %v1495 = vunpack.c.h.b16 %v432
    %v1496 = vunpack.c.l.b16 %v433
    %v1497 = vunpack.c.h.b16 %v433
    %v1498 = vunpack.c.l.b16 %v434
    %v1499 = vunpack.c.h.b16 %v434
    %v1500 = vunpack.c.l.b16 %v435
    %v1501 = vunpack.c.h.b16 %v435
    %v1502 = vunpack.c.l.b16 %v436
    %v1503 = vunpack.c.h.b16 %v436
    %v1504 = vunpack.c.l.b16 %v437
    %v1505 = vunpack.c.h.b16 %v437
    %v1506 = vunpack.c.l.b16 %v438
    %v1507 = vunpack.c.h.b16 %v438
    %v1508 = vunpack.c.l.b16 %v439
    %v1509 = vunpack.c.h.b16 %v439
    %v1510 = vunpack.c.l.b16 %v440
    %v1511 = vunpack.c.h.b16 %v440
    %v1512 = vunpack.c.l.b16 %v441
    %v1513 = vunpack.c.h.b16 %v441
    %v1514 = vunpack.c.l.b16 %v442
    %v1515 = vunpack.c.h.b16 %v442
    %v1516 = vunpack.c.l.b16 %v443
    %v1517 = vunpack.c.h.b16 %v443
    %v1518 = vunpack.c.l.b16 %v444
    %v1519 = vunpack.c.h.b16 %v444
    %v1520 = vunpack.c.l.b16 %v445
    %v1521 = vunpack.c.h.b16 %v445
    %v1522 = vunpack.c.l.b16 %v446
    %v1523 = vunpack.c.h.b16 %v446
    %v1524 = vunpack.c.l.b16 %v447
    %v1525 = vunpack.c.h.b16 %v447
    %v1526 = vunpack.c.l.b16 %v448
    %v1527 = vunpack.c.h.b16 %v448
    %v1528 = vunpack.c.l.b16 %v449
    %v1529 = vunpack.c.h.b16 %v449
    %v1530 = vunpack.c.l.b16 %v450
    %v1531 = vunpack.c.h.b16 %v450
    %v1532 = vunpack.c.l.b16 %v451
    %v1533 = vunpack.c.h.b16 %v451
    %v1534 = vunpack.c.l.b16 %v452
    %v1535 = vunpack.c.h.b16 %v452
    %v1536 = vunpack.c.l.b16 %v453
    %v1537 = vunpack.c.h.b16 %v453
    %v1538 = vunpack.c.l.b16 %v454
    %v1539 = vunpack.c.h.b16 %v454
    %v1540 = vunpack.c.l.b16 %v455
    %v1541 = vunpack.c.h.b16 %v455
    %v1542 = vunpack.c.l.b16 %v456
    %v1543 = vunpack.c.h.b16 %v456
    %v1544 = vunpack.c.l.b16 %v457
    %v1545 = vunpack.c.h.b16 %v457
    %v1546 = vunpack.c.l.b16 %v458
    %v1547 = vunpack.c.h.b16 %v458
    %v1548 = vunpack.c.l.b16 %v459
    %v1549 = vunpack.c.h.b16 %v459
    %v1550 = vunpack.c.l.b16 %v460
    %v1551 = vunpack.c.h.b16 %v460
    %v1552 = vunpack.c.l.b16 %v461
    %v1553 = vunpack.c.h.b16 %v461
    %v1554 = vunpack.c.l.b16 %v462
    %v1555 = vunpack.c.h.b16 %v462
    %v1556 = vunpack.c.l.b16 %v463
    %v1557 = vunpack.c.h.b16 %v463
    %v1558 = vunpack.c.l.b16 %v464
    %v1559 = vunpack.c.h.b16 %v464
    %v1560 = vunpack.c.l.b16 %v465
    %v1561 = vunpack.c.h.b16 %v465
    %v1562 = vunpack.c.l.b16 %v466
    %v1563 = vunpack.c.h.b16 %v466
    %v1564 = vunpack.c.l.b16 %v467
    %v1565 = vunpack.c.h.b16 %v467
    %v1566 = vunpack.c.l.b16 %v468
    %v1567 = vunpack.c.h.b16 %v468
    %v1568 = vunpack.c.l.b16 %v469
    %v1569 = vunpack.c.h.b16 %v469
    %v1570 = vunpack.c.l.b16 %v470
    %v1571 = vunpack.c.h.b16 %v470
    %v1572 = vunpack.c.l.b16 %v471
    %v1573 = vunpack.c.h.b16 %v471
    %v1574 = vunpack.c.l.b16 %v472
    %v1575 = vunpack.c.h.b16 %v472
    %v1576 = vunpack.c.l.b16 %v473
    %v1577 = vunpack.c.h.b16 %v473
    %v1578 = vunpack.c.l.b16 %v474
    %v1579 = vunpack.c.h.b16 %v474
    %v1580 = vunpack.c.l.b16 %v475
    %v1581 = vunpack.c.h.b16 %v475
    %v1582 = vunpack.c.l.b16 %v476
    %v1583 = vunpack.c.h.b16 %v476
    %v1584 = vunpack.c.l.b16 %v477
    %v1585 = vunpack.c.h.b16 %v477
    %v1586 = vunpack.c.l.b16 %v478
    %v1587 = vunpack.c.h.b16 %v478
    %v1588 = vunpack.c.l.b16 %v479
    %v1589 = vunpack.c.h.b16 %v479
    %v1590 = vunpack.c.l.b16 %v480
    %v1591 = vunpack.c.h.b16 %v480
    %v1592 = vunpack.c.l.b16 %v481
    %v1593 = vunpack.c.h.b16 %v481
    %v1594 = vunpack.c.l.b16 %v482
    %v1595 = vunpack.c.h.b16 %v482
    %v1596 = vunpack.c.l.b16 %v483
    %v1597 = vunpack.c.h.b16 %v483
    %v1598 = vunpack.c.l.b16 %v484
    %v1599 = vunpack.c.h.b16 %v484
    %v1600 = vunpack.c.l.b16 %v485
    %v1601 = vunpack.c.h.b16 %v485
    %v1602 = vunpack.c.l.b16 %v486
    %v1603 = vunpack.c.h.b16 %v486
    %v1604 = vunpack.c.l.b16 %v487
    %v1605 = vunpack.c.h.b16 %v487
    %v1606 = vunpack.c.l.b16 %v488
    %v1607 = vunpack.c.h.b16 %v488
    %v1608 = vunpack.c.l.b16 %v489
    %v1609 = vunpack.c.h.b16 %v489
    %v1610 = vunpack.c.l.b16 %v490
    %v1611 = vunpack.c.h.b16 %v490
    %v1612 = vunpack.c.l.b16 %v491
    %v1613 = vunpack.c.h.b16 %v491
    %v1614 = vunpack.c.l.b16 %v492
    %v1615 = vunpack.c.h.b16 %v492
    %v1616 = vunpack.c.l.b16 %v493
    %v1617 = vunpack.c.h.b16 %v493
    %v1618 = vunpack.c.l.b16 %v494
    %v1619 = vunpack.c.h.b16 %v494
    %v1620 = vunpack.c.l.b16 %v495
    %v1621 = vunpack.c.h.b16 %v495
    %v1622 = vunpack.c.l.b16 %v496
    %v1623 = vunpack.c.h.b16 %v496
    %v1624 = vunpack.c.l.b16 %v497
    %v1625 = vunpack.c.h.b16 %v497
    %v1626 = vunpack.c.l.b16 %v498
    %v1627 = vunpack.c.h.b16 %v498
    %v1628 = vunpack.c.l.b16 %v499
    %v1629 = vunpack.c.h.b16 %v499
    %v1630 = vunpack.c.l.b16 %v500
    %v1631 = vunpack.c.h.b16 %v500
    %v1632 = vunpack.c.l.b16 %v501
    %v1633 = vunpack.c.h.b16 %v501
    %v1634 = vunpack.c.l.b16 %v502
    %v1635 = vunpack.c.h.b16 %v502
    %v1636 = vunpack.c.l.b16 %v503
    %v1637 = vunpack.c.h.b16 %v503
    %v1638 = vunpack.c.l.b16 %v504
    %v1639 = vunpack.c.h.b16 %v504
    %v1640 = vunpack.c.l.b16 %v505
    %v1641 = vunpack.c.h.b16 %v505
    %v1642 = vunpack.c.l.b16 %v506
    %v1643 = vunpack.c.h.b16 %v506
    %v1644 = vunpack.c.l.b16 %v507
    %v1645 = vunpack.c.h.b16 %v507
    %v1646 = vunpack.c.l.b16 %v508
    %v1647 = vunpack.c.h.b16 %v508
    %v1648 = vunpack.c.l.b16 %v509
    %v1649 = vunpack.c.h.b16 %v509
    %v1650 = vunpack.c.l.b16 %v510
    %v1651 = vunpack.c.h.b16 %v510
    %v1652 = vunpack.c.l.b16 %v511
    %v1653 = vunpack.c.h.b16 %v511
    %v1654 = vunpack.c.l.b16 %v512
    %v1655 = vunpack.c.h.b16 %v512
    %v1656 = vunpack.c.l.b16 %v513
    %v1657 = vunpack.c.h.b16 %v513
    %v1658 = vunpack.c.l.b16 %v514
    %v1659 = vunpack.c.h.b16 %v514
    %v1660 = vunpack.c.l.b16 %v515
    %v1661 = vunpack.c.h.b16 %v515
    %v1662 = vunpack.c.l.b16 %v516
    %v1663 = vunpack.c.h.b16 %v516
    %v1664 = vunpack.c.l.b16 %v517
    %v1665 = vunpack.c.h.b16 %v517
    %v1666 = vunpack.c.l.b16 %v518
    %v1667 = vunpack.c.h.b16 %v518
    %v1668 = vunpack.c.l.b16 %v519
    %v1669 = vunpack.c.h.b16 %v519
    %v1670 = vunpack.c.l.b16 %v520
    %v1671 = vunpack.c.h.b16 %v520
    %v1672 = vunpack.c.l.b16 %v521
    %v1673 = vunpack.c.h.b16 %v521
    %v1674 = vunpack.c.l.b16 %v522
    %v1675 = vunpack.c.h.b16 %v522
    %v1676 = vunpack.c.l.b16 %v523
    %v1677 = vunpack.c.h.b16 %v523
    %v1678 = vunpack.c.l.b16 %v524
    %v1679 = vunpack.c.h.b16 %v524
    %v1680 = vunpack.c.l.b16 %v525
    %v1681 = vunpack.c.h.b16 %v525
    %v1682 = vunpack.c.l.b16 %v526
    %v1683 = vunpack.c.h.b16 %v526
    %v1684 = vunpack.c.l.b16 %v527
    %v1685 = vunpack.c.h.b16 %v527
    %v1686 = vunpack.c.l.b16 %v528
    %v1687 = vunpack.c.h.b16 %v528
    %v1688 = vunpack.c.l.b16 %v529
    %v1689 = vunpack.c.h.b16 %v529
    %v1690 = vunpack.c.l.b16 %v530
    %v1691 = vunpack.c.h.b16 %v530
    %v1692 = vunpack.c.l.b16 %v531
    %v1693 = vunpack.c.h.b16 %v531
    %v1694 = vunpack.c.l.b16 %v532
    %v1695 = vunpack.c.h.b16 %v532
    %v1696 = vunpack.c.l.b16 %v533
    %v1697 = vunpack.c.h.b16 %v533
    %v1698 = vunpack.c.l.b16 %v534
    %v1699 = vunpack.c.h.b16 %v534
    %v1700 = vunpack.c.l.b16 %v535
    %v1701 = vunpack.c.h.b16 %v535
    %v1702 = vunpack.c.l.b16 %v536
    %v1703 = vunpack.c.h.b16 %v536
    %v1704 = vunpack.c.l.b16 %v537
    %v1705 = vunpack.c.h.b16 %v537
    %v1706 = vunpack.c.l.b16 %v538
    %v1707 = vunpack.c.h.b16 %v538
    %v1708 = vunpack.c.l.b16 %v539
    %v1709 = vunpack.c.h.b16 %v539
    %v1710 = vunpack.c.l.b16 %v540
    %v1711 = vunpack.c.h.b16 %v540
    %v1712 = vunpack.c.l.b16 %v541
    %v1713 = vunpack.c.h.b16 %v541
    %v1714 = vunpack.c.l.b16 %v542
    %v1715 = vunpack.c.h.b16 %v542
    %v1716 = vunpack.c.l.b16 %v543
    %v1717 = vunpack.c.h.b16 %v543
    %v1718 = vunpack.c.l.b16 %v544
    %v1719 = vunpack.c.h.b16 %v544
    %v1720 = vunpack.c.l.b16 %v545
    %v1721 = vunpack.c.h.b16 %v545
    %v1722 = vunpack.c.l.b16 %v546
    %v1723 = vunpack.c.h.b16 %v546
    %v1724 = vunpack.c.l.b16 %v547
    %v1725 = vunpack.c.h.b16 %v547
    %v1726 = vunpack.c.l.b16 %v548
    %v1727 = vunpack.c.h.b16 %v548
    %v1728 = vunpack.c.l.b16 %v549
    %v1729 = vunpack.c.h.b16 %v549
    %v1730 = vunpack.c.l.b16 %v550
    %v1731 = vunpack.c.h.b16 %v550
    %v1732 = vunpack.c.l.b16 %v551
    %v1733 = vunpack.c.h.b16 %v551
    %v1734 = vunpack.c.l.b16 %v552
    %v1735 = vunpack.c.h.b16 %v552
    %v1736 = vunpack.c.l.b16 %v553
    %v1737 = vunpack.c.h.b16 %v553
    %v1738 = vunpack.c.l.b16 %v554
    %v1739 = vunpack.c.h.b16 %v554
    %v1740 = vunpack.c.l.b16 %v555
    %v1741 = vunpack.c.h.b16 %v555
    %v1742 = vunpack.c.l.b16 %v556
    %v1743 = vunpack.c.h.b16 %v556
    %v1744 = vunpack.c.l.b16 %v557
    %v1745 = vunpack.c.h.b16 %v557
    %v1746 = vunpack.c.l.b16 %v558
    %v1747 = vunpack.c.h.b16 %v558
    %v1748 = vunpack.c.l.b16 %v559
    %v1749 = vunpack.c.h.b16 %v559
    %v1750 = vunpack.c.l.b16 %v560
    %v1751 = vunpack.c.h.b16 %v560
    %v1752 = vunpack.c.l.b16 %v561
    %v1753 = vunpack.c.h.b16 %v561
    %v1754 = vunpack.c.l.b16 %v562
    %v1755 = vunpack.c.h.b16 %v562
    %v1756 = vunpack.c.l.b16 %v563
    %v1757 = vunpack.c.h.b16 %v563
    %v1758 = vunpack.c.l.b16 %v564
    %v1759 = vunpack.c.h.b16 %v564
    %v1760 = vunpack.c.l.b16 %v565
    %v1761 = vunpack.c.h.b16 %v565
    %v1762 = vunpack.c.l.b16 %v566
    %v1763 = vunpack.c.h.b16 %v566
    %v1764 = vunpack.c.l.b16 %v567
    %v1765 = vunpack.c.h.b16 %v567
    %v1766 = vunpack.c.l.b16 %v568
    %v1767 = vunpack.c.h.b16 %v568
    %v1768 = vunpack.c.l.b16 %v569
    %v1769 = vunpack.c.h.b16 %v569
    %v1770 = vunpack.c.l.b16 %v570
    %v1771 = vunpack.c.h.b16 %v570
    %v1772 = vunpack.c.l.b16 %v571
    %v1773 = vunpack.c.h.b16 %v571
    %v1774 = vunpack.c.l.b16 %v572
    %v1775 = vunpack.c.h.b16 %v572
    %v1776 = vunpack.c.l.b16 %v573
    %v1777 = vunpack.c.h.b16 %v573
    %v1778 = vunpack.c.l.b16 %v574
    %v1779 = vunpack.c.h.b16 %v574
    %v1780 = vunpack.c.l.b16 %v575
    %v1781 = vunpack.c.h.b16 %v575
    %v1782 = vunpack.c.l.b16 %v576
    %v1783 = vunpack.c.h.b16 %v576
    %v1784 = vunpack.c.l.b16 %v577
    %v1785 = vunpack.c.h.b16 %v577
    %v1786 = vunpack.c.l.b16 %v578
    %v1787 = vunpack.c.h.b16 %v578
    %v1788 = vunpack.c.l.b16 %v579
    %v1789 = vunpack.c.h.b16 %v579
    %v1790 = vunpack.c.l.b16 %v580
    %v1791 = vunpack.c.h.b16 %v580
    %v1792 = vunpack.c.l.b16 %v581
    %v1793 = vunpack.c.h.b16 %v581
    %v1794 = vunpack.c.l.b16 %v582
    %v1795 = vunpack.c.h.b16 %v582
    %v1796 = vunpack.c.l.b16 %v583
    %v1797 = vunpack.c.h.b16 %v583
    %v1798 = vunpack.c.l.b16 %v584
    %v1799 = vunpack.c.h.b16 %v584
    %v1800 = vunpack.c.l.b16 %v585
    %v1801 = vunpack.c.h.b16 %v585
    %v1802 = vunpack.c.l.b16 %v586
    %v1803 = vunpack.c.h.b16 %v586
    %v1804 = vunpack.c.l.b16 %v587
    %v1805 = vunpack.c.h.b16 %v587
    %v1806 = vunpack.c.l.b16 %v588
    %v1807 = vunpack.c.h.b16 %v588
    %v1808 = vunpack.c.l.b16 %v589
    %v1809 = vunpack.c.h.b16 %v589
    %v1810 = vunpack.c.l.b16 %v590
    %v1811 = vunpack.c.h.b16 %v590
    %v1812 = vunpack.c.l.b16 %v591
    %v1813 = vunpack.c.h.b16 %v591
    %v1814 = vunpack.c.l.b16 %v592
    %v1815 = vunpack.c.h.b16 %v592
    %v1816 = vunpack.c.l.b16 %v593
    %v1817 = vunpack.c.h.b16 %v593
    %v1818 = vunpack.c.l.b16 %v594
    %v1819 = vunpack.c.h.b16 %v594
    %v1820 = vunpack.c.l.b16 %v595
    %v1821 = vunpack.c.h.b16 %v595
    %v1822 = vunpack.c.l.b16 %v596
    %v1823 = vunpack.c.h.b16 %v596
    %v1824 = vunpack.c.l.b16 %v597
    %v1825 = vunpack.c.h.b16 %v597
    %v1826 = vunpack.c.l.b16 %v598
    %v1827 = vunpack.c.h.b16 %v598
    %v1828 = vunpack.c.l.b16 %v599
    %v1829 = vunpack.c.h.b16 %v599
    %v1830 = vunpack.c.l.b16 %v600
    %v1831 = vunpack.c.h.b16 %v600
    %v1832 = vunpack.c.l.b16 %v601
    %v1833 = vunpack.c.h.b16 %v601
    %v1834 = vunpack.c.l.b16 %v602
    %v1835 = vunpack.c.h.b16 %v602
    %v1836 = vunpack.c.l.b16 %v603
    %v1837 = vunpack.c.h.b16 %v603
    %v1838 = vunpack.c.l.b16 %v604
    %v1839 = vunpack.c.h.b16 %v604
    %v1840 = vunpack.c.l.b16 %v605
    %v1841 = vunpack.c.h.b16 %v605
    %v1842 = vunpack.c.l.b16 %v606
    %v1843 = vunpack.c.h.b16 %v606
    %v1844 = vunpack.c.l.b16 %v607
    %v1845 = vunpack.c.h.b16 %v607
    %v1846 = vunpack.c.l.b16 %v608
    %v1847 = vunpack.c.h.b16 %v608
    %v1848 = vunpack.c.l.b16 %v609
    %v1849 = vunpack.c.h.b16 %v609
    %v1850 = vunpack.c.l.b16 %v610
    %v1851 = vunpack.c.h.b16 %v610
    %v1852 = vunpack.c.l.b16 %v611
    %v1853 = vunpack.c.h.b16 %v611
    %v1854 = vunpack.c.l.b16 %v612
    %v1855 = vunpack.c.h.b16 %v612
    %v1856 = vunpack.c.l.b16 %v613
    %v1857 = vunpack.c.h.b16 %v613
    %v1858 = vunpack.c.l.b16 %v614
    %v1859 = vunpack.c.h.b16 %v614
    %v1860 = vunpack.c.l.b16 %v615
    %v1861 = vunpack.c.h.b16 %v615
    %v1862 = vunpack.c.l.b16 %v616
    %v1863 = vunpack.c.h.b16 %v616
    %v1864 = vunpack.c.l.b16 %v617
    %v1865 = vunpack.c.h.b16 %v617
    %v1866 = vunpack.c.l.b16 %v618
    %v1867 = vunpack.c.h.b16 %v618
    %v1868 = vunpack.c.l.b16 %v619
    %v1869 = vunpack.c.h.b16 %v619
    %v1870 = vunpack.c.l.b16 %v620
    %v1871 = vunpack.c.h.b16 %v620
    %v1872 = vunpack.c.l.b16 %v621
    %v1873 = vunpack.c.h.b16 %v621
    %v1874 = vunpack.c.l.b16 %v622
    %v1875 = vunpack.c.h.b16 %v622
    %v1876 = vunpack.c.l.b16 %v623
    %v1877 = vunpack.c.h.b16 %v623
    %v1878 = vunpack.c.l.b16 %v624
    %v1879 = vunpack.c.h.b16 %v624
    %v1880 = vunpack.c.l.b16 %v625
    %v1881 = vunpack.c.h.b16 %v625
    %v1882 = vunpack.c.l.b16 %v626
    %v1883 = vunpack.c.h.b16 %v626
    %v1884 = vunpack.c.l.b16 %v627
    %v1885 = vunpack.c.h.b16 %v627
    %v1886 = vunpack.c.l.b16 %v628
    %v1887 = vunpack.c.h.b16 %v628
    %v1888 = vunpack.c.l.b16 %v629
    %v1889 = vunpack.c.h.b16 %v629
    %v1890 = vunpack.c.l.b16 %v630
    %v1891 = vunpack.c.h.b16 %v630
    %v1892 = vunpack.c.l.b16 %v631
    %v1893 = vunpack.c.h.b16 %v631
    %v1894 = vunpack.c.l.b16 %v632
    %v1895 = vunpack.c.h.b16 %v632
    %v1896 = vunpack.c.l.b16 %v633
    %v1897 = vunpack.c.h.b16 %v633
    %v1898 = vunpack.c.l.b16 %v634
    %v1899 = vunpack.c.h.b16 %v634
    %v1900 = vunpack.c.l.b16 %v635
    %v1901 = vunpack.c.h.b16 %v635
    %v1902 = vunpack.c.l.b16 %v636
    %v1903 = vunpack.c.h.b16 %v636
    %v1904 = vunpack.c.l.b16 %v637
    %v1905 = vunpack.c.h.b16 %v637
    %v1906 = vunpack.c.l.b16 %v638
    %v1907 = vunpack.c.h.b16 %v638
    %v1908 = vunpack.c.l.b16 %v639
    %v1909 = vunpack.c.h.b16 %v639
    %v1910 = vunpack.c.l.b16 %v640
    %v1911 = vunpack.c.h.b16 %v640
    %v1912 = vunpack.c.l.b16 %v641
    %v1913 = vunpack.c.h.b16 %v641
    %v1914 = vunpack.c.l.b16 %v642
    %v1915 = vunpack.c.h.b16 %v642
    %v1916 = vunpack.c.l.b16 %v643
    %v1917 = vunpack.c.h.b16 %v643
    %v1918 = vunpack.c.l.b16 %v644
    %v1919 = vunpack.c.h.b16 %v644
    %v1920 = vunpack.c.l.b16 %v645
    %v1921 = vunpack.c.h.b16 %v645
    %v1922 = vunpack.c.l.b16 %v646
    %v1923 = vunpack.c.h.b16 %v646
    %v1924 = vunpack.c.l.b16 %v647
    %v1925 = vunpack.c.h.b16 %v647
    %v1926 = vunpack.c.l.b16 %v648
    %v1927 = vunpack.c.h.b16 %v648
    %v1928 = vunpack.c.l.b16 %v649
    %v1929 = vunpack.c.h.b16 %v649
    %v1930 = vunpack.c.l.b16 %v650
    %v1931 = vunpack.c.h.b16 %v650
    %v1932 = vunpack.c.l.b16 %v651
    %v1933 = vunpack.c.h.b16 %v651
    %v1934 = vunpack.c.l.b16 %v652
    %v1935 = vunpack.c.h.b16 %v652
    %v1936 = vunpack.c.l.b16 %v653
    %v1937 = vunpack.c.h.b16 %v653
    %v1938 = vunpack.c.l.b16 %v654
    %v1939 = vunpack.c.h.b16 %v654
    %v1940 = vunpack.c.l.b16 %v655
    %v1941 = vunpack.c.h.b16 %v655
    %v1942 = vunpack.c.l.b16 %v656
    %v1943 = vunpack.c.h.b16 %v656
    %v1944 = vunpack.c.l.b16 %v657
    %v1945 = vunpack.c.h.b16 %v657
    %v1946 = vunpack.c.l.b16 %v658
    %v1947 = vunpack.c.h.b16 %v658
    %v1948 = vunpack.c.l.b16 %v659
    %v1949 = vunpack.c.h.b16 %v659
    %v1950 = vunpack.c.l.b16 %v660
    %v1951 = vunpack.c.h.b16 %v660
    %v1952 = vunpack.c.l.b16 %v661
    %v1953 = vunpack.c.h.b16 %v661
    %v1954 = vunpack.c.l.b16 %v662
    %v1955 = vunpack.c.h.b16 %v662
    %v1956 = vunpack.c.l.b16 %v663
    %v1957 = vunpack.c.h.b16 %v663
    %v1958 = vunpack.c.l.b16 %v664
    %v1959 = vunpack.c.h.b16 %v664
    %v1960 = vunpack.c.l.b16 %v665
    %v1961 = vunpack.c.h.b16 %v665
    %v1962 = vunpack.c.l.b16 %v666
    %v1963 = vunpack.c.h.b16 %v666
    %v1964 = vunpack.c.l.b16 %v667
    %v1965 = vunpack.c.h.b16 %v667
    %v1966 = vunpack.c.l.b16 %v668
    %v1967 = vunpack.c.h.b16 %v668
    %v1968 = vunpack.c.l.b16 %v669
    %v1969 = vunpack.c.h.b16 %v669
    %v1970 = vunpack.c.l.b16 %v670
    %v1971 = vunpack.c.h.b16 %v670
    %v1972 = vunpack.c.l.b16 %v671
    %v1973 = vunpack.c.h.b16 %v671
    %v1974 = vunpack.c.l.b16 %v672
    %v1975 = vunpack.c.h.b16 %v672
    %v1976 = vunpack.c.l.b16 %v673
    %v1977 = vunpack.c.h.b16 %v673
    %v1978 = vunpack.c.l.b16 %v674
    %v1979 = vunpack.c.h.b16 %v674
    %v1980 = vunpack.c.l.b16 %v675
    %v1981 = vunpack.c.h.b16 %v675
    %v1982 = vunpack.c.l.b16 %v676
    %v1983 = vunpack.c.h.b16 %v676
    %v1984 = vunpack.c.l.b16 %v677
    %v1985 = vunpack.c.h.b16 %v677
    %v1986 = vunpack.c.l.b16 %v678
    %v1987 = vunpack.c.h.b16 %v678
    %v1988 = vunpack.c.l.b16 %v679
    %v1989 = vunpack.c.h.b16 %v679
    %v1990 = vunpack.c.l.b16 %v680
    %v1991 = vunpack.c.h.b16 %v680
    %v1992 = vunpack.c.l.b16 %v681
    %v1993 = vunpack.c.h.b16 %v681
    %v1994 = vunpack.c.l.b16 %v682
    %v1995 = vunpack.c.h.b16 %v682
    %v1996 = vunpack.c.l.b16 %v683
    %v1997 = vunpack.c.h.b16 %v683
    %v1998 = vunpack.c.l.b16 %v684
    %v1999 = vunpack.c.h.b16 %v684
    %v2000 = vunpack.c.l.b16 %v685
    %v2001 = vunpack.c.h.b16 %v685
    %v2002 = vunpack.c.l.b16 %v686
    %v2003 = vunpack.c.h.b16 %v686
    %v2004 = vunpack.c.l.b16 %v687
    %v2005 = vunpack.c.h.b16 %v687
    %v2006 = vunpack.c.l.b16 %v688
    %v2007 = vunpack.c.h.b16 %v688
    %v2008 = vunpack.c.l.b16 %v689
    %v2009 = vunpack.c.h.b16 %v689
    %v2010 = vunpack.c.l.b16 %v690
    %v2011 = vunpack.c.h.b16 %v690
    %v2012 = vunpack.c.l.b16 %v691
    %v2013 = vunpack.c.h.b16 %v691
    %v2014 = vunpack.c.l.b16 %v692
    %v2015 = vunpack.c.h.b16 %v692
    %v2016 = vunpack.c.l.b16 %v693
    %v2017 = vunpack.c.h.b16 %v693
    %v2018 = vunpack.c.l.b16 %v694
    %v2019 = vunpack.c.h.b16 %v694
    %v2020 = vunpack.c.l.b16 %v695
    %v2021 = vunpack.c.h.b16 %v695
    %v2022 = vunpack.c.l.b16 %v696
    %v2023 = vunpack.c.h.b16 %v696
    %v2024 = vunpack.c.l.b16 %v697
    %v2025 = vunpack.c.h.b16 %v697
    %v2026 = vunpack.c.l.b16 %v698
    %v2027 = vunpack.c.h.b16 %v698
    %v2028 = vunpack.c.l.b16 %v699
    %v2029 = vunpack.c.h.b16 %v699
    %v2030 = vunpack.c.l.b16 %v700
    %v2031 = vunpack.c.h.b16 %v700
    %v2032 = vunpack.c.l.b16 %v701
    %v2033 = vunpack.c.h.b16 %v701
    %v2034 = vunpack.c.l.b16 %v702
    %v2035 = vunpack.c.h.b16 %v702
    %v2036 = vunpack.c.l.b16 %v703
    %v2037 = vunpack.c.h.b16 %v703
    %v2038 = vunpack.c.l.b16 %v704
    %v2039 = vunpack.c.h.b16 %v704
    %v2040 = vunpack.c.l.b16 %v705
    %v2041 = vunpack.c.h.b16 %v705
    %v2042 = vunpack.c.l.b16 %v706
    %v2043 = vunpack.c.h.b16 %v706
    %v2044 = vunpack.c.l.b16 %v707
    %v2045 = vunpack.c.h.b16 %v707
    %v2046 = vunpack.c.l.b16 %v708
    %v2047 = vunpack.c.h.b16 %v708
    %v2048 = vunpack.c.l.b16 %v709
    %v2049 = vunpack.c.h.b16 %v709
    %v2050 = vunpack.c.l.b16 %v710
    %v2051 = vunpack.c.h.b16 %v710
    %v2052 = vunpack.c.l.b16 %v711
    %v2053 = vunpack.c.h.b16 %v711
    %v2054 = vunpack.c.l.b16 %v712
    %v2055 = vunpack.c.h.b16 %v712
    %v2056 = vunpack.c.l.b16 %v713
    %v2057 = vunpack.c.h.b16 %v713
    %v2058 = vunpack.c.l.b16 %v714
    %v2059 = vunpack.c.h.b16 %v714
    %v2060 = vunpack.c.l.b16 %v715
    %v2061 = vunpack.c.h.b16 %v715
    %v2062 = vunpack.c.l.b16 %v716
    %v2063 = vunpack.c.h.b16 %v716
    %v2064 = vunpack.c.l.b16 %v717
    %v2065 = vunpack.c.h.b16 %v717
    %v2066 = vunpack.c.l.b16 %v718
    %v2067 = vunpack.c.h.b16 %v718
    %v2068 = vunpack.c.l.b16 %v719
    %v2069 = vunpack.c.h.b16 %v719
    %v2070 = vunpack.c.l.b16 %v720
    %v2071 = vunpack.c.h.b16 %v720
    %v2072 = vunpack.c.l.b16 %v721
    %v2073 = vunpack.c.h.b16 %v721
    %v2074 = vunpack.c.l.b16 %v722
    %v2075 = vunpack.c.h.b16 %v722
    %v2076 = vunpack.c.l.b16 %v723
    %v2077 = vunpack.c.h.b16 %v723
    %v2078 = vunpack.c.l.b16 %v724
    %v2079 = vunpack.c.h.b16 %v724
    %v2080 = vunpack.c.l.b16 %v725
    %v2081 = vunpack.c.h.b16 %v725
    %v2082 = vunpack.c.l.b16 %v726
    %v2083 = vunpack.c.h.b16 %v726
    %v2084 = vunpack.c.l.b16 %v727
    %v2085 = vunpack.c.h.b16 %v727
    %v2086 = vunpack.c.l.b16 %v728
    %v2087 = vunpack.c.h.b16 %v728
    %v2088 = vunpack.c.l.b16 %v729
    %v2089 = vunpack.c.h.b16 %v729
    %v2090 = vunpack.c.l.b16 %v730
    %v2091 = vunpack.c.h.b16 %v730
    %v2092 = vunpack.c.l.b16 %v731
    %v2093 = vunpack.c.h.b16 %v731
    %v2094 = vunpack.c.l.b16 %v732
    %v2095 = vunpack.c.h.b16 %v732
    %v2096 = vunpack.c.l.b16 %v733
    %v2097 = vunpack.c.h.b16 %v733
    %v2098 = vunpack.c.l.b16 %v734
    %v2099 = vunpack.c.h.b16 %v734
    %v2100 = vunpack.c.l.b16 %v735
    %v2101 = vunpack.c.h.b16 %v735
    %v2102 = vunpack.c.l.b16 %v736
    %v2103 = vunpack.c.h.b16 %v736
    %v2104 = vunpack.c.l.b16 %v737
    %v2105 = vunpack.c.h.b16 %v737
    %v2106 = vunpack.c.l.b16 %v738
    %v2107 = vunpack.c.h.b16 %v738
    %v2108 = vunpack.c.l.b16 %v739
    %v2109 = vunpack.c.h.b16 %v739
    %v2110 = vunpack.c.l.b16 %v740
    %v2111 = vunpack.c.h.b16 %v740
    %v2112 = vunpack.c.l.b16 %v741
    %v2113 = vunpack.c.h.b16 %v741
    %v2114 = vunpack.c.l.b16 %v742
    %v2115 = vunpack.c.h.b16 %v742
    %v2116 = vunpack.c.l.b16 %v743
    %v2117 = vunpack.c.h.b16 %v743
    %v2118 = vunpack.c.l.b16 %v744
    %v2119 = vunpack.c.h.b16 %v744
    %v2120 = vunpack.c.l.b16 %v745
    %v2121 = vunpack.c.h.b16 %v745
    %v2122 = vunpack.c.l.b16 %v746
    %v2123 = vunpack.c.h.b16 %v746
    %v2124 = vunpack.c.l.b16 %v747
    %v2125 = vunpack.c.h.b16 %v747
    %v2126 = vunpack.c.l.b16 %v748
    %v2127 = vunpack.c.h.b16 %v748
    %v2128 = vunpack.c.l.b16 %v749
    %v2129 = vunpack.c.h.b16 %v749
    %v2130 = vunpack.c.l.b16 %v750
    %v2131 = vunpack.c.h.b16 %v750
    %v2132 = vunpack.c.l.b16 %v751
    %v2133 = vunpack.c.h.b16 %v751
    %v2134 = vunpack.c.l.b16 %v752
    %v2135 = vunpack.c.h.b16 %v752
    %v2136 = vunpack.c.l.b16 %v753
    %v2137 = vunpack.c.h.b16 %v753
    %v2138 = vunpack.c.l.b16 %v754
    %v2139 = vunpack.c.h.b16 %v754
    %v2140 = vunpack.c.l.b16 %v755
    %v2141 = vunpack.c.h.b16 %v755
    %v2142 = vunpack.c.l.b16 %v756
    %v2143 = vunpack.c.h.b16 %v756
    %v2144 = vunpack.c.l.b16 %v757
    %v2145 = vunpack.c.h.b16 %v757
    %v2146 = vunpack.c.l.b16 %v758
    %v2147 = vunpack.c.h.b16 %v758
    %v2148 = vunpack.c.l.b16 %v759
    %v2149 = vunpack.c.h.b16 %v759
    %v2150 = vunpack.c.l.b16 %v760
    %v2151 = vunpack.c.h.b16 %v760
    %v2152 = vunpack.c.l.b16 %v761
    %v2153 = vunpack.c.h.b16 %v761
    %v2154 = vunpack.c.l.b16 %v762
    %v2155 = vunpack.c.h.b16 %v762
    %v2156 = vunpack.c.l.b16 %v763
    %v2157 = vunpack.c.h.b16 %v763
    %v2158 = vunpack.c.l.b16 %v764
    %v2159 = vunpack.c.h.b16 %v764
    %v2160 = vunpack.c.l.b16 %v765
    %v2161 = vunpack.c.h.b16 %v765
    %v2162 = vunpack.c.l.b16 %v766
    %v2163 = vunpack.c.h.b16 %v766
    %v2164 = vunpack.c.l.b16 %v767
    %v2165 = vunpack.c.h.b16 %v767
    %v2166 = vunpack.c.l.b16 %v768
    %v2167 = vunpack.c.h.b16 %v768
    %v2168 = vunpack.c.l.b16 %v769
    %v2169 = vunpack.c.h.b16 %v769
    %v2170 = vunpack.c.l.b16 %v770
    %v2171 = vunpack.c.h.b16 %v770
    %v2172 = vunpack.c.l.b16 %v771
    %v2173 = vunpack.c.h.b16 %v771
    %v2174 = vunpack.c.l.b16 %v772
    %v2175 = vunpack.c.h.b16 %v772
    %v2176 = vunpack.c.l.b16 %v773
    %v2177 = vunpack.c.h.b16 %v773
    %v2178 = vunpack.c.l.b16 %v774
    %v2179 = vunpack.c.h.b16 %v774
    %v2180 = vunpack.c.l.b16 %v775
    %v2181 = vunpack.c.h.b16 %v775
    %v2182 = vunpack.c.l.b16 %v776
    %v2183 = vunpack.c.h.b16 %v776
    %v2184 = vunpack.c.l.b16 %v777
    %v2185 = vunpack.c.h.b16 %v777
    %v2186 = vunpack.c.l.b16 %v778
    %v2187 = vunpack.c.h.b16 %v778
    %v2188 = vunpack.c.l.b16 %v779
    %v2189 = vunpack.c.h.b16 %v779
    %v2190 = vunpack.c.l.b16 %v780
    %v2191 = vunpack.c.h.b16 %v780
    %v2192 = vunpack.c.l.b16 %v781
    %v2193 = vunpack.c.h.b16 %v781
    %v2194 = vunpack.c.l.b16 %v782
    %v2195 = vunpack.c.h.b16 %v782
    %v2196 = vunpack.c.l.b16 %v783
    %v2197 = vunpack.c.h.b16 %v783
    %v2198 = vunpack.c.l.b16 %v784
    %v2199 = vunpack.c.h.b16 %v784
    %v2200 = vunpack.c.l.b16 %v785
    %v2201 = vunpack.c.h.b16 %v785
    %v2202 = vunpack.c.l.b16 %v786
    %v2203 = vunpack.c.h.b16 %v786
    %v2204 = vunpack.c.l.b16 %v787
    %v2205 = vunpack.c.h.b16 %v787
    %v2206 = vunpack.c.l.b16 %v788
    %v2207 = vunpack.c.h.b16 %v788
    %v2208 = vunpack.c.l.b16 %v789
    %v2209 = vunpack.c.h.b16 %v789
    %v2210 = vunpack.c.l.b16 %v790
    %v2211 = vunpack.c.h.b16 %v790
    %v2212 = vunpack.c.l.b16 %v791
    %v2213 = vunpack.c.h.b16 %v791
    %v2214 = vunpack.c.l.b16 %v792
    %v2215 = vunpack.c.h.b16 %v792
    %v2216 = vunpack.c.l.b16 %v793
    %v2217 = vunpack.c.h.b16 %v793
    %v2218 = vunpack.c.l.b16 %v794
    %v2219 = vunpack.c.h.b16 %v794
    %v2220 = vunpack.c.l.b16 %v795
    %v2221 = vunpack.c.h.b16 %v795
    %v2222 = vunpack.c.l.b16 %v796
    %v2223 = vunpack.c.h.b16 %v796
    %v2224 = vunpack.c.l.b16 %v797
    %v2225 = vunpack.c.h.b16 %v797
    %v2226 = vunpack.c.l.b16 %v798
    %v2227 = vunpack.c.h.b16 %v798
    %v2228 = vunpack.c.l.b16 %v799
    %v2229 = vunpack.c.h.b16 %v799
    %v2230 = vunpack.c.l.b16 %v800
    %v2231 = vunpack.c.h.b16 %v800
    %v2232 = vunpack.c.l.b16 %v801
    %v2233 = vunpack.c.h.b16 %v801
    %v2234 = vunpack.c.l.b16 %v802
    %v2235 = vunpack.c.h.b16 %v802
    %v2236 = vunpack.c.l.b16 %v803
    %v2237 = vunpack.c.h.b16 %v803
    %v2238 = vunpack.c.l.b16 %v804
    %v2239 = vunpack.c.h.b16 %v804
    %v2240 = vunpack.c.l.b16 %v805
    %v2241 = vunpack.c.h.b16 %v805
    %v2242 = vunpack.c.l.b16 %v806
    %v2243 = vunpack.c.h.b16 %v806
    %v2244 = vunpack.c.l.b16 %v807
    %v2245 = vunpack.c.h.b16 %v807
    %v2246 = vunpack.c.l.b16 %v808
    %v2247 = vunpack.c.h.b16 %v808
    %v2248 = vunpack.c.l.b16 %v809
    %v2249 = vunpack.c.h.b16 %v809
    %v2250 = vunpack.c.l.b16 %v810
    %v2251 = vunpack.c.h.b16 %v810
    %v2252 = vunpack.c.l.b16 %v811
    %v2253 = vunpack.c.h.b16 %v811
    %v2254 = vunpack.c.l.b16 %v812
    %v2255 = vunpack.c.h.b16 %v812
    %v2256 = vunpack.c.l.b16 %v813
    %v2257 = vunpack.c.h.b16 %v813
    %v2258 = vunpack.c.l.b16 %v814
    %v2259 = vunpack.c.h.b16 %v814
    %v2260 = vunpack.c.l.b16 %v815
    %v2261 = vunpack.c.h.b16 %v815
    %v2262 = vunpack.c.l.b16 %v816
    %v2263 = vunpack.c.h.b16 %v816
    %v2264 = vunpack.c.l.b16 %v817
    %v2265 = vunpack.c.h.b16 %v817
    %v2266 = vunpack.c.l.b16 %v818
    %v2267 = vunpack.c.h.b16 %v818
    %v2268 = vunpack.c.l.b16 %v819
    %v2269 = vunpack.c.h.b16 %v819
    %v2270 = vunpack.c.l.b16 %v820
    %v2271 = vunpack.c.h.b16 %v820
    %v2272 = vunpack.c.l.b16 %v821
    %v2273 = vunpack.c.h.b16 %v821
    %v2274 = vunpack.c.l.b16 %v822
    %v2275 = vunpack.c.h.b16 %v822
    %v2276 = vunpack.c.l.b16 %v823
    %v2277 = vunpack.c.h.b16 %v823
    %v2278 = vunpack.c.l.b16 %v824
    %v2279 = vunpack.c.h.b16 %v824
    %v2280 = vunpack.c.l.b16 %v825
    %v2281 = vunpack.c.h.b16 %v825
    %v2282 = vunpack.c.l.b16 %v826
    %v2283 = vunpack.c.h.b16 %v826
    %v2284 = vunpack.c.l.b16 %v827
    %v2285 = vunpack.c.h.b16 %v827
    %v2286 = vunpack.c.l.b16 %v828
    %v2287 = vunpack.c.h.b16 %v828
    %v2288 = vunpack.c.l.b16 %v829
    %v2289 = vunpack.c.h.b16 %v829
    %v2290 = vunpack.c.l.b16 %v830
    %v2291 = vunpack.c.h.b16 %v830
    %v2292 = vunpack.c.l.b16 %v831
    %v2293 = vunpack.c.h.b16 %v831
    %v2294 = vunpack.c.l.b16 %v832
    %v2295 = vunpack.c.h.b16 %v832
    %v2296 = vunpack.c.l.b16 %v833
    %v2297 = vunpack.c.h.b16 %v833
    %v2298 = vunpack.c.l.b16 %v834
    %v2299 = vunpack.c.h.b16 %v834
    %v2300 = vunpack.c.l.b16 %v835
    %v2301 = vunpack.c.h.b16 %v835
    %v2302 = vunpack.c.l.b16 %v836
    %v2303 = vunpack.c.h.b16 %v836
    %v2304 = vunpack.c.l.b16 %v837
    %v2305 = vunpack.c.h.b16 %v837
    %v2306 = vunpack.c.l.b16 %v838
    %v2307 = vunpack.c.h.b16 %v838
    %v2308 = vunpack.c.l.b16 %v839
    %v2309 = vunpack.c.h.b16 %v839
    %v2310 = vunpack.c.l.b16 %v840
    %v2311 = vunpack.c.h.b16 %v840
    %v2312 = vunpack.c.l.b16 %v841
    %v2313 = vunpack.c.h.b16 %v841
    %v2314 = vunpack.c.l.b16 %v842
    %v2315 = vunpack.c.h.b16 %v842
    %v2316 = vunpack.c.l.b16 %v843
    %v2317 = vunpack.c.h.b16 %v843
    %v2318 = vunpack.c.l.b16 %v844
    %v2319 = vunpack.c.h.b16 %v844
    %v2320 = vunpack.c.l.b16 %v845
    %v2321 = vunpack.c.h.b16 %v845
    %v2322 = vunpack.c.l.b16 %v846
    %v2323 = vunpack.c.h.b16 %v846
    %v2324 = vunpack.c.l.b16 %v847
    %v2325 = vunpack.c.h.b16 %v847
    %v2326 = vunpack.c.l.b16 %v848
    %v2327 = vunpack.c.h.b16 %v848
    %v2328 = vunpack.c.l.b16 %v849
    %v2329 = vunpack.c.h.b16 %v849
    %v2330 = vunpack.c.l.b16 %v850
    %v2331 = vunpack.c.h.b16 %v850
    %v2332 = vunpack.c.l.b16 %v851
    %v2333 = vunpack.c.h.b16 %v851
    %v2334 = vunpack.c.l.b16 %v852
    %v2335 = vunpack.c.h.b16 %v852
    %v2336 = vunpack.c.l.b16 %v853
    %v2337 = vunpack.c.h.b16 %v853
    %v2338 = vunpack.c.l.b16 %v854
    %v2339 = vunpack.c.h.b16 %v854
    %v2340 = vunpack.c.l.b16 %v855
    %v2341 = vunpack.c.h.b16 %v855
    %v2342 = vunpack.c.l.b16 %v856
    %v2343 = vunpack.c.h.b16 %v856
    %v2344 = vunpack.c.l.b16 %v857
    %v2345 = vunpack.c.h.b16 %v857
    %v2346 = vunpack.c.l.b16 %v858
    %v2347 = vunpack.c.h.b16 %v858
    %v2348 = vunpack.c.l.b16 %v859
    %v2349 = vunpack.c.h.b16 %v859
    %v2350 = vunpack.c.l.b16 %v860
    %v2351 = vunpack.c.h.b16 %v860
    %v2352 = vunpack.c.l.b16 %v861
    %v2353 = vunpack.c.h.b16 %v861
    %v2354 = vunpack.c.l.b16 %v862
    %v2355 = vunpack.c.h.b16 %v862
    %v2356 = vunpack.c.l.b16 %v863
    %v2357 = vunpack.c.h.b16 %v863
    %v2358 = vunpack.c.l.b16 %v864
    %v2359 = vunpack.c.h.b16 %v864
    %v2360 = vunpack.c.l.b16 %v865
    %v2361 = vunpack.c.h.b16 %v865
    %v2362 = vunpack.c.l.b16 %v866
    %v2363 = vunpack.c.h.b16 %v866
    %v2364 = vunpack.c.l.b16 %v867
    %v2365 = vunpack.c.h.b16 %v867
    %v2366 = vunpack.c.l.b16 %v868
    %v2367 = vunpack.c.h.b16 %v868
    %v2368 = vunpack.c.l.b16 %v869
    %v2369 = vunpack.c.h.b16 %v869
    %v2370 = vunpack.c.l.b16 %v870
    %v2371 = vunpack.c.h.b16 %v870
    %v2372 = vunpack.c.l.b16 %v871
    %v2373 = vunpack.c.h.b16 %v871
    %v2374 = vunpack.c.l.b16 %v872
    %v2375 = vunpack.c.h.b16 %v872
    %v2376 = vunpack.c.l.b16 %v873
    %v2377 = vunpack.c.h.b16 %v873
    %v2378 = vunpack.c.l.b16 %v874
    %v2379 = vunpack.c.h.b16 %v874
    %v2380 = vunpack.c.l.b16 %v875
    %v2381 = vunpack.c.h.b16 %v875
    %v2382 = vunpack.c.l.b16 %v876
    %v2383 = vunpack.c.h.b16 %v876
    %v2384 = vunpack.c.l.b16 %v877
    %v2385 = vunpack.c.h.b16 %v877
    %v2386 = vunpack.c.l.b16 %v878
    %v2387 = vunpack.c.h.b16 %v878
    %v2388 = vunpack.c.l.b16 %v879
    %v2389 = vunpack.c.h.b16 %v879
    %v2390 = vunpack.c.l.b16 %v880
    %v2391 = vunpack.c.h.b16 %v880
    %v2392 = vunpack.c.l.b16 %v881
    %v2393 = vunpack.c.h.b16 %v881
    %v2394 = vunpack.c.l.b16 %v882
    %v2395 = vunpack.c.h.b16 %v882
    %v2396 = vunpack.c.l.b16 %v883
    %v2397 = vunpack.c.h.b16 %v883
    %v2398 = vunpack.c.l.b16 %v884
    %v2399 = vunpack.c.h.b16 %v884
    %v2400 = vunpack.c.l.b16 %v885
    %v2401 = vunpack.c.h.b16 %v885
    %v2402 = vunpack.c.l.b16 %v886
    %v2403 = vunpack.c.h.b16 %v886
    %v2404 = vunpack.c.l.b16 %v887
    %v2405 = vunpack.c.h.b16 %v887
    %v2406 = vunpack.c.l.b16 %v888
    %v2407 = vunpack.c.h.b16 %v888
    %v2408 = vunpack.c.l.b16 %v889
    %v2409 = vunpack.c.h.b16 %v889
    %v2410 = vunpack.c.l.b16 %v890
    %v2411 = vunpack.c.h.b16 %v890
    %v2412 = vunpack.c.l.b16 %v891
    %v2413 = vunpack.c.h.b16 %v891
    %v2414 = vunpack.c.l.b16 %v892
    %v2415 = vunpack.c.h.b16 %v892
    %v2416 = vunpack.c.l.b16 %v893
    %v2417 = vunpack.c.h.b16 %v893
    %v2418 = vunpack.c.l.b16 %v894
    %v2419 = vunpack.c.h.b16 %v894
    %v2420 = vunpack.c.l.b16 %v895
    %v2421 = vunpack.c.h.b16 %v895
    %v2422 = vunpack.c.l.b16 %v896
    %v2423 = vunpack.c.h.b16 %v896
    %v2424 = vunpack.c.l.b16 %v897
    %v2425 = vunpack.c.h.b16 %v897
    %v2426 = vunpack.c.l.b16 %v898
    %v2427 = vunpack.c.h.b16 %v898
    %v2428 = vunpack.c.l.b16 %v899
    %v2429 = vunpack.c.h.b16 %v899
    %v2430 = vunpack.c.l.b16 %v900
    %v2431 = vunpack.c.h.b16 %v900
    %v2432 = vunpack.c.l.b16 %v901
    %v2433 = vunpack.c.h.b16 %v901
    %v2434 = vunpack.c.l.b16 %v902
    %v2435 = vunpack.c.h.b16 %v902
    %v2436 = vunpack.c.l.b16 %v903
    %v2437 = vunpack.c.h.b16 %v903
    %v2438 = vunpack.c.l.b16 %v904
    %v2439 = vunpack.c.h.b16 %v904
    %v2440 = vunpack.c.l.b16 %v905
    %v2441 = vunpack.c.h.b16 %v905
    %v2442 = vpack.c.b16 %v1434, %v1418
    %v2443 = vpack.c.b16 %v1435, %v1419
    %v2444 = vpack.c.b16 %v1436, %v1420
    %v2445 = vpack.c.b16 %v1437, %v1421
    %v2446 = vpack.c.b16 %v1438, %v1422
    %v2447 = vpack.c.b16 %v1439, %v1423
    %v2448 = vpack.c.b16 %v1440, %v1424
    %v2449 = vpack.c.b16 %v1441, %v1425
    %v2450 = vpack.c.b16 %v1442, %v1426
    %v2451 = vpack.c.b16 %v1443, %v1427
    %v2452 = vpack.c.b16 %v1444, %v1428
    %v2453 = vpack.c.b16 %v1445, %v1429
    %v2454 = vpack.c.b16 %v1446, %v1430
    %v2455 = vpack.c.b16 %v1447, %v1431
    %v2456 = vpack.c.b16 %v1448, %v1432
    %v2457 = vpack.c.b16 %v1449, %v1433
    %v2458 = vpack.c.b16 %v1466, %v1450
    %v2459 = vpack.c.b16 %v1467, %v1451
    %v2460 = vpack.c.b16 %v1468, %v1452
    %v2461 = vpack.c.b16 %v1469, %v1453
    %v2462 = vpack.c.b16 %v1470, %v1454
    %v2463 = vpack.c.b16 %v1471, %v1455
    %v2464 = vpack.c.b16 %v1472, %v1456
    %v2465 = vpack.c.b16 %v1473, %v1457
    %v2466 = vpack.c.b16 %v1474, %v1458
    %v2467 = vpack.c.b16 %v1475, %v1459
    %v2468 = vpack.c.b16 %v1476, %v1460
    %v2469 = vpack.c.b16 %v1477, %v1461
    %v2470 = vpack.c.b16 %v1478, %v1462
    %v2471 = vpack.c.b16 %v1479, %v1463
    %v2472 = vpack.c.b16 %v1480, %v1464
    %v2473 = vpack.c.b16 %v1481, %v1465
    %v2474 = vpack.c.b16 %v1498, %v1482
    %v2475 = vpack.c.b16 %v1499, %v1483
    %v2476 = vpack.c.b16 %v1500, %v1484
    %v2477 = vpack.c.b16 %v1501, %v1485
    %v2478 = vpack.c.b16 %v1502, %v1486
    %v2479 = vpack.c.b16 %v1503, %v1487
    %v2480 = vpack.c.b16 %v1504, %v1488
    %v2481 = vpack.c.b16 %v1505, %v1489
    %v2482 = vpack.c.b16 %v1506, %v1490
    %v2483 = vpack.c.b16 %v1507, %v1491
    %v2484 = vpack.c.b16 %v1508, %v1492
    %v2485 = vpack.c.b16 %v1509, %v1493
    %v2486 = vpack.c.b16 %v1510, %v1494
    %v2487 = vpack.c.b16 %v1511, %v1495
    %v2488 = vpack.c.b16 %v1512, %v1496
    %v2489 = vpack.c.b16 %v1513, %v1497
    %v2490 = vpack.c.b16 %v1530, %v1514
    %v2491 = vpack.c.b16 %v1531, %v1515
    %v2492 = vpack.c.b16 %v1532, %v1516
    %v2493 = vpack.c.b16 %v1533, %v1517
    %v2494 = vpack.c.b16 %v1534, %v1518
    %v2495 = vpack.c.b16 %v1535, %v1519
    %v2496 = vpack.c.b16 %v1536, %v1520
    %v2497 = vpack.c.b16 %v1537, %v1521
    %v2498 = vpack.c.b16 %v1538, %v1522
    %v2499 = vpack.c.b16 %v1539, %v1523
    %v2500 = vpack.c.b16 %v1540, %v1524
    %v2501 = vpack.c.b16 %v1541, %v1525
    %v2502 = vpack.c.b16 %v1542, %v1526
    %v2503 = vpack.c.b16 %v1543, %v1527
    %v2504 = vpack.c.b16 %v1544, %v1528
    %v2505 = vpack.c.b16 %v1545, %v1529
    %v2506 = vpack.c.b16 %v1562, %v1546
    %v2507 = vpack.c.b16 %v1563, %v1547
    %v2508 = vpack.c.b16 %v1564, %v1548
    %v2509 = vpack.c.b16 %v1565, %v1549
    %v2510 = vpack.c.b16 %v1566, %v1550
    %v2511 = vpack.c.b16 %v1567, %v1551
    %v2512 = vpack.c.b16 %v1568, %v1552
    %v2513 = vpack.c.b16 %v1569, %v1553
    %v2514 = vpack.c.b16 %v1570, %v1554
    %v2515 = vpack.c.b16 %v1571, %v1555
    %v2516 = vpack.c.b16 %v1572, %v1556
    %v2517 = vpack.c.b16 %v1573, %v1557
    %v2518 = vpack.c.b16 %v1574, %v1558
    %v2519 = vpack.c.b16 %v1575, %v1559
    %v2520 = vpack.c.b16 %v1576, %v1560
    %v2521 = vpack.c.b16 %v1577, %v1561
    %v2522 = vpack.c.b16 %v1594, %v1578
    %v2523 = vpack.c.b16 %v1595, %v1579
    %v2524 = vpack.c.b16 %v1596, %v1580
    %v2525 = vpack.c.b16 %v1597, %v1581
    %v2526 = vpack.c.b16 %v1598, %v1582
    %v2527 = vpack.c.b16 %v1599, %v1583
    %v2528 = vpack.c.b16 %v1600, %v1584
    %v2529 = vpack.c.b16 %v1601, %v1585
    %v2530 = vpack.c.b16 %v1602, %v1586
    %v2531 = vpack.c.b16 %v1603, %v1587
    %v2532 = vpack.c.b16 %v1604, %v1588
    %v2533 = vpack.c.b16 %v1605, %v1589
    %v2534 = vpack.c.b16 %v1606, %v1590
    %v2535 = vpack.c.b16 %v1607, %v1591
    %v2536 = vpack.c.b16 %v1608, %v1592
    %v2537 = vpack.c.b16 %v1609, %v1593
    %v2538 = vpack.c.b16 %v1626, %v1610
    %v2539 = vpack.c.b16 %v1627, %v1611
    %v2540 = vpack.c.b16 %v1628, %v1612
    %v2541 = vpack.c.b16 %v1629, %v1613
    %v2542 = vpack.c.b16 %v1630, %v1614
    %v2543 = vpack.c.b16 %v1631, %v1615
    %v2544 = vpack.c.b16 %v1632, %v1616
    %v2545 = vpack.c.b16 %v1633, %v1617
    %v2546 = vpack.c.b16 %v1634, %v1618
    %v2547 = vpack.c.b16 %v1635, %v1619
    %v2548 = vpack.c.b16 %v1636, %v1620
    %v2549 = vpack.c.b16 %v1637, %v1621
    %v2550 = vpack.c.b16 %v1638, %v1622
    %v2551 = vpack.c.b16 %v1639, %v1623
    %v2552 = vpack.c.b16 %v1640, %v1624
    %v2553 = vpack.c.b16 %v1641, %v1625
    %v2554 = vpack.c.b16 %v1658, %v1642
    %v2555 = vpack.c.b16 %v1659, %v1643
    %v2556 = vpack.c.b16 %v1660, %v1644
    %v2557 = vpack.c.b16 %v1661, %v1645
    %v2558 = vpack.c.b16 %v1662, %v1646
    %v2559 = vpack.c.b16 %v1663, %v1647
    %v2560 = vpack.c.b16 %v1664, %v1648
    %v2561 = vpack.c.b16 %v1665, %v1649
    %v2562 = vpack.c.b16 %v1666, %v1650
    %v2563 = vpack.c.b16 %v1667, %v1651
    %v2564 = vpack.c.b16 %v1668, %v1652
    %v2565 = vpack.c.b16 %v1669, %v1653
    %v2566 = vpack.c.b16 %v1670, %v1654
    %v2567 = vpack.c.b16 %v1671, %v1655
    %v2568 = vpack.c.b16 %v1672, %v1656
    %v2569 = vpack.c.b16 %v1673, %v1657
    %v2570 = vpack.c.b16 %v1690, %v1674
    %v2571 = vpack.c.b16 %v1691, %v1675
    %v2572 = vpack.c.b16 %v1692, %v1676
    %v2573 = vpack.c.b16 %v1693, %v1677
    %v2574 = vpack.c.b16 %v1694, %v1678
    %v2575 = vpack.c.b16 %v1695, %v1679
    %v2576 = vpack.c.b16 %v1696, %v1680
    %v2577 = vpack.c.b16 %v1697, %v1681
    %v2578 = vpack.c.b16 %v1698, %v1682
    %v2579 = vpack.c.b16 %v1699, %v1683
    %v2580 = vpack.c.b16 %v1700, %v1684
    %v2581 = vpack.c.b16 %v1701, %v1685
    %v2582 = vpack.c.b16 %v1702, %v1686
    %v2583 = vpack.c.b16 %v1703, %v1687
    %v2584 = vpack.c.b16 %v1704, %v1688
    %v2585 = vpack.c.b16 %v1705, %v1689
    %v2586 = vpack.c.b16 %v1722, %v1706
    %v2587 = vpack.c.b16 %v1723, %v1707
    %v2588 = vpack.c.b16 %v1724, %v1708
    %v2589 = vpack.c.b16 %v1725, %v1709
    %v2590 = vpack.c.b16 %v1726, %v1710
    %v2591 = vpack.c.b16 %v1727, %v1711
    %v2592 = vpack.c.b16 %v1728, %v1712
    %v2593 = vpack.c.b16 %v1729, %v1713
    %v2594 = vpack.c.b16 %v1730, %v1714
    %v2595 = vpack.c.b16 %v1731, %v1715
    %v2596 = vpack.c.b16 %v1732, %v1716
    %v2597 = vpack.c.b16 %v1733, %v1717
    %v2598 = vpack.c.b16 %v1734, %v1718
    %v2599 = vpack.c.b16 %v1735, %v1719
    %v2600 = vpack.c.b16 %v1736, %v1720
    %v2601 = vpack.c.b16 %v1737, %v1721
    %v2602 = vpack.c.b16 %v1754, %v1738
    %v2603 = vpack.c.b16 %v1755, %v1739
    %v2604 = vpack.c.b16 %v1756, %v1740
    %v2605 = vpack.c.b16 %v1757, %v1741
    %v2606 = vpack.c.b16 %v1758, %v1742
    %v2607 = vpack.c.b16 %v1759, %v1743
    %v2608 = vpack.c.b16 %v1760, %v1744
    %v2609 = vpack.c.b16 %v1761, %v1745
    %v2610 = vpack.c.b16 %v1762, %v1746
    %v2611 = vpack.c.b16 %v1763, %v1747
    %v2612 = vpack.c.b16 %v1764, %v1748
    %v2613 = vpack.c.b16 %v1765, %v1749
    %v2614 = vpack.c.b16 %v1766, %v1750
    %v2615 = vpack.c.b16 %v1767, %v1751
    %v2616 = vpack.c.b16 %v1768, %v1752
    %v2617 = vpack.c.b16 %v1769, %v1753
    %v2618 = vpack.c.b16 %v1786, %v1770
    %v2619 = vpack.c.b16 %v1787, %v1771
    %v2620 = vpack.c.b16 %v1788, %v1772
    %v2621 = vpack.c.b16 %v1789, %v1773
    %v2622 = vpack.c.b16 %v1790, %v1774
    %v2623 = vpack.c.b16 %v1791, %v1775
    %v2624 = vpack.c.b16 %v1792, %v1776
    %v2625 = vpack.c.b16 %v1793, %v1777
    %v2626 = vpack.c.b16 %v1794, %v1778
    %v2627 = vpack.c.b16 %v1795, %v1779
    %v2628 = vpack.c.b16 %v1796, %v1780
    %v2629 = vpack.c.b16 %v1797, %v1781
    %v2630 = vpack.c.b16 %v1798, %v1782
    %v2631 = vpack.c.b16 %v1799, %v1783
    %v2632 = vpack.c.b16 %v1800, %v1784
    %v2633 = vpack.c.b16 %v1801, %v1785
    %v2634 = vpack.c.b16 %v1818, %v1802
    %v2635 = vpack.c.b16 %v1819, %v1803
    %v2636 = vpack.c.b16 %v1820, %v1804
    %v2637 = vpack.c.b16 %v1821, %v1805
    %v2638 = vpack.c.b16 %v1822, %v1806
    %v2639 = vpack.c.b16 %v1823, %v1807
    %v2640 = vpack.c.b16 %v1824, %v1808
    %v2641 = vpack.c.b16 %v1825, %v1809
    %v2642 = vpack.c.b16 %v1826, %v1810
    %v2643 = vpack.c.b16 %v1827, %v1811
    %v2644 = vpack.c.b16 %v1828, %v1812
    %v2645 = vpack.c.b16 %v1829, %v1813
    %v2646 = vpack.c.b16 %v1830, %v1814
    %v2647 = vpack.c.b16 %v1831, %v1815
    %v2648 = vpack.c.b16 %v1832, %v1816
    %v2649 = vpack.c.b16 %v1833, %v1817
    %v2650 = vpack.c.b16 %v1850, %v1834
    %v2651 = vpack.c.b16 %v1851, %v1835
    %v2652 = vpack.c.b16 %v1852, %v1836
    %v2653 = vpack.c.b16 %v1853, %v1837
    %v2654 = vpack.c.b16 %v1854, %v1838
    %v2655 = vpack.c.b16 %v1855, %v1839
    %v2656 = vpack.c.b16 %v1856, %v1840
    %v2657 = vpack.c.b16 %v1857, %v1841
    %v2658 = vpack.c.b16 %v1858, %v1842
    %v2659 = vpack.c.b16 %v1859, %v1843
    %v2660 = vpack.c.b16 %v1860, %v1844
    %v2661 = vpack.c.b16 %v1861, %v1845
    %v2662 = vpack.c.b16 %v1862, %v1846
    %v2663 = vpack.c.b16 %v1863, %v1847
    %v2664 = vpack.c.b16 %v1864, %v1848
    %v2665 = vpack.c.b16 %v1865, %v1849
    %v2666 = vpack.c.b16 %v1882, %v1866
    %v2667 = vpack.c.b16 %v1883, %v1867
    %v2668 = vpack.c.b16 %v1884, %v1868
    %v2669 = vpack.c.b16 %v1885, %v1869
    %v2670 = vpack.c.b16 %v1886, %v1870
    %v2671 = vpack.c.b16 %v1887, %v1871
    %v2672 = vpack.c.b16 %v1888, %v1872
    %v2673 = vpack.c.b16 %v1889, %v1873
    %v2674 = vpack.c.b16 %v1890, %v1874
    %v2675 = vpack.c.b16 %v1891, %v1875
    %v2676 = vpack.c.b16 %v1892, %v1876
    %v2677 = vpack.c.b16 %v1893, %v1877
    %v2678 = vpack.c.b16 %v1894, %v1878
    %v2679 = vpack.c.b16 %v1895, %v1879
    %v2680 = vpack.c.b16 %v1896, %v1880
    %v2681 = vpack.c.b16 %v1897, %v1881
    %v2682 = vpack.c.b16 %v1914, %v1898
    %v2683 = vpack.c.b16 %v1915, %v1899
    %v2684 = vpack.c.b16 %v1916, %v1900
    %v2685 = vpack.c.b16 %v1917, %v1901
    %v2686 = vpack.c.b16 %v1918, %v1902
    %v2687 = vpack.c.b16 %v1919, %v1903
    %v2688 = vpack.c.b16 %v1920, %v1904
    %v2689 = vpack.c.b16 %v1921, %v1905
    %v2690 = vpack.c.b16 %v1922, %v1906
    %v2691 = vpack.c.b16 %v1923, %v1907
    %v2692 = vpack.c.b16 %v1924, %v1908
    %v2693 = vpack.c.b16 %v1925, %v1909
    %v2694 = vpack.c.b16 %v1926, %v1910
    %v2695 = vpack.c.b16 %v1927, %v1911
    %v2696 = vpack.c.b16 %v1928, %v1912
    %v2697 = vpack.c.b16 %v1929, %v1913
    %v2698 = vpack.c.b16 %v1946, %v1930
    %v2699 = vpack.c.b16 %v1947, %v1931
    %v2700 = vpack.c.b16 %v1948, %v1932
    %v2701 = vpack.c.b16 %v1949, %v1933
    %v2702 = vpack.c.b16 %v1950, %v1934
    %v2703 = vpack.c.b16 %v1951, %v1935
    %v2704 = vpack.c.b16 %v1952, %v1936
    %v2705 = vpack.c.b16 %v1953, %v1937
    %v2706 = vpack.c.b16 %v1954, %v1938
    %v2707 = vpack.c.b16 %v1955, %v1939
    %v2708 = vpack.c.b16 %v1956, %v1940
    %v2709 = vpack.c.b16 %v1957, %v1941
    %v2710 = vpack.c.b16 %v1958, %v1942
    %v2711 = vpack.c.b16 %v1959, %v1943
    %v2712 = vpack.c.b16 %v1960, %v1944
    %v2713 = vpack.c.b16 %v1961, %v1945
    %v2714 = vpack.c.b16 %v1978, %v1962
    %v2715 = vpack.c.b16 %v1979, %v1963
    %v2716 = vpack.c.b16 %v1980, %v1964
    %v2717 = vpack.c.b16 %v1981, %v1965
    %v2718 = vpack.c.b16 %v1982, %v1966
    %v2719 = vpack.c.b16 %v1983, %v1967
    %v2720 = vpack.c.b16 %v1984, %v1968
    %v2721 = vpack.c.b16 %v1985, %v1969
    %v2722 = vpack.c.b16 %v1986, %v1970
    %v2723 = vpack.c.b16 %v1987, %v1971
    %v2724 = vpack.c.b16 %v1988, %v1972
    %v2725 = vpack.c.b16 %v1989, %v1973
    %v2726 = vpack.c.b16 %v1990, %v1974
    %v2727 = vpack.c.b16 %v1991, %v1975
    %v2728 = vpack.c.b16 %v1992, %v1976
    %v2729 = vpack.c.b16 %v1993, %v1977
    %v2730 = vpack.c.b16 %v2010, %v1994
    %v2731 = vpack.c.b16 %v2011, %v1995
    %v2732 = vpack.c.b16 %v2012, %v1996
    %v2733 = vpack.c.b16 %v2013, %v1997
    %v2734 = vpack.c.b16 %v2014, %v1998
    %v2735 = vpack.c.b16 %v2015, %v1999
    %v2736 = vpack.c.b16 %v2016, %v2000
    %v2737 = vpack.c.b16 %v2017, %v2001
    %v2738 = vpack.c.b16 %v2018, %v2002
    %v2739 = vpack.c.b16 %v2019, %v2003
    %v2740 = vpack.c.b16 %v2020, %v2004
    %v2741 = vpack.c.b16 %v2021, %v2005
    %v2742 = vpack.c.b16 %v2022, %v2006
    %v2743 = vpack.c.b16 %v2023, %v2007
    %v2744 = vpack.c.b16 %v2024, %v2008
    %v2745 = vpack.c.b16 %v2025, %v2009
    %v2746 = vpack.c.b16 %v2042, %v2026
    %v2747 = vpack.c.b16 %v2043, %v2027
    %v2748 = vpack.c.b16 %v2044, %v2028
    %v2749 = vpack.c.b16 %v2045, %v2029
    %v2750 = vpack.c.b16 %v2046, %v2030
    %v2751 = vpack.c.b16 %v2047, %v2031
    %v2752 = vpack.c.b16 %v2048, %v2032
    %v2753 = vpack.c.b16 %v2049, %v2033
    %v2754 = vpack.c.b16 %v2050, %v2034
    %v2755 = vpack.c.b16 %v2051, %v2035
    %v2756 = vpack.c.b16 %v2052, %v2036
    %v2757 = vpack.c.b16 %v2053, %v2037
    %v2758 = vpack.c.b16 %v2054, %v2038
    %v2759 = vpack.c.b16 %v2055, %v2039
    %v2760 = vpack.c.b16 %v2056, %v2040
    %v2761 = vpack.c.b16 %v2057, %v2041
    %v2762 = vpack.c.b16 %v2074, %v2058
    %v2763 = vpack.c.b16 %v2075, %v2059
    %v2764 = vpack.c.b16 %v2076, %v2060
    %v2765 = vpack.c.b16 %v2077, %v2061
    %v2766 = vpack.c.b16 %v2078, %v2062
    %v2767 = vpack.c.b16 %v2079, %v2063
    %v2768 = vpack.c.b16 %v2080, %v2064
    %v2769 = vpack.c.b16 %v2081, %v2065
    %v2770 = vpack.c.b16 %v2082, %v2066
    %v2771 = vpack.c.b16 %v2083, %v2067
    %v2772 = vpack.c.b16 %v2084, %v2068
    %v2773 = vpack.c.b16 %v2085, %v2069
    %v2774 = vpack.c.b16 %v2086, %v2070
    %v2775 = vpack.c.b16 %v2087, %v2071
    %v2776 = vpack.c.b16 %v2088, %v2072
    %v2777 = vpack.c.b16 %v2089, %v2073
    %v2778 = vpack.c.b16 %v2106, %v2090
    %v2779 = vpack.c.b16 %v2107, %v2091
    %v2780 = vpack.c.b16 %v2108, %v2092
    %v2781 = vpack.c.b16 %v2109, %v2093
    %v2782 = vpack.c.b16 %v2110, %v2094
    %v2783 = vpack.c.b16 %v2111, %v2095
    %v2784 = vpack.c.b16 %v2112, %v2096
    %v2785 = vpack.c.b16 %v2113, %v2097
    %v2786 = vpack.c.b16 %v2114, %v2098
    %v2787 = vpack.c.b16 %v2115, %v2099
    %v2788 = vpack.c.b16 %v2116, %v2100
    %v2789 = vpack.c.b16 %v2117, %v2101
    %v2790 = vpack.c.b16 %v2118, %v2102
    %v2791 = vpack.c.b16 %v2119, %v2103
    %v2792 = vpack.c.b16 %v2120, %v2104
    %v2793 = vpack.c.b16 %v2121, %v2105
    %v2794 = vpack.c.b16 %v2138, %v2122
    %v2795 = vpack.c.b16 %v2139, %v2123
    %v2796 = vpack.c.b16 %v2140, %v2124
    %v2797 = vpack.c.b16 %v2141, %v2125
    %v2798 = vpack.c.b16 %v2142, %v2126
    %v2799 = vpack.c.b16 %v2143, %v2127
    %v2800 = vpack.c.b16 %v2144, %v2128
    %v2801 = vpack.c.b16 %v2145, %v2129
    %v2802 = vpack.c.b16 %v2146, %v2130
    %v2803 = vpack.c.b16 %v2147, %v2131
    %v2804 = vpack.c.b16 %v2148, %v2132
    %v2805 = vpack.c.b16 %v2149, %v2133
    %v2806 = vpack.c.b16 %v2150, %v2134
    %v2807 = vpack.c.b16 %v2151, %v2135
    %v2808 = vpack.c.b16 %v2152, %v2136
    %v2809 = vpack.c.b16 %v2153, %v2137
    %v2810 = vpack.c.b16 %v2170, %v2154
    %v2811 = vpack.c.b16 %v2171, %v2155
    %v2812 = vpack.c.b16 %v2172, %v2156
    %v2813 = vpack.c.b16 %v2173, %v2157
    %v2814 = vpack.c.b16 %v2174, %v2158
    %v2815 = vpack.c.b16 %v2175, %v2159
    %v2816 = vpack.c.b16 %v2176, %v2160
    %v2817 = vpack.c.b16 %v2177, %v2161
    %v2818 = vpack.c.b16 %v2178, %v2162
    %v2819 = vpack.c.b16 %v2179, %v2163
    %v2820 = vpack.c.b16 %v2180, %v2164
    %v2821 = vpack.c.b16 %v2181, %v2165
    %v2822 = vpack.c.b16 %v2182, %v2166
    %v2823 = vpack.c.b16 %v2183, %v2167
    %v2824 = vpack.c.b16 %v2184, %v2168
    %v2825 = vpack.c.b16 %v2185, %v2169
    %v2826 = vpack.c.b16 %v2202, %v2186
    %v2827 = vpack.c.b16 %v2203, %v2187
    %v2828 = vpack.c.b16 %v2204, %v2188
    %v2829 = vpack.c.b16 %v2205, %v2189
    %v2830 = vpack.c.b16 %v2206, %v2190
    %v2831 = vpack.c.b16 %v2207, %v2191
    %v2832 = vpack.c.b16 %v2208, %v2192
    %v2833 = vpack.c.b16 %v2209, %v2193
    %v2834 = vpack.c.b16 %v2210, %v2194
    %v2835 = vpack.c.b16 %v2211, %v2195
    %v2836 = vpack.c.b16 %v2212, %v2196
    %v2837 = vpack.c.b16 %v2213, %v2197
    %v2838 = vpack.c.b16 %v2214, %v2198
    %v2839 = vpack.c.b16 %v2215, %v2199
    %v2840 = vpack.c.b16 %v2216, %v2200
    %v2841 = vpack.c.b16 %v2217, %v2201
    %v2842 = vpack.c.b16 %v2234, %v2218
    %v2843 = vpack.c.b16 %v2235, %v2219
    %v2844 = vpack.c.b16 %v2236, %v2220
    %v2845 = vpack.c.b16 %v2237, %v2221
    %v2846 = vpack.c.b16 %v2238, %v2222
    %v2847 = vpack.c.b16 %v2239, %v2223
    %v2848 = vpack.c.b16 %v2240, %v2224
    %v2849 = vpack.c.b16 %v2241, %v2225
    %v2850 = vpack.c.b16 %v2242, %v2226
    %v2851 = vpack.c.b16 %v2243, %v2227
    %v2852 = vpack.c.b16 %v2244, %v2228
    %v2853 = vpack.c.b16 %v2245, %v2229
    %v2854 = vpack.c.b16 %v2246, %v2230
    %v2855 = vpack.c.b16 %v2247, %v2231
    %v2856 = vpack.c.b16 %v2248, %v2232
    %v2857 = vpack.c.b16 %v2249, %v2233
    %v2858 = vpack.c.b16 %v2266, %v2250
    %v2859 = vpack.c.b16 %v2267, %v2251
    %v2860 = vpack.c.b16 %v2268, %v2252
    %v2861 = vpack.c.b16 %v2269, %v2253
    %v2862 = vpack.c.b16 %v2270, %v2254
    %v2863 = vpack.c.b16 %v2271, %v2255
    %v2864 = vpack.c.b16 %v2272, %v2256
    %v2865 = vpack.c.b16 %v2273, %v2257
    %v2866 = vpack.c.b16 %v2274, %v2258
    %v2867 = vpack.c.b16 %v2275, %v2259
    %v2868 = vpack.c.b16 %v2276, %v2260
    %v2869 = vpack.c.b16 %v2277, %v2261
    %v2870 = vpack.c.b16 %v2278, %v2262
    %v2871 = vpack.c.b16 %v2279, %v2263
    %v2872 = vpack.c.b16 %v2280, %v2264
    %v2873 = vpack.c.b16 %v2281, %v2265
    %v2874 = vpack.c.b16 %v2298, %v2282
    %v2875 = vpack.c.b16 %v2299, %v2283
    %v2876 = vpack.c.b16 %v2300, %v2284
    %v2877 = vpack.c.b16 %v2301, %v2285
    %v2878 = vpack.c.b16 %v2302, %v2286
    %v2879 = vpack.c.b16 %v2303, %v2287
    %v2880 = vpack.c.b16 %v2304, %v2288
    %v2881 = vpack.c.b16 %v2305, %v2289
    %v2882 = vpack.c.b16 %v2306, %v2290
    %v2883 = vpack.c.b16 %v2307, %v2291
    %v2884 = vpack.c.b16 %v2308, %v2292
    %v2885 = vpack.c.b16 %v2309, %v2293
    %v2886 = vpack.c.b16 %v2310, %v2294
    %v2887 = vpack.c.b16 %v2311, %v2295
    %v2888 = vpack.c.b16 %v2312, %v2296
    %v2889 = vpack.c.b16 %v2313, %v2297
    %v2890 = vpack.c.b16 %v2330, %v2314
    %v2891 = vpack.c.b16 %v2331, %v2315
    %v2892 = vpack.c.b16 %v2332, %v2316
    %v2893 = vpack.c.b16 %v2333, %v2317
    %v2894 = vpack.c.b16 %v2334, %v2318
    %v2895 = vpack.c.b16 %v2335, %v2319
    %v2896 = vpack.c.b16 %v2336, %v2320
    %v2897 = vpack.c.b16 %v2337, %v2321
    %v2898 = vpack.c.b16 %v2338, %v2322
    %v2899 = vpack.c.b16 %v2339, %v2323
    %v2900 = vpack.c.b16 %v2340, %v2324
    %v2901 = vpack.c.b16 %v2341, %v2325
    %v2902 = vpack.c.b16 %v2342, %v2326
    %v2903 = vpack.c.b16 %v2343, %v2327
    %v2904 = vpack.c.b16 %v2344, %v2328
    %v2905 = vpack.c.b16 %v2345, %v2329
    %v2906 = vpack.c.b16 %v2362, %v2346
    %v2907 = vpack.c.b16 %v2363, %v2347
    %v2908 = vpack.c.b16 %v2364, %v2348
    %v2909 = vpack.c.b16 %v2365, %v2349
    %v2910 = vpack.c.b16 %v2366, %v2350
    %v2911 = vpack.c.b16 %v2367, %v2351
    %v2912 = vpack.c.b16 %v2368, %v2352
    %v2913 = vpack.c.b16 %v2369, %v2353
    %v2914 = vpack.c.b16 %v2370, %v2354
    %v2915 = vpack.c.b16 %v2371, %v2355
    %v2916 = vpack.c.b16 %v2372, %v2356
    %v2917 = vpack.c.b16 %v2373, %v2357
    %v2918 = vpack.c.b16 %v2374, %v2358
    %v2919 = vpack.c.b16 %v2375, %v2359
    %v2920 = vpack.c.b16 %v2376, %v2360
    %v2921 = vpack.c.b16 %v2377, %v2361
    %v2922 = vpack.c.b16 %v2394, %v2378
    %v2923 = vpack.c.b16 %v2395, %v2379
    %v2924 = vpack.c.b16 %v2396, %v2380
    %v2925 = vpack.c.b16 %v2397, %v2381
    %v2926 = vpack.c.b16 %v2398, %v2382
    %v2927 = vpack.c.b16 %v2399, %v2383
    %v2928 = vpack.c.b16 %v2400, %v2384
    %v2929 = vpack.c.b16 %v2401, %v2385
    %v2930 = vpack.c.b16 %v2402, %v2386
    %v2931 = vpack.c.b16 %v2403, %v2387
    %v2932 = vpack.c.b16 %v2404, %v2388
    %v2933 = vpack.c.b16 %v2405, %v2389
    %v2934 = vpack.c.b16 %v2406, %v2390
    %v2935 = vpack.c.b16 %v2407, %v2391
    %v2936 = vpack.c.b16 %v2408, %v2392
    %v2937 = vpack.c.b16 %v2409, %v2393
    %v2938 = vpack.c.b16 %v2426, %v2410
    %v2939 = vpack.c.b16 %v2427, %v2411
    %v2940 = vpack.c.b16 %v2428, %v2412
    %v2941 = vpack.c.b16 %v2429, %v2413
    %v2942 = vpack.c.b16 %v2430, %v2414
    %v2943 = vpack.c.b16 %v2431, %v2415
    %v2944 = vpack.c.b16 %v2432, %v2416
    %v2945 = vpack.c.b16 %v2433, %v2417
    %v2946 = vpack.c.b16 %v2434, %v2418
    %v2947 = vpack.c.b16 %v2435, %v2419
    %v2948 = vpack.c.b16 %v2436, %v2420
    %v2949 = vpack.c.b16 %v2437, %v2421
    %v2950 = vpack.c.b16 %v2438, %v2422
    %v2951 = vpack.c.b16 %v2439, %v2423
    %v2952 = vpack.c.b16 %v2440, %v2424
    %v2953 = vpack.c.b16 %v2441, %v2425
    %3466 = vmatprep.subr.bf16.mxu0 %v2443
    %3467 = vmatpush1.bf16.msra.mxu0 %v2442
    %3468 = vmatprep.subr.bf16.mxu0 %v2459
    %3469 = vmatpush1.bf16.msra.mxu0 %v2458
    %3470 = vmatprep.subr.bf16.mxu0 %v2475
    %3471 = vmatpush1.bf16.msra.mxu0 %v2474
    %3472 = vmatprep.subr.bf16.mxu0 %v2491
    %3473 = vmatpush1.bf16.msra.mxu0 %v2490
    %3474 = vmatprep.subr.bf16.mxu0 %v2507
    %3475 = vmatpush1.bf16.msra.mxu0 %v2506
    %3476 = vmatprep.subr.bf16.mxu0 %v2523
    %3477 = vmatpush1.bf16.msra.mxu0 %v2522
    %3478 = vmatprep.subr.bf16.mxu0 %v2539
    %3479 = vmatpush1.bf16.msra.mxu0 %v2538
    %3480 = vmatprep.subr.bf16.mxu0 %v2555
    %3481 = vmatpush1.bf16.msra.mxu0 %v2554
    %3482 = vmatprep.subr.bf16.mxu0 %v2571
    %3483 = vmatpush1.bf16.msra.mxu0 %v2570
    %3484 = vmatprep.subr.bf16.mxu0 %v2587
    %3485 = vmatpush1.bf16.msra.mxu0 %v2586
    %3486 = vmatprep.subr.bf16.mxu0 %v2603
    %3487 = vmatpush1.bf16.msra.mxu0 %v2602
    %3488 = vmatprep.subr.bf16.mxu0 %v2619
    %3489 = vmatpush1.bf16.msra.mxu0 %v2618
    %3490 = vmatprep.subr.bf16.mxu0 %v2635
    %3491 = vmatpush1.bf16.msra.mxu0 %v2634
    %3492 = vmatprep.subr.bf16.mxu0 %v2651
    %3493 = vmatpush1.bf16.msra.mxu0 %v2650
    %3494 = vmatprep.subr.bf16.mxu0 %v2667
    %3495 = vmatpush1.bf16.msra.mxu0 %v2666
    %3496 = vmatprep.subr.bf16.mxu0 %v2683
    %3497 = vmatpush1.bf16.msra.mxu0 %v2682
    %3498 = vmatprep.mubr.bf16.mxu0 %v391
    %3499 = vmatmul.mubr.bf16.gmra.mrb[0].mxu0 %v390
    %v3500 = vpop.f32.mrb[0].mxu0
    %v3501 = vadd.f32 0.0, %v3500
    %v3502 = vpop.f32.mrb[0].mxu0
    %v3503 = vadd.f32 0.0, %v3502
    %v3504 = vpop.f32.mrb[0].mxu0
    %v3505 = vpop.f32.mrb[0].mxu0
    %3506 = vdwg.mxu0
    %3507 = vmatprep.subr.bf16.mxu0 %v2699
    %3508 = vmatpush1.bf16.msra.mxu0 %v2698
    %3509 = vmatprep.subr.bf16.mxu0 %v2715
    %3510 = vmatpush1.bf16.msra.mxu0 %v2714
    %3511 = vmatprep.subr.bf16.mxu0 %v2731
    %3512 = vmatpush1.bf16.msra.mxu0 %v2730
    %3513 = vmatprep.subr.bf16.mxu0 %v2747
    %3514 = vmatpush1.bf16.msra.mxu0 %v2746
    %3515 = vmatprep.subr.bf16.mxu0 %v2763
    %3516 = vmatpush1.bf16.msra.mxu0 %v2762
    %3517 = vmatprep.subr.bf16.mxu0 %v2779
    %3518 = vmatpush1.bf16.msra.mxu0 %v2778
    %3519 = vmatprep.subr.bf16.mxu0 %v2795
    %3520 = vmatpush1.bf16.msra.mxu0 %v2794
    %3521 = vmatprep.subr.bf16.mxu0 %v2811
    %3522 = vmatpush1.bf16.msra.mxu0 %v2810
    %3523 = vmatprep.subr.bf16.mxu0 %v2827
    %3524 = vmatpush1.bf16.msra.mxu0 %v2826
    %3525 = vmatprep.subr.bf16.mxu0 %v2843
    %3526 = vmatpush1.bf16.msra.mxu0 %v2842
    %3527 = vmatprep.subr.bf16.mxu0 %v2859
    %3528 = vmatpush1.bf16.msra.mxu0 %v2858
    %3529 = vmatprep.subr.bf16.mxu0 %v2875
    %3530 = vmatpush1.bf16.msra.mxu0 %v2874
    %3531 = vmatprep.subr.bf16.mxu0 %v2891
    %3532 = vmatpush1.bf16.msra.mxu0 %v2890
    %3533 = vmatprep.subr.bf16.mxu0 %v2907
    %3534 = vmatpush1.bf16.msra.mxu0 %v2906
    %3535 = vmatprep.subr.bf16.mxu0 %v2923
    %3536 = vmatpush1.bf16.msra.mxu0 %v2922
    %3537 = vmatprep.subr.bf16.mxu0 %v2939
    %3538 = vmatpush1.bf16.msra.mxu0 %v2938
    %3539 = vmatprep.mubr.bf16.mxu0 %v393
    %3540 = vmatmul.mubr.bf16.gmra.mrb[0].mxu0 %v392
    %v3541 = vpop.f32.mrb[0].mxu0
    %v3542 = vadd.f32 %v3501, %v3541
    %v3543 = vpop.f32.mrb[0].mxu0
    %v3544 = vadd.f32 %v3503, %v3543
    %v3545 = vpop.f32.mrb[0].mxu0
    %v3546 = vpop.f32.mrb[0].mxu0
    %3547 = vdwg.mxu0
    %3548 = vmatprep.subr.bf16.mxu0 %v2445
    %3549 = vmatpush1.bf16.msra.mxu0 %v2444
    %3550 = vmatprep.subr.bf16.mxu0 %v2461
    %3551 = vmatpush1.bf16.msra.mxu0 %v2460
    %3552 = vmatprep.subr.bf16.mxu0 %v2477
    %3553 = vmatpush1.bf16.msra.mxu0 %v2476
    %3554 = vmatprep.subr.bf16.mxu0 %v2493
    %3555 = vmatpush1.bf16.msra.mxu0 %v2492
    %3556 = vmatprep.subr.bf16.mxu0 %v2509
    %3557 = vmatpush1.bf16.msra.mxu0 %v2508
    %3558 = vmatprep.subr.bf16.mxu0 %v2525
    %3559 = vmatpush1.bf16.msra.mxu0 %v2524
    %3560 = vmatprep.subr.bf16.mxu0 %v2541
    %3561 = vmatpush1.bf16.msra.mxu0 %v2540
    %3562 = vmatprep.subr.bf16.mxu0 %v2557
    %3563 = vmatpush1.bf16.msra.mxu0 %v2556
    %3564 = vmatprep.subr.bf16.mxu0 %v2573
    %3565 = vmatpush1.bf16.msra.mxu0 %v2572
    %3566 = vmatprep.subr.bf16.mxu0 %v2589
    %3567 = vmatpush1.bf16.msra.mxu0 %v2588
    %3568 = vmatprep.subr.bf16.mxu0 %v2605
    %3569 = vmatpush1.bf16.msra.mxu0 %v2604
    %3570 = vmatprep.subr.bf16.mxu0 %v2621
    %3571 = vmatpush1.bf16.msra.mxu0 %v2620
    %3572 = vmatprep.subr.bf16.mxu0 %v2637
    %3573 = vmatpush1.bf16.msra.mxu0 %v2636
    %3574 = vmatprep.subr.bf16.mxu0 %v2653
    %3575 = vmatpush1.bf16.msra.mxu0 %v2652
    %3576 = vmatprep.subr.bf16.mxu0 %v2669
    %3577 = vmatpush1.bf16.msra.mxu0 %v2668
    %3578 = vmatprep.subr.bf16.mxu0 %v2685
    %3579 = vmatpush1.bf16.msra.mxu0 %v2684
    %3580 = vmatprep.mubr.bf16.mxu0 %v391
    %3581 = vmatmul.mubr.bf16.gmra.mrb[0].mxu0 %v390
    %v3582 = vpop.f32.mrb[0].mxu0
    %v3583 = vadd.f32 0.0, %v3582
    %v3584 = vpop.f32.mrb[0].mxu0
    %v3585 = vadd.f32 0.0, %v3584
    %v3586 = vpop.f32.mrb[0].mxu0
    %v3587 = vpop.f32.mrb[0].mxu0
    %3588 = vdwg.mxu0
    %3589 = vmatprep.subr.bf16.mxu0 %v2701
    %3590 = vmatpush1.bf16.msra.mxu0 %v2700
    %3591 = vmatprep.subr.bf16.mxu0 %v2717
    %3592 = vmatpush1.bf16.msra.mxu0 %v2716
    %3593 = vmatprep.subr.bf16.mxu0 %v2733
    %3594 = vmatpush1.bf16.msra.mxu0 %v2732
    %3595 = vmatprep.subr.bf16.mxu0 %v2749
    %3596 = vmatpush1.bf16.msra.mxu0 %v2748
    %3597 = vmatprep.subr.bf16.mxu0 %v2765
    %3598 = vmatpush1.bf16.msra.mxu0 %v2764
    %3599 = vmatprep.subr.bf16.mxu0 %v2781
    %3600 = vmatpush1.bf16.msra.mxu0 %v2780
    %3601 = vmatprep.subr.bf16.mxu0 %v2797
    %3602 = vmatpush1.bf16.msra.mxu0 %v2796
    %3603 = vmatprep.subr.bf16.mxu0 %v2813
    %3604 = vmatpush1.bf16.msra.mxu0 %v2812
    %3605 = vmatprep.subr.bf16.mxu0 %v2829
    %3606 = vmatpush1.bf16.msra.mxu0 %v2828
    %3607 = vmatprep.subr.bf16.mxu0 %v2845
    %3608 = vmatpush1.bf16.msra.mxu0 %v2844
    %3609 = vmatprep.subr.bf16.mxu0 %v2861
    %3610 = vmatpush1.bf16.msra.mxu0 %v2860
    %3611 = vmatprep.subr.bf16.mxu0 %v2877
    %3612 = vmatpush1.bf16.msra.mxu0 %v2876
    %3613 = vmatprep.subr.bf16.mxu0 %v2893
    %3614 = vmatpush1.bf16.msra.mxu0 %v2892
    %3615 = vmatprep.subr.bf16.mxu0 %v2909
    %3616 = vmatpush1.bf16.msra.mxu0 %v2908
    %3617 = vmatprep.subr.bf16.mxu0 %v2925
    %3618 = vmatpush1.bf16.msra.mxu0 %v2924
    %3619 = vmatprep.subr.bf16.mxu0 %v2941
    %3620 = vmatpush1.bf16.msra.mxu0 %v2940
    %3621 = vmatprep.mubr.bf16.mxu0 %v393
    %3622 = vmatmul.mubr.bf16.gmra.mrb[0].mxu0 %v392
    %v3623 = vpop.f32.mrb[0].mxu0
    %v3624 = vadd.f32 %v3583, %v3623
    %v3625 = vpop.f32.mrb[0].mxu0
    %v3626 = vadd.f32 %v3585, %v3625
    %v3627 = vpop.f32.mrb[0].mxu0
    %v3628 = vpop.f32.mrb[0].mxu0
    %3629 = vdwg.mxu0
    %3630 = vmatprep.subr.bf16.mxu0 %v2447
    %3631 = vmatpush1.bf16.msra.mxu0 %v2446
    %3632 = vmatprep.subr.bf16.mxu0 %v2463
    %3633 = vmatpush1.bf16.msra.mxu0 %v2462
    %3634 = vmatprep.subr.bf16.mxu0 %v2479
    %3635 = vmatpush1.bf16.msra.mxu0 %v2478
    %3636 = vmatprep.subr.bf16.mxu0 %v2495
    %3637 = vmatpush1.bf16.msra.mxu0 %v2494
    %3638 = vmatprep.subr.bf16.mxu0 %v2511
    %3639 = vmatpush1.bf16.msra.mxu0 %v2510
    %3640 = vmatprep.subr.bf16.mxu0 %v2527
    %3641 = vmatpush1.bf16.msra.mxu0 %v2526
    %3642 = vmatprep.subr.bf16.mxu0 %v2543
    %3643 = vmatpush1.bf16.msra.mxu0 %v2542
    %3644 = vmatprep.subr.bf16.mxu0 %v2559
    %3645 = vmatpush1.bf16.msra.mxu0 %v2558
    %3646 = vmatprep.subr.bf16.mxu0 %v2575
    %3647 = vmatpush1.bf16.msra.mxu0 %v2574
    %3648 = vmatprep.subr.bf16.mxu0 %v2591
    %3649 = vmatpush1.bf16.msra.mxu0 %v2590
    %3650 = vmatprep.subr.bf16.mxu0 %v2607
    %3651 = vmatpush1.bf16.msra.mxu0 %v2606
    %3652 = vmatprep.subr.bf16.mxu0 %v2623
    %3653 = vmatpush1.bf16.msra.mxu0 %v2622
    %3654 = vmatprep.subr.bf16.mxu0 %v2639
    %3655 = vmatpush1.bf16.msra.mxu0 %v2638
    %3656 = vmatprep.subr.bf16.mxu0 %v2655
    %3657 = vmatpush1.bf16.msra.mxu0 %v2654
    %3658 = vmatprep.subr.bf16.mxu0 %v2671
    %3659 = vmatpush1.bf16.msra.mxu0 %v2670
    %3660 = vmatprep.subr.bf16.mxu0 %v2687
    %3661 = vmatpush1.bf16.msra.mxu0 %v2686
    %3662 = vmatprep.mubr.bf16.mxu0 %v391
    %3663 = vmatmul.mubr.bf16.gmra.mrb[0].mxu0 %v390
    %v3664 = vpop.f32.mrb[0].mxu0
    %v3665 = vadd.f32 0.0, %v3664
    %v3666 = vpop.f32.mrb[0].mxu0
    %v3667 = vadd.f32 0.0, %v3666
    %v3668 = vpop.f32.mrb[0].mxu0
    %v3669 = vpop.f32.mrb[0].mxu0
    %3670 = vdwg.mxu0
    %3671 = vmatprep.subr.bf16.mxu0 %v2703
    %3672 = vmatpush1.bf16.msra.mxu0 %v2702
    %3673 = vmatprep.subr.bf16.mxu0 %v2719
    %3674 = vmatpush1.bf16.msra.mxu0 %v2718
    %3675 = vmatprep.subr.bf16.mxu0 %v2735
    %3676 = vmatpush1.bf16.msra.mxu0 %v2734
    %3677 = vmatprep.subr.bf16.mxu0 %v2751
    %3678 = vmatpush1.bf16.msra.mxu0 %v2750
    %3679 = vmatprep.subr.bf16.mxu0 %v2767
    %3680 = vmatpush1.bf16.msra.mxu0 %v2766
    %3681 = vmatprep.subr.bf16.mxu0 %v2783
    %3682 = vmatpush1.bf16.msra.mxu0 %v2782
    %3683 = vmatprep.subr.bf16.mxu0 %v2799
    %3684 = vmatpush1.bf16.msra.mxu0 %v2798
    %3685 = vmatprep.subr.bf16.mxu0 %v2815
    %3686 = vmatpush1.bf16.msra.mxu0 %v2814
    %3687 = vmatprep.subr.bf16.mxu0 %v2831
    %3688 = vmatpush1.bf16.msra.mxu0 %v2830
    %3689 = vmatprep.subr.bf16.mxu0 %v2847
    %3690 = vmatpush1.bf16.msra.mxu0 %v2846
    %3691 = vmatprep.subr.bf16.mxu0 %v2863
    %3692 = vmatpush1.bf16.msra.mxu0 %v2862
    %3693 = vmatprep.subr.bf16.mxu0 %v2879
    %3694 = vmatpush1.bf16.msra.mxu0 %v2878
    %3695 = vmatprep.subr.bf16.mxu0 %v2895
    %3696 = vmatpush1.bf16.msra.mxu0 %v2894
    %3697 = vmatprep.subr.bf16.mxu0 %v2911
    %3698 = vmatpush1.bf16.msra.mxu0 %v2910
    %3699 = vmatprep.subr.bf16.mxu0 %v2927
    %3700 = vmatpush1.bf16.msra.mxu0 %v2926
    %3701 = vmatprep.subr.bf16.mxu0 %v2943
    %3702 = vmatpush1.bf16.msra.mxu0 %v2942
    %3703 = vmatprep.mubr.bf16.mxu0 %v393
    %3704 = vmatmul.mubr.bf16.gmra.mrb[0].mxu0 %v392
    %v3705 = vpop.f32.mrb[0].mxu0
    %v3706 = vadd.f32 %v3665, %v3705
    %v3707 = vpop.f32.mrb[0].mxu0
    %v3708 = vadd.f32 %v3667, %v3707
    %v3709 = vpop.f32.mrb[0].mxu0
    %v3710 = vpop.f32.mrb[0].mxu0
    %3711 = vdwg.mxu0
    %3712 = vmatprep.subr.bf16.mxu0 %v2449
    %3713 = vmatpush1.bf16.msra.mxu0 %v2448
    %3714 = vmatprep.subr.bf16.mxu0 %v2465
    %3715 = vmatpush1.bf16.msra.mxu0 %v2464
    %3716 = vmatprep.subr.bf16.mxu0 %v2481
    %3717 = vmatpush1.bf16.msra.mxu0 %v2480
    %3718 = vmatprep.subr.bf16.mxu0 %v2497
    %3719 = vmatpush1.bf16.msra.mxu0 %v2496
    %3720 = vmatprep.subr.bf16.mxu0 %v2513
    %3721 = vmatpush1.bf16.msra.mxu0 %v2512
    %3722 = vmatprep.subr.bf16.mxu0 %v2529
    %3723 = vmatpush1.bf16.msra.mxu0 %v2528
    %3724 = vmatprep.subr.bf16.mxu0 %v2545
    %3725 = vmatpush1.bf16.msra.mxu0 %v2544
    %3726 = vmatprep.subr.bf16.mxu0 %v2561
    %3727 = vmatpush1.bf16.msra.mxu0 %v2560
    %3728 = vmatprep.subr.bf16.mxu0 %v2577
    %3729 = vmatpush1.bf16.msra.mxu0 %v2576
    %3730 = vmatprep.subr.bf16.mxu0 %v2593
    %3731 = vmatpush1.bf16.msra.mxu0 %v2592
    %3732 = vmatprep.subr.bf16.mxu0 %v2609
    %3733 = vmatpush1.bf16.msra.mxu0 %v2608
    %3734 = vmatprep.subr.bf16.mxu0 %v2625
    %3735 = vmatpush1.bf16.msra.mxu0 %v2624
    %3736 = vmatprep.subr.bf16.mxu0 %v2641
    %3737 = vmatpush1.bf16.msra.mxu0 %v2640
    %3738 = vmatprep.subr.bf16.mxu0 %v2657
    %3739 = vmatpush1.bf16.msra.mxu0 %v2656
    %3740 = vmatprep.subr.bf16.mxu0 %v2673
    %3741 = vmatpush1.bf16.msra.mxu0 %v2672
    %3742 = vmatprep.subr.bf16.mxu0 %v2689
    %3743 = vmatpush1.bf16.msra.mxu0 %v2688
    %3744 = vmatprep.mubr.bf16.mxu0 %v391
    %3745 = vmatmul.mubr.bf16.gmra.mrb[0].mxu0 %v390
    %v3746 = vpop.f32.mrb[0].mxu0
    %v3747 = vadd.f32 0.0, %v3746
    %v3748 = vpop.f32.mrb[0].mxu0
    %v3749 = vadd.f32 0.0, %v3748
    %v3750 = vpop.f32.mrb[0].mxu0
    %v3751 = vpop.f32.mrb[0].mxu0
    %3752 = vdwg.mxu0
    %3753 = vmatprep.subr.bf16.mxu0 %v2705
    %3754 = vmatpush1.bf16.msra.mxu0 %v2704
    %3755 = vmatprep.subr.bf16.mxu0 %v2721
    %3756 = vmatpush1.bf16.msra.mxu0 %v2720
    %3757 = vmatprep.subr.bf16.mxu0 %v2737
    %3758 = vmatpush1.bf16.msra.mxu0 %v2736
    %3759 = vmatprep.subr.bf16.mxu0 %v2753
    %3760 = vmatpush1.bf16.msra.mxu0 %v2752
    %3761 = vmatprep.subr.bf16.mxu0 %v2769
    %3762 = vmatpush1.bf16.msra.mxu0 %v2768
    %3763 = vmatprep.subr.bf16.mxu0 %v2785
    %3764 = vmatpush1.bf16.msra.mxu0 %v2784
    %3765 = vmatprep.subr.bf16.mxu0 %v2801
    %3766 = vmatpush1.bf16.msra.mxu0 %v2800
    %3767 = vmatprep.subr.bf16.mxu0 %v2817
    %3768 = vmatpush1.bf16.msra.mxu0 %v2816
    %3769 = vmatprep.subr.bf16.mxu0 %v2833
    %3770 = vmatpush1.bf16.msra.mxu0 %v2832
    %3771 = vmatprep.subr.bf16.mxu0 %v2849
    %3772 = vmatpush1.bf16.msra.mxu0 %v2848
    %3773 = vmatprep.subr.bf16.mxu0 %v2865
    %3774 = vmatpush1.bf16.msra.mxu0 %v2864
    %3775 = vmatprep.subr.bf16.mxu0 %v2881
    %3776 = vmatpush1.bf16.msra.mxu0 %v2880
    %3777 = vmatprep.subr.bf16.mxu0 %v2897
    %3778 = vmatpush1.bf16.msra.mxu0 %v2896
    %3779 = vmatprep.subr.bf16.mxu0 %v2913
    %3780 = vmatpush1.bf16.msra.mxu0 %v2912
    %3781 = vmatprep.subr.bf16.mxu0 %v2929
    %3782 = vmatpush1.bf16.msra.mxu0 %v2928
    %3783 = vmatprep.subr.bf16.mxu0 %v2945
    %3784 = vmatpush1.bf16.msra.mxu0 %v2944
    %3785 = vmatprep.mubr.bf16.mxu0 %v393
    %3786 = vmatmul.mubr.bf16.gmra.mrb[0].mxu0 %v392
    %v3787 = vpop.f32.mrb[0].mxu0
    %v3788 = vadd.f32 %v3747, %v3787
    %v3789 = vpop.f32.mrb[0].mxu0
    %v3790 = vadd.f32 %v3749, %v3789
    %v3791 = vpop.f32.mrb[0].mxu0
    %v3792 = vpop.f32.mrb[0].mxu0
    %3793 = vdwg.mxu0
    %3794 = vmatprep.subr.bf16.mxu0 %v2451
    %3795 = vmatpush1.bf16.msra.mxu0 %v2450
    %3796 = vmatprep.subr.bf16.mxu0 %v2467
    %3797 = vmatpush1.bf16.msra.mxu0 %v2466
    %3798 = vmatprep.subr.bf16.mxu0 %v2483
    %3799 = vmatpush1.bf16.msra.mxu0 %v2482
    %3800 = vmatprep.subr.bf16.mxu0 %v2499
    %3801 = vmatpush1.bf16.msra.mxu0 %v2498
    %3802 = vmatprep.subr.bf16.mxu0 %v2515
    %3803 = vmatpush1.bf16.msra.mxu0 %v2514
    %3804 = vmatprep.subr.bf16.mxu0 %v2531
    %3805 = vmatpush1.bf16.msra.mxu0 %v2530
    %3806 = vmatprep.subr.bf16.mxu0 %v2547
    %3807 = vmatpush1.bf16.msra.mxu0 %v2546
    %3808 = vmatprep.subr.bf16.mxu0 %v2563
    %3809 = vmatpush1.bf16.msra.mxu0 %v2562
    %3810 = vmatprep.subr.bf16.mxu0 %v2579
    %3811 = vmatpush1.bf16.msra.mxu0 %v2578
    %3812 = vmatprep.subr.bf16.mxu0 %v2595
    %3813 = vmatpush1.bf16.msra.mxu0 %v2594
    %3814 = vmatprep.subr.bf16.mxu0 %v2611
    %3815 = vmatpush1.bf16.msra.mxu0 %v2610
    %3816 = vmatprep.subr.bf16.mxu0 %v2627
    %3817 = vmatpush1.bf16.msra.mxu0 %v2626
    %3818 = vmatprep.subr.bf16.mxu0 %v2643
    %3819 = vmatpush1.bf16.msra.mxu0 %v2642
    %3820 = vmatprep.subr.bf16.mxu0 %v2659
    %3821 = vmatpush1.bf16.msra.mxu0 %v2658
    %3822 = vmatprep.subr.bf16.mxu0 %v2675
    %3823 = vmatpush1.bf16.msra.mxu0 %v2674
    %3824 = vmatprep.subr.bf16.mxu0 %v2691
    %3825 = vmatpush1.bf16.msra.mxu0 %v2690
    %3826 = vmatprep.mubr.bf16.mxu0 %v391
    %3827 = vmatmul.mubr.bf16.gmra.mrb[0].mxu0 %v390
    %v3828 = vpop.f32.mrb[0].mxu0
    %v3829 = vadd.f32 0.0, %v3828
    %v3830 = vpop.f32.mrb[0].mxu0
    %v3831 = vadd.f32 0.0, %v3830
    %v3832 = vpop.f32.mrb[0].mxu0
    %v3833 = vpop.f32.mrb[0].mxu0
    %3834 = vdwg.mxu0
    %3835 = vmatprep.subr.bf16.mxu0 %v2707
    %3836 = vmatpush1.bf16.msra.mxu0 %v2706
    %3837 = vmatprep.subr.bf16.mxu0 %v2723
    %3838 = vmatpush1.bf16.msra.mxu0 %v2722
    %3839 = vmatprep.subr.bf16.mxu0 %v2739
    %3840 = vmatpush1.bf16.msra.mxu0 %v2738
    %3841 = vmatprep.subr.bf16.mxu0 %v2755
    %3842 = vmatpush1.bf16.msra.mxu0 %v2754
    %3843 = vmatprep.subr.bf16.mxu0 %v2771
    %3844 = vmatpush1.bf16.msra.mxu0 %v2770
    %3845 = vmatprep.subr.bf16.mxu0 %v2787
    %3846 = vmatpush1.bf16.msra.mxu0 %v2786
    %3847 = vmatprep.subr.bf16.mxu0 %v2803
    %3848 = vmatpush1.bf16.msra.mxu0 %v2802
    %3849 = vmatprep.subr.bf16.mxu0 %v2819
    %3850 = vmatpush1.bf16.msra.mxu0 %v2818
    %3851 = vmatprep.subr.bf16.mxu0 %v2835
    %3852 = vmatpush1.bf16.msra.mxu0 %v2834
    %3853 = vmatprep.subr.bf16.mxu0 %v2851
    %3854 = vmatpush1.bf16.msra.mxu0 %v2850
    %3855 = vmatprep.subr.bf16.mxu0 %v2867
    %3856 = vmatpush1.bf16.msra.mxu0 %v2866
    %3857 = vmatprep.subr.bf16.mxu0 %v2883
    %3858 = vmatpush1.bf16.msra.mxu0 %v2882
    %3859 = vmatprep.subr.bf16.mxu0 %v2899
    %3860 = vmatpush1.bf16.msra.mxu0 %v2898
    %3861 = vmatprep.subr.bf16.mxu0 %v2915
    %3862 = vmatpush1.bf16.msra.mxu0 %v2914
    %3863 = vmatprep.subr.bf16.mxu0 %v2931
    %3864 = vmatpush1.bf16.msra.mxu0 %v2930
    %3865 = vmatprep.subr.bf16.mxu0 %v2947
    %3866 = vmatpush1.bf16.msra.mxu0 %v2946
    %3867 = vmatprep.mubr.bf16.mxu0 %v393
    %3868 = vmatmul.mubr.bf16.gmra.mrb[0].mxu0 %v392
    %v3869 = vpop.f32.mrb[0].mxu0
    %v3870 = vadd.f32 %v3829, %v3869
    %v3871 = vpop.f32.mrb[0].mxu0
    %v3872 = vadd.f32 %v3831, %v3871
    %v3873 = vpop.f32.mrb[0].mxu0
    %v3874 = vpop.f32.mrb[0].mxu0
    %3875 = vdwg.mxu0
    %3876 = vmatprep.subr.bf16.mxu0 %v2453
    %3877 = vmatpush1.bf16.msra.mxu0 %v2452
    %3878 = vmatprep.subr.bf16.mxu0 %v2469
    %3879 = vmatpush1.bf16.msra.mxu0 %v2468
    %3880 = vmatprep.subr.bf16.mxu0 %v2485
    %3881 = vmatpush1.bf16.msra.mxu0 %v2484
    %3882 = vmatprep.subr.bf16.mxu0 %v2501
    %3883 = vmatpush1.bf16.msra.mxu0 %v2500
    %3884 = vmatprep.subr.bf16.mxu0 %v2517
    %3885 = vmatpush1.bf16.msra.mxu0 %v2516
    %3886 = vmatprep.subr.bf16.mxu0 %v2533
    %3887 = vmatpush1.bf16.msra.mxu0 %v2532
    %3888 = vmatprep.subr.bf16.mxu0 %v2549
    %3889 = vmatpush1.bf16.msra.mxu0 %v2548
    %3890 = vmatprep.subr.bf16.mxu0 %v2565
    %3891 = vmatpush1.bf16.msra.mxu0 %v2564
    %3892 = vmatprep.subr.bf16.mxu0 %v2581
    %3893 = vmatpush1.bf16.msra.mxu0 %v2580
    %3894 = vmatprep.subr.bf16.mxu0 %v2597
    %3895 = vmatpush1.bf16.msra.mxu0 %v2596
    %3896 = vmatprep.subr.bf16.mxu0 %v2613
    %3897 = vmatpush1.bf16.msra.mxu0 %v2612
    %3898 = vmatprep.subr.bf16.mxu0 %v2629
    %3899 = vmatpush1.bf16.msra.mxu0 %v2628
    %3900 = vmatprep.subr.bf16.mxu0 %v2645
    %3901 = vmatpush1.bf16.msra.mxu0 %v2644
    %3902 = vmatprep.subr.bf16.mxu0 %v2661
    %3903 = vmatpush1.bf16.msra.mxu0 %v2660
    %3904 = vmatprep.subr.bf16.mxu0 %v2677
    %3905 = vmatpush1.bf16.msra.mxu0 %v2676
    %3906 = vmatprep.subr.bf16.mxu0 %v2693
    %3907 = vmatpush1.bf16.msra.mxu0 %v2692
    %3908 = vmatprep.mubr.bf16.mxu0 %v391
    %3909 = vmatmul.mubr.bf16.gmra.mrb[0].mxu0 %v390
    %v3910 = vpop.f32.mrb[0].mxu0
    %v3911 = vadd.f32 0.0, %v3910
    %v3912 = vpop.f32.mrb[0].mxu0
    %v3913 = vadd.f32 0.0, %v3912
    %v3914 = vpop.f32.mrb[0].mxu0
    %v3915 = vpop.f32.mrb[0].mxu0
    %3916 = vdwg.mxu0
    %3917 = vmatprep.subr.bf16.mxu0 %v2709
    %3918 = vmatpush1.bf16.msra.mxu0 %v2708
    %3919 = vmatprep.subr.bf16.mxu0 %v2725
    %3920 = vmatpush1.bf16.msra.mxu0 %v2724
    %3921 = vmatprep.subr.bf16.mxu0 %v2741
    %3922 = vmatpush1.bf16.msra.mxu0 %v2740
    %3923 = vmatprep.subr.bf16.mxu0 %v2757
    %3924 = vmatpush1.bf16.msra.mxu0 %v2756
    %3925 = vmatprep.subr.bf16.mxu0 %v2773
    %3926 = vmatpush1.bf16.msra.mxu0 %v2772
    %3927 = vmatprep.subr.bf16.mxu0 %v2789
    %3928 = vmatpush1.bf16.msra.mxu0 %v2788
    %3929 = vmatprep.subr.bf16.mxu0 %v2805
    %3930 = vmatpush1.bf16.msra.mxu0 %v2804
    %3931 = vmatprep.subr.bf16.mxu0 %v2821
    %3932 = vmatpush1.bf16.msra.mxu0 %v2820
    %3933 = vmatprep.subr.bf16.mxu0 %v2837
    %3934 = vmatpush1.bf16.msra.mxu0 %v2836
    %3935 = vmatprep.subr.bf16.mxu0 %v2853
    %3936 = vmatpush1.bf16.msra.mxu0 %v2852
    %3937 = vmatprep.subr.bf16.mxu0 %v2869
    %3938 = vmatpush1.bf16.msra.mxu0 %v2868
    %3939 = vmatprep.subr.bf16.mxu0 %v2885
    %3940 = vmatpush1.bf16.msra.mxu0 %v2884
    %3941 = vmatprep.subr.bf16.mxu0 %v2901
    %3942 = vmatpush1.bf16.msra.mxu0 %v2900
    %3943 = vmatprep.subr.bf16.mxu0 %v2917
    %3944 = vmatpush1.bf16.msra.mxu0 %v2916
    %3945 = vmatprep.subr.bf16.mxu0 %v2933
    %3946 = vmatpush1.bf16.msra.mxu0 %v2932
    %3947 = vmatprep.subr.bf16.mxu0 %v2949
    %3948 = vmatpush1.bf16.msra.mxu0 %v2948
    %3949 = vmatprep.mubr.bf16.mxu0 %v393
    %3950 = vmatmul.mubr.bf16.gmra.mrb[0].mxu0 %v392
    %v3951 = vpop.f32.mrb[0].mxu0
    %v3952 = vadd.f32 %v3911, %v3951
    %v3953 = vpop.f32.mrb[0].mxu0
    %v3954 = vadd.f32 %v3913, %v3953
    %v3955 = vpop.f32.mrb[0].mxu0
    %v3956 = vpop.f32.mrb[0].mxu0
    %3957 = vdwg.mxu0
    %3958 = vmatprep.subr.bf16.mxu0 %v2455
    %3959 = vmatpush1.bf16.msra.mxu0 %v2454
    %3960 = vmatprep.subr.bf16.mxu0 %v2471
    %3961 = vmatpush1.bf16.msra.mxu0 %v2470
    %3962 = vmatprep.subr.bf16.mxu0 %v2487
    %3963 = vmatpush1.bf16.msra.mxu0 %v2486
    %3964 = vmatprep.subr.bf16.mxu0 %v2503
    %3965 = vmatpush1.bf16.msra.mxu0 %v2502
    %3966 = vmatprep.subr.bf16.mxu0 %v2519
    %3967 = vmatpush1.bf16.msra.mxu0 %v2518
    %3968 = vmatprep.subr.bf16.mxu0 %v2535
    %3969 = vmatpush1.bf16.msra.mxu0 %v2534
    %3970 = vmatprep.subr.bf16.mxu0 %v2551
    %3971 = vmatpush1.bf16.msra.mxu0 %v2550
    %3972 = vmatprep.subr.bf16.mxu0 %v2567
    %3973 = vmatpush1.bf16.msra.mxu0 %v2566
    %3974 = vmatprep.subr.bf16.mxu0 %v2583
    %3975 = vmatpush1.bf16.msra.mxu0 %v2582
    %3976 = vmatprep.subr.bf16.mxu0 %v2599
    %3977 = vmatpush1.bf16.msra.mxu0 %v2598
    %3978 = vmatprep.subr.bf16.mxu0 %v2615
    %3979 = vmatpush1.bf16.msra.mxu0 %v2614
    %3980 = vmatprep.subr.bf16.mxu0 %v2631
    %3981 = vmatpush1.bf16.msra.mxu0 %v2630
    %3982 = vmatprep.subr.bf16.mxu0 %v2647
    %3983 = vmatpush1.bf16.msra.mxu0 %v2646
    %3984 = vmatprep.subr.bf16.mxu0 %v2663
    %3985 = vmatpush1.bf16.msra.mxu0 %v2662
    %3986 = vmatprep.subr.bf16.mxu0 %v2679
    %3987 = vmatpush1.bf16.msra.mxu0 %v2678
    %3988 = vmatprep.subr.bf16.mxu0 %v2695
    %3989 = vmatpush1.bf16.msra.mxu0 %v2694
    %3990 = vmatprep.mubr.bf16.mxu0 %v391
    %3991 = vmatmul.mubr.bf16.gmra.mrb[0].mxu0 %v390
    %v3992 = vpop.f32.mrb[0].mxu0
    %v3993 = vadd.f32 0.0, %v3992
    %v3994 = vpop.f32.mrb[0].mxu0
    %v3995 = vadd.f32 0.0, %v3994
    %v3996 = vpop.f32.mrb[0].mxu0
    %v3997 = vpop.f32.mrb[0].mxu0
    %3998 = vdwg.mxu0
    %3999 = vmatprep.subr.bf16.mxu0 %v2711
    %4000 = vmatpush1.bf16.msra.mxu0 %v2710
    %4001 = vmatprep.subr.bf16.mxu0 %v2727
    %4002 = vmatpush1.bf16.msra.mxu0 %v2726
    %4003 = vmatprep.subr.bf16.mxu0 %v2743
    %4004 = vmatpush1.bf16.msra.mxu0 %v2742
    %4005 = vmatprep.subr.bf16.mxu0 %v2759
    %4006 = vmatpush1.bf16.msra.mxu0 %v2758
    %4007 = vmatprep.subr.bf16.mxu0 %v2775
    %4008 = vmatpush1.bf16.msra.mxu0 %v2774
    %4009 = vmatprep.subr.bf16.mxu0 %v2791
    %4010 = vmatpush1.bf16.msra.mxu0 %v2790
    %4011 = vmatprep.subr.bf16.mxu0 %v2807
    %4012 = vmatpush1.bf16.msra.mxu0 %v2806
    %4013 = vmatprep.subr.bf16.mxu0 %v2823
    %4014 = vmatpush1.bf16.msra.mxu0 %v2822
    %4015 = vmatprep.subr.bf16.mxu0 %v2839
    %4016 = vmatpush1.bf16.msra.mxu0 %v2838
    %4017 = vmatprep.subr.bf16.mxu0 %v2855
    %4018 = vmatpush1.bf16.msra.mxu0 %v2854
    %4019 = vmatprep.subr.bf16.mxu0 %v2871
    %4020 = vmatpush1.bf16.msra.mxu0 %v2870
    %4021 = vmatprep.subr.bf16.mxu0 %v2887
    %4022 = vmatpush1.bf16.msra.mxu0 %v2886
    %4023 = vmatprep.subr.bf16.mxu0 %v2903
    %4024 = vmatpush1.bf16.msra.mxu0 %v2902
    %4025 = vmatprep.subr.bf16.mxu0 %v2919
    %4026 = vmatpush1.bf16.msra.mxu0 %v2918
    %4027 = vmatprep.subr.bf16.mxu0 %v2935
    %4028 = vmatpush1.bf16.msra.mxu0 %v2934
    %4029 = vmatprep.subr.bf16.mxu0 %v2951
    %4030 = vmatpush1.bf16.msra.mxu0 %v2950
    %4031 = vmatprep.mubr.bf16.mxu0 %v393
    %4032 = vmatmul.mubr.bf16.gmra.mrb[0].mxu0 %v392
    %v4033 = vpop.f32.mrb[0].mxu0
    %v4034 = vadd.f32 %v3993, %v4033
    %v4035 = vpop.f32.mrb[0].mxu0
    %v4036 = vadd.f32 %v3995, %v4035
    %v4037 = vpop.f32.mrb[0].mxu0
    %v4038 = vpop.f32.mrb[0].mxu0
    %4039 = vdwg.mxu0
    %4040 = vmatprep.subr.bf16.mxu0 %v2457
    %4041 = vmatpush1.bf16.msra.mxu0 %v2456
    %4042 = vmatprep.subr.bf16.mxu0 %v2473
    %4043 = vmatpush1.bf16.msra.mxu0 %v2472
    %4044 = vmatprep.subr.bf16.mxu0 %v2489
    %4045 = vmatpush1.bf16.msra.mxu0 %v2488
    %4046 = vmatprep.subr.bf16.mxu0 %v2505
    %4047 = vmatpush1.bf16.msra.mxu0 %v2504
    %4048 = vmatprep.subr.bf16.mxu0 %v2521
    %4049 = vmatpush1.bf16.msra.mxu0 %v2520
    %4050 = vmatprep.subr.bf16.mxu0 %v2537
    %4051 = vmatpush1.bf16.msra.mxu0 %v2536
    %4052 = vmatprep.subr.bf16.mxu0 %v2553
    %4053 = vmatpush1.bf16.msra.mxu0 %v2552
    %4054 = vmatprep.subr.bf16.mxu0 %v2569
    %4055 = vmatpush1.bf16.msra.mxu0 %v2568
    %4056 = vmatprep.subr.bf16.mxu0 %v2585
    %4057 = vmatpush1.bf16.msra.mxu0 %v2584
    %4058 = vmatprep.subr.bf16.mxu0 %v2601
    %4059 = vmatpush1.bf16.msra.mxu0 %v2600
    %4060 = vmatprep.subr.bf16.mxu0 %v2617
    %4061 = vmatpush1.bf16.msra.mxu0 %v2616
    %4062 = vmatprep.subr.bf16.mxu0 %v2633
    %4063 = vmatpush1.bf16.msra.mxu0 %v2632
    %4064 = vmatprep.subr.bf16.mxu0 %v2649
    %4065 = vmatpush1.bf16.msra.mxu0 %v2648
    %4066 = vmatprep.subr.bf16.mxu0 %v2665
    %4067 = vmatpush1.bf16.msra.mxu0 %v2664
    %4068 = vmatprep.subr.bf16.mxu0 %v2681
    %4069 = vmatpush1.bf16.msra.mxu0 %v2680
    %4070 = vmatprep.subr.bf16.mxu0 %v2697
    %4071 = vmatpush1.bf16.msra.mxu0 %v2696
    %4072 = vmatprep.mubr.bf16.mxu0 %v391
    %4073 = vmatmul.mubr.bf16.gmra.mrb[0].mxu0 %v390
    %v4074 = vpop.f32.mrb[0].mxu0
    %v4075 = vadd.f32 0.0, %v4074
    %v4076 = vpop.f32.mrb[0].mxu0
    %v4077 = vadd.f32 0.0, %v4076
    %v4078 = vpop.f32.mrb[0].mxu0
    %v4079 = vpop.f32.mrb[0].mxu0
    %4080 = vdwg.mxu0
    %4081 = vmatprep.subr.bf16.mxu0 %v2713
    %4082 = vmatpush1.bf16.msra.mxu0 %v2712
    %4083 = vmatprep.subr.bf16.mxu0 %v2729
    %4084 = vmatpush1.bf16.msra.mxu0 %v2728
    %4085 = vmatprep.subr.bf16.mxu0 %v2745
    %4086 = vmatpush1.bf16.msra.mxu0 %v2744
    %4087 = vmatprep.subr.bf16.mxu0 %v2761
    %4088 = vmatpush1.bf16.msra.mxu0 %v2760
    %4089 = vmatprep.subr.bf16.mxu0 %v2777
    %4090 = vmatpush1.bf16.msra.mxu0 %v2776
    %4091 = vmatprep.subr.bf16.mxu0 %v2793
    %4092 = vmatpush1.bf16.msra.mxu0 %v2792
    %4093 = vmatprep.subr.bf16.mxu0 %v2809
    %4094 = vmatpush1.bf16.msra.mxu0 %v2808
    %4095 = vmatprep.subr.bf16.mxu0 %v2825
    %4096 = vmatpush1.bf16.msra.mxu0 %v2824
    %4097 = vmatprep.subr.bf16.mxu0 %v2841
    %4098 = vmatpush1.bf16.msra.mxu0 %v2840
    %4099 = vmatprep.subr.bf16.mxu0 %v2857
    %4100 = vmatpush1.bf16.msra.mxu0 %v2856
    %4101 = vmatprep.subr.bf16.mxu0 %v2873
    %4102 = vmatpush1.bf16.msra.mxu0 %v2872
    %4103 = vmatprep.subr.bf16.mxu0 %v2889
    %4104 = vmatpush1.bf16.msra.mxu0 %v2888
    %4105 = vmatprep.subr.bf16.mxu0 %v2905
    %4106 = vmatpush1.bf16.msra.mxu0 %v2904
    %4107 = vmatprep.subr.bf16.mxu0 %v2921
    %4108 = vmatpush1.bf16.msra.mxu0 %v2920
    %4109 = vmatprep.subr.bf16.mxu0 %v2937
    %4110 = vmatpush1.bf16.msra.mxu0 %v2936
    %4111 = vmatprep.subr.bf16.mxu0 %v2953
    %4112 = vmatpush1.bf16.msra.mxu0 %v2952
    %4113 = vmatprep.mubr.bf16.mxu0 %v393
    %4114 = vmatmul.mubr.bf16.gmra.mrb[0].mxu0 %v392
    %v4115 = vpop.f32.mrb[0].mxu0
    %v4116 = vadd.f32 %v4075, %v4115
    %v4117 = vpop.f32.mrb[0].mxu0
    %v4118 = vadd.f32 %v4077, %v4117
    %v4119 = vpop.f32.mrb[0].mxu0
    %v4120 = vpop.f32.mrb[0].mxu0
    %4121 = vdwg.mxu0
    %vm4122 = vcmask 1041408
    %v4123 = vsel %vm4122, %v3542, 0.0
    %v4124 = vrot.slane %v4123, 4
    %v4125 = vadd.f32 %v4123, %v4124
    %v4126 = vrot.slane %v4125, 2
    %v4127 = vadd.f32 %v4125, %v4126
    %v4128 = vrot.slane %v4127, 1
    %v4129 = vadd.f32 %v4127, %v4128
    %v4130 = vsel %vm4122, %v3544, 0.0
    %v4131 = vrot.slane %v4130, 4
    %v4132 = vadd.f32 %v4130, %v4131
    %v4133 = vrot.slane %v4132, 2
    %v4134 = vadd.f32 %v4132, %v4133
    %v4135 = vrot.slane %v4134, 1
    %v4136 = vadd.f32 %v4134, %v4135
    %v4137 = vsel %vm4122, %v3624, 0.0
    %v4138 = vrot.slane %v4137, 4
    %v4139 = vadd.f32 %v4137, %v4138
    %v4140 = vrot.slane %v4139, 2
    %v4141 = vadd.f32 %v4139, %v4140
    %v4142 = vrot.slane %v4141, 1
    %v4143 = vadd.f32 %v4141, %v4142
    %v4144 = vsel %vm4122, %v3626, 0.0
    %v4145 = vrot.slane %v4144, 4
    %v4146 = vadd.f32 %v4144, %v4145
    %v4147 = vrot.slane %v4146, 2
    %v4148 = vadd.f32 %v4146, %v4147
    %v4149 = vrot.slane %v4148, 1
    %v4150 = vadd.f32 %v4148, %v4149
    %v4151 = vsel %vm4122, %v3706, 0.0
    %v4152 = vrot.slane %v4151, 4
    %v4153 = vadd.f32 %v4151, %v4152
    %v4154 = vrot.slane %v4153, 2
    %v4155 = vadd.f32 %v4153, %v4154
    %v4156 = vrot.slane %v4155, 1
    %v4157 = vadd.f32 %v4155, %v4156
    %v4158 = vsel %vm4122, %v3708, 0.0
    %v4159 = vrot.slane %v4158, 4
    %v4160 = vadd.f32 %v4158, %v4159
    %v4161 = vrot.slane %v4160, 2
    %v4162 = vadd.f32 %v4160, %v4161
    %v4163 = vrot.slane %v4162, 1
    %v4164 = vadd.f32 %v4162, %v4163
    %v4165 = vsel %vm4122, %v3788, 0.0
    %v4166 = vrot.slane %v4165, 4
    %v4167 = vadd.f32 %v4165, %v4166
    %v4168 = vrot.slane %v4167, 2
    %v4169 = vadd.f32 %v4167, %v4168
    %v4170 = vrot.slane %v4169, 1
    %v4171 = vadd.f32 %v4169, %v4170
    %v4172 = vsel %vm4122, %v3790, 0.0
    %v4173 = vrot.slane %v4172, 4
    %v4174 = vadd.f32 %v4172, %v4173
    %v4175 = vrot.slane %v4174, 2
    %v4176 = vadd.f32 %v4174, %v4175
    %v4177 = vrot.slane %v4176, 1
    %v4178 = vadd.f32 %v4176, %v4177
    %v4179 = vsel %vm4122, %v3870, 0.0
    %v4180 = vrot.slane %v4179, 4
    %v4181 = vadd.f32 %v4179, %v4180
    %v4182 = vrot.slane %v4181, 2
    %v4183 = vadd.f32 %v4181, %v4182
    %v4184 = vrot.slane %v4183, 1
    %v4185 = vadd.f32 %v4183, %v4184
    %v4186 = vsel %vm4122, %v3872, 0.0
    %v4187 = vrot.slane %v4186, 4
    %v4188 = vadd.f32 %v4186, %v4187
    %v4189 = vrot.slane %v4188, 2
    %v4190 = vadd.f32 %v4188, %v4189
    %v4191 = vrot.slane %v4190, 1
    %v4192 = vadd.f32 %v4190, %v4191
    %v4193 = vsel %vm4122, %v3952, 0.0
    %v4194 = vrot.slane %v4193, 4
    %v4195 = vadd.f32 %v4193, %v4194
    %v4196 = vrot.slane %v4195, 2
    %v4197 = vadd.f32 %v4195, %v4196
    %v4198 = vrot.slane %v4197, 1
    %v4199 = vadd.f32 %v4197, %v4198
    %v4200 = vsel %vm4122, %v3954, 0.0
    %v4201 = vrot.slane %v4200, 4
    %v4202 = vadd.f32 %v4200, %v4201
    %v4203 = vrot.slane %v4202, 2
    %v4204 = vadd.f32 %v4202, %v4203
    %v4205 = vrot.slane %v4204, 1
    %v4206 = vadd.f32 %v4204, %v4205
    %v4207 = vsel %vm4122, %v4034, 0.0
    %v4208 = vrot.slane %v4207, 4
    %v4209 = vadd.f32 %v4207, %v4208
    %v4210 = vrot.slane %v4209, 2
    %v4211 = vadd.f32 %v4209, %v4210
    %v4212 = vrot.slane %v4211, 1
    %v4213 = vadd.f32 %v4211, %v4212
    %v4214 = vsel %vm4122, %v4036, 0.0
    %v4215 = vrot.slane %v4214, 4
    %v4216 = vadd.f32 %v4214, %v4215
    %v4217 = vrot.slane %v4216, 2
    %v4218 = vadd.f32 %v4216, %v4217
    %v4219 = vrot.slane %v4218, 1
    %v4220 = vadd.f32 %v4218, %v4219
    %v4221 = vsel %vm4122, %v4116, 0.0
    %v4222 = vrot.slane %v4221, 4
    %v4223 = vadd.f32 %v4221, %v4222
    %v4224 = vrot.slane %v4223, 2
    %v4225 = vadd.f32 %v4223, %v4224
    %v4226 = vrot.slane %v4225, 1
    %v4227 = vadd.f32 %v4225, %v4226
    %v4228 = vsel %vm4122, %v4118, 0.0
    %v4229 = vrot.slane %v4228, 4
    %v4230 = vadd.f32 %v4228, %v4229
    %v4231 = vrot.slane %v4230, 2
    %v4232 = vadd.f32 %v4230, %v4231
    %v4233 = vrot.slane %v4232, 1
    %v4234 = vadd.f32 %v4232, %v4233
    %v4235 = vrcp.pop 2.0
    %v4236 = vmul.f32 %v4129, %v4235
    %v4237 = vmul.f32 %v4136, %v4235
    %v4238 = vmul.f32 %v4143, %v4235
    %v4239 = vmul.f32 %v4150, %v4235
    %v4240 = vmul.f32 %v4157, %v4235
    %v4241 = vmul.f32 %v4164, %v4235
    %v4242 = vmul.f32 %v4171, %v4235
    %v4243 = vmul.f32 %v4178, %v4235
    %v4244 = vmul.f32 %v4185, %v4235
    %v4245 = vmul.f32 %v4192, %v4235
    %v4246 = vmul.f32 %v4199, %v4235
    %v4247 = vmul.f32 %v4206, %v4235
    %v4248 = vmul.f32 %v4213, %v4235
    %v4249 = vmul.f32 %v4220, %v4235
    %v4250 = vmul.f32 %v4227, %v4235
    %v4251 = vmul.f32 %v4234, %v4235
    %v4252 = vsub.f32 %v3542, %v4236
    %v4253 = vsub.f32 %v3544, %v4237
    %v4254 = vsub.f32 %v3624, %v4238
    %v4255 = vsub.f32 %v3626, %v4239
    %v4256 = vsub.f32 %v3706, %v4240
    %v4257 = vsub.f32 %v3708, %v4241
    %v4258 = vsub.f32 %v3788, %v4242
    %v4259 = vsub.f32 %v3790, %v4243
    %v4260 = vsub.f32 %v3870, %v4244
    %v4261 = vsub.f32 %v3872, %v4245
    %v4262 = vsub.f32 %v3952, %v4246
    %v4263 = vsub.f32 %v3954, %v4247
    %v4264 = vsub.f32 %v4034, %v4248
    %v4265 = vsub.f32 %v4036, %v4249
    %v4266 = vsub.f32 %v4116, %v4250
    %v4267 = vsub.f32 %v4118, %v4251
    %v4268 = vmul.f32 %v4252, %v4252
    %v4269 = vmul.f32 %v4253, %v4253
    %v4270 = vmul.f32 %v4254, %v4254
    %v4271 = vmul.f32 %v4255, %v4255
    %v4272 = vmul.f32 %v4256, %v4256
    %v4273 = vmul.f32 %v4257, %v4257
    %v4274 = vmul.f32 %v4258, %v4258
    %v4275 = vmul.f32 %v4259, %v4259
    %v4276 = vmul.f32 %v4260, %v4260
    %v4277 = vmul.f32 %v4261, %v4261
    %v4278 = vmul.f32 %v4262, %v4262
    %v4279 = vmul.f32 %v4263, %v4263
    %v4280 = vmul.f32 %v4264, %v4264
    %v4281 = vmul.f32 %v4265, %v4265
    %v4282 = vmul.f32 %v4266, %v4266
    %v4283 = vmul.f32 %v4267, %v4267
    %v4284 = vsel %vm4122, %v4268, 0.0
    %v4285 = vrot.slane %v4284, 4
    %v4286 = vadd.f32 %v4284, %v4285
    %v4287 = vrot.slane %v4286, 2
    %v4288 = vadd.f32 %v4286, %v4287
    %v4289 = vrot.slane %v4288, 1
    %v4290 = vadd.f32 %v4288, %v4289
    %v4291 = vsel %vm4122, %v4269, 0.0
    %v4292 = vrot.slane %v4291, 4
    %v4293 = vadd.f32 %v4291, %v4292
    %v4294 = vrot.slane %v4293, 2
    %v4295 = vadd.f32 %v4293, %v4294
    %v4296 = vrot.slane %v4295, 1
    %v4297 = vadd.f32 %v4295, %v4296
    %v4298 = vsel %vm4122, %v4270, 0.0
    %v4299 = vrot.slane %v4298, 4
    %v4300 = vadd.f32 %v4298, %v4299
    %v4301 = vrot.slane %v4300, 2
    %v4302 = vadd.f32 %v4300, %v4301
    %v4303 = vrot.slane %v4302, 1
    %v4304 = vadd.f32 %v4302, %v4303
    %v4305 = vsel %vm4122, %v4271, 0.0
    %v4306 = vrot.slane %v4305, 4
    %v4307 = vadd.f32 %v4305, %v4306
    %v4308 = vrot.slane %v4307, 2
    %v4309 = vadd.f32 %v4307, %v4308
    %v4310 = vrot.slane %v4309, 1
    %v4311 = vadd.f32 %v4309, %v4310
    %v4312 = vsel %vm4122, %v4272, 0.0
    %v4313 = vrot.slane %v4312, 4
    %v4314 = vadd.f32 %v4312, %v4313
    %v4315 = vrot.slane %v4314, 2
    %v4316 = vadd.f32 %v4314, %v4315
    %v4317 = vrot.slane %v4316, 1
    %v4318 = vadd.f32 %v4316, %v4317
    %v4319 = vsel %vm4122, %v4273, 0.0
    %v4320 = vrot.slane %v4319, 4
    %v4321 = vadd.f32 %v4319, %v4320
    %v4322 = vrot.slane %v4321, 2
    %v4323 = vadd.f32 %v4321, %v4322
    %v4324 = vrot.slane %v4323, 1
    %v4325 = vadd.f32 %v4323, %v4324
    %v4326 = vsel %vm4122, %v4274, 0.0
    %v4327 = vrot.slane %v4326, 4
    %v4328 = vadd.f32 %v4326, %v4327
    %v4329 = vrot.slane %v4328, 2
    %v4330 = vadd.f32 %v4328, %v4329
    %v4331 = vrot.slane %v4330, 1
    %v4332 = vadd.f32 %v4330, %v4331
    %v4333 = vsel %vm4122, %v4275, 0.0
    %v4334 = vrot.slane %v4333, 4
    %v4335 = vadd.f32 %v4333, %v4334
    %v4336 = vrot.slane %v4335, 2
    %v4337 = vadd.f32 %v4335, %v4336
    %v4338 = vrot.slane %v4337, 1
    %v4339 = vadd.f32 %v4337, %v4338
    %v4340 = vsel %vm4122, %v4276, 0.0
    %v4341 = vrot.slane %v4340, 4
    %v4342 = vadd.f32 %v4340, %v4341
    %v4343 = vrot.slane %v4342, 2
    %v4344 = vadd.f32 %v4342, %v4343
    %v4345 = vrot.slane %v4344, 1
    %v4346 = vadd.f32 %v4344, %v4345
    %v4347 = vsel %vm4122, %v4277, 0.0
    %v4348 = vrot.slane %v4347, 4
    %v4349 = vadd.f32 %v4347, %v4348
    %v4350 = vrot.slane %v4349, 2
    %v4351 = vadd.f32 %v4349, %v4350
    %v4352 = vrot.slane %v4351, 1
    %v4353 = vadd.f32 %v4351, %v4352
    %v4354 = vsel %vm4122, %v4278, 0.0
    %v4355 = vrot.slane %v4354, 4
    %v4356 = vadd.f32 %v4354, %v4355
    %v4357 = vrot.slane %v4356, 2
    %v4358 = vadd.f32 %v4356, %v4357
    %v4359 = vrot.slane %v4358, 1
    %v4360 = vadd.f32 %v4358, %v4359
    %v4361 = vsel %vm4122, %v4279, 0.0
    %v4362 = vrot.slane %v4361, 4
    %v4363 = vadd.f32 %v4361, %v4362
    %v4364 = vrot.slane %v4363, 2
    %v4365 = vadd.f32 %v4363, %v4364
    %v4366 = vrot.slane %v4365, 1
    %v4367 = vadd.f32 %v4365, %v4366
    %v4368 = vsel %vm4122, %v4280, 0.0
    %v4369 = vrot.slane %v4368, 4
    %v4370 = vadd.f32 %v4368, %v4369
    %v4371 = vrot.slane %v4370, 2
    %v4372 = vadd.f32 %v4370, %v4371
    %v4373 = vrot.slane %v4372, 1
    %v4374 = vadd.f32 %v4372, %v4373
    %v4375 = vsel %vm4122, %v4281, 0.0
    %v4376 = vrot.slane %v4375, 4
    %v4377 = vadd.f32 %v4375, %v4376
    %v4378 = vrot.slane %v4377, 2
    %v4379 = vadd.f32 %v4377, %v4378
    %v4380 = vrot.slane %v4379, 1
    %v4381 = vadd.f32 %v4379, %v4380
    %v4382 = vsel %vm4122, %v4282, 0.0
    %v4383 = vrot.slane %v4382, 4
    %v4384 = vadd.f32 %v4382, %v4383
    %v4385 = vrot.slane %v4384, 2
    %v4386 = vadd.f32 %v4384, %v4385
    %v4387 = vrot.slane %v4386, 1
    %v4388 = vadd.f32 %v4386, %v4387
    %v4389 = vsel %vm4122, %v4283, 0.0
    %v4390 = vrot.slane %v4389, 4
    %v4391 = vadd.f32 %v4389, %v4390
    %v4392 = vrot.slane %v4391, 2
    %v4393 = vadd.f32 %v4391, %v4392
    %v4394 = vrot.slane %v4393, 1
    %v4395 = vadd.f32 %v4393, %v4394
    %v4396 = vmul.f32 %v4290, %v4235
    %v4397 = vmul.f32 %v4297, %v4235
    %v4398 = vmul.f32 %v4304, %v4235
    %v4399 = vmul.f32 %v4311, %v4235
    %v4400 = vmul.f32 %v4318, %v4235
    %v4401 = vmul.f32 %v4325, %v4235
    %v4402 = vmul.f32 %v4332, %v4235
    %v4403 = vmul.f32 %v4339, %v4235
    %v4404 = vmul.f32 %v4346, %v4235
    %v4405 = vmul.f32 %v4353, %v4235
    %v4406 = vmul.f32 %v4360, %v4235
    %v4407 = vmul.f32 %v4367, %v4235
    %v4408 = vmul.f32 %v4374, %v4235
    %v4409 = vmul.f32 %v4381, %v4235
    %v4410 = vmul.f32 %v4388, %v4235
    %v4411 = vmul.f32 %v4395, %v4235
    %v4412 = vadd.f32 %v4396, 1e-05
    %v4413 = vadd.f32 %v4397, 1e-05
    %v4414 = vadd.f32 %v4398, 1e-05
    %v4415 = vadd.f32 %v4399, 1e-05
    %v4416 = vadd.f32 %v4400, 1e-05
    %v4417 = vadd.f32 %v4401, 1e-05
    %v4418 = vadd.f32 %v4402, 1e-05
    %v4419 = vadd.f32 %v4403, 1e-05
    %v4420 = vadd.f32 %v4404, 1e-05
    %v4421 = vadd.f32 %v4405, 1e-05
    %v4422 = vadd.f32 %v4406, 1e-05
    %v4423 = vadd.f32 %v4407, 1e-05
    %v4424 = vadd.f32 %v4408, 1e-05
    %v4425 = vadd.f32 %v4409, 1e-05
    %v4426 = vadd.f32 %v4410, 1e-05
    %v4427 = vadd.f32 %v4411, 1e-05
    %v4428 = vrsqrt.pop %v4412
    %v4429 = vrsqrt.pop %v4413
    %v4430 = vrsqrt.pop %v4414
    %v4431 = vrsqrt.pop %v4415
    %v4432 = vrsqrt.pop %v4416
    %v4433 = vrsqrt.pop %v4417
    %v4434 = vrsqrt.pop %v4418
    %v4435 = vrsqrt.pop %v4419
    %v4436 = vrsqrt.pop %v4420
    %v4437 = vrsqrt.pop %v4421
    %v4438 = vrsqrt.pop %v4422
    %v4439 = vrsqrt.pop %v4423
    %v4440 = vrsqrt.pop %v4424
    %v4441 = vrsqrt.pop %v4425
    %v4442 = vrsqrt.pop %v4426
    %v4443 = vrsqrt.pop %v4427
    %v4444 = vmul.f32 %v4252, %v4428
    %v4445 = vmul.f32 %v4253, %v4429
    %v4446 = vmul.f32 %v4254, %v4430
    %v4447 = vmul.f32 %v4255, %v4431
    %v4448 = vmul.f32 %v4256, %v4432
    %v4449 = vmul.f32 %v4257, %v4433
    %v4450 = vmul.f32 %v4258, %v4434
    %v4451 = vmul.f32 %v4259, %v4435
    %v4452 = vmul.f32 %v4260, %v4436
    %v4453 = vmul.f32 %v4261, %v4437
    %v4454 = vmul.f32 %v4262, %v4438
    %v4455 = vmul.f32 %v4263, %v4439
    %v4456 = vmul.f32 %v4264, %v4440
    %v4457 = vmul.f32 %v4265, %v4441
    %v4458 = vmul.f32 %v4266, %v4442
    %v4459 = vmul.f32 %v4267, %v4443
    %v4460 = vld [vmem:[#allocation8] sm:$0xff]
    %v4461 = vld [vmem:[#allocation8 + $0x8] sm:$0xff]
    %v4464 = vlaneseq
    %v4465 = vshrl.u32 %v4464, 7
    %v4466 = vsub.s32 0, %v4465
    %v4467 = vrot.slane %v4460, %v4466
    %v4468 = vlaneseq
    %v4469 = vshrl.u32 %v4468, 7
    %v4470 = vsub.s32 1, %v4469
    %v4471 = vrot.slane %v4460, %v4470
    %v4472 = vlaneseq
    %v4473 = vshrl.u32 %v4472, 7
    %v4474 = vsub.s32 2, %v4473
    %v4475 = vrot.slane %v4460, %v4474
    %v4476 = vlaneseq
    %v4477 = vshrl.u32 %v4476, 7
    %v4478 = vsub.s32 3, %v4477
    %v4479 = vrot.slane %v4460, %v4478
    %v4480 = vlaneseq
    %v4481 = vshrl.u32 %v4480, 7
    %v4482 = vsub.s32 4, %v4481
    %v4483 = vrot.slane %v4460, %v4482
    %v4484 = vlaneseq
    %v4485 = vshrl.u32 %v4484, 7
    %v4486 = vsub.s32 5, %v4485
    %v4487 = vrot.slane %v4460, %v4486
    %v4488 = vlaneseq
    %v4489 = vshrl.u32 %v4488, 7
    %v4490 = vsub.s32 6, %v4489
    %v4491 = vrot.slane %v4460, %v4490
    %v4492 = vlaneseq
    %v4493 = vshrl.u32 %v4492, 7
    %v4494 = vsub.s32 7, %v4493
    %v4495 = vrot.slane %v4460, %v4494
    %v4496 = vlaneseq
    %v4497 = vshrl.u32 %v4496, 7
    %v4498 = vsub.s32 0, %v4497
    %v4499 = vrot.slane %v4461, %v4498
    %v4500 = vlaneseq
    %v4501 = vshrl.u32 %v4500, 7
    %v4502 = vsub.s32 1, %v4501
    %v4503 = vrot.slane %v4461, %v4502
    %v4504 = vlaneseq
    %v4505 = vshrl.u32 %v4504, 7
    %v4506 = vsub.s32 2, %v4505
    %v4507 = vrot.slane %v4461, %v4506
    %v4508 = vlaneseq
    %v4509 = vshrl.u32 %v4508, 7
    %v4510 = vsub.s32 3, %v4509
    %v4511 = vrot.slane %v4461, %v4510
    %v4512 = vlaneseq
    %v4513 = vshrl.u32 %v4512, 7
    %v4514 = vsub.s32 4, %v4513
    %v4515 = vrot.slane %v4461, %v4514
    %v4516 = vlaneseq
    %v4517 = vshrl.u32 %v4516, 7
    %v4518 = vsub.s32 5, %v4517
    %v4519 = vrot.slane %v4461, %v4518
    %v4520 = vlaneseq
    %v4521 = vshrl.u32 %v4520, 7
    %v4522 = vsub.s32 6, %v4521
    %v4523 = vrot.slane %v4461, %v4522
    %v4524 = vlaneseq
    %v4525 = vshrl.u32 %v4524, 7
    %v4526 = vsub.s32 7, %v4525
    %v4527 = vrot.slane %v4461, %v4526
    %v4544 = vmul.f32 %v4444, %v4467
    %v4545 = vmul.f32 %v4445, %v4471
    %v4546 = vmul.f32 %v4446, %v4475
    %v4547 = vmul.f32 %v4447, %v4479
    %v4548 = vmul.f32 %v4448, %v4483
    %v4549 = vmul.f32 %v4449, %v4487
    %v4550 = vmul.f32 %v4450, %v4491
    %v4551 = vmul.f32 %v4451, %v4495
    %v4552 = vmul.f32 %v4452, %v4499
    %v4553 = vmul.f32 %v4453, %v4503
    %v4554 = vmul.f32 %v4454, %v4507
    %v4555 = vmul.f32 %v4455, %v4511
    %v4556 = vmul.f32 %v4456, %v4515
    %v4557 = vmul.f32 %v4457, %v4519
    %v4558 = vmul.f32 %v4458, %v4523
    %v4559 = vmul.f32 %v4459, %v4527
    %v4560 = vld [vmem:[#allocation10] sm:$0xff]
    %v4561 = vld [vmem:[#allocation10 + $0x8] sm:$0xff]
    %v4564 = vlaneseq
    %v4565 = vshrl.u32 %v4564, 7
    %v4566 = vsub.s32 0, %v4565
    %v4567 = vrot.slane %v4560, %v4566
    %v4568 = vlaneseq
    %v4569 = vshrl.u32 %v4568, 7
    %v4570 = vsub.s32 1, %v4569
    %v4571 = vrot.slane %v4560, %v4570
    %v4572 = vlaneseq
    %v4573 = vshrl.u32 %v4572, 7
    %v4574 = vsub.s32 2, %v4573
    %v4575 = vrot.slane %v4560, %v4574
    %v4576 = vlaneseq
    %v4577 = vshrl.u32 %v4576, 7
    %v4578 = vsub.s32 3, %v4577
    %v4579 = vrot.slane %v4560, %v4578
    %v4580 = vlaneseq
    %v4581 = vshrl.u32 %v4580, 7
    %v4582 = vsub.s32 4, %v4581
    %v4583 = vrot.slane %v4560, %v4582
    %v4584 = vlaneseq
    %v4585 = vshrl.u32 %v4584, 7
    %v4586 = vsub.s32 5, %v4585
    %v4587 = vrot.slane %v4560, %v4586
    %v4588 = vlaneseq
    %v4589 = vshrl.u32 %v4588, 7
    %v4590 = vsub.s32 6, %v4589
    %v4591 = vrot.slane %v4560, %v4590
    %v4592 = vlaneseq
    %v4593 = vshrl.u32 %v4592, 7
    %v4594 = vsub.s32 7, %v4593
    %v4595 = vrot.slane %v4560, %v4594
    %v4596 = vlaneseq
    %v4597 = vshrl.u32 %v4596, 7
    %v4598 = vsub.s32 0, %v4597
    %v4599 = vrot.slane %v4561, %v4598
    %v4600 = vlaneseq
    %v4601 = vshrl.u32 %v4600, 7
    %v4602 = vsub.s32 1, %v4601
    %v4603 = vrot.slane %v4561, %v4602
    %v4604 = vlaneseq
    %v4605 = vshrl.u32 %v4604, 7
    %v4606 = vsub.s32 2, %v4605
    %v4607 = vrot.slane %v4561, %v4606
    %v4608 = vlaneseq
    %v4609 = vshrl.u32 %v4608, 7
    %v4610 = vsub.s32 3, %v4609
    %v4611 = vrot.slane %v4561, %v4610
    %v4612 = vlaneseq
    %v4613 = vshrl.u32 %v4612, 7
    %v4614 = vsub.s32 4, %v4613
    %v4615 = vrot.slane %v4561, %v4614
    %v4616 = vlaneseq
    %v4617 = vshrl.u32 %v4616, 7
    %v4618 = vsub.s32 5, %v4617
    %v4619 = vrot.slane %v4561, %v4618
    %v4620 = vlaneseq
    %v4621 = vshrl.u32 %v4620, 7
    %v4622 = vsub.s32 6, %v4621
    %v4623 = vrot.slane %v4561, %v4622
    %v4624 = vlaneseq
    %v4625 = vshrl.u32 %v4624, 7
    %v4626 = vsub.s32 7, %v4625
    %v4627 = vrot.slane %v4561, %v4626
    %v4644 = vadd.f32 %v4544, %v4567
    %v4645 = vadd.f32 %v4545, %v4571
    %v4646 = vadd.f32 %v4546, %v4575
    %v4647 = vadd.f32 %v4547, %v4579
    %v4648 = vadd.f32 %v4548, %v4583
    %v4649 = vadd.f32 %v4549, %v4587
    %v4650 = vadd.f32 %v4550, %v4591
    %v4651 = vadd.f32 %v4551, %v4595
    %v4652 = vadd.f32 %v4552, %v4599
    %v4653 = vadd.f32 %v4553, %v4603
    %v4654 = vadd.f32 %v4554, %v4607
    %v4655 = vadd.f32 %v4555, %v4611
    %v4656 = vadd.f32 %v4556, %v4615
    %v4657 = vadd.f32 %v4557, %v4619
    %v4658 = vadd.f32 %v4558, %v4623
    %v4659 = vadd.f32 %v4559, %v4627
    %v4660 = vmax.f32 %v4644, 0.0
    %v4661 = vmax.f32 %v4645, 0.0
    %v4662 = vmax.f32 %v4646, 0.0
    %v4663 = vmax.f32 %v4647, 0.0
    %v4664 = vmax.f32 %v4648, 0.0
    %v4665 = vmax.f32 %v4649, 0.0
    %v4666 = vmax.f32 %v4650, 0.0
    %v4667 = vmax.f32 %v4651, 0.0
    %v4668 = vmax.f32 %v4652, 0.0
    %v4669 = vmax.f32 %v4653, 0.0
    %v4670 = vmax.f32 %v4654, 0.0
    %v4671 = vmax.f32 %v4655, 0.0
    %v4672 = vmax.f32 %v4656, 0.0
    %v4673 = vmax.f32 %v4657, 0.0
    %v4674 = vmax.f32 %v4658, 0.0
    %v4675 = vmax.f32 %v4659, 0.0
    %v4676 = vpack.c.bf16 %v4660, %v4660
    %v4677 = vpack.c.bf16 %v4661, %v4661
    %v4678 = vpack.c.bf16 %v4662, %v4662
    %v4679 = vpack.c.bf16 %v4663, %v4663
    %v4680 = vpack.c.bf16 %v4664, %v4664
    %v4681 = vpack.c.bf16 %v4665, %v4665
    %v4682 = vpack.c.bf16 %v4666, %v4666
    %v4683 = vpack.c.bf16 %v4667, %v4667
    %v4684 = vpack.c.bf16 %v4668, %v4668
    %v4685 = vpack.c.bf16 %v4669, %v4669
    %v4686 = vpack.c.bf16 %v4670, %v4670
    %v4687 = vpack.c.bf16 %v4671, %v4671
    %v4688 = vpack.c.bf16 %v4672, %v4672
    %v4689 = vpack.c.bf16 %v4673, %v4673
    %v4690 = vpack.c.bf16 %v4674, %v4674
    %v4691 = vpack.c.bf16 %v4675, %v4675
    %v4692 = vld [vmem:[#allocation11] sm:$0xff]
    %v4693 = vld [vmem:[#allocation11 + $0x8] sm:$0xff]
    %v4694 = vld [vmem:[#allocation11 + $0x10] sm:$0xff]
    %v4695 = vld [vmem:[#allocation11 + $0x18] sm:$0xff]
    %v4696 = vld [vmem:[#allocation11 + $0x20] sm:$0xff]
    %v4697 = vld [vmem:[#allocation11 + $0x28] sm:$0xff]
    %v4698 = vld [vmem:[#allocation11 + $0x30] sm:$0xff]
    %v4699 = vld [vmem:[#allocation11 + $0x38] sm:$0xff]
    %v4700 = vld [vmem:[#allocation11 + $0x40] sm:$0xff]
    %v4701 = vld [vmem:[#allocation11 + $0x48] sm:$0xff]
    %v4702 = vld [vmem:[#allocation11 + $0x50] sm:$0xff]
    %v4703 = vld [vmem:[#allocation11 + $0x58] sm:$0xff]
    %v4704 = vld [vmem:[#allocation11 + $0x60] sm:$0xff]
    %v4705 = vld [vmem:[#allocation11 + $0x68] sm:$0xff]
    %v4706 = vld [vmem:[#allocation11 + $0x70] sm:$0xff]
    %v4707 = vld [vmem:[#allocation11 + $0x78] sm:$0xff]
    %v4708 = vld [vmem:[#allocation11 + $0x80] sm:$0xff]
    %v4709 = vld [vmem:[#allocation11 + $0x88] sm:$0xff]
    %v4710 = vld [vmem:[#allocation11 + $0x90] sm:$0xff]
    %v4711 = vld [vmem:[#allocation11 + $0x98] sm:$0xff]
    %v4712 = vld [vmem:[#allocation11 + $0xa0] sm:$0xff]
    %v4713 = vld [vmem:[#allocation11 + $0xa8] sm:$0xff]
    %v4714 = vld [vmem:[#allocation11 + $0xb0] sm:$0xff]
    %v4715 = vld [vmem:[#allocation11 + $0xb8] sm:$0xff]
    %v4716 = vld [vmem:[#allocation11 + $0xc0] sm:$0xff]
    %v4717 = vld [vmem:[#allocation11 + $0xc8] sm:$0xff]
    %v4718 = vld [vmem:[#allocation11 + $0xd0] sm:$0xff]
    %v4719 = vld [vmem:[#allocation11 + $0xd8] sm:$0xff]
    %v4720 = vld [vmem:[#allocation11 + $0xe0] sm:$0xff]
    %v4721 = vld [vmem:[#allocation11 + $0xe8] sm:$0xff]
    %v4722 = vld [vmem:[#allocation11 + $0xf0] sm:$0xff]
    %v4723 = vld [vmem:[#allocation11 + $0xf8] sm:$0xff]
    %v4724 = vld [vmem:[#allocation11 + $0x100] sm:$0xff]
    %v4725 = vld [vmem:[#allocation11 + $0x108] sm:$0xff]
    %v4726 = vld [vmem:[#allocation11 + $0x110] sm:$0xff]
    %v4727 = vld [vmem:[#allocation11 + $0x118] sm:$0xff]
    %v4728 = vld [vmem:[#allocation11 + $0x120] sm:$0xff]
    %v4729 = vld [vmem:[#allocation11 + $0x128] sm:$0xff]
    %v4730 = vld [vmem:[#allocation11 + $0x130] sm:$0xff]
    %v4731 = vld [vmem:[#allocation11 + $0x138] sm:$0xff]
    %v4732 = vld [vmem:[#allocation11 + $0x140] sm:$0xff]
    %v4733 = vld [vmem:[#allocation11 + $0x148] sm:$0xff]
    %v4734 = vld [vmem:[#allocation11 + $0x150] sm:$0xff]
    %v4735 = vld [vmem:[#allocation11 + $0x158] sm:$0xff]
    %v4736 = vld [vmem:[#allocation11 + $0x160] sm:$0xff]
    %v4737 = vld [vmem:[#allocation11 + $0x168] sm:$0xff]
    %v4738 = vld [vmem:[#allocation11 + $0x170] sm:$0xff]
    %v4739 = vld [vmem:[#allocation11 + $0x178] sm:$0xff]
    %v4740 = vld [vmem:[#allocation11 + $0x180] sm:$0xff]
    %v4741 = vld [vmem:[#allocation11 + $0x188] sm:$0xff]
    %v4742 = vld [vmem:[#allocation11 + $0x190] sm:$0xff]
    %v4743 = vld [vmem:[#allocation11 + $0x198] sm:$0xff]
    %v4744 = vld [vmem:[#allocation11 + $0x1a0] sm:$0xff]
    %v4745 = vld [vmem:[#allocation11 + $0x1a8] sm:$0xff]
    %v4746 = vld [vmem:[#allocation11 + $0x1b0] sm:$0xff]
    %v4747 = vld [vmem:[#allocation11 + $0x1b8] sm:$0xff]
    %v4748 = vld [vmem:[#allocation11 + $0x1c0] sm:$0xff]
    %v4749 = vld [vmem:[#allocation11 + $0x1c8] sm:$0xff]
    %v4750 = vld [vmem:[#allocation11 + $0x1d0] sm:$0xff]
    %v4751 = vld [vmem:[#allocation11 + $0x1d8] sm:$0xff]
    %v4752 = vld [vmem:[#allocation11 + $0x1e0] sm:$0xff]
    %v4753 = vld [vmem:[#allocation11 + $0x1e8] sm:$0xff]
    %v4754 = vld [vmem:[#allocation11 + $0x1f0] sm:$0xff]
    %v4755 = vld [vmem:[#allocation11 + $0x1f8] sm:$0xff]
    %v4756 = vld [vmem:[#allocation11 + $0x200] sm:$0xff]
    %v4757 = vld [vmem:[#allocation11 + $0x208] sm:$0xff]
    %v4758 = vld [vmem:[#allocation11 + $0x210] sm:$0xff]
    %v4759 = vld [vmem:[#allocation11 + $0x218] sm:$0xff]
    %v4760 = vld [vmem:[#allocation11 + $0x220] sm:$0xff]
    %v4761 = vld [vmem:[#allocation11 + $0x228] sm:$0xff]
    %v4762 = vld [vmem:[#allocation11 + $0x230] sm:$0xff]
    %v4763 = vld [vmem:[#allocation11 + $0x238] sm:$0xff]
    %v4764 = vld [vmem:[#allocation11 + $0x240] sm:$0xff]
    %v4765 = vld [vmem:[#allocation11 + $0x248] sm:$0xff]
    %v4766 = vld [vmem:[#allocation11 + $0x250] sm:$0xff]
    %v4767 = vld [vmem:[#allocation11 + $0x258] sm:$0xff]
    %v4768 = vld [vmem:[#allocation11 + $0x260] sm:$0xff]
    %v4769 = vld [vmem:[#allocation11 + $0x268] sm:$0xff]
    %v4770 = vld [vmem:[#allocation11 + $0x270] sm:$0xff]
    %v4771 = vld [vmem:[#allocation11 + $0x278] sm:$0xff]
    %v4772 = vld [vmem:[#allocation11 + $0x280] sm:$0xff]
    %v4773 = vld [vmem:[#allocation11 + $0x288] sm:$0xff]
    %v4774 = vld [vmem:[#allocation11 + $0x290] sm:$0xff]
    %v4775 = vld [vmem:[#allocation11 + $0x298] sm:$0xff]
    %v4776 = vld [vmem:[#allocation11 + $0x2a0] sm:$0xff]
    %v4777 = vld [vmem:[#allocation11 + $0x2a8] sm:$0xff]
    %v4778 = vld [vmem:[#allocation11 + $0x2b0] sm:$0xff]
    %v4779 = vld [vmem:[#allocation11 + $0x2b8] sm:$0xff]
    %v4780 = vld [vmem:[#allocation11 + $0x2c0] sm:$0xff]
    %v4781 = vld [vmem:[#allocation11 + $0x2c8] sm:$0xff]
    %v4782 = vld [vmem:[#allocation11 + $0x2d0] sm:$0xff]
    %v4783 = vld [vmem:[#allocation11 + $0x2d8] sm:$0xff]
    %v4784 = vld [vmem:[#allocation11 + $0x2e0] sm:$0xff]
    %v4785 = vld [vmem:[#allocation11 + $0x2e8] sm:$0xff]
    %v4786 = vld [vmem:[#allocation11 + $0x2f0] sm:$0xff]
    %v4787 = vld [vmem:[#allocation11 + $0x2f8] sm:$0xff]
    %v4788 = vld [vmem:[#allocation11 + $0x300] sm:$0xff]
    %v4789 = vld [vmem:[#allocation11 + $0x308] sm:$0xff]
    %v4790 = vld [vmem:[#allocation11 + $0x310] sm:$0xff]
    %v4791 = vld [vmem:[#allocation11 + $0x318] sm:$0xff]
    %v4792 = vld [vmem:[#allocation11 + $0x320] sm:$0xff]
    %v4793 = vld [vmem:[#allocation11 + $0x328] sm:$0xff]
    %v4794 = vld [vmem:[#allocation11 + $0x330] sm:$0xff]
    %v4795 = vld [vmem:[#allocation11 + $0x338] sm:$0xff]
    %v4796 = vld [vmem:[#allocation11 + $0x340] sm:$0xff]
    %v4797 = vld [vmem:[#allocation11 + $0x348] sm:$0xff]
    %v4798 = vld [vmem:[#allocation11 + $0x350] sm:$0xff]
    %v4799 = vld [vmem:[#allocation11 + $0x358] sm:$0xff]
    %v4800 = vld [vmem:[#allocation11 + $0x360] sm:$0xff]
    %v4801 = vld [vmem:[#allocation11 + $0x368] sm:$0xff]
    %v4802 = vld [vmem:[#allocation11 + $0x370] sm:$0xff]
    %v4803 = vld [vmem:[#allocation11 + $0x378] sm:$0xff]
    %v4804 = vld [vmem:[#allocation11 + $0x380] sm:$0xff]
    %v4805 = vld [vmem:[#allocation11 + $0x388] sm:$0xff]
    %v4806 = vld [vmem:[#allocation11 + $0x390] sm:$0xff]
    %v4807 = vld [vmem:[#allocation11 + $0x398] sm:$0xff]
    %v4808 = vld [vmem:[#allocation11 + $0x3a0] sm:$0xff]
    %v4809 = vld [vmem:[#allocation11 + $0x3a8] sm:$0xff]
    %v4810 = vld [vmem:[#allocation11 + $0x3b0] sm:$0xff]
    %v4811 = vld [vmem:[#allocation11 + $0x3b8] sm:$0xff]
    %v4812 = vld [vmem:[#allocation11 + $0x3c0] sm:$0xff]
    %v4813 = vld [vmem:[#allocation11 + $0x3c8] sm:$0xff]
    %v4814 = vld [vmem:[#allocation11 + $0x3d0] sm:$0xff]
    %v4815 = vld [vmem:[#allocation11 + $0x3d8] sm:$0xff]
    %v4816 = vld [vmem:[#allocation11 + $0x3e0] sm:$0xff]
    %v4817 = vld [vmem:[#allocation11 + $0x3e8] sm:$0xff]
    %v4818 = vld [vmem:[#allocation11 + $0x3f0] sm:$0xff]
    %v4819 = vld [vmem:[#allocation11 + $0x3f8] sm:$0xff]
    %v4820 = vld [vmem:[#allocation11 + $0x400] sm:$0xff]
    %v4821 = vld [vmem:[#allocation11 + $0x408] sm:$0xff]
    %v4822 = vld [vmem:[#allocation11 + $0x410] sm:$0xff]
    %v4823 = vld [vmem:[#allocation11 + $0x418] sm:$0xff]
    %v4824 = vld [vmem:[#allocation11 + $0x420] sm:$0xff]
    %v4825 = vld [vmem:[#allocation11 + $0x428] sm:$0xff]
    %v4826 = vld [vmem:[#allocation11 + $0x430] sm:$0xff]
    %v4827 = vld [vmem:[#allocation11 + $0x438] sm:$0xff]
    %v4828 = vld [vmem:[#allocation11 + $0x440] sm:$0xff]
    %v4829 = vld [vmem:[#allocation11 + $0x448] sm:$0xff]
    %v4830 = vld [vmem:[#allocation11 + $0x450] sm:$0xff]
    %v4831 = vld [vmem:[#allocation11 + $0x458] sm:$0xff]
    %v4832 = vld [vmem:[#allocation11 + $0x460] sm:$0xff]
    %v4833 = vld [vmem:[#allocation11 + $0x468] sm:$0xff]
    %v4834 = vld [vmem:[#allocation11 + $0x470] sm:$0xff]
    %v4835 = vld [vmem:[#allocation11 + $0x478] sm:$0xff]
    %v4836 = vld [vmem:[#allocation11 + $0x480] sm:$0xff]
    %v4837 = vld [vmem:[#allocation11 + $0x488] sm:$0xff]
    %v4838 = vld [vmem:[#allocation11 + $0x490] sm:$0xff]
    %v4839 = vld [vmem:[#allocation11 + $0x498] sm:$0xff]
    %v4840 = vld [vmem:[#allocation11 + $0x4a0] sm:$0xff]
    %v4841 = vld [vmem:[#allocation11 + $0x4a8] sm:$0xff]
    %v4842 = vld [vmem:[#allocation11 + $0x4b0] sm:$0xff]
    %v4843 = vld [vmem:[#allocation11 + $0x4b8] sm:$0xff]
    %v4844 = vld [vmem:[#allocation11 + $0x4c0] sm:$0xff]
    %v4845 = vld [vmem:[#allocation11 + $0x4c8] sm:$0xff]
    %v4846 = vld [vmem:[#allocation11 + $0x4d0] sm:$0xff]
    %v4847 = vld [vmem:[#allocation11 + $0x4d8] sm:$0xff]
    %v4848 = vld [vmem:[#allocation11 + $0x4e0] sm:$0xff]
    %v4849 = vld [vmem:[#allocation11 + $0x4e8] sm:$0xff]
    %v4850 = vld [vmem:[#allocation11 + $0x4f0] sm:$0xff]
    %v4851 = vld [vmem:[#allocation11 + $0x4f8] sm:$0xff]
    %v4852 = vld [vmem:[#allocation11 + $0x500] sm:$0xff]
    %v4853 = vld [vmem:[#allocation11 + $0x508] sm:$0xff]
    %v4854 = vld [vmem:[#allocation11 + $0x510] sm:$0xff]
    %v4855 = vld [vmem:[#allocation11 + $0x518] sm:$0xff]
    %v4856 = vld [vmem:[#allocation11 + $0x520] sm:$0xff]
    %v4857 = vld [vmem:[#allocation11 + $0x528] sm:$0xff]
    %v4858 = vld [vmem:[#allocation11 + $0x530] sm:$0xff]
    %v4859 = vld [vmem:[#allocation11 + $0x538] sm:$0xff]
    %v4860 = vld [vmem:[#allocation11 + $0x540] sm:$0xff]
    %v4861 = vld [vmem:[#allocation11 + $0x548] sm:$0xff]
    %v4862 = vld [vmem:[#allocation11 + $0x550] sm:$0xff]
    %v4863 = vld [vmem:[#allocation11 + $0x558] sm:$0xff]
    %v4864 = vld [vmem:[#allocation11 + $0x560] sm:$0xff]
    %v4865 = vld [vmem:[#allocation11 + $0x568] sm:$0xff]
    %v4866 = vld [vmem:[#allocation11 + $0x570] sm:$0xff]
    %v4867 = vld [vmem:[#allocation11 + $0x578] sm:$0xff]
    %v4868 = vld [vmem:[#allocation11 + $0x580] sm:$0xff]
    %v4869 = vld [vmem:[#allocation11 + $0x588] sm:$0xff]
    %v4870 = vld [vmem:[#allocation11 + $0x590] sm:$0xff]
    %v4871 = vld [vmem:[#allocation11 + $0x598] sm:$0xff]
    %v4872 = vld [vmem:[#allocation11 + $0x5a0] sm:$0xff]
    %v4873 = vld [vmem:[#allocation11 + $0x5a8] sm:$0xff]
    %v4874 = vld [vmem:[#allocation11 + $0x5b0] sm:$0xff]
    %v4875 = vld [vmem:[#allocation11 + $0x5b8] sm:$0xff]
    %v4876 = vld [vmem:[#allocation11 + $0x5c0] sm:$0xff]
    %v4877 = vld [vmem:[#allocation11 + $0x5c8] sm:$0xff]
    %v4878 = vld [vmem:[#allocation11 + $0x5d0] sm:$0xff]
    %v4879 = vld [vmem:[#allocation11 + $0x5d8] sm:$0xff]
    %v4880 = vld [vmem:[#allocation11 + $0x5e0] sm:$0xff]
    %v4881 = vld [vmem:[#allocation11 + $0x5e8] sm:$0xff]
    %v4882 = vld [vmem:[#allocation11 + $0x5f0] sm:$0xff]
    %v4883 = vld [vmem:[#allocation11 + $0x5f8] sm:$0xff]
    %v4884 = vld [vmem:[#allocation11 + $0x600] sm:$0xff]
    %v4885 = vld [vmem:[#allocation11 + $0x608] sm:$0xff]
    %v4886 = vld [vmem:[#allocation11 + $0x610] sm:$0xff]
    %v4887 = vld [vmem:[#allocation11 + $0x618] sm:$0xff]
    %v4888 = vld [vmem:[#allocation11 + $0x620] sm:$0xff]
    %v4889 = vld [vmem:[#allocation11 + $0x628] sm:$0xff]
    %v4890 = vld [vmem:[#allocation11 + $0x630] sm:$0xff]
    %v4891 = vld [vmem:[#allocation11 + $0x638] sm:$0xff]
    %v4892 = vld [vmem:[#allocation11 + $0x640] sm:$0xff]
    %v4893 = vld [vmem:[#allocation11 + $0x648] sm:$0xff]
    %v4894 = vld [vmem:[#allocation11 + $0x650] sm:$0xff]
    %v4895 = vld [vmem:[#allocation11 + $0x658] sm:$0xff]
    %v4896 = vld [vmem:[#allocation11 + $0x660] sm:$0xff]
    %v4897 = vld [vmem:[#allocation11 + $0x668] sm:$0xff]
    %v4898 = vld [vmem:[#allocation11 + $0x670] sm:$0xff]
    %v4899 = vld [vmem:[#allocation11 + $0x678] sm:$0xff]
    %v4900 = vld [vmem:[#allocation11 + $0x680] sm:$0xff]
    %v4901 = vld [vmem:[#allocation11 + $0x688] sm:$0xff]
    %v4902 = vld [vmem:[#allocation11 + $0x690] sm:$0xff]
    %v4903 = vld [vmem:[#allocation11 + $0x698] sm:$0xff]
    %v4904 = vld [vmem:[#allocation11 + $0x6a0] sm:$0xff]
    %v4905 = vld [vmem:[#allocation11 + $0x6a8] sm:$0xff]
    %v4906 = vld [vmem:[#allocation11 + $0x6b0] sm:$0xff]
    %v4907 = vld [vmem:[#allocation11 + $0x6b8] sm:$0xff]
    %v4908 = vld [vmem:[#allocation11 + $0x6c0] sm:$0xff]
    %v4909 = vld [vmem:[#allocation11 + $0x6c8] sm:$0xff]
    %v4910 = vld [vmem:[#allocation11 + $0x6d0] sm:$0xff]
    %v4911 = vld [vmem:[#allocation11 + $0x6d8] sm:$0xff]
    %v4912 = vld [vmem:[#allocation11 + $0x6e0] sm:$0xff]
    %v4913 = vld [vmem:[#allocation11 + $0x6e8] sm:$0xff]
    %v4914 = vld [vmem:[#allocation11 + $0x6f0] sm:$0xff]
    %v4915 = vld [vmem:[#allocation11 + $0x6f8] sm:$0xff]
    %v4916 = vld [vmem:[#allocation11 + $0x700] sm:$0xff]
    %v4917 = vld [vmem:[#allocation11 + $0x708] sm:$0xff]
    %v4918 = vld [vmem:[#allocation11 + $0x710] sm:$0xff]
    %v4919 = vld [vmem:[#allocation11 + $0x718] sm:$0xff]
    %v4920 = vld [vmem:[#allocation11 + $0x720] sm:$0xff]
    %v4921 = vld [vmem:[#allocation11 + $0x728] sm:$0xff]
    %v4922 = vld [vmem:[#allocation11 + $0x730] sm:$0xff]
    %v4923 = vld [vmem:[#allocation11 + $0x738] sm:$0xff]
    %v4924 = vld [vmem:[#allocation11 + $0x740] sm:$0xff]
    %v4925 = vld [vmem:[#allocation11 + $0x748] sm:$0xff]
    %v4926 = vld [vmem:[#allocation11 + $0x750] sm:$0xff]
    %v4927 = vld [vmem:[#allocation11 + $0x758] sm:$0xff]
    %v4928 = vld [vmem:[#allocation11 + $0x760] sm:$0xff]
    %v4929 = vld [vmem:[#allocation11 + $0x768] sm:$0xff]
    %v4930 = vld [vmem:[#allocation11 + $0x770] sm:$0xff]
    %v4931 = vld [vmem:[#allocation11 + $0x778] sm:$0xff]
    %v4932 = vld [vmem:[#allocation11 + $0x780] sm:$0xff]
    %v4933 = vld [vmem:[#allocation11 + $0x788] sm:$0xff]
    %v4934 = vld [vmem:[#allocation11 + $0x790] sm:$0xff]
    %v4935 = vld [vmem:[#allocation11 + $0x798] sm:$0xff]
    %v4936 = vld [vmem:[#allocation11 + $0x7a0] sm:$0xff]
    %v4937 = vld [vmem:[#allocation11 + $0x7a8] sm:$0xff]
    %v4938 = vld [vmem:[#allocation11 + $0x7b0] sm:$0xff]
    %v4939 = vld [vmem:[#allocation11 + $0x7b8] sm:$0xff]
    %v4940 = vld [vmem:[#allocation11 + $0x7c0] sm:$0xff]
    %v4941 = vld [vmem:[#allocation11 + $0x7c8] sm:$0xff]
    %v4942 = vld [vmem:[#allocation11 + $0x7d0] sm:$0xff]
    %v4943 = vld [vmem:[#allocation11 + $0x7d8] sm:$0xff]
    %v4944 = vld [vmem:[#allocation11 + $0x7e0] sm:$0xff]
    %v4945 = vld [vmem:[#allocation11 + $0x7e8] sm:$0xff]
    %v4946 = vld [vmem:[#allocation11 + $0x7f0] sm:$0xff]
    %v4947 = vld [vmem:[#allocation11 + $0x7f8] sm:$0xff]
    %v4948 = vld [vmem:[#allocation11 + $0x800] sm:$0xff]
    %v4949 = vld [vmem:[#allocation11 + $0x808] sm:$0xff]
    %v4950 = vld [vmem:[#allocation11 + $0x810] sm:$0xff]
    %v4951 = vld [vmem:[#allocation11 + $0x818] sm:$0xff]
    %v4952 = vld [vmem:[#allocation11 + $0x820] sm:$0xff]
    %v4953 = vld [vmem:[#allocation11 + $0x828] sm:$0xff]
    %v4954 = vld [vmem:[#allocation11 + $0x830] sm:$0xff]
    %v4955 = vld [vmem:[#allocation11 + $0x838] sm:$0xff]
    %v4956 = vld [vmem:[#allocation11 + $0x840] sm:$0xff]
    %v4957 = vld [vmem:[#allocation11 + $0x848] sm:$0xff]
    %v4958 = vld [vmem:[#allocation11 + $0x850] sm:$0xff]
    %v4959 = vld [vmem:[#allocation11 + $0x858] sm:$0xff]
    %v4960 = vld [vmem:[#allocation11 + $0x860] sm:$0xff]
    %v4961 = vld [vmem:[#allocation11 + $0x868] sm:$0xff]
    %v4962 = vld [vmem:[#allocation11 + $0x870] sm:$0xff]
    %v4963 = vld [vmem:[#allocation11 + $0x878] sm:$0xff]
    %v4964 = vld [vmem:[#allocation11 + $0x880] sm:$0xff]
    %v4965 = vld [vmem:[#allocation11 + $0x888] sm:$0xff]
    %v4966 = vld [vmem:[#allocation11 + $0x890] sm:$0xff]
    %v4967 = vld [vmem:[#allocation11 + $0x898] sm:$0xff]
    %v4968 = vld [vmem:[#allocation11 + $0x8a0] sm:$0xff]
    %v4969 = vld [vmem:[#allocation11 + $0x8a8] sm:$0xff]
    %v4970 = vld [vmem:[#allocation11 + $0x8b0] sm:$0xff]
    %v4971 = vld [vmem:[#allocation11 + $0x8b8] sm:$0xff]
    %v4972 = vld [vmem:[#allocation11 + $0x8c0] sm:$0xff]
    %v4973 = vld [vmem:[#allocation11 + $0x8c8] sm:$0xff]
    %v4974 = vld [vmem:[#allocation11 + $0x8d0] sm:$0xff]
    %v4975 = vld [vmem:[#allocation11 + $0x8d8] sm:$0xff]
    %v4976 = vld [vmem:[#allocation11 + $0x8e0] sm:$0xff]
    %v4977 = vld [vmem:[#allocation11 + $0x8e8] sm:$0xff]
    %v4978 = vld [vmem:[#allocation11 + $0x8f0] sm:$0xff]
    %v4979 = vld [vmem:[#allocation11 + $0x8f8] sm:$0xff]
    %v4980 = vld [vmem:[#allocation11 + $0x900] sm:$0xff]
    %v4981 = vld [vmem:[#allocation11 + $0x908] sm:$0xff]
    %v4982 = vld [vmem:[#allocation11 + $0x910] sm:$0xff]
    %v4983 = vld [vmem:[#allocation11 + $0x918] sm:$0xff]
    %v4984 = vld [vmem:[#allocation11 + $0x920] sm:$0xff]
    %v4985 = vld [vmem:[#allocation11 + $0x928] sm:$0xff]
    %v4986 = vld [vmem:[#allocation11 + $0x930] sm:$0xff]
    %v4987 = vld [vmem:[#allocation11 + $0x938] sm:$0xff]
    %v4988 = vld [vmem:[#allocation11 + $0x940] sm:$0xff]
    %v4989 = vld [vmem:[#allocation11 + $0x948] sm:$0xff]
    %v4990 = vld [vmem:[#allocation11 + $0x950] sm:$0xff]
    %v4991 = vld [vmem:[#allocation11 + $0x958] sm:$0xff]
    %v4992 = vld [vmem:[#allocation11 + $0x960] sm:$0xff]
    %v4993 = vld [vmem:[#allocation11 + $0x968] sm:$0xff]
    %v4994 = vld [vmem:[#allocation11 + $0x970] sm:$0xff]
    %v4995 = vld [vmem:[#allocation11 + $0x978] sm:$0xff]
    %v4996 = vld [vmem:[#allocation11 + $0x980] sm:$0xff]
    %v4997 = vld [vmem:[#allocation11 + $0x988] sm:$0xff]
    %v4998 = vld [vmem:[#allocation11 + $0x990] sm:$0xff]
    %v4999 = vld [vmem:[#allocation11 + $0x998] sm:$0xff]
    %v5000 = vld [vmem:[#allocation11 + $0x9a0] sm:$0xff]
    %v5001 = vld [vmem:[#allocation11 + $0x9a8] sm:$0xff]
    %v5002 = vld [vmem:[#allocation11 + $0x9b0] sm:$0xff]
    %v5003 = vld [vmem:[#allocation11 + $0x9b8] sm:$0xff]
    %v5004 = vld [vmem:[#allocation11 + $0x9c0] sm:$0xff]
    %v5005 = vld [vmem:[#allocation11 + $0x9c8] sm:$0xff]
    %v5006 = vld [vmem:[#allocation11 + $0x9d0] sm:$0xff]
    %v5007 = vld [vmem:[#allocation11 + $0x9d8] sm:$0xff]
    %v5008 = vld [vmem:[#allocation11 + $0x9e0] sm:$0xff]
    %v5009 = vld [vmem:[#allocation11 + $0x9e8] sm:$0xff]
    %v5010 = vld [vmem:[#allocation11 + $0x9f0] sm:$0xff]
    %v5011 = vld [vmem:[#allocation11 + $0x9f8] sm:$0xff]
    %v5012 = vld [vmem:[#allocation11 + $0xa00] sm:$0xff]
    %v5013 = vld [vmem:[#allocation11 + $0xa08] sm:$0xff]
    %v5014 = vld [vmem:[#allocation11 + $0xa10] sm:$0xff]
    %v5015 = vld [vmem:[#allocation11 + $0xa18] sm:$0xff]
    %v5016 = vld [vmem:[#allocation11 + $0xa20] sm:$0xff]
    %v5017 = vld [vmem:[#allocation11 + $0xa28] sm:$0xff]
    %v5018 = vld [vmem:[#allocation11 + $0xa30] sm:$0xff]
    %v5019 = vld [vmem:[#allocation11 + $0xa38] sm:$0xff]
    %v5020 = vld [vmem:[#allocation11 + $0xa40] sm:$0xff]
    %v5021 = vld [vmem:[#allocation11 + $0xa48] sm:$0xff]
    %v5022 = vld [vmem:[#allocation11 + $0xa50] sm:$0xff]
    %v5023 = vld [vmem:[#allocation11 + $0xa58] sm:$0xff]
    %v5024 = vld [vmem:[#allocation11 + $0xa60] sm:$0xff]
    %v5025 = vld [vmem:[#allocation11 + $0xa68] sm:$0xff]
    %v5026 = vld [vmem:[#allocation11 + $0xa70] sm:$0xff]
    %v5027 = vld [vmem:[#allocation11 + $0xa78] sm:$0xff]
    %v5028 = vld [vmem:[#allocation11 + $0xa80] sm:$0xff]
    %v5029 = vld [vmem:[#allocation11 + $0xa88] sm:$0xff]
    %v5030 = vld [vmem:[#allocation11 + $0xa90] sm:$0xff]
    %v5031 = vld [vmem:[#allocation11 + $0xa98] sm:$0xff]
    %v5032 = vld [vmem:[#allocation11 + $0xaa0] sm:$0xff]
    %v5033 = vld [vmem:[#allocation11 + $0xaa8] sm:$0xff]
    %v5034 = vld [vmem:[#allocation11 + $0xab0] sm:$0xff]
    %v5035 = vld [vmem:[#allocation11 + $0xab8] sm:$0xff]
    %v5036 = vld [vmem:[#allocation11 + $0xac0] sm:$0xff]
    %v5037 = vld [vmem:[#allocation11 + $0xac8] sm:$0xff]
    %v5038 = vld [vmem:[#allocation11 + $0xad0] sm:$0xff]
    %v5039 = vld [vmem:[#allocation11 + $0xad8] sm:$0xff]
    %v5040 = vld [vmem:[#allocation11 + $0xae0] sm:$0xff]
    %v5041 = vld [vmem:[#allocation11 + $0xae8] sm:$0xff]
    %v5042 = vld [vmem:[#allocation11 + $0xaf0] sm:$0xff]
    %v5043 = vld [vmem:[#allocation11 + $0xaf8] sm:$0xff]
    %v5044 = vld [vmem:[#allocation11 + $0xb00] sm:$0xff]
    %v5045 = vld [vmem:[#allocation11 + $0xb08] sm:$0xff]
    %v5046 = vld [vmem:[#allocation11 + $0xb10] sm:$0xff]
    %v5047 = vld [vmem:[#allocation11 + $0xb18] sm:$0xff]
    %v5048 = vld [vmem:[#allocation11 + $0xb20] sm:$0xff]
    %v5049 = vld [vmem:[#allocation11 + $0xb28] sm:$0xff]
    %v5050 = vld [vmem:[#allocation11 + $0xb30] sm:$0xff]
    %v5051 = vld [vmem:[#allocation11 + $0xb38] sm:$0xff]
    %v5052 = vld [vmem:[#allocation11 + $0xb40] sm:$0xff]
    %v5053 = vld [vmem:[#allocation11 + $0xb48] sm:$0xff]
    %v5054 = vld [vmem:[#allocation11 + $0xb50] sm:$0xff]
    %v5055 = vld [vmem:[#allocation11 + $0xb58] sm:$0xff]
    %v5056 = vld [vmem:[#allocation11 + $0xb60] sm:$0xff]
    %v5057 = vld [vmem:[#allocation11 + $0xb68] sm:$0xff]
    %v5058 = vld [vmem:[#allocation11 + $0xb70] sm:$0xff]
    %v5059 = vld [vmem:[#allocation11 + $0xb78] sm:$0xff]
    %v5060 = vld [vmem:[#allocation11 + $0xb80] sm:$0xff]
    %v5061 = vld [vmem:[#allocation11 + $0xb88] sm:$0xff]
    %v5062 = vld [vmem:[#allocation11 + $0xb90] sm:$0xff]
    %v5063 = vld [vmem:[#allocation11 + $0xb98] sm:$0xff]
    %v5064 = vld [vmem:[#allocation11 + $0xba0] sm:$0xff]
    %v5065 = vld [vmem:[#allocation11 + $0xba8] sm:$0xff]
    %v5066 = vld [vmem:[#allocation11 + $0xbb0] sm:$0xff]
    %v5067 = vld [vmem:[#allocation11 + $0xbb8] sm:$0xff]
    %v5068 = vld [vmem:[#allocation11 + $0xbc0] sm:$0xff]
    %v5069 = vld [vmem:[#allocation11 + $0xbc8] sm:$0xff]
    %v5070 = vld [vmem:[#allocation11 + $0xbd0] sm:$0xff]
    %v5071 = vld [vmem:[#allocation11 + $0xbd8] sm:$0xff]
    %v5072 = vld [vmem:[#allocation11 + $0xbe0] sm:$0xff]
    %v5073 = vld [vmem:[#allocation11 + $0xbe8] sm:$0xff]
    %v5074 = vld [vmem:[#allocation11 + $0xbf0] sm:$0xff]
    %v5075 = vld [vmem:[#allocation11 + $0xbf8] sm:$0xff]
    %v5076 = vld [vmem:[#allocation11 + $0xc00] sm:$0xff]
    %v5077 = vld [vmem:[#allocation11 + $0xc08] sm:$0xff]
    %v5078 = vld [vmem:[#allocation11 + $0xc10] sm:$0xff]
    %v5079 = vld [vmem:[#allocation11 + $0xc18] sm:$0xff]
    %v5080 = vld [vmem:[#allocation11 + $0xc20] sm:$0xff]
    %v5081 = vld [vmem:[#allocation11 + $0xc28] sm:$0xff]
    %v5082 = vld [vmem:[#allocation11 + $0xc30] sm:$0xff]
    %v5083 = vld [vmem:[#allocation11 + $0xc38] sm:$0xff]
    %v5084 = vld [vmem:[#allocation11 + $0xc40] sm:$0xff]
    %v5085 = vld [vmem:[#allocation11 + $0xc48] sm:$0xff]
    %v5086 = vld [vmem:[#allocation11 + $0xc50] sm:$0xff]
    %v5087 = vld [vmem:[#allocation11 + $0xc58] sm:$0xff]
    %v5088 = vld [vmem:[#allocation11 + $0xc60] sm:$0xff]
    %v5089 = vld [vmem:[#allocation11 + $0xc68] sm:$0xff]
    %v5090 = vld [vmem:[#allocation11 + $0xc70] sm:$0xff]
    %v5091 = vld [vmem:[#allocation11 + $0xc78] sm:$0xff]
    %v5092 = vld [vmem:[#allocation11 + $0xc80] sm:$0xff]
    %v5093 = vld [vmem:[#allocation11 + $0xc88] sm:$0xff]
    %v5094 = vld [vmem:[#allocation11 + $0xc90] sm:$0xff]
    %v5095 = vld [vmem:[#allocation11 + $0xc98] sm:$0xff]
    %v5096 = vld [vmem:[#allocation11 + $0xca0] sm:$0xff]
    %v5097 = vld [vmem:[#allocation11 + $0xca8] sm:$0xff]
    %v5098 = vld [vmem:[#allocation11 + $0xcb0] sm:$0xff]
    %v5099 = vld [vmem:[#allocation11 + $0xcb8] sm:$0xff]
    %v5100 = vld [vmem:[#allocation11 + $0xcc0] sm:$0xff]
    %v5101 = vld [vmem:[#allocation11 + $0xcc8] sm:$0xff]
    %v5102 = vld [vmem:[#allocation11 + $0xcd0] sm:$0xff]
    %v5103 = vld [vmem:[#allocation11 + $0xcd8] sm:$0xff]
    %v5104 = vld [vmem:[#allocation11 + $0xce0] sm:$0xff]
    %v5105 = vld [vmem:[#allocation11 + $0xce8] sm:$0xff]
    %v5106 = vld [vmem:[#allocation11 + $0xcf0] sm:$0xff]
    %v5107 = vld [vmem:[#allocation11 + $0xcf8] sm:$0xff]
    %v5108 = vld [vmem:[#allocation11 + $0xd00] sm:$0xff]
    %v5109 = vld [vmem:[#allocation11 + $0xd08] sm:$0xff]
    %v5110 = vld [vmem:[#allocation11 + $0xd10] sm:$0xff]
    %v5111 = vld [vmem:[#allocation11 + $0xd18] sm:$0xff]
    %v5112 = vld [vmem:[#allocation11 + $0xd20] sm:$0xff]
    %v5113 = vld [vmem:[#allocation11 + $0xd28] sm:$0xff]
    %v5114 = vld [vmem:[#allocation11 + $0xd30] sm:$0xff]
    %v5115 = vld [vmem:[#allocation11 + $0xd38] sm:$0xff]
    %v5116 = vld [vmem:[#allocation11 + $0xd40] sm:$0xff]
    %v5117 = vld [vmem:[#allocation11 + $0xd48] sm:$0xff]
    %v5118 = vld [vmem:[#allocation11 + $0xd50] sm:$0xff]
    %v5119 = vld [vmem:[#allocation11 + $0xd58] sm:$0xff]
    %v5120 = vld [vmem:[#allocation11 + $0xd60] sm:$0xff]
    %v5121 = vld [vmem:[#allocation11 + $0xd68] sm:$0xff]
    %v5122 = vld [vmem:[#allocation11 + $0xd70] sm:$0xff]
    %v5123 = vld [vmem:[#allocation11 + $0xd78] sm:$0xff]
    %v5124 = vld [vmem:[#allocation11 + $0xd80] sm:$0xff]
    %v5125 = vld [vmem:[#allocation11 + $0xd88] sm:$0xff]
    %v5126 = vld [vmem:[#allocation11 + $0xd90] sm:$0xff]
    %v5127 = vld [vmem:[#allocation11 + $0xd98] sm:$0xff]
    %v5128 = vld [vmem:[#allocation11 + $0xda0] sm:$0xff]
    %v5129 = vld [vmem:[#allocation11 + $0xda8] sm:$0xff]
    %v5130 = vld [vmem:[#allocation11 + $0xdb0] sm:$0xff]
    %v5131 = vld [vmem:[#allocation11 + $0xdb8] sm:$0xff]
    %v5132 = vld [vmem:[#allocation11 + $0xdc0] sm:$0xff]
    %v5133 = vld [vmem:[#allocation11 + $0xdc8] sm:$0xff]
    %v5134 = vld [vmem:[#allocation11 + $0xdd0] sm:$0xff]
    %v5135 = vld [vmem:[#allocation11 + $0xdd8] sm:$0xff]
    %v5136 = vld [vmem:[#allocation11 + $0xde0] sm:$0xff]
    %v5137 = vld [vmem:[#allocation11 + $0xde8] sm:$0xff]
    %v5138 = vld [vmem:[#allocation11 + $0xdf0] sm:$0xff]
    %v5139 = vld [vmem:[#allocation11 + $0xdf8] sm:$0xff]
    %v5140 = vld [vmem:[#allocation11 + $0xe00] sm:$0xff]
    %v5141 = vld [vmem:[#allocation11 + $0xe08] sm:$0xff]
    %v5142 = vld [vmem:[#allocation11 + $0xe10] sm:$0xff]
    %v5143 = vld [vmem:[#allocation11 + $0xe18] sm:$0xff]
    %v5144 = vld [vmem:[#allocation11 + $0xe20] sm:$0xff]
    %v5145 = vld [vmem:[#allocation11 + $0xe28] sm:$0xff]
    %v5146 = vld [vmem:[#allocation11 + $0xe30] sm:$0xff]
    %v5147 = vld [vmem:[#allocation11 + $0xe38] sm:$0xff]
    %v5148 = vld [vmem:[#allocation11 + $0xe40] sm:$0xff]
    %v5149 = vld [vmem:[#allocation11 + $0xe48] sm:$0xff]
    %v5150 = vld [vmem:[#allocation11 + $0xe50] sm:$0xff]
    %v5151 = vld [vmem:[#allocation11 + $0xe58] sm:$0xff]
    %v5152 = vld [vmem:[#allocation11 + $0xe60] sm:$0xff]
    %v5153 = vld [vmem:[#allocation11 + $0xe68] sm:$0xff]
    %v5154 = vld [vmem:[#allocation11 + $0xe70] sm:$0xff]
    %v5155 = vld [vmem:[#allocation11 + $0xe78] sm:$0xff]
    %v5156 = vld [vmem:[#allocation11 + $0xe80] sm:$0xff]
    %v5157 = vld [vmem:[#allocation11 + $0xe88] sm:$0xff]
    %v5158 = vld [vmem:[#allocation11 + $0xe90] sm:$0xff]
    %v5159 = vld [vmem:[#allocation11 + $0xe98] sm:$0xff]
    %v5160 = vld [vmem:[#allocation11 + $0xea0] sm:$0xff]
    %v5161 = vld [vmem:[#allocation11 + $0xea8] sm:$0xff]
    %v5162 = vld [vmem:[#allocation11 + $0xeb0] sm:$0xff]
    %v5163 = vld [vmem:[#allocation11 + $0xeb8] sm:$0xff]
    %v5164 = vld [vmem:[#allocation11 + $0xec0] sm:$0xff]
    %v5165 = vld [vmem:[#allocation11 + $0xec8] sm:$0xff]
    %v5166 = vld [vmem:[#allocation11 + $0xed0] sm:$0xff]
    %v5167 = vld [vmem:[#allocation11 + $0xed8] sm:$0xff]
    %v5168 = vld [vmem:[#allocation11 + $0xee0] sm:$0xff]
    %v5169 = vld [vmem:[#allocation11 + $0xee8] sm:$0xff]
    %v5170 = vld [vmem:[#allocation11 + $0xef0] sm:$0xff]
    %v5171 = vld [vmem:[#allocation11 + $0xef8] sm:$0xff]
    %v5172 = vld [vmem:[#allocation11 + $0xf00] sm:$0xff]
    %v5173 = vld [vmem:[#allocation11 + $0xf08] sm:$0xff]
    %v5174 = vld [vmem:[#allocation11 + $0xf10] sm:$0xff]
    %v5175 = vld [vmem:[#allocation11 + $0xf18] sm:$0xff]
    %v5176 = vld [vmem:[#allocation11 + $0xf20] sm:$0xff]
    %v5177 = vld [vmem:[#allocation11 + $0xf28] sm:$0xff]
    %v5178 = vld [vmem:[#allocation11 + $0xf30] sm:$0xff]
    %v5179 = vld [vmem:[#allocation11 + $0xf38] sm:$0xff]
    %v5180 = vld [vmem:[#allocation11 + $0xf40] sm:$0xff]
    %v5181 = vld [vmem:[#allocation11 + $0xf48] sm:$0xff]
    %v5182 = vld [vmem:[#allocation11 + $0xf50] sm:$0xff]
    %v5183 = vld [vmem:[#allocation11 + $0xf58] sm:$0xff]
    %v5184 = vld [vmem:[#allocation11 + $0xf60] sm:$0xff]
    %v5185 = vld [vmem:[#allocation11 + $0xf68] sm:$0xff]
    %v5186 = vld [vmem:[#allocation11 + $0xf70] sm:$0xff]
    %v5187 = vld [vmem:[#allocation11 + $0xf78] sm:$0xff]
    %v5188 = vld [vmem:[#allocation11 + $0xf80] sm:$0xff]
    %v5189 = vld [vmem:[#allocation11 + $0xf88] sm:$0xff]
    %v5190 = vld [vmem:[#allocation11 + $0xf90] sm:$0xff]
    %v5191 = vld [vmem:[#allocation11 + $0xf98] sm:$0xff]
    %v5192 = vld [vmem:[#allocation11 + $0xfa0] sm:$0xff]
    %v5193 = vld [vmem:[#allocation11 + $0xfa8] sm:$0xff]
    %v5194 = vld [vmem:[#allocation11 + $0xfb0] sm:$0xff]
    %v5195 = vld [vmem:[#allocation11 + $0xfb8] sm:$0xff]
    %v5196 = vld [vmem:[#allocation11 + $0xfc0] sm:$0xff]
    %v5197 = vld [vmem:[#allocation11 + $0xfc8] sm:$0xff]
    %v5198 = vld [vmem:[#allocation11 + $0xfd0] sm:$0xff]
    %v5199 = vld [vmem:[#allocation11 + $0xfd8] sm:$0xff]
    %v5200 = vld [vmem:[#allocation11 + $0xfe0] sm:$0xff]
    %v5201 = vld [vmem:[#allocation11 + $0xfe8] sm:$0xff]
    %v5202 = vld [vmem:[#allocation11 + $0xff0] sm:$0xff]
    %v5203 = vld [vmem:[#allocation11 + $0xff8] sm:$0xff]
    %v5204 = vld [vmem:[#allocation13] sm:$0xf]
    %v5206 = vlaneseq
    %v5207 = vshrl.u32 %v5206, 7
    %v5208 = vsub.s32 0, %v5207
    %v5209 = vrot.slane %v5204, %v5208
    %v5210 = vlaneseq
    %v5211 = vshrl.u32 %v5210, 7
    %v5212 = vsub.s32 1, %v5211
    %v5213 = vrot.slane %v5204, %v5212
    %v5214 = vlaneseq
    %v5215 = vshrl.u32 %v5214, 7
    %v5216 = vsub.s32 2, %v5215
    %v5217 = vrot.slane %v5204, %v5216
    %v5218 = vlaneseq
    %v5219 = vshrl.u32 %v5218, 7
    %v5220 = vsub.s32 3, %v5219
    %v5221 = vrot.slane %v5204, %v5220
    %v5738 = vunpack.c.l.b16 %v4692
    %v5739 = vunpack.c.h.b16 %v4692
    %v5740 = vunpack.c.l.b16 %v4693
    %v5741 = vunpack.c.h.b16 %v4693
    %v5742 = vunpack.c.l.b16 %v4694
    %v5743 = vunpack.c.h.b16 %v4694
    %v5744 = vunpack.c.l.b16 %v4695
    %v5745 = vunpack.c.h.b16 %v4695
    %v5746 = vunpack.c.l.b16 %v4696
    %v5747 = vunpack.c.h.b16 %v4696
    %v5748 = vunpack.c.l.b16 %v4697
    %v5749 = vunpack.c.h.b16 %v4697
    %v5750 = vunpack.c.l.b16 %v4698
    %v5751 = vunpack.c.h.b16 %v4698
    %v5752 = vunpack.c.l.b16 %v4699
    %v5753 = vunpack.c.h.b16 %v4699
    %v5754 = vunpack.c.l.b16 %v4700
    %v5755 = vunpack.c.h.b16 %v4700
    %v5756 = vunpack.c.l.b16 %v4701
    %v5757 = vunpack.c.h.b16 %v4701
    %v5758 = vunpack.c.l.b16 %v4702
    %v5759 = vunpack.c.h.b16 %v4702
    %v5760 = vunpack.c.l.b16 %v4703
    %v5761 = vunpack.c.h.b16 %v4703
    %v5762 = vunpack.c.l.b16 %v4704
    %v5763 = vunpack.c.h.b16 %v4704
    %v5764 = vunpack.c.l.b16 %v4705
    %v5765 = vunpack.c.h.b16 %v4705
    %v5766 = vunpack.c.l.b16 %v4706
    %v5767 = vunpack.c.h.b16 %v4706
    %v5768 = vunpack.c.l.b16 %v4707
    %v5769 = vunpack.c.h.b16 %v4707
    %v5770 = vunpack.c.l.b16 %v4708
    %v5771 = vunpack.c.h.b16 %v4708
    %v5772 = vunpack.c.l.b16 %v4709
    %v5773 = vunpack.c.h.b16 %v4709
    %v5774 = vunpack.c.l.b16 %v4710
    %v5775 = vunpack.c.h.b16 %v4710
    %v5776 = vunpack.c.l.b16 %v4711
    %v5777 = vunpack.c.h.b16 %v4711
    %v5778 = vunpack.c.l.b16 %v4712
    %v5779 = vunpack.c.h.b16 %v4712
    %v5780 = vunpack.c.l.b16 %v4713
    %v5781 = vunpack.c.h.b16 %v4713
    %v5782 = vunpack.c.l.b16 %v4714
    %v5783 = vunpack.c.h.b16 %v4714
    %v5784 = vunpack.c.l.b16 %v4715
    %v5785 = vunpack.c.h.b16 %v4715
    %v5786 = vunpack.c.l.b16 %v4716
    %v5787 = vunpack.c.h.b16 %v4716
    %v5788 = vunpack.c.l.b16 %v4717
    %v5789 = vunpack.c.h.b16 %v4717
    %v5790 = vunpack.c.l.b16 %v4718
    %v5791 = vunpack.c.h.b16 %v4718
    %v5792 = vunpack.c.l.b16 %v4719
    %v5793 = vunpack.c.h.b16 %v4719
    %v5794 = vunpack.c.l.b16 %v4720
    %v5795 = vunpack.c.h.b16 %v4720
    %v5796 = vunpack.c.l.b16 %v4721
    %v5797 = vunpack.c.h.b16 %v4721
    %v5798 = vunpack.c.l.b16 %v4722
    %v5799 = vunpack.c.h.b16 %v4722
    %v5800 = vunpack.c.l.b16 %v4723
    %v5801 = vunpack.c.h.b16 %v4723
    %v5802 = vunpack.c.l.b16 %v4724
    %v5803 = vunpack.c.h.b16 %v4724
    %v5804 = vunpack.c.l.b16 %v4725
    %v5805 = vunpack.c.h.b16 %v4725
    %v5806 = vunpack.c.l.b16 %v4726
    %v5807 = vunpack.c.h.b16 %v4726
    %v5808 = vunpack.c.l.b16 %v4727
    %v5809 = vunpack.c.h.b16 %v4727
    %v5810 = vunpack.c.l.b16 %v4728
    %v5811 = vunpack.c.h.b16 %v4728
    %v5812 = vunpack.c.l.b16 %v4729
    %v5813 = vunpack.c.h.b16 %v4729
    %v5814 = vunpack.c.l.b16 %v4730
    %v5815 = vunpack.c.h.b16 %v4730
    %v5816 = vunpack.c.l.b16 %v4731
    %v5817 = vunpack.c.h.b16 %v4731
    %v5818 = vunpack.c.l.b16 %v4732
    %v5819 = vunpack.c.h.b16 %v4732
    %v5820 = vunpack.c.l.b16 %v4733
    %v5821 = vunpack.c.h.b16 %v4733
    %v5822 = vunpack.c.l.b16 %v4734
    %v5823 = vunpack.c.h.b16 %v4734
    %v5824 = vunpack.c.l.b16 %v4735
    %v5825 = vunpack.c.h.b16 %v4735
    %v5826 = vunpack.c.l.b16 %v4736
    %v5827 = vunpack.c.h.b16 %v4736
    %v5828 = vunpack.c.l.b16 %v4737
    %v5829 = vunpack.c.h.b16 %v4737
    %v5830 = vunpack.c.l.b16 %v4738
    %v5831 = vunpack.c.h.b16 %v4738
    %v5832 = vunpack.c.l.b16 %v4739
    %v5833 = vunpack.c.h.b16 %v4739
    %v5834 = vunpack.c.l.b16 %v4740
    %v5835 = vunpack.c.h.b16 %v4740
    %v5836 = vunpack.c.l.b16 %v4741
    %v5837 = vunpack.c.h.b16 %v4741
    %v5838 = vunpack.c.l.b16 %v4742
    %v5839 = vunpack.c.h.b16 %v4742
    %v5840 = vunpack.c.l.b16 %v4743
    %v5841 = vunpack.c.h.b16 %v4743
    %v5842 = vunpack.c.l.b16 %v4744
    %v5843 = vunpack.c.h.b16 %v4744
    %v5844 = vunpack.c.l.b16 %v4745
    %v5845 = vunpack.c.h.b16 %v4745
    %v5846 = vunpack.c.l.b16 %v4746
    %v5847 = vunpack.c.h.b16 %v4746
    %v5848 = vunpack.c.l.b16 %v4747
    %v5849 = vunpack.c.h.b16 %v4747
    %v5850 = vunpack.c.l.b16 %v4748
    %v5851 = vunpack.c.h.b16 %v4748
    %v5852 = vunpack.c.l.b16 %v4749
    %v5853 = vunpack.c.h.b16 %v4749
    %v5854 = vunpack.c.l.b16 %v4750
    %v5855 = vunpack.c.h.b16 %v4750
    %v5856 = vunpack.c.l.b16 %v4751
    %v5857 = vunpack.c.h.b16 %v4751
    %v5858 = vunpack.c.l.b16 %v4752
    %v5859 = vunpack.c.h.b16 %v4752
    %v5860 = vunpack.c.l.b16 %v4753
    %v5861 = vunpack.c.h.b16 %v4753
    %v5862 = vunpack.c.l.b16 %v4754
    %v5863 = vunpack.c.h.b16 %v4754
    %v5864 = vunpack.c.l.b16 %v4755
    %v5865 = vunpack.c.h.b16 %v4755
    %v5866 = vunpack.c.l.b16 %v4756
    %v5867 = vunpack.c.h.b16 %v4756
    %v5868 = vunpack.c.l.b16 %v4757
    %v5869 = vunpack.c.h.b16 %v4757
    %v5870 = vunpack.c.l.b16 %v4758
    %v5871 = vunpack.c.h.b16 %v4758
    %v5872 = vunpack.c.l.b16 %v4759
    %v5873 = vunpack.c.h.b16 %v4759
    %v5874 = vunpack.c.l.b16 %v4760
    %v5875 = vunpack.c.h.b16 %v4760
    %v5876 = vunpack.c.l.b16 %v4761
    %v5877 = vunpack.c.h.b16 %v4761
    %v5878 = vunpack.c.l.b16 %v4762
    %v5879 = vunpack.c.h.b16 %v4762
    %v5880 = vunpack.c.l.b16 %v4763
    %v5881 = vunpack.c.h.b16 %v4763
    %v5882 = vunpack.c.l.b16 %v4764
    %v5883 = vunpack.c.h.b16 %v4764
    %v5884 = vunpack.c.l.b16 %v4765
    %v5885 = vunpack.c.h.b16 %v4765
    %v5886 = vunpack.c.l.b16 %v4766
    %v5887 = vunpack.c.h.b16 %v4766
    %v5888 = vunpack.c.l.b16 %v4767
    %v5889 = vunpack.c.h.b16 %v4767
    %v5890 = vunpack.c.l.b16 %v4768
    %v5891 = vunpack.c.h.b16 %v4768
    %v5892 = vunpack.c.l.b16 %v4769
    %v5893 = vunpack.c.h.b16 %v4769
    %v5894 = vunpack.c.l.b16 %v4770
    %v5895 = vunpack.c.h.b16 %v4770
    %v5896 = vunpack.c.l.b16 %v4771
    %v5897 = vunpack.c.h.b16 %v4771
    %v5898 = vunpack.c.l.b16 %v4772
    %v5899 = vunpack.c.h.b16 %v4772
    %v5900 = vunpack.c.l.b16 %v4773
    %v5901 = vunpack.c.h.b16 %v4773
    %v5902 = vunpack.c.l.b16 %v4774
    %v5903 = vunpack.c.h.b16 %v4774
    %v5904 = vunpack.c.l.b16 %v4775
    %v5905 = vunpack.c.h.b16 %v4775
    %v5906 = vunpack.c.l.b16 %v4776
    %v5907 = vunpack.c.h.b16 %v4776
    %v5908 = vunpack.c.l.b16 %v4777
    %v5909 = vunpack.c.h.b16 %v4777
    %v5910 = vunpack.c.l.b16 %v4778
    %v5911 = vunpack.c.h.b16 %v4778
    %v5912 = vunpack.c.l.b16 %v4779
    %v5913 = vunpack.c.h.b16 %v4779
    %v5914 = vunpack.c.l.b16 %v4780
    %v5915 = vunpack.c.h.b16 %v4780
    %v5916 = vunpack.c.l.b16 %v4781
    %v5917 = vunpack.c.h.b16 %v4781
    %v5918 = vunpack.c.l.b16 %v4782
    %v5919 = vunpack.c.h.b16 %v4782
    %v5920 = vunpack.c.l.b16 %v4783
    %v5921 = vunpack.c.h.b16 %v4783
    %v5922 = vunpack.c.l.b16 %v4784
    %v5923 = vunpack.c.h.b16 %v4784
    %v5924 = vunpack.c.l.b16 %v4785
    %v5925 = vunpack.c.h.b16 %v4785
    %v5926 = vunpack.c.l.b16 %v4786
    %v5927 = vunpack.c.h.b16 %v4786
    %v5928 = vunpack.c.l.b16 %v4787
    %v5929 = vunpack.c.h.b16 %v4787
    %v5930 = vunpack.c.l.b16 %v4788
    %v5931 = vunpack.c.h.b16 %v4788
    %v5932 = vunpack.c.l.b16 %v4789
    %v5933 = vunpack.c.h.b16 %v4789
    %v5934 = vunpack.c.l.b16 %v4790
    %v5935 = vunpack.c.h.b16 %v4790
    %v5936 = vunpack.c.l.b16 %v4791
    %v5937 = vunpack.c.h.b16 %v4791
    %v5938 = vunpack.c.l.b16 %v4792
    %v5939 = vunpack.c.h.b16 %v4792
    %v5940 = vunpack.c.l.b16 %v4793
    %v5941 = vunpack.c.h.b16 %v4793
    %v5942 = vunpack.c.l.b16 %v4794
    %v5943 = vunpack.c.h.b16 %v4794
    %v5944 = vunpack.c.l.b16 %v4795
    %v5945 = vunpack.c.h.b16 %v4795
    %v5946 = vunpack.c.l.b16 %v4796
    %v5947 = vunpack.c.h.b16 %v4796
    %v5948 = vunpack.c.l.b16 %v4797
    %v5949 = vunpack.c.h.b16 %v4797
    %v5950 = vunpack.c.l.b16 %v4798
    %v5951 = vunpack.c.h.b16 %v4798
    %v5952 = vunpack.c.l.b16 %v4799
    %v5953 = vunpack.c.h.b16 %v4799
    %v5954 = vunpack.c.l.b16 %v4800
    %v5955 = vunpack.c.h.b16 %v4800
    %v5956 = vunpack.c.l.b16 %v4801
    %v5957 = vunpack.c.h.b16 %v4801
    %v5958 = vunpack.c.l.b16 %v4802
    %v5959 = vunpack.c.h.b16 %v4802
    %v5960 = vunpack.c.l.b16 %v4803
    %v5961 = vunpack.c.h.b16 %v4803
    %v5962 = vunpack.c.l.b16 %v4804
    %v5963 = vunpack.c.h.b16 %v4804
    %v5964 = vunpack.c.l.b16 %v4805
    %v5965 = vunpack.c.h.b16 %v4805
    %v5966 = vunpack.c.l.b16 %v4806
    %v5967 = vunpack.c.h.b16 %v4806
    %v5968 = vunpack.c.l.b16 %v4807
    %v5969 = vunpack.c.h.b16 %v4807
    %v5970 = vunpack.c.l.b16 %v4808
    %v5971 = vunpack.c.h.b16 %v4808
    %v5972 = vunpack.c.l.b16 %v4809
    %v5973 = vunpack.c.h.b16 %v4809
    %v5974 = vunpack.c.l.b16 %v4810
    %v5975 = vunpack.c.h.b16 %v4810
    %v5976 = vunpack.c.l.b16 %v4811
    %v5977 = vunpack.c.h.b16 %v4811
    %v5978 = vunpack.c.l.b16 %v4812
    %v5979 = vunpack.c.h.b16 %v4812
    %v5980 = vunpack.c.l.b16 %v4813
    %v5981 = vunpack.c.h.b16 %v4813
    %v5982 = vunpack.c.l.b16 %v4814
    %v5983 = vunpack.c.h.b16 %v4814
    %v5984 = vunpack.c.l.b16 %v4815
    %v5985 = vunpack.c.h.b16 %v4815
    %v5986 = vunpack.c.l.b16 %v4816
    %v5987 = vunpack.c.h.b16 %v4816
    %v5988 = vunpack.c.l.b16 %v4817
    %v5989 = vunpack.c.h.b16 %v4817
    %v5990 = vunpack.c.l.b16 %v4818
    %v5991 = vunpack.c.h.b16 %v4818
    %v5992 = vunpack.c.l.b16 %v4819
    %v5993 = vunpack.c.h.b16 %v4819
    %v5994 = vunpack.c.l.b16 %v4820
    %v5995 = vunpack.c.h.b16 %v4820
    %v5996 = vunpack.c.l.b16 %v4821
    %v5997 = vunpack.c.h.b16 %v4821
    %v5998 = vunpack.c.l.b16 %v4822
    %v5999 = vunpack.c.h.b16 %v4822
    %v6000 = vunpack.c.l.b16 %v4823
    %v6001 = vunpack.c.h.b16 %v4823
    %v6002 = vunpack.c.l.b16 %v4824
    %v6003 = vunpack.c.h.b16 %v4824
    %v6004 = vunpack.c.l.b16 %v4825
    %v6005 = vunpack.c.h.b16 %v4825
    %v6006 = vunpack.c.l.b16 %v4826
    %v6007 = vunpack.c.h.b16 %v4826
    %v6008 = vunpack.c.l.b16 %v4827
    %v6009 = vunpack.c.h.b16 %v4827
    %v6010 = vunpack.c.l.b16 %v4828
    %v6011 = vunpack.c.h.b16 %v4828
    %v6012 = vunpack.c.l.b16 %v4829
    %v6013 = vunpack.c.h.b16 %v4829
    %v6014 = vunpack.c.l.b16 %v4830
    %v6015 = vunpack.c.h.b16 %v4830
    %v6016 = vunpack.c.l.b16 %v4831
    %v6017 = vunpack.c.h.b16 %v4831
    %v6018 = vunpack.c.l.b16 %v4832
    %v6019 = vunpack.c.h.b16 %v4832
    %v6020 = vunpack.c.l.b16 %v4833
    %v6021 = vunpack.c.h.b16 %v4833
    %v6022 = vunpack.c.l.b16 %v4834
    %v6023 = vunpack.c.h.b16 %v4834
    %v6024 = vunpack.c.l.b16 %v4835
    %v6025 = vunpack.c.h.b16 %v4835
    %v6026 = vunpack.c.l.b16 %v4836
    %v6027 = vunpack.c.h.b16 %v4836
    %v6028 = vunpack.c.l.b16 %v4837
    %v6029 = vunpack.c.h.b16 %v4837
    %v6030 = vunpack.c.l.b16 %v4838
    %v6031 = vunpack.c.h.b16 %v4838
    %v6032 = vunpack.c.l.b16 %v4839
    %v6033 = vunpack.c.h.b16 %v4839
    %v6034 = vunpack.c.l.b16 %v4840
    %v6035 = vunpack.c.h.b16 %v4840
    %v6036 = vunpack.c.l.b16 %v4841
    %v6037 = vunpack.c.h.b16 %v4841
    %v6038 = vunpack.c.l.b16 %v4842
    %v6039 = vunpack.c.h.b16 %v4842
    %v6040 = vunpack.c.l.b16 %v4843
    %v6041 = vunpack.c.h.b16 %v4843
    %v6042 = vunpack.c.l.b16 %v4844
    %v6043 = vunpack.c.h.b16 %v4844
    %v6044 = vunpack.c.l.b16 %v4845
    %v6045 = vunpack.c.h.b16 %v4845
    %v6046 = vunpack.c.l.b16 %v4846
    %v6047 = vunpack.c.h.b16 %v4846
    %v6048 = vunpack.c.l.b16 %v4847
    %v6049 = vunpack.c.h.b16 %v4847
    %v6050 = vunpack.c.l.b16 %v4848
    %v6051 = vunpack.c.h.b16 %v4848
    %v6052 = vunpack.c.l.b16 %v4849
    %v6053 = vunpack.c.h.b16 %v4849
    %v6054 = vunpack.c.l.b16 %v4850
    %v6055 = vunpack.c.h.b16 %v4850
    %v6056 = vunpack.c.l.b16 %v4851
    %v6057 = vunpack.c.h.b16 %v4851
    %v6058 = vunpack.c.l.b16 %v4852
    %v6059 = vunpack.c.h.b16 %v4852
    %v6060 = vunpack.c.l.b16 %v4853
    %v6061 = vunpack.c.h.b16 %v4853
    %v6062 = vunpack.c.l.b16 %v4854
    %v6063 = vunpack.c.h.b16 %v4854
    %v6064 = vunpack.c.l.b16 %v4855
    %v6065 = vunpack.c.h.b16 %v4855
    %v6066 = vunpack.c.l.b16 %v4856
    %v6067 = vunpack.c.h.b16 %v4856
    %v6068 = vunpack.c.l.b16 %v4857
    %v6069 = vunpack.c.h.b16 %v4857
    %v6070 = vunpack.c.l.b16 %v4858
    %v6071 = vunpack.c.h.b16 %v4858
    %v6072 = vunpack.c.l.b16 %v4859
    %v6073 = vunpack.c.h.b16 %v4859
    %v6074 = vunpack.c.l.b16 %v4860
    %v6075 = vunpack.c.h.b16 %v4860
    %v6076 = vunpack.c.l.b16 %v4861
    %v6077 = vunpack.c.h.b16 %v4861
    %v6078 = vunpack.c.l.b16 %v4862
    %v6079 = vunpack.c.h.b16 %v4862
    %v6080 = vunpack.c.l.b16 %v4863
    %v6081 = vunpack.c.h.b16 %v4863
    %v6082 = vunpack.c.l.b16 %v4864
    %v6083 = vunpack.c.h.b16 %v4864
    %v6084 = vunpack.c.l.b16 %v4865
    %v6085 = vunpack.c.h.b16 %v4865
    %v6086 = vunpack.c.l.b16 %v4866
    %v6087 = vunpack.c.h.b16 %v4866
    %v6088 = vunpack.c.l.b16 %v4867
    %v6089 = vunpack.c.h.b16 %v4867
    %v6090 = vunpack.c.l.b16 %v4868
    %v6091 = vunpack.c.h.b16 %v4868
    %v6092 = vunpack.c.l.b16 %v4869
    %v6093 = vunpack.c.h.b16 %v4869
    %v6094 = vunpack.c.l.b16 %v4870
    %v6095 = vunpack.c.h.b16 %v4870
    %v6096 = vunpack.c.l.b16 %v4871
    %v6097 = vunpack.c.h.b16 %v4871
    %v6098 = vunpack.c.l.b16 %v4872
    %v6099 = vunpack.c.h.b16 %v4872
    %v6100 = vunpack.c.l.b16 %v4873
    %v6101 = vunpack.c.h.b16 %v4873
    %v6102 = vunpack.c.l.b16 %v4874
    %v6103 = vunpack.c.h.b16 %v4874
    %v6104 = vunpack.c.l.b16 %v4875
    %v6105 = vunpack.c.h.b16 %v4875
    %v6106 = vunpack.c.l.b16 %v4876
    %v6107 = vunpack.c.h.b16 %v4876
    %v6108 = vunpack.c.l.b16 %v4877
    %v6109 = vunpack.c.h.b16 %v4877
    %v6110 = vunpack.c.l.b16 %v4878
    %v6111 = vunpack.c.h.b16 %v4878
    %v6112 = vunpack.c.l.b16 %v4879
    %v6113 = vunpack.c.h.b16 %v4879
    %v6114 = vunpack.c.l.b16 %v4880
    %v6115 = vunpack.c.h.b16 %v4880
    %v6116 = vunpack.c.l.b16 %v4881
    %v6117 = vunpack.c.h.b16 %v4881
    %v6118 = vunpack.c.l.b16 %v4882
    %v6119 = vunpack.c.h.b16 %v4882
    %v6120 = vunpack.c.l.b16 %v4883
    %v6121 = vunpack.c.h.b16 %v4883
    %v6122 = vunpack.c.l.b16 %v4884
    %v6123 = vunpack.c.h.b16 %v4884
    %v6124 = vunpack.c.l.b16 %v4885
    %v6125 = vunpack.c.h.b16 %v4885
    %v6126 = vunpack.c.l.b16 %v4886
    %v6127 = vunpack.c.h.b16 %v4886
    %v6128 = vunpack.c.l.b16 %v4887
    %v6129 = vunpack.c.h.b16 %v4887
    %v6130 = vunpack.c.l.b16 %v4888
    %v6131 = vunpack.c.h.b16 %v4888
    %v6132 = vunpack.c.l.b16 %v4889
    %v6133 = vunpack.c.h.b16 %v4889
    %v6134 = vunpack.c.l.b16 %v4890
    %v6135 = vunpack.c.h.b16 %v4890
    %v6136 = vunpack.c.l.b16 %v4891
    %v6137 = vunpack.c.h.b16 %v4891
    %v6138 = vunpack.c.l.b16 %v4892
    %v6139 = vunpack.c.h.b16 %v4892
    %v6140 = vunpack.c.l.b16 %v4893
    %v6141 = vunpack.c.h.b16 %v4893
    %v6142 = vunpack.c.l.b16 %v4894
    %v6143 = vunpack.c.h.b16 %v4894
    %v6144 = vunpack.c.l.b16 %v4895
    %v6145 = vunpack.c.h.b16 %v4895
    %v6146 = vunpack.c.l.b16 %v4896
    %v6147 = vunpack.c.h.b16 %v4896
    %v6148 = vunpack.c.l.b16 %v4897
    %v6149 = vunpack.c.h.b16 %v4897
    %v6150 = vunpack.c.l.b16 %v4898
    %v6151 = vunpack.c.h.b16 %v4898
    %v6152 = vunpack.c.l.b16 %v4899
    %v6153 = vunpack.c.h.b16 %v4899
    %v6154 = vunpack.c.l.b16 %v4900
    %v6155 = vunpack.c.h.b16 %v4900
    %v6156 = vunpack.c.l.b16 %v4901
    %v6157 = vunpack.c.h.b16 %v4901
    %v6158 = vunpack.c.l.b16 %v4902
    %v6159 = vunpack.c.h.b16 %v4902
    %v6160 = vunpack.c.l.b16 %v4903
    %v6161 = vunpack.c.h.b16 %v4903
    %v6162 = vunpack.c.l.b16 %v4904
    %v6163 = vunpack.c.h.b16 %v4904
    %v6164 = vunpack.c.l.b16 %v4905
    %v6165 = vunpack.c.h.b16 %v4905
    %v6166 = vunpack.c.l.b16 %v4906
    %v6167 = vunpack.c.h.b16 %v4906
    %v6168 = vunpack.c.l.b16 %v4907
    %v6169 = vunpack.c.h.b16 %v4907
    %v6170 = vunpack.c.l.b16 %v4908
    %v6171 = vunpack.c.h.b16 %v4908
    %v6172 = vunpack.c.l.b16 %v4909
    %v6173 = vunpack.c.h.b16 %v4909
    %v6174 = vunpack.c.l.b16 %v4910
    %v6175 = vunpack.c.h.b16 %v4910
    %v6176 = vunpack.c.l.b16 %v4911
    %v6177 = vunpack.c.h.b16 %v4911
    %v6178 = vunpack.c.l.b16 %v4912
    %v6179 = vunpack.c.h.b16 %v4912
    %v6180 = vunpack.c.l.b16 %v4913
    %v6181 = vunpack.c.h.b16 %v4913
    %v6182 = vunpack.c.l.b16 %v4914
    %v6183 = vunpack.c.h.b16 %v4914
    %v6184 = vunpack.c.l.b16 %v4915
    %v6185 = vunpack.c.h.b16 %v4915
    %v6186 = vunpack.c.l.b16 %v4916
    %v6187 = vunpack.c.h.b16 %v4916
    %v6188 = vunpack.c.l.b16 %v4917
    %v6189 = vunpack.c.h.b16 %v4917
    %v6190 = vunpack.c.l.b16 %v4918
    %v6191 = vunpack.c.h.b16 %v4918
    %v6192 = vunpack.c.l.b16 %v4919
    %v6193 = vunpack.c.h.b16 %v4919
    %v6194 = vunpack.c.l.b16 %v4920
    %v6195 = vunpack.c.h.b16 %v4920
    %v6196 = vunpack.c.l.b16 %v4921
    %v6197 = vunpack.c.h.b16 %v4921
    %v6198 = vunpack.c.l.b16 %v4922
    %v6199 = vunpack.c.h.b16 %v4922
    %v6200 = vunpack.c.l.b16 %v4923
    %v6201 = vunpack.c.h.b16 %v4923
    %v6202 = vunpack.c.l.b16 %v4924
    %v6203 = vunpack.c.h.b16 %v4924
    %v6204 = vunpack.c.l.b16 %v4925
    %v6205 = vunpack.c.h.b16 %v4925
    %v6206 = vunpack.c.l.b16 %v4926
    %v6207 = vunpack.c.h.b16 %v4926
    %v6208 = vunpack.c.l.b16 %v4927
    %v6209 = vunpack.c.h.b16 %v4927
    %v6210 = vunpack.c.l.b16 %v4928
    %v6211 = vunpack.c.h.b16 %v4928
    %v6212 = vunpack.c.l.b16 %v4929
    %v6213 = vunpack.c.h.b16 %v4929
    %v6214 = vunpack.c.l.b16 %v4930
    %v6215 = vunpack.c.h.b16 %v4930
    %v6216 = vunpack.c.l.b16 %v4931
    %v6217 = vunpack.c.h.b16 %v4931
    %v6218 = vunpack.c.l.b16 %v4932
    %v6219 = vunpack.c.h.b16 %v4932
    %v6220 = vunpack.c.l.b16 %v4933
    %v6221 = vunpack.c.h.b16 %v4933
    %v6222 = vunpack.c.l.b16 %v4934
    %v6223 = vunpack.c.h.b16 %v4934
    %v6224 = vunpack.c.l.b16 %v4935
    %v6225 = vunpack.c.h.b16 %v4935
    %v6226 = vunpack.c.l.b16 %v4936
    %v6227 = vunpack.c.h.b16 %v4936
    %v6228 = vunpack.c.l.b16 %v4937
    %v6229 = vunpack.c.h.b16 %v4937
    %v6230 = vunpack.c.l.b16 %v4938
    %v6231 = vunpack.c.h.b16 %v4938
    %v6232 = vunpack.c.l.b16 %v4939
    %v6233 = vunpack.c.h.b16 %v4939
    %v6234 = vunpack.c.l.b16 %v4940
    %v6235 = vunpack.c.h.b16 %v4940
    %v6236 = vunpack.c.l.b16 %v4941
    %v6237 = vunpack.c.h.b16 %v4941
    %v6238 = vunpack.c.l.b16 %v4942
    %v6239 = vunpack.c.h.b16 %v4942
    %v6240 = vunpack.c.l.b16 %v4943
    %v6241 = vunpack.c.h.b16 %v4943
    %v6242 = vunpack.c.l.b16 %v4944
    %v6243 = vunpack.c.h.b16 %v4944
    %v6244 = vunpack.c.l.b16 %v4945
    %v6245 = vunpack.c.h.b16 %v4945
    %v6246 = vunpack.c.l.b16 %v4946
    %v6247 = vunpack.c.h.b16 %v4946
    %v6248 = vunpack.c.l.b16 %v4947
    %v6249 = vunpack.c.h.b16 %v4947
    %v6250 = vunpack.c.l.b16 %v4948
    %v6251 = vunpack.c.h.b16 %v4948
    %v6252 = vunpack.c.l.b16 %v4949
    %v6253 = vunpack.c.h.b16 %v4949
    %v6254 = vunpack.c.l.b16 %v4950
    %v6255 = vunpack.c.h.b16 %v4950
    %v6256 = vunpack.c.l.b16 %v4951
    %v6257 = vunpack.c.h.b16 %v4951
    %v6258 = vunpack.c.l.b16 %v4952
    %v6259 = vunpack.c.h.b16 %v4952
    %v6260 = vunpack.c.l.b16 %v4953
    %v6261 = vunpack.c.h.b16 %v4953
    %v6262 = vunpack.c.l.b16 %v4954
    %v6263 = vunpack.c.h.b16 %v4954
    %v6264 = vunpack.c.l.b16 %v4955
    %v6265 = vunpack.c.h.b16 %v4955
    %v6266 = vunpack.c.l.b16 %v4956
    %v6267 = vunpack.c.h.b16 %v4956
    %v6268 = vunpack.c.l.b16 %v4957
    %v6269 = vunpack.c.h.b16 %v4957
    %v6270 = vunpack.c.l.b16 %v4958
    %v6271 = vunpack.c.h.b16 %v4958
    %v6272 = vunpack.c.l.b16 %v4959
    %v6273 = vunpack.c.h.b16 %v4959
    %v6274 = vunpack.c.l.b16 %v4960
    %v6275 = vunpack.c.h.b16 %v4960
    %v6276 = vunpack.c.l.b16 %v4961
    %v6277 = vunpack.c.h.b16 %v4961
    %v6278 = vunpack.c.l.b16 %v4962
    %v6279 = vunpack.c.h.b16 %v4962
    %v6280 = vunpack.c.l.b16 %v4963
    %v6281 = vunpack.c.h.b16 %v4963
    %v6282 = vunpack.c.l.b16 %v4964
    %v6283 = vunpack.c.h.b16 %v4964
    %v6284 = vunpack.c.l.b16 %v4965
    %v6285 = vunpack.c.h.b16 %v4965
    %v6286 = vunpack.c.l.b16 %v4966
    %v6287 = vunpack.c.h.b16 %v4966
    %v6288 = vunpack.c.l.b16 %v4967
    %v6289 = vunpack.c.h.b16 %v4967
    %v6290 = vunpack.c.l.b16 %v4968
    %v6291 = vunpack.c.h.b16 %v4968
    %v6292 = vunpack.c.l.b16 %v4969
    %v6293 = vunpack.c.h.b16 %v4969
    %v6294 = vunpack.c.l.b16 %v4970
    %v6295 = vunpack.c.h.b16 %v4970
    %v6296 = vunpack.c.l.b16 %v4971
    %v6297 = vunpack.c.h.b16 %v4971
    %v6298 = vunpack.c.l.b16 %v4972
    %v6299 = vunpack.c.h.b16 %v4972
    %v6300 = vunpack.c.l.b16 %v4973
    %v6301 = vunpack.c.h.b16 %v4973
    %v6302 = vunpack.c.l.b16 %v4974
    %v6303 = vunpack.c.h.b16 %v4974
    %v6304 = vunpack.c.l.b16 %v4975
    %v6305 = vunpack.c.h.b16 %v4975
    %v6306 = vunpack.c.l.b16 %v4976
    %v6307 = vunpack.c.h.b16 %v4976
    %v6308 = vunpack.c.l.b16 %v4977
    %v6309 = vunpack.c.h.b16 %v4977
    %v6310 = vunpack.c.l.b16 %v4978
    %v6311 = vunpack.c.h.b16 %v4978
    %v6312 = vunpack.c.l.b16 %v4979
    %v6313 = vunpack.c.h.b16 %v4979
    %v6314 = vunpack.c.l.b16 %v4980
    %v6315 = vunpack.c.h.b16 %v4980
    %v6316 = vunpack.c.l.b16 %v4981
    %v6317 = vunpack.c.h.b16 %v4981
    %v6318 = vunpack.c.l.b16 %v4982
    %v6319 = vunpack.c.h.b16 %v4982
    %v6320 = vunpack.c.l.b16 %v4983
    %v6321 = vunpack.c.h.b16 %v4983
    %v6322 = vunpack.c.l.b16 %v4984
    %v6323 = vunpack.c.h.b16 %v4984
    %v6324 = vunpack.c.l.b16 %v4985
    %v6325 = vunpack.c.h.b16 %v4985
    %v6326 = vunpack.c.l.b16 %v4986
    %v6327 = vunpack.c.h.b16 %v4986
    %v6328 = vunpack.c.l.b16 %v4987
    %v6329 = vunpack.c.h.b16 %v4987
    %v6330 = vunpack.c.l.b16 %v4988
    %v6331 = vunpack.c.h.b16 %v4988
    %v6332 = vunpack.c.l.b16 %v4989
    %v6333 = vunpack.c.h.b16 %v4989
    %v6334 = vunpack.c.l.b16 %v4990
    %v6335 = vunpack.c.h.b16 %v4990
    %v6336 = vunpack.c.l.b16 %v4991
    %v6337 = vunpack.c.h.b16 %v4991
    %v6338 = vunpack.c.l.b16 %v4992
    %v6339 = vunpack.c.h.b16 %v4992
    %v6340 = vunpack.c.l.b16 %v4993
    %v6341 = vunpack.c.h.b16 %v4993
    %v6342 = vunpack.c.l.b16 %v4994
    %v6343 = vunpack.c.h.b16 %v4994
    %v6344 = vunpack.c.l.b16 %v4995
    %v6345 = vunpack.c.h.b16 %v4995
    %v6346 = vunpack.c.l.b16 %v4996
    %v6347 = vunpack.c.h.b16 %v4996
    %v6348 = vunpack.c.l.b16 %v4997
    %v6349 = vunpack.c.h.b16 %v4997
    %v6350 = vunpack.c.l.b16 %v4998
    %v6351 = vunpack.c.h.b16 %v4998
    %v6352 = vunpack.c.l.b16 %v4999
    %v6353 = vunpack.c.h.b16 %v4999
    %v6354 = vunpack.c.l.b16 %v5000
    %v6355 = vunpack.c.h.b16 %v5000
    %v6356 = vunpack.c.l.b16 %v5001
    %v6357 = vunpack.c.h.b16 %v5001
    %v6358 = vunpack.c.l.b16 %v5002
    %v6359 = vunpack.c.h.b16 %v5002
    %v6360 = vunpack.c.l.b16 %v5003
    %v6361 = vunpack.c.h.b16 %v5003
    %v6362 = vunpack.c.l.b16 %v5004
    %v6363 = vunpack.c.h.b16 %v5004
    %v6364 = vunpack.c.l.b16 %v5005
    %v6365 = vunpack.c.h.b16 %v5005
    %v6366 = vunpack.c.l.b16 %v5006
    %v6367 = vunpack.c.h.b16 %v5006
    %v6368 = vunpack.c.l.b16 %v5007
    %v6369 = vunpack.c.h.b16 %v5007
    %v6370 = vunpack.c.l.b16 %v5008
    %v6371 = vunpack.c.h.b16 %v5008
    %v6372 = vunpack.c.l.b16 %v5009
    %v6373 = vunpack.c.h.b16 %v5009
    %v6374 = vunpack.c.l.b16 %v5010
    %v6375 = vunpack.c.h.b16 %v5010
    %v6376 = vunpack.c.l.b16 %v5011
    %v6377 = vunpack.c.h.b16 %v5011
    %v6378 = vunpack.c.l.b16 %v5012
    %v6379 = vunpack.c.h.b16 %v5012
    %v6380 = vunpack.c.l.b16 %v5013
    %v6381 = vunpack.c.h.b16 %v5013
    %v6382 = vunpack.c.l.b16 %v5014
    %v6383 = vunpack.c.h.b16 %v5014
    %v6384 = vunpack.c.l.b16 %v5015
    %v6385 = vunpack.c.h.b16 %v5015
    %v6386 = vunpack.c.l.b16 %v5016
    %v6387 = vunpack.c.h.b16 %v5016
    %v6388 = vunpack.c.l.b16 %v5017
    %v6389 = vunpack.c.h.b16 %v5017
    %v6390 = vunpack.c.l.b16 %v5018
    %v6391 = vunpack.c.h.b16 %v5018
    %v6392 = vunpack.c.l.b16 %v5019
    %v6393 = vunpack.c.h.b16 %v5019
    %v6394 = vunpack.c.l.b16 %v5020
    %v6395 = vunpack.c.h.b16 %v5020
    %v6396 = vunpack.c.l.b16 %v5021
    %v6397 = vunpack.c.h.b16 %v5021
    %v6398 = vunpack.c.l.b16 %v5022
    %v6399 = vunpack.c.h.b16 %v5022
    %v6400 = vunpack.c.l.b16 %v5023
    %v6401 = vunpack.c.h.b16 %v5023
    %v6402 = vunpack.c.l.b16 %v5024
    %v6403 = vunpack.c.h.b16 %v5024
    %v6404 = vunpack.c.l.b16 %v5025
    %v6405 = vunpack.c.h.b16 %v5025
    %v6406 = vunpack.c.l.b16 %v5026
    %v6407 = vunpack.c.h.b16 %v5026
    %v6408 = vunpack.c.l.b16 %v5027
    %v6409 = vunpack.c.h.b16 %v5027
    %v6410 = vunpack.c.l.b16 %v5028
    %v6411 = vunpack.c.h.b16 %v5028
    %v6412 = vunpack.c.l.b16 %v5029
    %v6413 = vunpack.c.h.b16 %v5029
    %v6414 = vunpack.c.l.b16 %v5030
    %v6415 = vunpack.c.h.b16 %v5030
    %v6416 = vunpack.c.l.b16 %v5031
    %v6417 = vunpack.c.h.b16 %v5031
    %v6418 = vunpack.c.l.b16 %v5032
    %v6419 = vunpack.c.h.b16 %v5032
    %v6420 = vunpack.c.l.b16 %v5033
    %v6421 = vunpack.c.h.b16 %v5033
    %v6422 = vunpack.c.l.b16 %v5034
    %v6423 = vunpack.c.h.b16 %v5034
    %v6424 = vunpack.c.l.b16 %v5035
    %v6425 = vunpack.c.h.b16 %v5035
    %v6426 = vunpack.c.l.b16 %v5036
    %v6427 = vunpack.c.h.b16 %v5036
    %v6428 = vunpack.c.l.b16 %v5037
    %v6429 = vunpack.c.h.b16 %v5037
    %v6430 = vunpack.c.l.b16 %v5038
    %v6431 = vunpack.c.h.b16 %v5038
    %v6432 = vunpack.c.l.b16 %v5039
    %v6433 = vunpack.c.h.b16 %v5039
    %v6434 = vunpack.c.l.b16 %v5040
    %v6435 = vunpack.c.h.b16 %v5040
    %v6436 = vunpack.c.l.b16 %v5041
    %v6437 = vunpack.c.h.b16 %v5041
    %v6438 = vunpack.c.l.b16 %v5042
    %v6439 = vunpack.c.h.b16 %v5042
    %v6440 = vunpack.c.l.b16 %v5043
    %v6441 = vunpack.c.h.b16 %v5043
    %v6442 = vunpack.c.l.b16 %v5044
    %v6443 = vunpack.c.h.b16 %v5044
    %v6444 = vunpack.c.l.b16 %v5045
    %v6445 = vunpack.c.h.b16 %v5045
    %v6446 = vunpack.c.l.b16 %v5046
    %v6447 = vunpack.c.h.b16 %v5046
    %v6448 = vunpack.c.l.b16 %v5047
    %v6449 = vunpack.c.h.b16 %v5047
    %v6450 = vunpack.c.l.b16 %v5048
    %v6451 = vunpack.c.h.b16 %v5048
    %v6452 = vunpack.c.l.b16 %v5049
    %v6453 = vunpack.c.h.b16 %v5049
    %v6454 = vunpack.c.l.b16 %v5050
    %v6455 = vunpack.c.h.b16 %v5050
    %v6456 = vunpack.c.l.b16 %v5051
    %v6457 = vunpack.c.h.b16 %v5051
    %v6458 = vunpack.c.l.b16 %v5052
    %v6459 = vunpack.c.h.b16 %v5052
    %v6460 = vunpack.c.l.b16 %v5053
    %v6461 = vunpack.c.h.b16 %v5053
    %v6462 = vunpack.c.l.b16 %v5054
    %v6463 = vunpack.c.h.b16 %v5054
    %v6464 = vunpack.c.l.b16 %v5055
    %v6465 = vunpack.c.h.b16 %v5055
    %v6466 = vunpack.c.l.b16 %v5056
    %v6467 = vunpack.c.h.b16 %v5056
    %v6468 = vunpack.c.l.b16 %v5057
    %v6469 = vunpack.c.h.b16 %v5057
    %v6470 = vunpack.c.l.b16 %v5058
    %v6471 = vunpack.c.h.b16 %v5058
    %v6472 = vunpack.c.l.b16 %v5059
    %v6473 = vunpack.c.h.b16 %v5059
    %v6474 = vunpack.c.l.b16 %v5060
    %v6475 = vunpack.c.h.b16 %v5060
    %v6476 = vunpack.c.l.b16 %v5061
    %v6477 = vunpack.c.h.b16 %v5061
    %v6478 = vunpack.c.l.b16 %v5062
    %v6479 = vunpack.c.h.b16 %v5062
    %v6480 = vunpack.c.l.b16 %v5063
    %v6481 = vunpack.c.h.b16 %v5063
    %v6482 = vunpack.c.l.b16 %v5064
    %v6483 = vunpack.c.h.b16 %v5064
    %v6484 = vunpack.c.l.b16 %v5065
    %v6485 = vunpack.c.h.b16 %v5065
    %v6486 = vunpack.c.l.b16 %v5066
    %v6487 = vunpack.c.h.b16 %v5066
    %v6488 = vunpack.c.l.b16 %v5067
    %v6489 = vunpack.c.h.b16 %v5067
    %v6490 = vunpack.c.l.b16 %v5068
    %v6491 = vunpack.c.h.b16 %v5068
    %v6492 = vunpack.c.l.b16 %v5069
    %v6493 = vunpack.c.h.b16 %v5069
    %v6494 = vunpack.c.l.b16 %v5070
    %v6495 = vunpack.c.h.b16 %v5070
    %v6496 = vunpack.c.l.b16 %v5071
    %v6497 = vunpack.c.h.b16 %v5071
    %v6498 = vunpack.c.l.b16 %v5072
    %v6499 = vunpack.c.h.b16 %v5072
    %v6500 = vunpack.c.l.b16 %v5073
    %v6501 = vunpack.c.h.b16 %v5073
    %v6502 = vunpack.c.l.b16 %v5074
    %v6503 = vunpack.c.h.b16 %v5074
    %v6504 = vunpack.c.l.b16 %v5075
    %v6505 = vunpack.c.h.b16 %v5075
    %v6506 = vunpack.c.l.b16 %v5076
    %v6507 = vunpack.c.h.b16 %v5076
    %v6508 = vunpack.c.l.b16 %v5077
    %v6509 = vunpack.c.h.b16 %v5077
    %v6510 = vunpack.c.l.b16 %v5078
    %v6511 = vunpack.c.h.b16 %v5078
    %v6512 = vunpack.c.l.b16 %v5079
    %v6513 = vunpack.c.h.b16 %v5079
    %v6514 = vunpack.c.l.b16 %v5080
    %v6515 = vunpack.c.h.b16 %v5080
    %v6516 = vunpack.c.l.b16 %v5081
    %v6517 = vunpack.c.h.b16 %v5081
    %v6518 = vunpack.c.l.b16 %v5082
    %v6519 = vunpack.c.h.b16 %v5082
    %v6520 = vunpack.c.l.b16 %v5083
    %v6521 = vunpack.c.h.b16 %v5083
    %v6522 = vunpack.c.l.b16 %v5084
    %v6523 = vunpack.c.h.b16 %v5084
    %v6524 = vunpack.c.l.b16 %v5085
    %v6525 = vunpack.c.h.b16 %v5085
    %v6526 = vunpack.c.l.b16 %v5086
    %v6527 = vunpack.c.h.b16 %v5086
    %v6528 = vunpack.c.l.b16 %v5087
    %v6529 = vunpack.c.h.b16 %v5087
    %v6530 = vunpack.c.l.b16 %v5088
    %v6531 = vunpack.c.h.b16 %v5088
    %v6532 = vunpack.c.l.b16 %v5089
    %v6533 = vunpack.c.h.b16 %v5089
    %v6534 = vunpack.c.l.b16 %v5090
    %v6535 = vunpack.c.h.b16 %v5090
    %v6536 = vunpack.c.l.b16 %v5091
    %v6537 = vunpack.c.h.b16 %v5091
    %v6538 = vunpack.c.l.b16 %v5092
    %v6539 = vunpack.c.h.b16 %v5092
    %v6540 = vunpack.c.l.b16 %v5093
    %v6541 = vunpack.c.h.b16 %v5093
    %v6542 = vunpack.c.l.b16 %v5094
    %v6543 = vunpack.c.h.b16 %v5094
    %v6544 = vunpack.c.l.b16 %v5095
    %v6545 = vunpack.c.h.b16 %v5095
    %v6546 = vunpack.c.l.b16 %v5096
    %v6547 = vunpack.c.h.b16 %v5096
    %v6548 = vunpack.c.l.b16 %v5097
    %v6549 = vunpack.c.h.b16 %v5097
    %v6550 = vunpack.c.l.b16 %v5098
    %v6551 = vunpack.c.h.b16 %v5098
    %v6552 = vunpack.c.l.b16 %v5099
    %v6553 = vunpack.c.h.b16 %v5099
    %v6554 = vunpack.c.l.b16 %v5100
    %v6555 = vunpack.c.h.b16 %v5100
    %v6556 = vunpack.c.l.b16 %v5101
    %v6557 = vunpack.c.h.b16 %v5101
    %v6558 = vunpack.c.l.b16 %v5102
    %v6559 = vunpack.c.h.b16 %v5102
    %v6560 = vunpack.c.l.b16 %v5103
    %v6561 = vunpack.c.h.b16 %v5103
    %v6562 = vunpack.c.l.b16 %v5104
    %v6563 = vunpack.c.h.b16 %v5104
    %v6564 = vunpack.c.l.b16 %v5105
    %v6565 = vunpack.c.h.b16 %v5105
    %v6566 = vunpack.c.l.b16 %v5106
    %v6567 = vunpack.c.h.b16 %v5106
    %v6568 = vunpack.c.l.b16 %v5107
    %v6569 = vunpack.c.h.b16 %v5107
    %v6570 = vunpack.c.l.b16 %v5108
    %v6571 = vunpack.c.h.b16 %v5108
    %v6572 = vunpack.c.l.b16 %v5109
    %v6573 = vunpack.c.h.b16 %v5109
    %v6574 = vunpack.c.l.b16 %v5110
    %v6575 = vunpack.c.h.b16 %v5110
    %v6576 = vunpack.c.l.b16 %v5111
    %v6577 = vunpack.c.h.b16 %v5111
    %v6578 = vunpack.c.l.b16 %v5112
    %v6579 = vunpack.c.h.b16 %v5112
    %v6580 = vunpack.c.l.b16 %v5113
    %v6581 = vunpack.c.h.b16 %v5113
    %v6582 = vunpack.c.l.b16 %v5114
    %v6583 = vunpack.c.h.b16 %v5114
    %v6584 = vunpack.c.l.b16 %v5115
    %v6585 = vunpack.c.h.b16 %v5115
    %v6586 = vunpack.c.l.b16 %v5116
    %v6587 = vunpack.c.h.b16 %v5116
    %v6588 = vunpack.c.l.b16 %v5117
    %v6589 = vunpack.c.h.b16 %v5117
    %v6590 = vunpack.c.l.b16 %v5118
    %v6591 = vunpack.c.h.b16 %v5118
    %v6592 = vunpack.c.l.b16 %v5119
    %v6593 = vunpack.c.h.b16 %v5119
    %v6594 = vunpack.c.l.b16 %v5120
    %v6595 = vunpack.c.h.b16 %v5120
    %v6596 = vunpack.c.l.b16 %v5121
    %v6597 = vunpack.c.h.b16 %v5121
    %v6598 = vunpack.c.l.b16 %v5122
    %v6599 = vunpack.c.h.b16 %v5122
    %v6600 = vunpack.c.l.b16 %v5123
    %v6601 = vunpack.c.h.b16 %v5123
    %v6602 = vunpack.c.l.b16 %v5124
    %v6603 = vunpack.c.h.b16 %v5124
    %v6604 = vunpack.c.l.b16 %v5125
    %v6605 = vunpack.c.h.b16 %v5125
    %v6606 = vunpack.c.l.b16 %v5126
    %v6607 = vunpack.c.h.b16 %v5126
    %v6608 = vunpack.c.l.b16 %v5127
    %v6609 = vunpack.c.h.b16 %v5127
    %v6610 = vunpack.c.l.b16 %v5128
    %v6611 = vunpack.c.h.b16 %v5128
    %v6612 = vunpack.c.l.b16 %v5129
    %v6613 = vunpack.c.h.b16 %v5129
    %v6614 = vunpack.c.l.b16 %v5130
    %v6615 = vunpack.c.h.b16 %v5130
    %v6616 = vunpack.c.l.b16 %v5131
    %v6617 = vunpack.c.h.b16 %v5131
    %v6618 = vunpack.c.l.b16 %v5132
    %v6619 = vunpack.c.h.b16 %v5132
    %v6620 = vunpack.c.l.b16 %v5133
    %v6621 = vunpack.c.h.b16 %v5133
    %v6622 = vunpack.c.l.b16 %v5134
    %v6623 = vunpack.c.h.b16 %v5134
    %v6624 = vunpack.c.l.b16 %v5135
    %v6625 = vunpack.c.h.b16 %v5135
    %v6626 = vunpack.c.l.b16 %v5136
    %v6627 = vunpack.c.h.b16 %v5136
    %v6628 = vunpack.c.l.b16 %v5137
    %v6629 = vunpack.c.h.b16 %v5137
    %v6630 = vunpack.c.l.b16 %v5138
    %v6631 = vunpack.c.h.b16 %v5138
    %v6632 = vunpack.c.l.b16 %v5139
    %v6633 = vunpack.c.h.b16 %v5139
    %v6634 = vunpack.c.l.b16 %v5140
    %v6635 = vunpack.c.h.b16 %v5140
    %v6636 = vunpack.c.l.b16 %v5141
    %v6637 = vunpack.c.h.b16 %v5141
    %v6638 = vunpack.c.l.b16 %v5142
    %v6639 = vunpack.c.h.b16 %v5142
    %v6640 = vunpack.c.l.b16 %v5143
    %v6641 = vunpack.c.h.b16 %v5143
    %v6642 = vunpack.c.l.b16 %v5144
    %v6643 = vunpack.c.h.b16 %v5144
    %v6644 = vunpack.c.l.b16 %v5145
    %v6645 = vunpack.c.h.b16 %v5145
    %v6646 = vunpack.c.l.b16 %v5146
    %v6647 = vunpack.c.h.b16 %v5146
    %v6648 = vunpack.c.l.b16 %v5147
    %v6649 = vunpack.c.h.b16 %v5147
    %v6650 = vunpack.c.l.b16 %v5148
    %v6651 = vunpack.c.h.b16 %v5148
    %v6652 = vunpack.c.l.b16 %v5149
    %v6653 = vunpack.c.h.b16 %v5149
    %v6654 = vunpack.c.l.b16 %v5150
    %v6655 = vunpack.c.h.b16 %v5150
    %v6656 = vunpack.c.l.b16 %v5151
    %v6657 = vunpack.c.h.b16 %v5151
    %v6658 = vunpack.c.l.b16 %v5152
    %v6659 = vunpack.c.h.b16 %v5152
    %v6660 = vunpack.c.l.b16 %v5153
    %v6661 = vunpack.c.h.b16 %v5153
    %v6662 = vunpack.c.l.b16 %v5154
    %v6663 = vunpack.c.h.b16 %v5154
    %v6664 = vunpack.c.l.b16 %v5155
    %v6665 = vunpack.c.h.b16 %v5155
    %v6666 = vunpack.c.l.b16 %v5156
    %v6667 = vunpack.c.h.b16 %v5156
    %v6668 = vunpack.c.l.b16 %v5157
    %v6669 = vunpack.c.h.b16 %v5157
    %v6670 = vunpack.c.l.b16 %v5158
    %v6671 = vunpack.c.h.b16 %v5158
    %v6672 = vunpack.c.l.b16 %v5159
    %v6673 = vunpack.c.h.b16 %v5159
    %v6674 = vunpack.c.l.b16 %v5160
    %v6675 = vunpack.c.h.b16 %v5160
    %v6676 = vunpack.c.l.b16 %v5161
    %v6677 = vunpack.c.h.b16 %v5161
    %v6678 = vunpack.c.l.b16 %v5162
    %v6679 = vunpack.c.h.b16 %v5162
    %v6680 = vunpack.c.l.b16 %v5163
    %v6681 = vunpack.c.h.b16 %v5163
    %v6682 = vunpack.c.l.b16 %v5164
    %v6683 = vunpack.c.h.b16 %v5164
    %v6684 = vunpack.c.l.b16 %v5165
    %v6685 = vunpack.c.h.b16 %v5165
    %v6686 = vunpack.c.l.b16 %v5166
    %v6687 = vunpack.c.h.b16 %v5166
    %v6688 = vunpack.c.l.b16 %v5167
    %v6689 = vunpack.c.h.b16 %v5167
    %v6690 = vunpack.c.l.b16 %v5168
    %v6691 = vunpack.c.h.b16 %v5168
    %v6692 = vunpack.c.l.b16 %v5169
    %v6693 = vunpack.c.h.b16 %v5169
    %v6694 = vunpack.c.l.b16 %v5170
    %v6695 = vunpack.c.h.b16 %v5170
    %v6696 = vunpack.c.l.b16 %v5171
    %v6697 = vunpack.c.h.b16 %v5171
    %v6698 = vunpack.c.l.b16 %v5172
    %v6699 = vunpack.c.h.b16 %v5172
    %v6700 = vunpack.c.l.b16 %v5173
    %v6701 = vunpack.c.h.b16 %v5173
    %v6702 = vunpack.c.l.b16 %v5174
    %v6703 = vunpack.c.h.b16 %v5174
    %v6704 = vunpack.c.l.b16 %v5175
    %v6705 = vunpack.c.h.b16 %v5175
    %v6706 = vunpack.c.l.b16 %v5176
    %v6707 = vunpack.c.h.b16 %v5176
    %v6708 = vunpack.c.l.b16 %v5177
    %v6709 = vunpack.c.h.b16 %v5177
    %v6710 = vunpack.c.l.b16 %v5178
    %v6711 = vunpack.c.h.b16 %v5178
    %v6712 = vunpack.c.l.b16 %v5179
    %v6713 = vunpack.c.h.b16 %v5179
    %v6714 = vunpack.c.l.b16 %v5180
    %v6715 = vunpack.c.h.b16 %v5180
    %v6716 = vunpack.c.l.b16 %v5181
    %v6717 = vunpack.c.h.b16 %v5181
    %v6718 = vunpack.c.l.b16 %v5182
    %v6719 = vunpack.c.h.b16 %v5182
    %v6720 = vunpack.c.l.b16 %v5183
    %v6721 = vunpack.c.h.b16 %v5183
    %v6722 = vunpack.c.l.b16 %v5184
    %v6723 = vunpack.c.h.b16 %v5184
    %v6724 = vunpack.c.l.b16 %v5185
    %v6725 = vunpack.c.h.b16 %v5185
    %v6726 = vunpack.c.l.b16 %v5186
    %v6727 = vunpack.c.h.b16 %v5186
    %v6728 = vunpack.c.l.b16 %v5187
    %v6729 = vunpack.c.h.b16 %v5187
    %v6730 = vunpack.c.l.b16 %v5188
    %v6731 = vunpack.c.h.b16 %v5188
    %v6732 = vunpack.c.l.b16 %v5189
    %v6733 = vunpack.c.h.b16 %v5189
    %v6734 = vunpack.c.l.b16 %v5190
    %v6735 = vunpack.c.h.b16 %v5190
    %v6736 = vunpack.c.l.b16 %v5191
    %v6737 = vunpack.c.h.b16 %v5191
    %v6738 = vunpack.c.l.b16 %v5192
    %v6739 = vunpack.c.h.b16 %v5192
    %v6740 = vunpack.c.l.b16 %v5193
    %v6741 = vunpack.c.h.b16 %v5193
    %v6742 = vunpack.c.l.b16 %v5194
    %v6743 = vunpack.c.h.b16 %v5194
    %v6744 = vunpack.c.l.b16 %v5195
    %v6745 = vunpack.c.h.b16 %v5195
    %v6746 = vunpack.c.l.b16 %v5196
    %v6747 = vunpack.c.h.b16 %v5196
    %v6748 = vunpack.c.l.b16 %v5197
    %v6749 = vunpack.c.h.b16 %v5197
    %v6750 = vunpack.c.l.b16 %v5198
    %v6751 = vunpack.c.h.b16 %v5198
    %v6752 = vunpack.c.l.b16 %v5199
    %v6753 = vunpack.c.h.b16 %v5199
    %v6754 = vunpack.c.l.b16 %v5200
    %v6755 = vunpack.c.h.b16 %v5200
    %v6756 = vunpack.c.l.b16 %v5201
    %v6757 = vunpack.c.h.b16 %v5201
    %v6758 = vunpack.c.l.b16 %v5202
    %v6759 = vunpack.c.h.b16 %v5202
    %v6760 = vunpack.c.l.b16 %v5203
    %v6761 = vunpack.c.h.b16 %v5203
    %v6762 = vpack.c.b16 %v5742, %v5738
    %v6763 = vpack.c.b16 %v5743, %v5739
    %v6764 = vpack.c.b16 %v5744, %v5740
    %v6765 = vpack.c.b16 %v5745, %v5741
    %v6766 = vpack.c.b16 %v5750, %v5746
    %v6767 = vpack.c.b16 %v5751, %v5747
    %v6768 = vpack.c.b16 %v5752, %v5748
    %v6769 = vpack.c.b16 %v5753, %v5749
    %v6770 = vpack.c.b16 %v5758, %v5754
    %v6771 = vpack.c.b16 %v5759, %v5755
    %v6772 = vpack.c.b16 %v5760, %v5756
    %v6773 = vpack.c.b16 %v5761, %v5757
    %v6774 = vpack.c.b16 %v5766, %v5762
    %v6775 = vpack.c.b16 %v5767, %v5763
    %v6776 = vpack.c.b16 %v5768, %v5764
    %v6777 = vpack.c.b16 %v5769, %v5765
    %v6778 = vpack.c.b16 %v5774, %v5770
    %v6779 = vpack.c.b16 %v5775, %v5771
    %v6780 = vpack.c.b16 %v5776, %v5772
    %v6781 = vpack.c.b16 %v5777, %v5773
    %v6782 = vpack.c.b16 %v5782, %v5778
    %v6783 = vpack.c.b16 %v5783, %v5779
    %v6784 = vpack.c.b16 %v5784, %v5780
    %v6785 = vpack.c.b16 %v5785, %v5781
    %v6786 = vpack.c.b16 %v5790, %v5786
    %v6787 = vpack.c.b16 %v5791, %v5787
    %v6788 = vpack.c.b16 %v5792, %v5788
    %v6789 = vpack.c.b16 %v5793, %v5789
    %v6790 = vpack.c.b16 %v5798, %v5794
    %v6791 = vpack.c.b16 %v5799, %v5795
    %v6792 = vpack.c.b16 %v5800, %v5796
    %v6793 = vpack.c.b16 %v5801, %v5797
    %v6794 = vpack.c.b16 %v5806, %v5802
    %v6795 = vpack.c.b16 %v5807, %v5803
    %v6796 = vpack.c.b16 %v5808, %v5804
    %v6797 = vpack.c.b16 %v5809, %v5805
    %v6798 = vpack.c.b16 %v5814, %v5810
    %v6799 = vpack.c.b16 %v5815, %v5811
    %v6800 = vpack.c.b16 %v5816, %v5812
    %v6801 = vpack.c.b16 %v5817, %v5813
    %v6802 = vpack.c.b16 %v5822, %v5818
    %v6803 = vpack.c.b16 %v5823, %v5819
    %v6804 = vpack.c.b16 %v5824, %v5820
    %v6805 = vpack.c.b16 %v5825, %v5821
    %v6806 = vpack.c.b16 %v5830, %v5826
    %v6807 = vpack.c.b16 %v5831, %v5827
    %v6808 = vpack.c.b16 %v5832, %v5828
    %v6809 = vpack.c.b16 %v5833, %v5829
    %v6810 = vpack.c.b16 %v5838, %v5834
    %v6811 = vpack.c.b16 %v5839, %v5835
    %v6812 = vpack.c.b16 %v5840, %v5836
    %v6813 = vpack.c.b16 %v5841, %v5837
    %v6814 = vpack.c.b16 %v5846, %v5842
    %v6815 = vpack.c.b16 %v5847, %v5843
    %v6816 = vpack.c.b16 %v5848, %v5844
    %v6817 = vpack.c.b16 %v5849, %v5845
    %v6818 = vpack.c.b16 %v5854, %v5850
    %v6819 = vpack.c.b16 %v5855, %v5851
    %v6820 = vpack.c.b16 %v5856, %v5852
    %v6821 = vpack.c.b16 %v5857, %v5853
    %v6822 = vpack.c.b16 %v5862, %v5858
    %v6823 = vpack.c.b16 %v5863, %v5859
    %v6824 = vpack.c.b16 %v5864, %v5860
    %v6825 = vpack.c.b16 %v5865, %v5861
    %v6826 = vpack.c.b16 %v5870, %v5866
    %v6827 = vpack.c.b16 %v5871, %v5867
    %v6828 = vpack.c.b16 %v5872, %v5868
    %v6829 = vpack.c.b16 %v5873, %v5869
    %v6830 = vpack.c.b16 %v5878, %v5874
    %v6831 = vpack.c.b16 %v5879, %v5875
    %v6832 = vpack.c.b16 %v5880, %v5876
    %v6833 = vpack.c.b16 %v5881, %v5877
    %v6834 = vpack.c.b16 %v5886, %v5882
    %v6835 = vpack.c.b16 %v5887, %v5883
    %v6836 = vpack.c.b16 %v5888, %v5884
    %v6837 = vpack.c.b16 %v5889, %v5885
    %v6838 = vpack.c.b16 %v5894, %v5890
    %v6839 = vpack.c.b16 %v5895, %v5891
    %v6840 = vpack.c.b16 %v5896, %v5892
    %v6841 = vpack.c.b16 %v5897, %v5893
    %v6842 = vpack.c.b16 %v5902, %v5898
    %v6843 = vpack.c.b16 %v5903, %v5899
    %v6844 = vpack.c.b16 %v5904, %v5900
    %v6845 = vpack.c.b16 %v5905, %v5901
    %v6846 = vpack.c.b16 %v5910, %v5906
    %v6847 = vpack.c.b16 %v5911, %v5907
    %v6848 = vpack.c.b16 %v5912, %v5908
    %v6849 = vpack.c.b16 %v5913, %v5909
    %v6850 = vpack.c.b16 %v5918, %v5914
    %v6851 = vpack.c.b16 %v5919, %v5915
    %v6852 = vpack.c.b16 %v5920, %v5916
    %v6853 = vpack.c.b16 %v5921, %v5917
    %v6854 = vpack.c.b16 %v5926, %v5922
    %v6855 = vpack.c.b16 %v5927, %v5923
    %v6856 = vpack.c.b16 %v5928, %v5924
    %v6857 = vpack.c.b16 %v5929, %v5925
    %v6858 = vpack.c.b16 %v5934, %v5930
    %v6859 = vpack.c.b16 %v5935, %v5931
    %v6860 = vpack.c.b16 %v5936, %v5932
    %v6861 = vpack.c.b16 %v5937, %v5933
    %v6862 = vpack.c.b16 %v5942, %v5938
    %v6863 = vpack.c.b16 %v5943, %v5939
    %v6864 = vpack.c.b16 %v5944, %v5940
    %v6865 = vpack.c.b16 %v5945, %v5941
    %v6866 = vpack.c.b16 %v5950, %v5946
    %v6867 = vpack.c.b16 %v5951, %v5947
    %v6868 = vpack.c.b16 %v5952, %v5948
    %v6869 = vpack.c.b16 %v5953, %v5949
    %v6870 = vpack.c.b16 %v5958, %v5954
    %v6871 = vpack.c.b16 %v5959, %v5955
    %v6872 = vpack.c.b16 %v5960, %v5956
    %v6873 = vpack.c.b16 %v5961, %v5957
    %v6874 = vpack.c.b16 %v5966, %v5962
    %v6875 = vpack.c.b16 %v5967, %v5963
    %v6876 = vpack.c.b16 %v5968, %v5964
    %v6877 = vpack.c.b16 %v5969, %v5965
    %v6878 = vpack.c.b16 %v5974, %v5970
    %v6879 = vpack.c.b16 %v5975, %v5971
    %v6880 = vpack.c.b16 %v5976, %v5972
    %v6881 = vpack.c.b16 %v5977, %v5973
    %v6882 = vpack.c.b16 %v5982, %v5978
    %v6883 = vpack.c.b16 %v5983, %v5979
    %v6884 = vpack.c.b16 %v5984, %v5980
    %v6885 = vpack.c.b16 %v5985, %v5981
    %v6886 = vpack.c.b16 %v5990, %v5986
    %v6887 = vpack.c.b16 %v5991, %v5987
    %v6888 = vpack.c.b16 %v5992, %v5988
    %v6889 = vpack.c.b16 %v5993, %v5989
    %v6890 = vpack.c.b16 %v5998, %v5994
    %v6891 = vpack.c.b16 %v5999, %v5995
    %v6892 = vpack.c.b16 %v6000, %v5996
    %v6893 = vpack.c.b16 %v6001, %v5997
    %v6894 = vpack.c.b16 %v6006, %v6002
    %v6895 = vpack.c.b16 %v6007, %v6003
    %v6896 = vpack.c.b16 %v6008, %v6004
    %v6897 = vpack.c.b16 %v6009, %v6005
    %v6898 = vpack.c.b16 %v6014, %v6010
    %v6899 = vpack.c.b16 %v6015, %v6011
    %v6900 = vpack.c.b16 %v6016, %v6012
    %v6901 = vpack.c.b16 %v6017, %v6013
    %v6902 = vpack.c.b16 %v6022, %v6018
    %v6903 = vpack.c.b16 %v6023, %v6019
    %v6904 = vpack.c.b16 %v6024, %v6020
    %v6905 = vpack.c.b16 %v6025, %v6021
    %v6906 = vpack.c.b16 %v6030, %v6026
    %v6907 = vpack.c.b16 %v6031, %v6027
    %v6908 = vpack.c.b16 %v6032, %v6028
    %v6909 = vpack.c.b16 %v6033, %v6029
    %v6910 = vpack.c.b16 %v6038, %v6034
    %v6911 = vpack.c.b16 %v6039, %v6035
    %v6912 = vpack.c.b16 %v6040, %v6036
    %v6913 = vpack.c.b16 %v6041, %v6037
    %v6914 = vpack.c.b16 %v6046, %v6042
    %v6915 = vpack.c.b16 %v6047, %v6043
    %v6916 = vpack.c.b16 %v6048, %v6044
    %v6917 = vpack.c.b16 %v6049, %v6045
    %v6918 = vpack.c.b16 %v6054, %v6050
    %v6919 = vpack.c.b16 %v6055, %v6051
    %v6920 = vpack.c.b16 %v6056, %v6052
    %v6921 = vpack.c.b16 %v6057, %v6053
    %v6922 = vpack.c.b16 %v6062, %v6058
    %v6923 = vpack.c.b16 %v6063, %v6059
    %v6924 = vpack.c.b16 %v6064, %v6060
    %v6925 = vpack.c.b16 %v6065, %v6061
    %v6926 = vpack.c.b16 %v6070, %v6066
    %v6927 = vpack.c.b16 %v6071, %v6067
    %v6928 = vpack.c.b16 %v6072, %v6068
    %v6929 = vpack.c.b16 %v6073, %v6069
    %v6930 = vpack.c.b16 %v6078, %v6074
    %v6931 = vpack.c.b16 %v6079, %v6075
    %v6932 = vpack.c.b16 %v6080, %v6076
    %v6933 = vpack.c.b16 %v6081, %v6077
    %v6934 = vpack.c.b16 %v6086, %v6082
    %v6935 = vpack.c.b16 %v6087, %v6083
    %v6936 = vpack.c.b16 %v6088, %v6084
    %v6937 = vpack.c.b16 %v6089, %v6085
    %v6938 = vpack.c.b16 %v6094, %v6090
    %v6939 = vpack.c.b16 %v6095, %v6091
    %v6940 = vpack.c.b16 %v6096, %v6092
    %v6941 = vpack.c.b16 %v6097, %v6093
    %v6942 = vpack.c.b16 %v6102, %v6098
    %v6943 = vpack.c.b16 %v6103, %v6099
    %v6944 = vpack.c.b16 %v6104, %v6100
    %v6945 = vpack.c.b16 %v6105, %v6101
    %v6946 = vpack.c.b16 %v6110, %v6106
    %v6947 = vpack.c.b16 %v6111, %v6107
    %v6948 = vpack.c.b16 %v6112, %v6108
    %v6949 = vpack.c.b16 %v6113, %v6109
    %v6950 = vpack.c.b16 %v6118, %v6114
    %v6951 = vpack.c.b16 %v6119, %v6115
    %v6952 = vpack.c.b16 %v6120, %v6116
    %v6953 = vpack.c.b16 %v6121, %v6117
    %v6954 = vpack.c.b16 %v6126, %v6122
    %v6955 = vpack.c.b16 %v6127, %v6123
    %v6956 = vpack.c.b16 %v6128, %v6124
    %v6957 = vpack.c.b16 %v6129, %v6125
    %v6958 = vpack.c.b16 %v6134, %v6130
    %v6959 = vpack.c.b16 %v6135, %v6131
    %v6960 = vpack.c.b16 %v6136, %v6132
    %v6961 = vpack.c.b16 %v6137, %v6133
    %v6962 = vpack.c.b16 %v6142, %v6138
    %v6963 = vpack.c.b16 %v6143, %v6139
    %v6964 = vpack.c.b16 %v6144, %v6140
    %v6965 = vpack.c.b16 %v6145, %v6141
    %v6966 = vpack.c.b16 %v6150, %v6146
    %v6967 = vpack.c.b16 %v6151, %v6147
    %v6968 = vpack.c.b16 %v6152, %v6148
    %v6969 = vpack.c.b16 %v6153, %v6149
    %v6970 = vpack.c.b16 %v6158, %v6154
    %v6971 = vpack.c.b16 %v6159, %v6155
    %v6972 = vpack.c.b16 %v6160, %v6156
    %v6973 = vpack.c.b16 %v6161, %v6157
    %v6974 = vpack.c.b16 %v6166, %v6162
    %v6975 = vpack.c.b16 %v6167, %v6163
    %v6976 = vpack.c.b16 %v6168, %v6164
    %v6977 = vpack.c.b16 %v6169, %v6165
    %v6978 = vpack.c.b16 %v6174, %v6170
    %v6979 = vpack.c.b16 %v6175, %v6171
    %v6980 = vpack.c.b16 %v6176, %v6172
    %v6981 = vpack.c.b16 %v6177, %v6173
    %v6982 = vpack.c.b16 %v6182, %v6178
    %v6983 = vpack.c.b16 %v6183, %v6179
    %v6984 = vpack.c.b16 %v6184, %v6180
    %v6985 = vpack.c.b16 %v6185, %v6181
    %v6986 = vpack.c.b16 %v6190, %v6186
    %v6987 = vpack.c.b16 %v6191, %v6187
    %v6988 = vpack.c.b16 %v6192, %v6188
    %v6989 = vpack.c.b16 %v6193, %v6189
    %v6990 = vpack.c.b16 %v6198, %v6194
    %v6991 = vpack.c.b16 %v6199, %v6195
    %v6992 = vpack.c.b16 %v6200, %v6196
    %v6993 = vpack.c.b16 %v6201, %v6197
    %v6994 = vpack.c.b16 %v6206, %v6202
    %v6995 = vpack.c.b16 %v6207, %v6203
    %v6996 = vpack.c.b16 %v6208, %v6204
    %v6997 = vpack.c.b16 %v6209, %v6205
    %v6998 = vpack.c.b16 %v6214, %v6210
    %v6999 = vpack.c.b16 %v6215, %v6211
    %v7000 = vpack.c.b16 %v6216, %v6212
    %v7001 = vpack.c.b16 %v6217, %v6213
    %v7002 = vpack.c.b16 %v6222, %v6218
    %v7003 = vpack.c.b16 %v6223, %v6219
    %v7004 = vpack.c.b16 %v6224, %v6220
    %v7005 = vpack.c.b16 %v6225, %v6221
    %v7006 = vpack.c.b16 %v6230, %v6226
    %v7007 = vpack.c.b16 %v6231, %v6227
    %v7008 = vpack.c.b16 %v6232, %v6228
    %v7009 = vpack.c.b16 %v6233, %v6229
    %v7010 = vpack.c.b16 %v6238, %v6234
    %v7011 = vpack.c.b16 %v6239, %v6235
    %v7012 = vpack.c.b16 %v6240, %v6236
    %v7013 = vpack.c.b16 %v6241, %v6237
    %v7014 = vpack.c.b16 %v6246, %v6242
    %v7015 = vpack.c.b16 %v6247, %v6243
    %v7016 = vpack.c.b16 %v6248, %v6244
    %v7017 = vpack.c.b16 %v6249, %v6245
    %v7018 = vpack.c.b16 %v6254, %v6250
    %v7019 = vpack.c.b16 %v6255, %v6251
    %v7020 = vpack.c.b16 %v6256, %v6252
    %v7021 = vpack.c.b16 %v6257, %v6253
    %v7022 = vpack.c.b16 %v6262, %v6258
    %v7023 = vpack.c.b16 %v6263, %v6259
    %v7024 = vpack.c.b16 %v6264, %v6260
    %v7025 = vpack.c.b16 %v6265, %v6261
    %v7026 = vpack.c.b16 %v6270, %v6266
    %v7027 = vpack.c.b16 %v6271, %v6267
    %v7028 = vpack.c.b16 %v6272, %v6268
    %v7029 = vpack.c.b16 %v6273, %v6269
    %v7030 = vpack.c.b16 %v6278, %v6274
    %v7031 = vpack.c.b16 %v6279, %v6275
    %v7032 = vpack.c.b16 %v6280, %v6276
    %v7033 = vpack.c.b16 %v6281, %v6277
    %v7034 = vpack.c.b16 %v6286, %v6282
    %v7035 = vpack.c.b16 %v6287, %v6283
    %v7036 = vpack.c.b16 %v6288, %v6284
    %v7037 = vpack.c.b16 %v6289, %v6285
    %v7038 = vpack.c.b16 %v6294, %v6290
    %v7039 = vpack.c.b16 %v6295, %v6291
    %v7040 = vpack.c.b16 %v6296, %v6292
    %v7041 = vpack.c.b16 %v6297, %v6293
    %v7042 = vpack.c.b16 %v6302, %v6298
    %v7043 = vpack.c.b16 %v6303, %v6299
    %v7044 = vpack.c.b16 %v6304, %v6300
    %v7045 = vpack.c.b16 %v6305, %v6301
    %v7046 = vpack.c.b16 %v6310, %v6306
    %v7047 = vpack.c.b16 %v6311, %v6307
    %v7048 = vpack.c.b16 %v6312, %v6308
    %v7049 = vpack.c.b16 %v6313, %v6309
    %v7050 = vpack.c.b16 %v6318, %v6314
    %v7051 = vpack.c.b16 %v6319, %v6315
    %v7052 = vpack.c.b16 %v6320, %v6316
    %v7053 = vpack.c.b16 %v6321, %v6317
    %v7054 = vpack.c.b16 %v6326, %v6322
    %v7055 = vpack.c.b16 %v6327, %v6323
    %v7056 = vpack.c.b16 %v6328, %v6324
    %v7057 = vpack.c.b16 %v6329, %v6325
    %v7058 = vpack.c.b16 %v6334, %v6330
    %v7059 = vpack.c.b16 %v6335, %v6331
    %v7060 = vpack.c.b16 %v6336, %v6332
    %v7061 = vpack.c.b16 %v6337, %v6333
    %v7062 = vpack.c.b16 %v6342, %v6338
    %v7063 = vpack.c.b16 %v6343, %v6339
    %v7064 = vpack.c.b16 %v6344, %v6340
    %v7065 = vpack.c.b16 %v6345, %v6341
    %v7066 = vpack.c.b16 %v6350, %v6346
    %v7067 = vpack.c.b16 %v6351, %v6347
    %v7068 = vpack.c.b16 %v6352, %v6348
    %v7069 = vpack.c.b16 %v6353, %v6349
    %v7070 = vpack.c.b16 %v6358, %v6354
    %v7071 = vpack.c.b16 %v6359, %v6355
    %v7072 = vpack.c.b16 %v6360, %v6356
    %v7073 = vpack.c.b16 %v6361, %v6357
    %v7074 = vpack.c.b16 %v6366, %v6362
    %v7075 = vpack.c.b16 %v6367, %v6363
    %v7076 = vpack.c.b16 %v6368, %v6364
    %v7077 = vpack.c.b16 %v6369, %v6365
    %v7078 = vpack.c.b16 %v6374, %v6370
    %v7079 = vpack.c.b16 %v6375, %v6371
    %v7080 = vpack.c.b16 %v6376, %v6372
    %v7081 = vpack.c.b16 %v6377, %v6373
    %v7082 = vpack.c.b16 %v6382, %v6378
    %v7083 = vpack.c.b16 %v6383, %v6379
    %v7084 = vpack.c.b16 %v6384, %v6380
    %v7085 = vpack.c.b16 %v6385, %v6381
    %v7086 = vpack.c.b16 %v6390, %v6386
    %v7087 = vpack.c.b16 %v6391, %v6387
    %v7088 = vpack.c.b16 %v6392, %v6388
    %v7089 = vpack.c.b16 %v6393, %v6389
    %v7090 = vpack.c.b16 %v6398, %v6394
    %v7091 = vpack.c.b16 %v6399, %v6395
    %v7092 = vpack.c.b16 %v6400, %v6396
    %v7093 = vpack.c.b16 %v6401, %v6397
    %v7094 = vpack.c.b16 %v6406, %v6402
    %v7095 = vpack.c.b16 %v6407, %v6403
    %v7096 = vpack.c.b16 %v6408, %v6404
    %v7097 = vpack.c.b16 %v6409, %v6405
    %v7098 = vpack.c.b16 %v6414, %v6410
    %v7099 = vpack.c.b16 %v6415, %v6411
    %v7100 = vpack.c.b16 %v6416, %v6412
    %v7101 = vpack.c.b16 %v6417, %v6413
    %v7102 = vpack.c.b16 %v6422, %v6418
    %v7103 = vpack.c.b16 %v6423, %v6419
    %v7104 = vpack.c.b16 %v6424, %v6420
    %v7105 = vpack.c.b16 %v6425, %v6421
    %v7106 = vpack.c.b16 %v6430, %v6426
    %v7107 = vpack.c.b16 %v6431, %v6427
    %v7108 = vpack.c.b16 %v6432, %v6428
    %v7109 = vpack.c.b16 %v6433, %v6429
    %v7110 = vpack.c.b16 %v6438, %v6434
    %v7111 = vpack.c.b16 %v6439, %v6435
    %v7112 = vpack.c.b16 %v6440, %v6436
    %v7113 = vpack.c.b16 %v6441, %v6437
    %v7114 = vpack.c.b16 %v6446, %v6442
    %v7115 = vpack.c.b16 %v6447, %v6443
    %v7116 = vpack.c.b16 %v6448, %v6444
    %v7117 = vpack.c.b16 %v6449, %v6445
    %v7118 = vpack.c.b16 %v6454, %v6450
    %v7119 = vpack.c.b16 %v6455, %v6451
    %v7120 = vpack.c.b16 %v6456, %v6452
    %v7121 = vpack.c.b16 %v6457, %v6453
    %v7122 = vpack.c.b16 %v6462, %v6458
    %v7123 = vpack.c.b16 %v6463, %v6459
    %v7124 = vpack.c.b16 %v6464, %v6460
    %v7125 = vpack.c.b16 %v6465, %v6461
    %v7126 = vpack.c.b16 %v6470, %v6466
    %v7127 = vpack.c.b16 %v6471, %v6467
    %v7128 = vpack.c.b16 %v6472, %v6468
    %v7129 = vpack.c.b16 %v6473, %v6469
    %v7130 = vpack.c.b16 %v6478, %v6474
    %v7131 = vpack.c.b16 %v6479, %v6475
    %v7132 = vpack.c.b16 %v6480, %v6476
    %v7133 = vpack.c.b16 %v6481, %v6477
    %v7134 = vpack.c.b16 %v6486, %v6482
    %v7135 = vpack.c.b16 %v6487, %v6483
    %v7136 = vpack.c.b16 %v6488, %v6484
    %v7137 = vpack.c.b16 %v6489, %v6485
    %v7138 = vpack.c.b16 %v6494, %v6490
    %v7139 = vpack.c.b16 %v6495, %v6491
    %v7140 = vpack.c.b16 %v6496, %v6492
    %v7141 = vpack.c.b16 %v6497, %v6493
    %v7142 = vpack.c.b16 %v6502, %v6498
    %v7143 = vpack.c.b16 %v6503, %v6499
    %v7144 = vpack.c.b16 %v6504, %v6500
    %v7145 = vpack.c.b16 %v6505, %v6501
    %v7146 = vpack.c.b16 %v6510, %v6506
    %v7147 = vpack.c.b16 %v6511, %v6507
    %v7148 = vpack.c.b16 %v6512, %v6508
    %v7149 = vpack.c.b16 %v6513, %v6509
    %v7150 = vpack.c.b16 %v6518, %v6514
    %v7151 = vpack.c.b16 %v6519, %v6515
    %v7152 = vpack.c.b16 %v6520, %v6516
    %v7153 = vpack.c.b16 %v6521, %v6517
    %v7154 = vpack.c.b16 %v6526, %v6522
    %v7155 = vpack.c.b16 %v6527, %v6523
    %v7156 = vpack.c.b16 %v6528, %v6524
    %v7157 = vpack.c.b16 %v6529, %v6525
    %v7158 = vpack.c.b16 %v6534, %v6530
    %v7159 = vpack.c.b16 %v6535, %v6531
    %v7160 = vpack.c.b16 %v6536, %v6532
    %v7161 = vpack.c.b16 %v6537, %v6533
    %v7162 = vpack.c.b16 %v6542, %v6538
    %v7163 = vpack.c.b16 %v6543, %v6539
    %v7164 = vpack.c.b16 %v6544, %v6540
    %v7165 = vpack.c.b16 %v6545, %v6541
    %v7166 = vpack.c.b16 %v6550, %v6546
    %v7167 = vpack.c.b16 %v6551, %v6547
    %v7168 = vpack.c.b16 %v6552, %v6548
    %v7169 = vpack.c.b16 %v6553, %v6549
    %v7170 = vpack.c.b16 %v6558, %v6554
    %v7171 = vpack.c.b16 %v6559, %v6555
    %v7172 = vpack.c.b16 %v6560, %v6556
    %v7173 = vpack.c.b16 %v6561, %v6557
    %v7174 = vpack.c.b16 %v6566, %v6562
    %v7175 = vpack.c.b16 %v6567, %v6563
    %v7176 = vpack.c.b16 %v6568, %v6564
    %v7177 = vpack.c.b16 %v6569, %v6565
    %v7178 = vpack.c.b16 %v6574, %v6570
    %v7179 = vpack.c.b16 %v6575, %v6571
    %v7180 = vpack.c.b16 %v6576, %v6572
    %v7181 = vpack.c.b16 %v6577, %v6573
    %v7182 = vpack.c.b16 %v6582, %v6578
    %v7183 = vpack.c.b16 %v6583, %v6579
    %v7184 = vpack.c.b16 %v6584, %v6580
    %v7185 = vpack.c.b16 %v6585, %v6581
    %v7186 = vpack.c.b16 %v6590, %v6586
    %v7187 = vpack.c.b16 %v6591, %v6587
    %v7188 = vpack.c.b16 %v6592, %v6588
    %v7189 = vpack.c.b16 %v6593, %v6589
    %v7190 = vpack.c.b16 %v6598, %v6594
    %v7191 = vpack.c.b16 %v6599, %v6595
    %v7192 = vpack.c.b16 %v6600, %v6596
    %v7193 = vpack.c.b16 %v6601, %v6597
    %v7194 = vpack.c.b16 %v6606, %v6602
    %v7195 = vpack.c.b16 %v6607, %v6603
    %v7196 = vpack.c.b16 %v6608, %v6604
    %v7197 = vpack.c.b16 %v6609, %v6605
    %v7198 = vpack.c.b16 %v6614, %v6610
    %v7199 = vpack.c.b16 %v6615, %v6611
    %v7200 = vpack.c.b16 %v6616, %v6612
    %v7201 = vpack.c.b16 %v6617, %v6613
    %v7202 = vpack.c.b16 %v6622, %v6618
    %v7203 = vpack.c.b16 %v6623, %v6619
    %v7204 = vpack.c.b16 %v6624, %v6620
    %v7205 = vpack.c.b16 %v6625, %v6621
    %v7206 = vpack.c.b16 %v6630, %v6626
    %v7207 = vpack.c.b16 %v6631, %v6627
    %v7208 = vpack.c.b16 %v6632, %v6628
    %v7209 = vpack.c.b16 %v6633, %v6629
    %v7210 = vpack.c.b16 %v6638, %v6634
    %v7211 = vpack.c.b16 %v6639, %v6635
    %v7212 = vpack.c.b16 %v6640, %v6636
    %v7213 = vpack.c.b16 %v6641, %v6637
    %v7214 = vpack.c.b16 %v6646, %v6642
    %v7215 = vpack.c.b16 %v6647, %v6643
    %v7216 = vpack.c.b16 %v6648, %v6644
    %v7217 = vpack.c.b16 %v6649, %v6645
    %v7218 = vpack.c.b16 %v6654, %v6650
    %v7219 = vpack.c.b16 %v6655, %v6651
    %v7220 = vpack.c.b16 %v6656, %v6652
    %v7221 = vpack.c.b16 %v6657, %v6653
    %v7222 = vpack.c.b16 %v6662, %v6658
    %v7223 = vpack.c.b16 %v6663, %v6659
    %v7224 = vpack.c.b16 %v6664, %v6660
    %v7225 = vpack.c.b16 %v6665, %v6661
    %v7226 = vpack.c.b16 %v6670, %v6666
    %v7227 = vpack.c.b16 %v6671, %v6667
    %v7228 = vpack.c.b16 %v6672, %v6668
    %v7229 = vpack.c.b16 %v6673, %v6669
    %v7230 = vpack.c.b16 %v6678, %v6674
    %v7231 = vpack.c.b16 %v6679, %v6675
    %v7232 = vpack.c.b16 %v6680, %v6676
    %v7233 = vpack.c.b16 %v6681, %v6677
    %v7234 = vpack.c.b16 %v6686, %v6682
    %v7235 = vpack.c.b16 %v6687, %v6683
    %v7236 = vpack.c.b16 %v6688, %v6684
    %v7237 = vpack.c.b16 %v6689, %v6685
    %v7238 = vpack.c.b16 %v6694, %v6690
    %v7239 = vpack.c.b16 %v6695, %v6691
    %v7240 = vpack.c.b16 %v6696, %v6692
    %v7241 = vpack.c.b16 %v6697, %v6693
    %v7242 = vpack.c.b16 %v6702, %v6698
    %v7243 = vpack.c.b16 %v6703, %v6699
    %v7244 = vpack.c.b16 %v6704, %v6700
    %v7245 = vpack.c.b16 %v6705, %v6701
    %v7246 = vpack.c.b16 %v6710, %v6706
    %v7247 = vpack.c.b16 %v6711, %v6707
    %v7248 = vpack.c.b16 %v6712, %v6708
    %v7249 = vpack.c.b16 %v6713, %v6709
    %v7250 = vpack.c.b16 %v6718, %v6714
    %v7251 = vpack.c.b16 %v6719, %v6715
    %v7252 = vpack.c.b16 %v6720, %v6716
    %v7253 = vpack.c.b16 %v6721, %v6717
    %v7254 = vpack.c.b16 %v6726, %v6722
    %v7255 = vpack.c.b16 %v6727, %v6723
    %v7256 = vpack.c.b16 %v6728, %v6724
    %v7257 = vpack.c.b16 %v6729, %v6725
    %v7258 = vpack.c.b16 %v6734, %v6730
    %v7259 = vpack.c.b16 %v6735, %v6731
    %v7260 = vpack.c.b16 %v6736, %v6732
    %v7261 = vpack.c.b16 %v6737, %v6733
    %v7262 = vpack.c.b16 %v6742, %v6738
    %v7263 = vpack.c.b16 %v6743, %v6739
    %v7264 = vpack.c.b16 %v6744, %v6740
    %v7265 = vpack.c.b16 %v6745, %v6741
    %v7266 = vpack.c.b16 %v6750, %v6746
    %v7267 = vpack.c.b16 %v6751, %v6747
    %v7268 = vpack.c.b16 %v6752, %v6748
    %v7269 = vpack.c.b16 %v6753, %v6749
    %v7270 = vpack.c.b16 %v6758, %v6754
    %v7271 = vpack.c.b16 %v6759, %v6755
    %v7272 = vpack.c.b16 %v6760, %v6756
    %v7273 = vpack.c.b16 %v6761, %v6757
    %7786 = vmatprep.subr.bf16.mxu0 %v6763
    %7787 = vmatpush1.bf16.msra.mxu0 %v6762
    %7788 = vmatprep.subr.bf16.mxu0 %v6767
    %7789 = vmatpush1.bf16.msra.mxu0 %v6766
    %7790 = vmatprep.subr.bf16.mxu0 %v6771
    %7791 = vmatpush1.bf16.msra.mxu0 %v6770
    %7792 = vmatprep.subr.bf16.mxu0 %v6775
    %7793 = vmatpush1.bf16.msra.mxu0 %v6774
    %7794 = vmatprep.subr.bf16.mxu0 %v6779
    %7795 = vmatpush1.bf16.msra.mxu0 %v6778
    %7796 = vmatprep.subr.bf16.mxu0 %v6783
    %7797 = vmatpush1.bf16.msra.mxu0 %v6782
    %7798 = vmatprep.subr.bf16.mxu0 %v6787
    %7799 = vmatpush1.bf16.msra.mxu0 %v6786
    %7800 = vmatprep.subr.bf16.mxu0 %v6791
    %7801 = vmatpush1.bf16.msra.mxu0 %v6790
    %7802 = vmatprep.subr.bf16.mxu0 %v6795
    %7803 = vmatpush1.bf16.msra.mxu0 %v6794
    %7804 = vmatprep.subr.bf16.mxu0 %v6799
    %7805 = vmatpush1.bf16.msra.mxu0 %v6798
    %7806 = vmatprep.subr.bf16.mxu0 %v6803
    %7807 = vmatpush1.bf16.msra.mxu0 %v6802
    %7808 = vmatprep.subr.bf16.mxu0 %v6807
    %7809 = vmatpush1.bf16.msra.mxu0 %v6806
    %7810 = vmatprep.subr.bf16.mxu0 %v6811
    %7811 = vmatpush1.bf16.msra.mxu0 %v6810
    %7812 = vmatprep.subr.bf16.mxu0 %v6815
    %7813 = vmatpush1.bf16.msra.mxu0 %v6814
    %7814 = vmatprep.subr.bf16.mxu0 %v6819
    %7815 = vmatpush1.bf16.msra.mxu0 %v6818
    %7816 = vmatprep.subr.bf16.mxu0 %v6823
    %7817 = vmatpush1.bf16.msra.mxu0 %v6822
    %7818 = vmatprep.mubr.bf16.mxu0 %v4677
    %7819 = vmatmul.mubr.bf16.gmra.mrb[0].mxu0 %v4676
    %v7820 = vpop.f32.mrb[0].mxu0
    %v7821 = vadd.f32 %v5209, %v7820
    %v7822 = vpop.f32.mrb[0].mxu0
    %v7823 = vadd.f32 %v5213, %v7822
    %v7824 = vpop.f32.mrb[0].mxu0
    %v7825 = vpop.f32.mrb[0].mxu0
    %7826 = vdwg.mxu0
    %7827 = vmatprep.subr.bf16.mxu0 %v6827
    %7828 = vmatpush1.bf16.msra.mxu0 %v6826
    %7829 = vmatprep.subr.bf16.mxu0 %v6831
    %7830 = vmatpush1.bf16.msra.mxu0 %v6830
    %7831 = vmatprep.subr.bf16.mxu0 %v6835
    %7832 = vmatpush1.bf16.msra.mxu0 %v6834
    %7833 = vmatprep.subr.bf16.mxu0 %v6839
    %7834 = vmatpush1.bf16.msra.mxu0 %v6838
    %7835 = vmatprep.subr.bf16.mxu0 %v6843
    %7836 = vmatpush1.bf16.msra.mxu0 %v6842
    %7837 = vmatprep.subr.bf16.mxu0 %v6847
    %7838 = vmatpush1.bf16.msra.mxu0 %v6846
    %7839 = vmatprep.subr.bf16.mxu0 %v6851
    %7840 = vmatpush1.bf16.msra.mxu0 %v6850
    %7841 = vmatprep.subr.bf16.mxu0 %v6855
    %7842 = vmatpush1.bf16.msra.mxu0 %v6854
    %7843 = vmatprep.subr.bf16.mxu0 %v6859
    %7844 = vmatpush1.bf16.msra.mxu0 %v6858
    %7845 = vmatprep.subr.bf16.mxu0 %v6863
    %7846 = vmatpush1.bf16.msra.mxu0 %v6862
    %7847 = vmatprep.subr.bf16.mxu0 %v6867
    %7848 = vmatpush1.bf16.msra.mxu0 %v6866
    %7849 = vmatprep.subr.bf16.mxu0 %v6871
    %7850 = vmatpush1.bf16.msra.mxu0 %v6870
    %7851 = vmatprep.subr.bf16.mxu0 %v6875
    %7852 = vmatpush1.bf16.msra.mxu0 %v6874
    %7853 = vmatprep.subr.bf16.mxu0 %v6879
    %7854 = vmatpush1.bf16.msra.mxu0 %v6878
    %7855 = vmatprep.subr.bf16.mxu0 %v6883
    %7856 = vmatpush1.bf16.msra.mxu0 %v6882
    %7857 = vmatprep.subr.bf16.mxu0 %v6887
    %7858 = vmatpush1.bf16.msra.mxu0 %v6886
    %7859 = vmatprep.mubr.bf16.mxu0 %v4679
    %7860 = vmatmul.mubr.bf16.gmra.mrb[0].mxu0 %v4678
    %v7861 = vpop.f32.mrb[0].mxu0
    %v7862 = vadd.f32 %v7821, %v7861
    %v7863 = vpop.f32.mrb[0].mxu0
    %v7864 = vadd.f32 %v7823, %v7863
    %v7865 = vpop.f32.mrb[0].mxu0
    %v7866 = vpop.f32.mrb[0].mxu0
    %7867 = vdwg.mxu0
    %7868 = vmatprep.subr.bf16.mxu0 %v6891
    %7869 = vmatpush1.bf16.msra.mxu0 %v6890
    %7870 = vmatprep.subr.bf16.mxu0 %v6895
    %7871 = vmatpush1.bf16.msra.mxu0 %v6894
    %7872 = vmatprep.subr.bf16.mxu0 %v6899
    %7873 = vmatpush1.bf16.msra.mxu0 %v6898
    %7874 = vmatprep.subr.bf16.mxu0 %v6903
    %7875 = vmatpush1.bf16.msra.mxu0 %v6902
    %7876 = vmatprep.subr.bf16.mxu0 %v6907
    %7877 = vmatpush1.bf16.msra.mxu0 %v6906
    %7878 = vmatprep.subr.bf16.mxu0 %v6911
    %7879 = vmatpush1.bf16.msra.mxu0 %v6910
    %7880 = vmatprep.subr.bf16.mxu0 %v6915
    %7881 = vmatpush1.bf16.msra.mxu0 %v6914
    %7882 = vmatprep.subr.bf16.mxu0 %v6919
    %7883 = vmatpush1.bf16.msra.mxu0 %v6918
    %7884 = vmatprep.subr.bf16.mxu0 %v6923
    %7885 = vmatpush1.bf16.msra.mxu0 %v6922
    %7886 = vmatprep.subr.bf16.mxu0 %v6927
    %7887 = vmatpush1.bf16.msra.mxu0 %v6926
    %7888 = vmatprep.subr.bf16.mxu0 %v6931
    %7889 = vmatpush1.bf16.msra.mxu0 %v6930
    %7890 = vmatprep.subr.bf16.mxu0 %v6935
    %7891 = vmatpush1.bf16.msra.mxu0 %v6934
    %7892 = vmatprep.subr.bf16.mxu0 %v6939
    %7893 = vmatpush1.bf16.msra.mxu0 %v6938
    %7894 = vmatprep.subr.bf16.mxu0 %v6943
    %7895 = vmatpush1.bf16.msra.mxu0 %v6942
    %7896 = vmatprep.subr.bf16.mxu0 %v6947
    %7897 = vmatpush1.bf16.msra.mxu0 %v6946
    %7898 = vmatprep.subr.bf16.mxu0 %v6951
    %7899 = vmatpush1.bf16.msra.mxu0 %v6950
    %7900 = vmatprep.mubr.bf16.mxu0 %v4681
    %7901 = vmatmul.mubr.bf16.gmra.mrb[0].mxu0 %v4680
    %v7902 = vpop.f32.mrb[0].mxu0
    %v7903 = vadd.f32 %v7862, %v7902
    %v7904 = vpop.f32.mrb[0].mxu0
    %v7905 = vadd.f32 %v7864, %v7904
    %v7906 = vpop.f32.mrb[0].mxu0
    %v7907 = vpop.f32.mrb[0].mxu0
    %7908 = vdwg.mxu0
    %7909 = vmatprep.subr.bf16.mxu0 %v6955
    %7910 = vmatpush1.bf16.msra.mxu0 %v6954
    %7911 = vmatprep.subr.bf16.mxu0 %v6959
    %7912 = vmatpush1.bf16.msra.mxu0 %v6958
    %7913 = vmatprep.subr.bf16.mxu0 %v6963
    %7914 = vmatpush1.bf16.msra.mxu0 %v6962
    %7915 = vmatprep.subr.bf16.mxu0 %v6967
    %7916 = vmatpush1.bf16.msra.mxu0 %v6966
    %7917 = vmatprep.subr.bf16.mxu0 %v6971
    %7918 = vmatpush1.bf16.msra.mxu0 %v6970
    %7919 = vmatprep.subr.bf16.mxu0 %v6975
    %7920 = vmatpush1.bf16.msra.mxu0 %v6974
    %7921 = vmatprep.subr.bf16.mxu0 %v6979
    %7922 = vmatpush1.bf16.msra.mxu0 %v6978
    %7923 = vmatprep.subr.bf16.mxu0 %v6983
    %7924 = vmatpush1.bf16.msra.mxu0 %v6982
    %7925 = vmatprep.subr.bf16.mxu0 %v6987
    %7926 = vmatpush1.bf16.msra.mxu0 %v6986
    %7927 = vmatprep.subr.bf16.mxu0 %v6991
    %7928 = vmatpush1.bf16.msra.mxu0 %v6990
    %7929 = vmatprep.subr.bf16.mxu0 %v6995
    %7930 = vmatpush1.bf16.msra.mxu0 %v6994
    %7931 = vmatprep.subr.bf16.mxu0 %v6999
    %7932 = vmatpush1.bf16.msra.mxu0 %v6998
    %7933 = vmatprep.subr.bf16.mxu0 %v7003
    %7934 = vmatpush1.bf16.msra.mxu0 %v7002
    %7935 = vmatprep.subr.bf16.mxu0 %v7007
    %7936 = vmatpush1.bf16.msra.mxu0 %v7006
    %7937 = vmatprep.subr.bf16.mxu0 %v7011
    %7938 = vmatpush1.bf16.msra.mxu0 %v7010
    %7939 = vmatprep.subr.bf16.mxu0 %v7015
    %7940 = vmatpush1.bf16.msra.mxu0 %v7014
    %7941 = vmatprep.mubr.bf16.mxu0 %v4683
    %7942 = vmatmul.mubr.bf16.gmra.mrb[0].mxu0 %v4682
    %v7943 = vpop.f32.mrb[0].mxu0
    %v7944 = vadd.f32 %v7903, %v7943
    %v7945 = vpop.f32.mrb[0].mxu0
    %v7946 = vadd.f32 %v7905, %v7945
    %v7947 = vpop.f32.mrb[0].mxu0
    %v7948 = vpop.f32.mrb[0].mxu0
    %7949 = vdwg.mxu0
    %7950 = vmatprep.subr.bf16.mxu0 %v7019
    %7951 = vmatpush1.bf16.msra.mxu0 %v7018
    %7952 = vmatprep.subr.bf16.mxu0 %v7023
    %7953 = vmatpush1.bf16.msra.mxu0 %v7022
    %7954 = vmatprep.subr.bf16.mxu0 %v7027
    %7955 = vmatpush1.bf16.msra.mxu0 %v7026
    %7956 = vmatprep.subr.bf16.mxu0 %v7031
    %7957 = vmatpush1.bf16.msra.mxu0 %v7030
    %7958 = vmatprep.subr.bf16.mxu0 %v7035
    %7959 = vmatpush1.bf16.msra.mxu0 %v7034
    %7960 = vmatprep.subr.bf16.mxu0 %v7039
    %7961 = vmatpush1.bf16.msra.mxu0 %v7038
    %7962 = vmatprep.subr.bf16.mxu0 %v7043
    %7963 = vmatpush1.bf16.msra.mxu0 %v7042
    %7964 = vmatprep.subr.bf16.mxu0 %v7047
    %7965 = vmatpush1.bf16.msra.mxu0 %v7046
    %7966 = vmatprep.subr.bf16.mxu0 %v7051
    %7967 = vmatpush1.bf16.msra.mxu0 %v7050
    %7968 = vmatprep.subr.bf16.mxu0 %v7055
    %7969 = vmatpush1.bf16.msra.mxu0 %v7054
    %7970 = vmatprep.subr.bf16.mxu0 %v7059
    %7971 = vmatpush1.bf16.msra.mxu0 %v7058
    %7972 = vmatprep.subr.bf16.mxu0 %v7063
    %7973 = vmatpush1.bf16.msra.mxu0 %v7062
    %7974 = vmatprep.subr.bf16.mxu0 %v7067
    %7975 = vmatpush1.bf16.msra.mxu0 %v7066
    %7976 = vmatprep.subr.bf16.mxu0 %v7071
    %7977 = vmatpush1.bf16.msra.mxu0 %v7070
    %7978 = vmatprep.subr.bf16.mxu0 %v7075
    %7979 = vmatpush1.bf16.msra.mxu0 %v7074
    %7980 = vmatprep.subr.bf16.mxu0 %v7079
    %7981 = vmatpush1.bf16.msra.mxu0 %v7078
    %7982 = vmatprep.mubr.bf16.mxu0 %v4685
    %7983 = vmatmul.mubr.bf16.gmra.mrb[0].mxu0 %v4684
    %v7984 = vpop.f32.mrb[0].mxu0
    %v7985 = vadd.f32 %v7944, %v7984
    %v7986 = vpop.f32.mrb[0].mxu0
    %v7987 = vadd.f32 %v7946, %v7986
    %v7988 = vpop.f32.mrb[0].mxu0
    %v7989 = vpop.f32.mrb[0].mxu0
    %7990 = vdwg.mxu0
    %7991 = vmatprep.subr.bf16.mxu0 %v7083
    %7992 = vmatpush1.bf16.msra.mxu0 %v7082
    %7993 = vmatprep.subr.bf16.mxu0 %v7087
    %7994 = vmatpush1.bf16.msra.mxu0 %v7086
    %7995 = vmatprep.subr.bf16.mxu0 %v7091
    %7996 = vmatpush1.bf16.msra.mxu0 %v7090
    %7997 = vmatprep.subr.bf16.mxu0 %v7095
    %7998 = vmatpush1.bf16.msra.mxu0 %v7094
    %7999 = vmatprep.subr.bf16.mxu0 %v7099
    %8000 = vmatpush1.bf16.msra.mxu0 %v7098
    %8001 = vmatprep.subr.bf16.mxu0 %v7103
    %8002 = vmatpush1.bf16.msra.mxu0 %v7102
    %8003 = vmatprep.subr.bf16.mxu0 %v7107
    %8004 = vmatpush1.bf16.msra.mxu0 %v7106
    %8005 = vmatprep.subr.bf16.mxu0 %v7111
    %8006 = vmatpush1.bf16.msra.mxu0 %v7110
    %8007 = vmatprep.subr.bf16.mxu0 %v7115
    %8008 = vmatpush1.bf16.msra.mxu0 %v7114
    %8009 = vmatprep.subr.bf16.mxu0 %v7119
    %8010 = vmatpush1.bf16.msra.mxu0 %v7118
    %8011 = vmatprep.subr.bf16.mxu0 %v7123
    %8012 = vmatpush1.bf16.msra.mxu0 %v7122
    %8013 = vmatprep.subr.bf16.mxu0 %v7127
    %8014 = vmatpush1.bf16.msra.mxu0 %v7126
    %8015 = vmatprep.subr.bf16.mxu0 %v7131
    %8016 = vmatpush1.bf16.msra.mxu0 %v7130
    %8017 = vmatprep.subr.bf16.mxu0 %v7135
    %8018 = vmatpush1.bf16.msra.mxu0 %v7134
    %8019 = vmatprep.subr.bf16.mxu0 %v7139
    %8020 = vmatpush1.bf16.msra.mxu0 %v7138
    %8021 = vmatprep.subr.bf16.mxu0 %v7143
    %8022 = vmatpush1.bf16.msra.mxu0 %v7142
    %8023 = vmatprep.mubr.bf16.mxu0 %v4687
    %8024 = vmatmul.mubr.bf16.gmra.mrb[0].mxu0 %v4686
    %v8025 = vpop.f32.mrb[0].mxu0
    %v8026 = vadd.f32 %v7985, %v8025
    %v8027 = vpop.f32.mrb[0].mxu0
    %v8028 = vadd.f32 %v7987, %v8027
    %v8029 = vpop.f32.mrb[0].mxu0
    %v8030 = vpop.f32.mrb[0].mxu0
    %8031 = vdwg.mxu0
    %8032 = vmatprep.subr.bf16.mxu0 %v7147
    %8033 = vmatpush1.bf16.msra.mxu0 %v7146
    %8034 = vmatprep.subr.bf16.mxu0 %v7151
    %8035 = vmatpush1.bf16.msra.mxu0 %v7150
    %8036 = vmatprep.subr.bf16.mxu0 %v7155
    %8037 = vmatpush1.bf16.msra.mxu0 %v7154
    %8038 = vmatprep.subr.bf16.mxu0 %v7159
    %8039 = vmatpush1.bf16.msra.mxu0 %v7158
    %8040 = vmatprep.subr.bf16.mxu0 %v7163
    %8041 = vmatpush1.bf16.msra.mxu0 %v7162
    %8042 = vmatprep.subr.bf16.mxu0 %v7167
    %8043 = vmatpush1.bf16.msra.mxu0 %v7166
    %8044 = vmatprep.subr.bf16.mxu0 %v7171
    %8045 = vmatpush1.bf16.msra.mxu0 %v7170
    %8046 = vmatprep.subr.bf16.mxu0 %v7175
    %8047 = vmatpush1.bf16.msra.mxu0 %v7174
    %8048 = vmatprep.subr.bf16.mxu0 %v7179
    %8049 = vmatpush1.bf16.msra.mxu0 %v7178
    %8050 = vmatprep.subr.bf16.mxu0 %v7183
    %8051 = vmatpush1.bf16.msra.mxu0 %v7182
    %8052 = vmatprep.subr.bf16.mxu0 %v7187
    %8053 = vmatpush1.bf16.msra.mxu0 %v7186
    %8054 = vmatprep.subr.bf16.mxu0 %v7191
    %8055 = vmatpush1.bf16.msra.mxu0 %v7190
    %8056 = vmatprep.subr.bf16.mxu0 %v7195
    %8057 = vmatpush1.bf16.msra.mxu0 %v7194
    %8058 = vmatprep.subr.bf16.mxu0 %v7199
    %8059 = vmatpush1.bf16.msra.mxu0 %v7198
    %8060 = vmatprep.subr.bf16.mxu0 %v7203
    %8061 = vmatpush1.bf16.msra.mxu0 %v7202
    %8062 = vmatprep.subr.bf16.mxu0 %v7207
    %8063 = vmatpush1.bf16.msra.mxu0 %v7206
    %8064 = vmatprep.mubr.bf16.mxu0 %v4689
    %8065 = vmatmul.mubr.bf16.gmra.mrb[0].mxu0 %v4688
    %v8066 = vpop.f32.mrb[0].mxu0
    %v8067 = vadd.f32 %v8026, %v8066
    %v8068 = vpop.f32.mrb[0].mxu0
    %v8069 = vadd.f32 %v8028, %v8068
    %v8070 = vpop.f32.mrb[0].mxu0
    %v8071 = vpop.f32.mrb[0].mxu0
    %8072 = vdwg.mxu0
    %8073 = vmatprep.subr.bf16.mxu0 %v7211
    %8074 = vmatpush1.bf16.msra.mxu0 %v7210
    %8075 = vmatprep.subr.bf16.mxu0 %v7215
    %8076 = vmatpush1.bf16.msra.mxu0 %v7214
    %8077 = vmatprep.subr.bf16.mxu0 %v7219
    %8078 = vmatpush1.bf16.msra.mxu0 %v7218
    %8079 = vmatprep.subr.bf16.mxu0 %v7223
    %8080 = vmatpush1.bf16.msra.mxu0 %v7222
    %8081 = vmatprep.subr.bf16.mxu0 %v7227
    %8082 = vmatpush1.bf16.msra.mxu0 %v7226
    %8083 = vmatprep.subr.bf16.mxu0 %v7231
    %8084 = vmatpush1.bf16.msra.mxu0 %v7230
    %8085 = vmatprep.subr.bf16.mxu0 %v7235
    %8086 = vmatpush1.bf16.msra.mxu0 %v7234
    %8087 = vmatprep.subr.bf16.mxu0 %v7239
    %8088 = vmatpush1.bf16.msra.mxu0 %v7238
    %8089 = vmatprep.subr.bf16.mxu0 %v7243
    %8090 = vmatpush1.bf16.msra.mxu0 %v7242
    %8091 = vmatprep.subr.bf16.mxu0 %v7247
    %8092 = vmatpush1.bf16.msra.mxu0 %v7246
    %8093 = vmatprep.subr.bf16.mxu0 %v7251
    %8094 = vmatpush1.bf16.msra.mxu0 %v7250
    %8095 = vmatprep.subr.bf16.mxu0 %v7255
    %8096 = vmatpush1.bf16.msra.mxu0 %v7254
    %8097 = vmatprep.subr.bf16.mxu0 %v7259
    %8098 = vmatpush1.bf16.msra.mxu0 %v7258
    %8099 = vmatprep.subr.bf16.mxu0 %v7263
    %8100 = vmatpush1.bf16.msra.mxu0 %v7262
    %8101 = vmatprep.subr.bf16.mxu0 %v7267
    %8102 = vmatpush1.bf16.msra.mxu0 %v7266
    %8103 = vmatprep.subr.bf16.mxu0 %v7271
    %8104 = vmatpush1.bf16.msra.mxu0 %v7270
    %8105 = vmatprep.mubr.bf16.mxu0 %v4691
    %8106 = vmatmul.mubr.bf16.gmra.mrb[0].mxu0 %v4690
    %v8107 = vpop.f32.mrb[0].mxu0
    %v8108 = vadd.f32 %v8067, %v8107
    %v8109 = vpop.f32.mrb[0].mxu0
    %v8110 = vadd.f32 %v8069, %v8109
    %v8111 = vpop.f32.mrb[0].mxu0
    %v8112 = vpop.f32.mrb[0].mxu0
    %8113 = vdwg.mxu0
    %8114 = vmatprep.subr.bf16.mxu0 %v6765
    %8115 = vmatpush1.bf16.msra.mxu0 %v6764
    %8116 = vmatprep.subr.bf16.mxu0 %v6769
    %8117 = vmatpush1.bf16.msra.mxu0 %v6768
    %8118 = vmatprep.subr.bf16.mxu0 %v6773
    %8119 = vmatpush1.bf16.msra.mxu0 %v6772
    %8120 = vmatprep.subr.bf16.mxu0 %v6777
    %8121 = vmatpush1.bf16.msra.mxu0 %v6776
    %8122 = vmatprep.subr.bf16.mxu0 %v6781
    %8123 = vmatpush1.bf16.msra.mxu0 %v6780
    %8124 = vmatprep.subr.bf16.mxu0 %v6785
    %8125 = vmatpush1.bf16.msra.mxu0 %v6784
    %8126 = vmatprep.subr.bf16.mxu0 %v6789
    %8127 = vmatpush1.bf16.msra.mxu0 %v6788
    %8128 = vmatprep.subr.bf16.mxu0 %v6793
    %8129 = vmatpush1.bf16.msra.mxu0 %v6792
    %8130 = vmatprep.subr.bf16.mxu0 %v6797
    %8131 = vmatpush1.bf16.msra.mxu0 %v6796
    %8132 = vmatprep.subr.bf16.mxu0 %v6801
    %8133 = vmatpush1.bf16.msra.mxu0 %v6800
    %8134 = vmatprep.subr.bf16.mxu0 %v6805
    %8135 = vmatpush1.bf16.msra.mxu0 %v6804
    %8136 = vmatprep.subr.bf16.mxu0 %v6809
    %8137 = vmatpush1.bf16.msra.mxu0 %v6808
    %8138 = vmatprep.subr.bf16.mxu0 %v6813
    %8139 = vmatpush1.bf16.msra.mxu0 %v6812
    %8140 = vmatprep.subr.bf16.mxu0 %v6817
    %8141 = vmatpush1.bf16.msra.mxu0 %v6816
    %8142 = vmatprep.subr.bf16.mxu0 %v6821
    %8143 = vmatpush1.bf16.msra.mxu0 %v6820
    %8144 = vmatprep.subr.bf16.mxu0 %v6825
    %8145 = vmatpush1.bf16.msra.mxu0 %v6824
    %8146 = vmatprep.mubr.bf16.mxu0 %v4677
    %8147 = vmatmul.mubr.bf16.gmra.mrb[0].mxu0 %v4676
    %v8148 = vpop.f32.mrb[0].mxu0
    %v8149 = vadd.f32 %v5217, %v8148
    %v8150 = vpop.f32.mrb[0].mxu0
    %v8151 = vadd.f32 %v5221, %v8150
    %v8152 = vpop.f32.mrb[0].mxu0
    %v8153 = vpop.f32.mrb[0].mxu0
    %8154 = vdwg.mxu0
    %8155 = vmatprep.subr.bf16.mxu0 %v6829
    %8156 = vmatpush1.bf16.msra.mxu0 %v6828
    %8157 = vmatprep.subr.bf16.mxu0 %v6833
    %8158 = vmatpush1.bf16.msra.mxu0 %v6832
    %8159 = vmatprep.subr.bf16.mxu0 %v6837
    %8160 = vmatpush1.bf16.msra.mxu0 %v6836
    %8161 = vmatprep.subr.bf16.mxu0 %v6841
    %8162 = vmatpush1.bf16.msra.mxu0 %v6840
    %8163 = vmatprep.subr.bf16.mxu0 %v6845
    %8164 = vmatpush1.bf16.msra.mxu0 %v6844
    %8165 = vmatprep.subr.bf16.mxu0 %v6849
    %8166 = vmatpush1.bf16.msra.mxu0 %v6848
    %8167 = vmatprep.subr.bf16.mxu0 %v6853
    %8168 = vmatpush1.bf16.msra.mxu0 %v6852
    %8169 = vmatprep.subr.bf16.mxu0 %v6857
    %8170 = vmatpush1.bf16.msra.mxu0 %v6856
    %8171 = vmatprep.subr.bf16.mxu0 %v6861
    %8172 = vmatpush1.bf16.msra.mxu0 %v6860
    %8173 = vmatprep.subr.bf16.mxu0 %v6865
    %8174 = vmatpush1.bf16.msra.mxu0 %v6864
    %8175 = vmatprep.subr.bf16.mxu0 %v6869
    %8176 = vmatpush1.bf16.msra.mxu0 %v6868
    %8177 = vmatprep.subr.bf16.mxu0 %v6873
    %8178 = vmatpush1.bf16.msra.mxu0 %v6872
    %8179 = vmatprep.subr.bf16.mxu0 %v6877
    %8180 = vmatpush1.bf16.msra.mxu0 %v6876
    %8181 = vmatprep.subr.bf16.mxu0 %v6881
    %8182 = vmatpush1.bf16.msra.mxu0 %v6880
    %8183 = vmatprep.subr.bf16.mxu0 %v6885
    %8184 = vmatpush1.bf16.msra.mxu0 %v6884
    %8185 = vmatprep.subr.bf16.mxu0 %v6889
    %8186 = vmatpush1.bf16.msra.mxu0 %v6888
    %8187 = vmatprep.mubr.bf16.mxu0 %v4679
    %8188 = vmatmul.mubr.bf16.gmra.mrb[0].mxu0 %v4678
    %v8189 = vpop.f32.mrb[0].mxu0
    %v8190 = vadd.f32 %v8149, %v8189
    %v8191 = vpop.f32.mrb[0].mxu0
    %v8192 = vadd.f32 %v8151, %v8191
    %v8193 = vpop.f32.mrb[0].mxu0
    %v8194 = vpop.f32.mrb[0].mxu0
    %8195 = vdwg.mxu0
    %8196 = vmatprep.subr.bf16.mxu0 %v6893
    %8197 = vmatpush1.bf16.msra.mxu0 %v6892
    %8198 = vmatprep.subr.bf16.mxu0 %v6897
    %8199 = vmatpush1.bf16.msra.mxu0 %v6896
    %8200 = vmatprep.subr.bf16.mxu0 %v6901
    %8201 = vmatpush1.bf16.msra.mxu0 %v6900
    %8202 = vmatprep.subr.bf16.mxu0 %v6905
    %8203 = vmatpush1.bf16.msra.mxu0 %v6904
    %8204 = vmatprep.subr.bf16.mxu0 %v6909
    %8205 = vmatpush1.bf16.msra.mxu0 %v6908
    %8206 = vmatprep.subr.bf16.mxu0 %v6913
    %8207 = vmatpush1.bf16.msra.mxu0 %v6912
    %8208 = vmatprep.subr.bf16.mxu0 %v6917
    %8209 = vmatpush1.bf16.msra.mxu0 %v6916
    %8210 = vmatprep.subr.bf16.mxu0 %v6921
    %8211 = vmatpush1.bf16.msra.mxu0 %v6920
    %8212 = vmatprep.subr.bf16.mxu0 %v6925
    %8213 = vmatpush1.bf16.msra.mxu0 %v6924
    %8214 = vmatprep.subr.bf16.mxu0 %v6929
    %8215 = vmatpush1.bf16.msra.mxu0 %v6928
    %8216 = vmatprep.subr.bf16.mxu0 %v6933
    %8217 = vmatpush1.bf16.msra.mxu0 %v6932
    %8218 = vmatprep.subr.bf16.mxu0 %v6937
    %8219 = vmatpush1.bf16.msra.mxu0 %v6936
    %8220 = vmatprep.subr.bf16.mxu0 %v6941
    %8221 = vmatpush1.bf16.msra.mxu0 %v6940
    %8222 = vmatprep.subr.bf16.mxu0 %v6945
    %8223 = vmatpush1.bf16.msra.mxu0 %v6944
    %8224 = vmatprep.subr.bf16.mxu0 %v6949
    %8225 = vmatpush1.bf16.msra.mxu0 %v6948
    %8226 = vmatprep.subr.bf16.mxu0 %v6953
    %8227 = vmatpush1.bf16.msra.mxu0 %v6952
    %8228 = vmatprep.mubr.bf16.mxu0 %v4681
    %8229 = vmatmul.mubr.bf16.gmra.mrb[0].mxu0 %v4680
    %v8230 = vpop.f32.mrb[0].mxu0
    %v8231 = vadd.f32 %v8190, %v8230
    %v8232 = vpop.f32.mrb[0].mxu0
    %v8233 = vadd.f32 %v8192, %v8232
    %v8234 = vpop.f32.mrb[0].mxu0
    %v8235 = vpop.f32.mrb[0].mxu0
    %8236 = vdwg.mxu0
    %8237 = vmatprep.subr.bf16.mxu0 %v6957
    %8238 = vmatpush1.bf16.msra.mxu0 %v6956
    %8239 = vmatprep.subr.bf16.mxu0 %v6961
    %8240 = vmatpush1.bf16.msra.mxu0 %v6960
    %8241 = vmatprep.subr.bf16.mxu0 %v6965
    %8242 = vmatpush1.bf16.msra.mxu0 %v6964
    %8243 = vmatprep.subr.bf16.mxu0 %v6969
    %8244 = vmatpush1.bf16.msra.mxu0 %v6968
    %8245 = vmatprep.subr.bf16.mxu0 %v6973
    %8246 = vmatpush1.bf16.msra.mxu0 %v6972
    %8247 = vmatprep.subr.bf16.mxu0 %v6977
    %8248 = vmatpush1.bf16.msra.mxu0 %v6976
    %8249 = vmatprep.subr.bf16.mxu0 %v6981
    %8250 = vmatpush1.bf16.msra.mxu0 %v6980
    %8251 = vmatprep.subr.bf16.mxu0 %v6985
    %8252 = vmatpush1.bf16.msra.mxu0 %v6984
    %8253 = vmatprep.subr.bf16.mxu0 %v6989
    %8254 = vmatpush1.bf16.msra.mxu0 %v6988
    %8255 = vmatprep.subr.bf16.mxu0 %v6993
    %8256 = vmatpush1.bf16.msra.mxu0 %v6992
    %8257 = vmatprep.subr.bf16.mxu0 %v6997
    %8258 = vmatpush1.bf16.msra.mxu0 %v6996
    %8259 = vmatprep.subr.bf16.mxu0 %v7001
    %8260 = vmatpush1.bf16.msra.mxu0 %v7000
    %8261 = vmatprep.subr.bf16.mxu0 %v7005
    %8262 = vmatpush1.bf16.msra.mxu0 %v7004
    %8263 = vmatprep.subr.bf16.mxu0 %v7009
    %8264 = vmatpush1.bf16.msra.mxu0 %v7008
    %8265 = vmatprep.subr.bf16.mxu0 %v7013
    %8266 = vmatpush1.bf16.msra.mxu0 %v7012
    %8267 = vmatprep.subr.bf16.mxu0 %v7017
    %8268 = vmatpush1.bf16.msra.mxu0 %v7016
    %8269 = vmatprep.mubr.bf16.mxu0 %v4683
    %8270 = vmatmul.mubr.bf16.gmra.mrb[0].mxu0 %v4682
    %v8271 = vpop.f32.mrb[0].mxu0
    %v8272 = vadd.f32 %v8231, %v8271
    %v8273 = vpop.f32.mrb[0].mxu0
    %v8274 = vadd.f32 %v8233, %v8273
    %v8275 = vpop.f32.mrb[0].mxu0
    %v8276 = vpop.f32.mrb[0].mxu0
    %8277 = vdwg.mxu0
    %8278 = vmatprep.subr.bf16.mxu0 %v7021
    %8279 = vmatpush1.bf16.msra.mxu0 %v7020
    %8280 = vmatprep.subr.bf16.mxu0 %v7025
    %8281 = vmatpush1.bf16.msra.mxu0 %v7024
    %8282 = vmatprep.subr.bf16.mxu0 %v7029
    %8283 = vmatpush1.bf16.msra.mxu0 %v7028
    %8284 = vmatprep.subr.bf16.mxu0 %v7033
    %8285 = vmatpush1.bf16.msra.mxu0 %v7032
    %8286 = vmatprep.subr.bf16.mxu0 %v7037
    %8287 = vmatpush1.bf16.msra.mxu0 %v7036
    %8288 = vmatprep.subr.bf16.mxu0 %v7041
    %8289 = vmatpush1.bf16.msra.mxu0 %v7040
    %8290 = vmatprep.subr.bf16.mxu0 %v7045
    %8291 = vmatpush1.bf16.msra.mxu0 %v7044
    %8292 = vmatprep.subr.bf16.mxu0 %v7049
    %8293 = vmatpush1.bf16.msra.mxu0 %v7048
    %8294 = vmatprep.subr.bf16.mxu0 %v7053
    %8295 = vmatpush1.bf16.msra.mxu0 %v7052
    %8296 = vmatprep.subr.bf16.mxu0 %v7057
    %8297 = vmatpush1.bf16.msra.mxu0 %v7056
    %8298 = vmatprep.subr.bf16.mxu0 %v7061
    %8299 = vmatpush1.bf16.msra.mxu0 %v7060
    %8300 = vmatprep.subr.bf16.mxu0 %v7065
    %8301 = vmatpush1.bf16.msra.mxu0 %v7064
    %8302 = vmatprep.subr.bf16.mxu0 %v7069
    %8303 = vmatpush1.bf16.msra.mxu0 %v7068
    %8304 = vmatprep.subr.bf16.mxu0 %v7073
    %8305 = vmatpush1.bf16.msra.mxu0 %v7072
    %8306 = vmatprep.subr.bf16.mxu0 %v7077
    %8307 = vmatpush1.bf16.msra.mxu0 %v7076
    %8308 = vmatprep.subr.bf16.mxu0 %v7081
    %8309 = vmatpush1.bf16.msra.mxu0 %v7080
    %8310 = vmatprep.mubr.bf16.mxu0 %v4685
    %8311 = vmatmul.mubr.bf16.gmra.mrb[0].mxu0 %v4684
    %v8312 = vpop.f32.mrb[0].mxu0
    %v8313 = vadd.f32 %v8272, %v8312
    %v8314 = vpop.f32.mrb[0].mxu0
    %v8315 = vadd.f32 %v8274, %v8314
    %v8316 = vpop.f32.mrb[0].mxu0
    %v8317 = vpop.f32.mrb[0].mxu0
    %8318 = vdwg.mxu0
    %8319 = vmatprep.subr.bf16.mxu0 %v7085
    %8320 = vmatpush1.bf16.msra.mxu0 %v7084
    %8321 = vmatprep.subr.bf16.mxu0 %v7089
    %8322 = vmatpush1.bf16.msra.mxu0 %v7088
    %8323 = vmatprep.subr.bf16.mxu0 %v7093
    %8324 = vmatpush1.bf16.msra.mxu0 %v7092
    %8325 = vmatprep.subr.bf16.mxu0 %v7097
    %8326 = vmatpush1.bf16.msra.mxu0 %v7096
    %8327 = vmatprep.subr.bf16.mxu0 %v7101
    %8328 = vmatpush1.bf16.msra.mxu0 %v7100
    %8329 = vmatprep.subr.bf16.mxu0 %v7105
    %8330 = vmatpush1.bf16.msra.mxu0 %v7104
    %8331 = vmatprep.subr.bf16.mxu0 %v7109
    %8332 = vmatpush1.bf16.msra.mxu0 %v7108
    %8333 = vmatprep.subr.bf16.mxu0 %v7113
    %8334 = vmatpush1.bf16.msra.mxu0 %v7112
    %8335 = vmatprep.subr.bf16.mxu0 %v7117
    %8336 = vmatpush1.bf16.msra.mxu0 %v7116
    %8337 = vmatprep.subr.bf16.mxu0 %v7121
    %8338 = vmatpush1.bf16.msra.mxu0 %v7120
    %8339 = vmatprep.subr.bf16.mxu0 %v7125
    %8340 = vmatpush1.bf16.msra.mxu0 %v7124
    %8341 = vmatprep.subr.bf16.mxu0 %v7129
    %8342 = vmatpush1.bf16.msra.mxu0 %v7128
    %8343 = vmatprep.subr.bf16.mxu0 %v7133
    %8344 = vmatpush1.bf16.msra.mxu0 %v7132
    %8345 = vmatprep.subr.bf16.mxu0 %v7137
    %8346 = vmatpush1.bf16.msra.mxu0 %v7136
    %8347 = vmatprep.subr.bf16.mxu0 %v7141
    %8348 = vmatpush1.bf16.msra.mxu0 %v7140
    %8349 = vmatprep.subr.bf16.mxu0 %v7145
    %8350 = vmatpush1.bf16.msra.mxu0 %v7144
    %8351 = vmatprep.mubr.bf16.mxu0 %v4687
    %8352 = vmatmul.mubr.bf16.gmra.mrb[0].mxu0 %v4686
    %v8353 = vpop.f32.mrb[0].mxu0
    %v8354 = vadd.f32 %v8313, %v8353
    %v8355 = vpop.f32.mrb[0].mxu0
    %v8356 = vadd.f32 %v8315, %v8355
    %v8357 = vpop.f32.mrb[0].mxu0
    %v8358 = vpop.f32.mrb[0].mxu0
    %8359 = vdwg.mxu0
    %8360 = vmatprep.subr.bf16.mxu0 %v7149
    %8361 = vmatpush1.bf16.msra.mxu0 %v7148
    %8362 = vmatprep.subr.bf16.mxu0 %v7153
    %8363 = vmatpush1.bf16.msra.mxu0 %v7152
    %8364 = vmatprep.subr.bf16.mxu0 %v7157
    %8365 = vmatpush1.bf16.msra.mxu0 %v7156
    %8366 = vmatprep.subr.bf16.mxu0 %v7161
    %8367 = vmatpush1.bf16.msra.mxu0 %v7160
    %8368 = vmatprep.subr.bf16.mxu0 %v7165
    %8369 = vmatpush1.bf16.msra.mxu0 %v7164
    %8370 = vmatprep.subr.bf16.mxu0 %v7169
    %8371 = vmatpush1.bf16.msra.mxu0 %v7168
    %8372 = vmatprep.subr.bf16.mxu0 %v7173
    %8373 = vmatpush1.bf16.msra.mxu0 %v7172
    %8374 = vmatprep.subr.bf16.mxu0 %v7177
    %8375 = vmatpush1.bf16.msra.mxu0 %v7176
    %8376 = vmatprep.subr.bf16.mxu0 %v7181
    %8377 = vmatpush1.bf16.msra.mxu0 %v7180
    %8378 = vmatprep.subr.bf16.mxu0 %v7185
    %8379 = vmatpush1.bf16.msra.mxu0 %v7184
    %8380 = vmatprep.subr.bf16.mxu0 %v7189
    %8381 = vmatpush1.bf16.msra.mxu0 %v7188
    %8382 = vmatprep.subr.bf16.mxu0 %v7193
    %8383 = vmatpush1.bf16.msra.mxu0 %v7192
    %8384 = vmatprep.subr.bf16.mxu0 %v7197
    %8385 = vmatpush1.bf16.msra.mxu0 %v7196
    %8386 = vmatprep.subr.bf16.mxu0 %v7201
    %8387 = vmatpush1.bf16.msra.mxu0 %v7200
    %8388 = vmatprep.subr.bf16.mxu0 %v7205
    %8389 = vmatpush1.bf16.msra.mxu0 %v7204
    %8390 = vmatprep.subr.bf16.mxu0 %v7209
    %8391 = vmatpush1.bf16.msra.mxu0 %v7208
    %8392 = vmatprep.mubr.bf16.mxu0 %v4689
    %8393 = vmatmul.mubr.bf16.gmra.mrb[0].mxu0 %v4688
    %v8394 = vpop.f32.mrb[0].mxu0
    %v8395 = vadd.f32 %v8354, %v8394
    %v8396 = vpop.f32.mrb[0].mxu0
    %v8397 = vadd.f32 %v8356, %v8396
    %v8398 = vpop.f32.mrb[0].mxu0
    %v8399 = vpop.f32.mrb[0].mxu0
    %8400 = vdwg.mxu0
    %8401 = vmatprep.subr.bf16.mxu0 %v7213
    %8402 = vmatpush1.bf16.msra.mxu0 %v7212
    %8403 = vmatprep.subr.bf16.mxu0 %v7217
    %8404 = vmatpush1.bf16.msra.mxu0 %v7216
    %8405 = vmatprep.subr.bf16.mxu0 %v7221
    %8406 = vmatpush1.bf16.msra.mxu0 %v7220
    %8407 = vmatprep.subr.bf16.mxu0 %v7225
    %8408 = vmatpush1.bf16.msra.mxu0 %v7224
    %8409 = vmatprep.subr.bf16.mxu0 %v7229
    %8410 = vmatpush1.bf16.msra.mxu0 %v7228
    %8411 = vmatprep.subr.bf16.mxu0 %v7233
    %8412 = vmatpush1.bf16.msra.mxu0 %v7232
    %8413 = vmatprep.subr.bf16.mxu0 %v7237
    %8414 = vmatpush1.bf16.msra.mxu0 %v7236
    %8415 = vmatprep.subr.bf16.mxu0 %v7241
    %8416 = vmatpush1.bf16.msra.mxu0 %v7240
    %8417 = vmatprep.subr.bf16.mxu0 %v7245
    %8418 = vmatpush1.bf16.msra.mxu0 %v7244
    %8419 = vmatprep.subr.bf16.mxu0 %v7249
    %8420 = vmatpush1.bf16.msra.mxu0 %v7248
    %8421 = vmatprep.subr.bf16.mxu0 %v7253
    %8422 = vmatpush1.bf16.msra.mxu0 %v7252
    %8423 = vmatprep.subr.bf16.mxu0 %v7257
    %8424 = vmatpush1.bf16.msra.mxu0 %v7256
    %8425 = vmatprep.subr.bf16.mxu0 %v7261
    %8426 = vmatpush1.bf16.msra.mxu0 %v7260
    %8427 = vmatprep.subr.bf16.mxu0 %v7265
    %8428 = vmatpush1.bf16.msra.mxu0 %v7264
    %8429 = vmatprep.subr.bf16.mxu0 %v7269
    %8430 = vmatpush1.bf16.msra.mxu0 %v7268
    %8431 = vmatprep.subr.bf16.mxu0 %v7273
    %8432 = vmatpush1.bf16.msra.mxu0 %v7272
    %8433 = vmatprep.mubr.bf16.mxu0 %v4691
    %8434 = vmatmul.mubr.bf16.gmra.mrb[0].mxu0 %v4690
    %v8435 = vpop.f32.mrb[0].mxu0
    %v8436 = vadd.f32 %v8395, %v8435
    %v8437 = vpop.f32.mrb[0].mxu0
    %v8438 = vadd.f32 %v8397, %v8437
    %v8439 = vpop.f32.mrb[0].mxu0
    %v8440 = vpop.f32.mrb[0].mxu0
    %8441 = vdwg.mxu0
    %v8446 = vcombine.low %v8108, %v8110
    %v8447 = vcombine.low %v8436, %v8438
    %v8449 = vunpack.c.l.s4 1983009808
    %v8450 = vunpack.c.0.s8 %v8449
    %v8451 = vlaneseq
    %v8452 = vshrl.u32 %v8451, 7
    %v8453 = vsub.s32 %v8450, %v8452
    %v8454 = vrot.slane %v8446, %v8453
    %v8456 = vunpack.c.l.s4 1983009808
    %v8457 = vunpack.c.0.s8 %v8456
    %v8458 = vlaneseq
    %v8459 = vshrl.u32 %v8458, 7
    %v8460 = vsub.s32 %v8457, %v8459
    %v8461 = vrot.slane %v8447, %v8460
    %v8462 = vcombine.low %v8454, %v8461
    %8464 = vst [vmem:[%s11] sm:$0xff] %v8462
    %v8465 = vld [vmem:[#allocation14] sm:$0xf]
    %v8466 = vld [vmem:[#allocation14 + $0x4] sm:$0xf]
    %v8467 = vld [vmem:[#allocation14 + $0x8] sm:$0xf]
    %v8468 = vld [vmem:[#allocation14 + $0xc] sm:$0xf]
    %v8469 = vld [vmem:[#allocation14 + $0x10] sm:$0xf]
    %v8470 = vld [vmem:[#allocation14 + $0x14] sm:$0xf]
    %v8471 = vld [vmem:[#allocation14 + $0x18] sm:$0xf]
    %v8472 = vld [vmem:[#allocation14 + $0x1c] sm:$0xf]
    %v8473 = vld [vmem:[#allocation14 + $0x20] sm:$0xf]
    %v8474 = vld [vmem:[#allocation14 + $0x24] sm:$0xf]
    %v8475 = vld [vmem:[#allocation14 + $0x28] sm:$0xf]
    %v8476 = vld [vmem:[#allocation14 + $0x2c] sm:$0xf]
    %v8477 = vld [vmem:[#allocation14 + $0x30] sm:$0xf]
    %v8478 = vld [vmem:[#allocation14 + $0x34] sm:$0xf]
    %v8479 = vld [vmem:[#allocation14 + $0x38] sm:$0xf]
    %v8480 = vld [vmem:[#allocation14 + $0x3c] sm:$0xf]
    %v8481 = vld [vmem:[#allocation14 + $0x40] sm:$0xf]
    %v8482 = vld [vmem:[#allocation14 + $0x44] sm:$0xf]
    %v8483 = vld [vmem:[#allocation14 + $0x48] sm:$0xf]
    %v8484 = vld [vmem:[#allocation14 + $0x4c] sm:$0xf]
    %v8485 = vld [vmem:[#allocation14 + $0x50] sm:$0xf]
    %v8486 = vld [vmem:[#allocation14 + $0x54] sm:$0xf]
    %v8487 = vld [vmem:[#allocation14 + $0x58] sm:$0xf]
    %v8488 = vld [vmem:[#allocation14 + $0x5c] sm:$0xf]
    %v8489 = vld [vmem:[#allocation14 + $0x60] sm:$0xf]
    %v8490 = vld [vmem:[#allocation14 + $0x64] sm:$0xf]
    %v8491 = vld [vmem:[#allocation14 + $0x68] sm:$0xf]
    %v8492 = vld [vmem:[#allocation14 + $0x6c] sm:$0xf]
    %v8493 = vld [vmem:[#allocation14 + $0x70] sm:$0xf]
    %v8494 = vld [vmem:[#allocation14 + $0x74] sm:$0xf]
    %v8495 = vld [vmem:[#allocation14 + $0x78] sm:$0xf]
    %v8496 = vld [vmem:[#allocation14 + $0x7c] sm:$0xf]
    %v8497 = vld [vmem:[#allocation14 + $0x80] sm:$0xf]
    %v8498 = vld [vmem:[#allocation14 + $0x84] sm:$0xf]
    %v8499 = vld [vmem:[#allocation14 + $0x88] sm:$0xf]
    %v8500 = vld [vmem:[#allocation14 + $0x8c] sm:$0xf]
    %v8501 = vld [vmem:[#allocation14 + $0x90] sm:$0xf]
    %v8502 = vld [vmem:[#allocation14 + $0x94] sm:$0xf]
    %v8503 = vld [vmem:[#allocation14 + $0x98] sm:$0xf]
    %v8504 = vld [vmem:[#allocation14 + $0x9c] sm:$0xf]
    %v8505 = vld [vmem:[#allocation14 + $0xa0] sm:$0xf]
    %v8506 = vld [vmem:[#allocation14 + $0xa4] sm:$0xf]
    %v8507 = vld [vmem:[#allocation14 + $0xa8] sm:$0xf]
    %v8508 = vld [vmem:[#allocation14 + $0xac] sm:$0xf]
    %v8509 = vld [vmem:[#allocation14 + $0xb0] sm:$0xf]
    %v8510 = vld [vmem:[#allocation14 + $0xb4] sm:$0xf]
    %v8511 = vld [vmem:[#allocation14 + $0xb8] sm:$0xf]
    %v8512 = vld [vmem:[#allocation14 + $0xbc] sm:$0xf]
    %v8513 = vld [vmem:[#allocation14 + $0xc0] sm:$0xf]
    %v8514 = vld [vmem:[#allocation14 + $0xc4] sm:$0xf]
    %v8515 = vld [vmem:[#allocation14 + $0xc8] sm:$0xf]
    %v8516 = vld [vmem:[#allocation14 + $0xcc] sm:$0xf]
    %v8517 = vld [vmem:[#allocation14 + $0xd0] sm:$0xf]
    %v8518 = vld [vmem:[#allocation14 + $0xd4] sm:$0xf]
    %v8519 = vld [vmem:[#allocation14 + $0xd8] sm:$0xf]
    %v8520 = vld [vmem:[#allocation14 + $0xdc] sm:$0xf]
    %v8521 = vld [vmem:[#allocation14 + $0xe0] sm:$0xf]
    %v8522 = vld [vmem:[#allocation14 + $0xe4] sm:$0xf]
    %v8523 = vld [vmem:[#allocation14 + $0xe8] sm:$0xf]
    %v8524 = vld [vmem:[#allocation14 + $0xec] sm:$0xf]
    %v8525 = vld [vmem:[#allocation14 + $0xf0] sm:$0xf]
    %v8526 = vld [vmem:[#allocation14 + $0xf4] sm:$0xf]
    %v8527 = vld [vmem:[#allocation14 + $0xf8] sm:$0xf]
    %v8528 = vld [vmem:[#allocation14 + $0xfc] sm:$0xf]
    %v8529 = vld [vmem:[#allocation16] sm:$0x1]
    %v8531 = vlaneseq
    %v8532 = vshrl.u32 %v8531, 7
    %v8533 = vsub.s32 0, %v8532
    %v8534 = vrot.slane %v8529, %v8533
    %v8600 = vunpack.c.l.b16 %v8465
    %v8601 = vunpack.c.l.b16 %v8466
    %v8602 = vunpack.c.l.b16 %v8467
    %v8603 = vunpack.c.l.b16 %v8468
    %v8604 = vunpack.c.l.b16 %v8469
    %v8605 = vunpack.c.l.b16 %v8470
    %v8606 = vunpack.c.l.b16 %v8471
    %v8607 = vunpack.c.l.b16 %v8472
    %v8608 = vunpack.c.l.b16 %v8473
    %v8609 = vunpack.c.l.b16 %v8474
    %v8610 = vunpack.c.l.b16 %v8475
    %v8611 = vunpack.c.l.b16 %v8476
    %v8612 = vunpack.c.l.b16 %v8477
    %v8613 = vunpack.c.l.b16 %v8478
    %v8614 = vunpack.c.l.b16 %v8479
    %v8615 = vunpack.c.l.b16 %v8480
    %v8616 = vunpack.c.l.b16 %v8481
    %v8617 = vunpack.c.l.b16 %v8482
    %v8618 = vunpack.c.l.b16 %v8483
    %v8619 = vunpack.c.l.b16 %v8484
    %v8620 = vunpack.c.l.b16 %v8485
    %v8621 = vunpack.c.l.b16 %v8486
    %v8622 = vunpack.c.l.b16 %v8487
    %v8623 = vunpack.c.l.b16 %v8488
    %v8624 = vunpack.c.l.b16 %v8489
    %v8625 = vunpack.c.l.b16 %v8490
    %v8626 = vunpack.c.l.b16 %v8491
    %v8627 = vunpack.c.l.b16 %v8492
    %v8628 = vunpack.c.l.b16 %v8493
    %v8629 = vunpack.c.l.b16 %v8494
    %v8630 = vunpack.c.l.b16 %v8495
    %v8631 = vunpack.c.l.b16 %v8496
    %v8632 = vunpack.c.l.b16 %v8497
    %v8633 = vunpack.c.l.b16 %v8498
    %v8634 = vunpack.c.l.b16 %v8499
    %v8635 = vunpack.c.l.b16 %v8500
    %v8636 = vunpack.c.l.b16 %v8501
    %v8637 = vunpack.c.l.b16 %v8502
    %v8638 = vunpack.c.l.b16 %v8503
    %v8639 = vunpack.c.l.b16 %v8504
    %v8640 = vunpack.c.l.b16 %v8505
    %v8641 = vunpack.c.l.b16 %v8506
    %v8642 = vunpack.c.l.b16 %v8507
    %v8643 = vunpack.c.l.b16 %v8508
    %v8644 = vunpack.c.l.b16 %v8509
    %v8645 = vunpack.c.l.b16 %v8510
    %v8646 = vunpack.c.l.b16 %v8511
    %v8647 = vunpack.c.l.b16 %v8512
    %v8648 = vunpack.c.l.b16 %v8513
    %v8649 = vunpack.c.l.b16 %v8514
    %v8650 = vunpack.c.l.b16 %v8515
    %v8651 = vunpack.c.l.b16 %v8516
    %v8652 = vunpack.c.l.b16 %v8517
    %v8653 = vunpack.c.l.b16 %v8518
    %v8654 = vunpack.c.l.b16 %v8519
    %v8655 = vunpack.c.l.b16 %v8520
    %v8656 = vunpack.c.l.b16 %v8521
    %v8657 = vunpack.c.l.b16 %v8522
    %v8658 = vunpack.c.l.b16 %v8523
    %v8659 = vunpack.c.l.b16 %v8524
    %v8660 = vunpack.c.l.b16 %v8525
    %v8661 = vunpack.c.l.b16 %v8526
    %v8662 = vunpack.c.l.b16 %v8527
    %v8663 = vunpack.c.l.b16 %v8528
    %v8664 = vpack.c.b16 %v8601, %v8600
    %v8665 = vpack.c.b16 %v8603, %v8602
    %v8666 = vpack.c.b16 %v8605, %v8604
    %v8667 = vpack.c.b16 %v8607, %v8606
    %v8668 = vpack.c.b16 %v8609, %v8608
    %v8669 = vpack.c.b16 %v8611, %v8610
    %v8670 = vpack.c.b16 %v8613, %v8612
    %v8671 = vpack.c.b16 %v8615, %v8614
    %v8672 = vpack.c.b16 %v8617, %v8616
    %v8673 = vpack.c.b16 %v8619, %v8618
    %v8674 = vpack.c.b16 %v8621, %v8620
    %v8675 = vpack.c.b16 %v8623, %v8622
    %v8676 = vpack.c.b16 %v8625, %v8624
    %v8677 = vpack.c.b16 %v8627, %v8626
    %v8678 = vpack.c.b16 %v8629, %v8628
    %v8679 = vpack.c.b16 %v8631, %v8630
    %v8680 = vpack.c.b16 %v8633, %v8632
    %v8681 = vpack.c.b16 %v8635, %v8634
    %v8682 = vpack.c.b16 %v8637, %v8636
    %v8683 = vpack.c.b16 %v8639, %v8638
    %v8684 = vpack.c.b16 %v8641, %v8640
    %v8685 = vpack.c.b16 %v8643, %v8642
    %v8686 = vpack.c.b16 %v8645, %v8644
    %v8687 = vpack.c.b16 %v8647, %v8646
    %v8688 = vpack.c.b16 %v8649, %v8648
    %v8689 = vpack.c.b16 %v8651, %v8650
    %v8690 = vpack.c.b16 %v8653, %v8652
    %v8691 = vpack.c.b16 %v8655, %v8654
    %v8692 = vpack.c.b16 %v8657, %v8656
    %v8693 = vpack.c.b16 %v8659, %v8658
    %v8694 = vpack.c.b16 %v8661, %v8660
    %v8695 = vpack.c.b16 %v8663, %v8662
    %8728 = vmatprep.subr.bf16.mxu0 0
    %8729 = vmatpush1.bf16.msra.mxu0 %v8664
    %8730 = vmatprep.subr.bf16.mxu0 0
    %8731 = vmatpush1.bf16.msra.mxu0 %v8665
    %8732 = vmatprep.subr.bf16.mxu0 0
    %8733 = vmatpush1.bf16.msra.mxu0 %v8666
    %8734 = vmatprep.subr.bf16.mxu0 0
    %8735 = vmatpush1.bf16.msra.mxu0 %v8667
    %8736 = vmatprep.subr.bf16.mxu0 0
    %8737 = vmatpush1.bf16.msra.mxu0 %v8668
    %8738 = vmatprep.subr.bf16.mxu0 0
    %8739 = vmatpush1.bf16.msra.mxu0 %v8669
    %8740 = vmatprep.subr.bf16.mxu0 0
    %8741 = vmatpush1.bf16.msra.mxu0 %v8670
    %8742 = vmatprep.subr.bf16.mxu0 0
    %8743 = vmatpush1.bf16.msra.mxu0 %v8671
    %8744 = vmatprep.subr.bf16.mxu0 0
    %8745 = vmatpush1.bf16.msra.mxu0 %v8672
    %8746 = vmatprep.subr.bf16.mxu0 0
    %8747 = vmatpush1.bf16.msra.mxu0 %v8673
    %8748 = vmatprep.subr.bf16.mxu0 0
    %8749 = vmatpush1.bf16.msra.mxu0 %v8674
    %8750 = vmatprep.subr.bf16.mxu0 0
    %8751 = vmatpush1.bf16.msra.mxu0 %v8675
    %8752 = vmatprep.subr.bf16.mxu0 0
    %8753 = vmatpush1.bf16.msra.mxu0 %v8676
    %8754 = vmatprep.subr.bf16.mxu0 0
    %8755 = vmatpush1.bf16.msra.mxu0 %v8677
    %8756 = vmatprep.subr.bf16.mxu0 0
    %8757 = vmatpush1.bf16.msra.mxu0 %v8678
    %8758 = vmatprep.subr.bf16.mxu0 0
    %8759 = vmatpush1.bf16.msra.mxu0 %v8679
    %8760 = vmatprep.mubr.bf16.mxu0 %v391
    %8761 = vmatmul.mubr.bf16.gmra.mrb[0].mxu0 %v390
    %v8762 = vpop.f32.mrb[0].mxu0
    %v8763 = vadd.f32 %v8534, %v8762
    %v8764 = vpop.f32.mrb[0].mxu0
    %v8765 = vpop.f32.mrb[0].mxu0
    %v8766 = vpop.f32.mrb[0].mxu0
    %8767 = vdwg.mxu0
    %8768 = vmatprep.subr.bf16.mxu0 0
    %8769 = vmatpush1.bf16.msra.mxu0 %v8680
    %8770 = vmatprep.subr.bf16.mxu0 0
    %8771 = vmatpush1.bf16.msra.mxu0 %v8681
    %8772 = vmatprep.subr.bf16.mxu0 0
    %8773 = vmatpush1.bf16.msra.mxu0 %v8682
    %8774 = vmatprep.subr.bf16.mxu0 0
    %8775 = vmatpush1.bf16.msra.mxu0 %v8683
    %8776 = vmatprep.subr.bf16.mxu0 0
    %8777 = vmatpush1.bf16.msra.mxu0 %v8684
    %8778 = vmatprep.subr.bf16.mxu0 0
    %8779 = vmatpush1.bf16.msra.mxu0 %v8685
    %8780 = vmatprep.subr.bf16.mxu0 0
    %8781 = vmatpush1.bf16.msra.mxu0 %v8686
    %8782 = vmatprep.subr.bf16.mxu0 0
    %8783 = vmatpush1.bf16.msra.mxu0 %v8687
    %8784 = vmatprep.subr.bf16.mxu0 0
    %8785 = vmatpush1.bf16.msra.mxu0 %v8688
    %8786 = vmatprep.subr.bf16.mxu0 0
    %8787 = vmatpush1.bf16.msra.mxu0 %v8689
    %8788 = vmatprep.subr.bf16.mxu0 0
    %8789 = vmatpush1.bf16.msra.mxu0 %v8690
    %8790 = vmatprep.subr.bf16.mxu0 0
    %8791 = vmatpush1.bf16.msra.mxu0 %v8691
    %8792 = vmatprep.subr.bf16.mxu0 0
    %8793 = vmatpush1.bf16.msra.mxu0 %v8692
    %8794 = vmatprep.subr.bf16.mxu0 0
    %8795 = vmatpush1.bf16.msra.mxu0 %v8693
    %8796 = vmatprep.subr.bf16.mxu0 0
    %8797 = vmatpush1.bf16.msra.mxu0 %v8694
    %8798 = vmatprep.subr.bf16.mxu0 0
    %8799 = vmatpush1.bf16.msra.mxu0 %v8695
    %8800 = vmatprep.mubr.bf16.mxu0 %v393
    %8801 = vmatmul.mubr.bf16.gmra.mrb[0].mxu0 %v392
    %v8802 = vpop.f32.mrb[0].mxu0
    %v8803 = vadd.f32 %v8763, %v8802
    %v8804 = vpop.f32.mrb[0].mxu0
    %v8805 = vpop.f32.mrb[0].mxu0
    %v8806 = vpop.f32.mrb[0].mxu0
    %8807 = vdwg.mxu0
    %8808 = vst [vmem:[#allocation17] sm:$0x3] %v8803
    // Predicated region
    $region78: #{baseline_train_forward.1} parent=1 // pred_check
      _
    $region79: #{baseline_train_forward.1} parent=1 // pred_check_branch
      %8810 = sbr.rel (0) target = $region81
    $region80: #{baseline_train_forward.1} parent=1 // pred_region
      _
    $region81: #{baseline_train_forward.1} parent=1 // pred_fallthru
      _
    // Predicated region
    $region82: #{baseline_train_forward.1} parent=1 // pred_check
      _
    $region83: #{baseline_train_forward.1} parent=1 // pred_check_branch
      %8812 = sbr.rel (0) target = $region85
    $region84: #{baseline_train_forward.1} parent=1 // pred_region
      _
    $region85: #{baseline_train_forward.1} parent=1 // pred_fallthru
      _
    // Predicated region
    $region86: #{baseline_train_forward.1} parent=1 // pred_check
      _
    $region87: #{baseline_train_forward.1} parent=1 // pred_check_branch
      %8814 = sbr.rel (0) target = $region89
    $region88: #{baseline_train_forward.1} parent=1 // pred_region
      %s8816 = ssub.s32 32, 32
      %8817 = vsyncadd [#allocation4], %s8816
      %s8819 = sshll.u32 [#allocation17], 4
      %s8820 = int_to_ptr.vmem [resolvable:$true] %s8819
      %8822 = dma.vmem_to_hbm [thread:$0]  %s8820, 32, %s12, [#allocation4]
    $region89: #{baseline_train_forward.1} parent=1 // pred_fallthru
      _
    // Predicated region
    $region90: #{baseline_train_forward.1} parent=1 // pred_check
      _
    $region91: #{baseline_train_forward.1} parent=1 // pred_check_branch
      %8824 = sbr.rel (0) target = $region93
    $region92: #{baseline_train_forward.1} parent=1 // pred_region
      _
    $region93: #{baseline_train_forward.1} parent=1 // pred_fallthru
      _
    // Predicated region
    $region94: #{baseline_train_forward.1} parent=1 // pred_check
      _
    $region95: #{baseline_train_forward.1} parent=1 // pred_check_branch
      %8826 = sbr.rel (0) target = $region97
    $region96: #{baseline_train_forward.1} parent=1 // pred_region
      _
    $region97: #{baseline_train_forward.1} parent=1 // pred_fallthru
      _
    // Predicated region
    $region98: #{baseline_train_forward.1} parent=1 // pred_check
      _
    $region99: #{baseline_train_forward.1} parent=1 // pred_check_branch
      %8828 = sbr.rel (0) target = $region101
    $region100: #{baseline_train_forward.1} parent=1 // pred_region
      %8829 = dma.done [#allocation4], 32
    $region101: #{baseline_train_forward.1} parent=1 // pred_fallthru
      _
    %8830 = vsyncpa [#allocation3], 1
    %8831 = vsyncpa [#allocation6], 1
    %8832 = vsyncpa [#allocation9], 1
    %8833 = vsyncpa [#allocation12], 1
    %8834 = vsyncpa [#allocation15], 1
    %8835 = vsyncpa [#allocation4], 1

</llo_original>
